<compile_context>
chip_gen: v5e
topology: v5e:2x2
jax: 0.10.0
libtpu: 0.0.40
codegen_flags: <defaults>
</compile_context>

<pallas_src>
import functools

import jax
import jax.numpy as jnp
import numpy as np
from jax import lax
from jax.experimental import pallas as pl
from jax.experimental.pallas import tpu as pltpu


def _fused_head_kernel(x_ref, w0_ref, w1_ref, w2_ref, b0_ref, b1_ref, b2_ref,
                       o_ref, pad_ref, col_ref, *, H, W, C):
    """Fused conv3x3+ReLU -> conv3x3+ReLU -> conv3x3 for one batch image.

    x_ref:   (1, H, W, C)      NHWC input tile (VMEM)
    w*_ref:  (9*C, Cout)       flat weights, rows ordered (dy, dx, cin) (VMEM)
    b*_ref:  (1, Cout)         biases, f32 (VMEM)
    o_ref:   (1, H*W, Cout2)   output tile (VMEM)
    pad_ref: (H+2, W+2, C)     f32 scratch, zero halo + activation interior
    col_ref: (H*W, 9*C)        im2col scratch in the matmul compute dtype
    """

    def im2col():
        # Scatter the 9 shifted (H, W, C) views of the padded activation into
        # the (H*W, 9*C) im2col scratch (tap-major columns, matching w layout).
        for dy in range(3):
            for dx in range(3):
                tap = dy * 3 + dx
                patch = pad_ref[dy:dy + H, dx:dx + W, :].reshape(H * W, C)
                col_ref[:, tap * C:(tap + 1) * C] = patch.astype(col_ref.dtype)

    def conv(w_ref, b_ref):
        im2col()
        y = jnp.dot(col_ref[...], w_ref[...],
                    preferred_element_type=jnp.float32)   # single K=9*C matmul
        return y + b_ref[...]                             # bias add in f32

    # In-kernel zero padding: memset the halo buffer once per image; only the
    # interior is rewritten between layers (the 1-pixel border stays zero).
    pad_ref[...] = jnp.zeros_like(pad_ref)

    # Layer 0: conv + ReLU
    pad_ref[1:H + 1, 1:W + 1, :] = x_ref[0]
    h = jnp.maximum(conv(w0_ref, b0_ref), 0.0)

    # Layer 1: conv + ReLU (input stays in VMEM)
    pad_ref[1:H + 1, 1:W + 1, :] = h.reshape(H, W, C)
    h = jnp.maximum(conv(w1_ref, b1_ref), 0.0)

    # Layer 2: conv (no ReLU) -> the kernel's only HBM write
    pad_ref[1:H + 1, 1:W + 1, :] = h.reshape(H, W, C)
    o_ref[0] = conv(w2_ref, b2_ref).astype(o_ref.dtype)


def fused_regression_head(x_nhwc, w0, w1, w2, b0, b1, b2):
    """x_nhwc: (N, H, W, C).  Returns (N, H*W, n_anchors*2) in f32."""
    N, H, W, C = x_nhwc.shape
    Cout = w2.shape[-1]
    compute_dtype = w0.dtype

    kernel = functools.partial(_fused_head_kernel, H=H, W=W, C=C)

    return pl.pallas_call(
        kernel,
        out_shape=jax.ShapeDtypeStruct((N, H * W, Cout), jnp.float32),
        grid_spec=pltpu.PrefetchScalarGridSpec(
            num_scalar_prefetch=0,
            grid=(N,),
            in_specs=[
                pl.BlockSpec((1, H, W, C), lambda n: (n, 0, 0, 0)),
                pl.BlockSpec((9 * C, C), lambda n: (0, 0)),
                pl.BlockSpec((9 * C, C), lambda n: (0, 0)),
                pl.BlockSpec((9 * C, Cout), lambda n: (0, 0)),
                pl.BlockSpec((1, C), lambda n: (0, 0)),
                pl.BlockSpec((1, C), lambda n: (0, 0)),
                pl.BlockSpec((1, Cout), lambda n: (0, 0)),
            ],
            out_specs=pl.BlockSpec((1, H * W, Cout), lambda n: (n, 0, 0)),
            scratch_shapes=[
                pltpu.VMEM((H + 2, W + 2, C), jnp.float32),     # padded act
                pltpu.VMEM((H * W, 9 * C), compute_dtype),      # im2col
            ],
        ),
        compiler_params=pltpu.CompilerParams(
            dimension_semantics=("parallel",)),
    )(x_nhwc, w0, w1, w2, b0, b1, b2)


@jax.jit
def _forward(x_nchw, w_flat, b_row):
    N, _, H, W = x_nchw.shape
    Cout = b_row[2].shape[1]
    x = jnp.transpose(x_nchw, (0, 2, 3, 1)).astype(jnp.float32)   # NCHW -> NHWC
    out = fused_regression_head(x, *w_flat, *b_row)               # (N, H*W, Cout)
    return jnp.transpose(out.reshape(N, H, W, Cout), (0, 3, 1, 2))  # -> NCHW


class RegressionHeadPallas:
    """JAX/Pallas equivalent of p2pnet RegressionHead (synthetic deterministic weights)."""

    def __init__(self, key, n_anchors=4, hidden_size=256,
                 compute_dtype=jnp.float32):
        self.n_anchors = n_anchors
        self.hidden_size = hidden_size
        self.compute_dtype = compute_dtype
        C, Cout = hidden_size, 2 * n_anchors
        cins, couts = [C, C, C], [C, C, Cout]

        self.w_hwio, self.biases = [], []
        for cin, cout in zip(cins, couts):
            kw, kb, key = jax.random.split(key, 3)
            # PyTorch Conv2d weight layout (Cout, Cin, kh, kw); synthetic init.
            w_oihw = jax.random.normal(kw, (cout, cin, 3, 3), jnp.float32) * 0.05
            b = jax.random.normal(kb, (cout,), jnp.float32) * 0.05
            self.w_hwio.append(jnp.transpose(w_oihw, (2, 3, 1, 0)))  # HWIO
            self.biases.append(b)

        # Kernel-ready layouts prepared ONCE (no per-call reshape/cast):
        #   (3,3,Cin,Cout) -> (9*Cin, Cout), rows ordered (dy, dx, cin);
        #   matmul operands in compute_dtype (bf16 for v6e/v7x), biases in f32.
        self.w_flat = tuple(
            w.reshape(9 * w.shape[2], w.shape[3]).astype(compute_dtype)
            for w in self.w_hwio)
        self.b_row = tuple(b.reshape(1, -1) for b in self.biases)

    def __call__(self, x_nchw):
        return _forward(x_nchw, self.w_flat, self.b_row)

    def reference(self, x_nchw):
        """Pure-JAX reference (lax conv, f32 weights) for validation."""
        h = jnp.transpose(x_nchw, (0, 2, 3, 1)).astype(jnp.float32)
        for i, (w, b) in enumerate(zip(self.w_hwio, self.biases)):
            h = lax.conv_general_dilated(
                h, w, window_strides=(1, 1), padding="SAME",
                dimension_numbers=("NHWC", "HWIO", "NHWC")) + b
            if i < 2:
                h = jnp.maximum(h, 0.0)
        return jnp.transpose(h, (0, 3, 1, 2))


if __name__ == "__main__":
    key = jax.random.PRNGKey(0)
    k_x, k_p = jax.random.split(key)

    # Small shapes consistent with the module: batch=2, hidden=32, spatial=16,
    # n_anchors=4  ->  output (2, 8, 16, 16).
    N, C, H, W = 2, 32, 16, 16
    x = jax.random.normal(k_x, (N, C, H, W), jnp.float32)

    # f32 compute path (all chips).
    head_f32 = RegressionHeadPallas(k_p, n_anchors=4, hidden_size=C,
                                    compute_dtype=jnp.float32)
    out_f32 = jax.block_until_ready(head_f32(x))
    ref = jax.block_until_ready(head_f32.reference(x))
    assert out_f32.shape == (N, 8, H, W), out_f32.shape
    np.testing.assert_allclose(np.asarray(out_f32), np.asarray(ref),
                               rtol=1e-4, atol=1e-4)

    # bf16 MXU-operand path (v6e/v7x feedback); same f32 weights, same f32
    # accumulation + f32 bias/ReLU, so only operand quantization error remains.
    head_bf16 = RegressionHeadPallas(k_p, n_anchors=4, hidden_size=C,
                                     compute_dtype=jnp.bfloat16)
    out_bf16 = jax.block_until_ready(head_bf16(x))
    np.testing.assert_allclose(np.asarray(out_bf16), np.asarray(ref),
                               rtol=5e-2, atol=5e-2)

    print("KERNEL_OK")
</pallas_src>

<mosaic_0001>
module attributes {stable_mosaic.version = 11 : i64} {
  func.func @_fused_head_kernel(%arg0: i32, %arg1: memref<1x16x16x32xf32, #tpu.memory_space<vmem>>, %arg2: memref<288x32xf32, #tpu.memory_space<vmem>>, %arg3: memref<288x32xf32, #tpu.memory_space<vmem>>, %arg4: memref<288x8xf32, #tpu.memory_space<vmem>>, %arg5: memref<1x32xf32, #tpu.memory_space<vmem>>, %arg6: memref<1x32xf32, #tpu.memory_space<vmem>>, %arg7: memref<1x8xf32, #tpu.memory_space<vmem>>, %arg8: memref<1x256x8xf32, #tpu.memory_space<vmem>>, %arg9: memref<18x18x32xf32, #tpu.memory_space<vmem>>, %arg10: memref<256x288xf32, #tpu.memory_space<vmem>>) attributes {dimension_semantics = [#tpu.dimension_semantics<parallel>], iteration_bounds = array<i64: 2>, scalar_prefetch = 0 : i64, scratch_operands = 2 : i64, tpu.core_type = #tpu.core_type<tc>, window_params = [{transform_indices = @transform_0, window_bounds = array<i64: 1, 16, 16, 32>}, {pipeline_mode = #tpu.pipeline_mode<synchronous>, transform_indices = @transform_1, window_bounds = array<i64: 288, 32>}, {pipeline_mode = #tpu.pipeline_mode<synchronous>, transform_indices = @transform_2, window_bounds = array<i64: 288, 32>}, {pipeline_mode = #tpu.pipeline_mode<synchronous>, transform_indices = @transform_3, window_bounds = array<i64: 288, 8>}, {pipeline_mode = #tpu.pipeline_mode<synchronous>, transform_indices = @transform_4, window_bounds = array<i64: 1, 32>}, {pipeline_mode = #tpu.pipeline_mode<synchronous>, transform_indices = @transform_5, window_bounds = array<i64: 1, 32>}, {pipeline_mode = #tpu.pipeline_mode<synchronous>, transform_indices = @transform_6, window_bounds = array<i64: 1, 8>}, {transform_indices = @transform_7, window_bounds = array<i64: 1, 256, 8>}]} {
    %cst = arith.constant 0.000000e+00 : f32
    %0 = vector.broadcast %cst : f32 to vector<18x18x32xf32>
    %c0 = arith.constant 0 : index
    %c0_0 = arith.constant 0 : index
    %c0_1 = arith.constant 0 : index
    %1 = vector.load %arg9[%c0, %c0_0, %c0_1] : memref<18x18x32xf32, #tpu.memory_space<vmem>>, vector<18x18x32xf32>
    tpu.vector_store %arg9[%c0, %c0_0, %c0_1], %0 {strides = array<i32>} : memref<18x18x32xf32, #tpu.memory_space<vmem>>, vector<18x18x32xf32>,
    %c0_2 = arith.constant 0 : index
    %c0_3 = arith.constant 0 : index
    %c0_4 = arith.constant 0 : index
    %c0_5 = arith.constant 0 : index
    %2 = vector.load %arg1[%c0_2, %c0_3, %c0_4, %c0_5] : memref<1x16x16x32xf32, #tpu.memory_space<vmem>>, vector<1x16x16x32xf32>
    %3 = vector.shape_cast %2 : vector<1x16x16x32xf32> to vector<16x16x32xf32>
    %c1 = arith.constant 1 : index
    %c1_6 = arith.constant 1 : index
    %c0_7 = arith.constant 0 : index
    %4 = vector.load %arg9[%c1, %c1_6, %c0_7] : memref<18x18x32xf32, #tpu.memory_space<vmem>>, vector<16x16x32xf32>
    tpu.vector_store %arg9[%c1, %c1_6, %c0_7], %3 {strides = array<i32>} : memref<18x18x32xf32, #tpu.memory_space<vmem>>, vector<16x16x32xf32>,
    %c0_8 = arith.constant 0 : index
    %c0_9 = arith.constant 0 : index
    %c0_10 = arith.constant 0 : index
    %5 = vector.load %arg9[%c0_8, %c0_9, %c0_10] : memref<18x18x32xf32, #tpu.memory_space<vmem>>, vector<16x16x32xf32>
    %6 = vector.shape_cast %5 : vector<16x16x32xf32> to vector<256x32xf32>
    %c0_11 = arith.constant 0 : index
    %c0_12 = arith.constant 0 : index
    %7 = vector.load %arg10[%c0_11, %c0_12] : memref<256x288xf32, #tpu.memory_space<vmem>>, vector<256x32xf32>
    tpu.vector_store %arg10[%c0_11, %c0_12], %6 {strides = array<i32>} : memref<256x288xf32, #tpu.memory_space<vmem>>, vector<256x32xf32>,
    %c0_13 = arith.constant 0 : index
    %c1_14 = arith.constant 1 : index
    %c0_15 = arith.constant 0 : index
    %8 = vector.load %arg9[%c0_13, %c1_14, %c0_15] : memref<18x18x32xf32, #tpu.memory_space<vmem>>, vector<16x16x32xf32>
    %9 = vector.shape_cast %8 : vector<16x16x32xf32> to vector<256x32xf32>
    %c0_16 = arith.constant 0 : index
    %c32 = arith.constant 32 : index
    %10 = vector.load %arg10[%c0_16, %c32] : memref<256x288xf32, #tpu.memory_space<vmem>>, vector<256x32xf32>
    tpu.vector_store %arg10[%c0_16, %c32], %9 {strides = array<i32>} : memref<256x288xf32, #tpu.memory_space<vmem>>, vector<256x32xf32>,
    %c0_17 = arith.constant 0 : index
    %c2 = arith.constant 2 : index
    %c0_18 = arith.constant 0 : index
    %11 = vector.load %arg9[%c0_17, %c2, %c0_18] : memref<18x18x32xf32, #tpu.memory_space<vmem>>, vector<16x16x32xf32>
    %12 = vector.shape_cast %11 : vector<16x16x32xf32> to vector<256x32xf32>
    %c0_19 = arith.constant 0 : index
    %c64 = arith.constant 64 : index
    %13 = vector.load %arg10[%c0_19, %c64] : memref<256x288xf32, #tpu.memory_space<vmem>>, vector<256x32xf32>
    tpu.vector_store %arg10[%c0_19, %c64], %12 {strides = array<i32>} : memref<256x288xf32, #tpu.memory_space<vmem>>, vector<256x32xf32>,
    %c1_20 = arith.constant 1 : index
    %c0_21 = arith.constant 0 : index
    %c0_22 = arith.constant 0 : index
    %14 = vector.load %arg9[%c1_20, %c0_21, %c0_22] : memref<18x18x32xf32, #tpu.memory_space<vmem>>, vector<16x16x32xf32>
    %15 = vector.shape_cast %14 : vector<16x16x32xf32> to vector<256x32xf32>
    %c0_23 = arith.constant 0 : index
    %c96 = arith.constant 96 : index
    %16 = vector.load %arg10[%c0_23, %c96] : memref<256x288xf32, #tpu.memory_space<vmem>>, vector<256x32xf32>
    tpu.vector_store %arg10[%c0_23, %c96], %15 {strides = array<i32>} : memref<256x288xf32, #tpu.memory_space<vmem>>, vector<256x32xf32>,
    %c1_24 = arith.constant 1 : index
    %c1_25 = arith.constant 1 : index
    %c0_26 = arith.constant 0 : index
    %17 = vector.load %arg9[%c1_24, %c1_25, %c0_26] : memref<18x18x32xf32, #tpu.memory_space<vmem>>, vector<16x16x32xf32>
    %18 = vector.shape_cast %17 : vector<16x16x32xf32> to vector<256x32xf32>
    %c0_27 = arith.constant 0 : index
    %c128 = arith.constant 128 : index
    %19 = vector.load %arg10[%c0_27, %c128] : memref<256x288xf32, #tpu.memory_space<vmem>>, vector<256x32xf32>
    tpu.vector_store %arg10[%c0_27, %c128], %18 {strides = array<i32>} : memref<256x288xf32, #tpu.memory_space<vmem>>, vector<256x32xf32>,
    %c1_28 = arith.constant 1 : index
    %c2_29 = arith.constant 2 : index
    %c0_30 = arith.constant 0 : index
    %20 = vector.load %arg9[%c1_28, %c2_29, %c0_30] : memref<18x18x32xf32, #tpu.memory_space<vmem>>, vector<16x16x32xf32>
    %21 = vector.shape_cast %20 : vector<16x16x32xf32> to vector<256x32xf32>
    %c0_31 = arith.constant 0 : index
    %c160 = arith.constant 160 : index
    %22 = vector.load %arg10[%c0_31, %c160] : memref<256x288xf32, #tpu.memory_space<vmem>>, vector<256x32xf32>
    tpu.vector_store %arg10[%c0_31, %c160], %21 {strides = array<i32>} : memref<256x288xf32, #tpu.memory_space<vmem>>, vector<256x32xf32>,
    %c2_32 = arith.constant 2 : index
    %c0_33 = arith.constant 0 : index
    %c0_34 = arith.constant 0 : index
    %23 = vector.load %arg9[%c2_32, %c0_33, %c0_34] : memref<18x18x32xf32, #tpu.memory_space<vmem>>, vector<16x16x32xf32>
    %24 = vector.shape_cast %23 : vector<16x16x32xf32> to vector<256x32xf32>
    %c0_35 = arith.constant 0 : index
    %c192 = arith.constant 192 : index
    %25 = vector.load %arg10[%c0_35, %c192] : memref<256x288xf32, #tpu.memory_space<vmem>>, vector<256x32xf32>
    tpu.vector_store %arg10[%c0_35, %c192], %24 {strides = array<i32>} : memref<256x288xf32, #tpu.memory_space<vmem>>, vector<256x32xf32>,
    %c2_36 = arith.constant 2 : index
    %c1_37 = arith.constant 1 : index
    %c0_38 = arith.constant 0 : index
    %26 = vector.load %arg9[%c2_36, %c1_37, %c0_38] : memref<18x18x32xf32, #tpu.memory_space<vmem>>, vector<16x16x32xf32>
    %27 = vector.shape_cast %26 : vector<16x16x32xf32> to vector<256x32xf32>
    %c0_39 = arith.constant 0 : index
    %c224 = arith.constant 224 : index
    %28 = vector.load %arg10[%c0_39, %c224] : memref<256x288xf32, #tpu.memory_space<vmem>>, vector<256x32xf32>
    tpu.vector_store %arg10[%c0_39, %c224], %27 {strides = array<i32>} : memref<256x288xf32, #tpu.memory_space<vmem>>, vector<256x32xf32>,
    %c2_40 = arith.constant 2 : index
    %c2_41 = arith.constant 2 : index
    %c0_42 = arith.constant 0 : index
    %29 = vector.load %arg9[%c2_40, %c2_41, %c0_42] : memref<18x18x32xf32, #tpu.memory_space<vmem>>, vector<16x16x32xf32>
    %30 = vector.shape_cast %29 : vector<16x16x32xf32> to vector<256x32xf32>
    %c0_43 = arith.constant 0 : index
    %c256 = arith.constant 256 : index
    %31 = vector.load %arg10[%c0_43, %c256] : memref<256x288xf32, #tpu.memory_space<vmem>>, vector<256x32xf32>
    tpu.vector_store %arg10[%c0_43, %c256], %30 {strides = array<i32>} : memref<256x288xf32, #tpu.memory_space<vmem>>, vector<256x32xf32>,
    %c0_44 = arith.constant 0 : index
    %c0_45 = arith.constant 0 : index
    %32 = vector.load %arg10[%c0_44, %c0_45] : memref<256x288xf32, #tpu.memory_space<vmem>>, vector<256x288xf32>
    %c0_46 = arith.constant 0 : index
    %c0_47 = arith.constant 0 : index
    %33 = vector.load %arg2[%c0_46, %c0_47] : memref<288x32xf32, #tpu.memory_space<vmem>>, vector<288x32xf32>
    %cst_48 = arith.constant dense<0.000000e+00> : vector<256x32xf32>
    %34 = tpu.matmul %32, %33, %cst_48 {dimension_numbers = #tpu.dot_dimension_numbers<[1], [0], [0], [1], [0, 0, 1, 1], [], []>} : vector<256x288xf32>, vector<288x32xf32>, vector<256x32xf32> -> vector<256x32xf32>
    %c0_49 = arith.constant 0 : index
    %c0_50 = arith.constant 0 : index
    %35 = vector.load %arg5[%c0_49, %c0_50] : memref<1x32xf32, #tpu.memory_space<vmem>>, vector<1x32xf32>
    %36 = vector.broadcast %35 : vector<1x32xf32> to vector<256x32xf32>
    %37 = arith.addf %34, %36 : vector<256x32xf32>
    %cst_51 = arith.constant 0.000000e+00 : f32
    %38 = vector.broadcast %cst_51 : f32 to vector<256x32xf32>
    %39 = arith.maximumf %37, %38 : vector<256x32xf32>
    %40 = vector.shape_cast %39 : vector<256x32xf32> to vector<16x16x32xf32>
    %c1_52 = arith.constant 1 : index
    %c1_53 = arith.constant 1 : index
    %c0_54 = arith.constant 0 : index
    %41 = vector.load %arg9[%c1_52, %c1_53, %c0_54] : memref<18x18x32xf32, #tpu.memory_space<vmem>>, vector<16x16x32xf32>
    tpu.vector_store %arg9[%c1_52, %c1_53, %c0_54], %40 {strides = array<i32>} : memref<18x18x32xf32, #tpu.memory_space<vmem>>, vector<16x16x32xf32>,
    %c0_55 = arith.constant 0 : index
    %c0_56 = arith.constant 0 : index
    %c0_57 = arith.constant 0 : index
    %42 = vector.load %arg9[%c0_55, %c0_56, %c0_57] : memref<18x18x32xf32, #tpu.memory_space<vmem>>, vector<16x16x32xf32>
    %43 = vector.shape_cast %42 : vector<16x16x32xf32> to vector<256x32xf32>
    %c0_58 = arith.constant 0 : index
    %c0_59 = arith.constant 0 : index
    %44 = vector.load %arg10[%c0_58, %c0_59] : memref<256x288xf32, #tpu.memory_space<vmem>>, vector<256x32xf32>
    tpu.vector_store %arg10[%c0_58, %c0_59], %43 {strides = array<i32>} : memref<256x288xf32, #tpu.memory_space<vmem>>, vector<256x32xf32>,
    %c0_60 = arith.constant 0 : index
    %c1_61 = arith.constant 1 : index
    %c0_62 = arith.constant 0 : index
    %45 = vector.load %arg9[%c0_60, %c1_61, %c0_62] : memref<18x18x32xf32, #tpu.memory_space<vmem>>, vector<16x16x32xf32>
    %46 = vector.shape_cast %45 : vector<16x16x32xf32> to vector<256x32xf32>
    %c0_63 = arith.constant 0 : index
    %c32_64 = arith.constant 32 : index
    %47 = vector.load %arg10[%c0_63, %c32_64] : memref<256x288xf32, #tpu.memory_space<vmem>>, vector<256x32xf32>
    tpu.vector_store %arg10[%c0_63, %c32_64], %46 {strides = array<i32>} : memref<256x288xf32, #tpu.memory_space<vmem>>, vector<256x32xf32>,
    %c0_65 = arith.constant 0 : index
    %c2_66 = arith.constant 2 : index
    %c0_67 = arith.constant 0 : index
    %48 = vector.load %arg9[%c0_65, %c2_66, %c0_67] : memref<18x18x32xf32, #tpu.memory_space<vmem>>, vector<16x16x32xf32>
    %49 = vector.shape_cast %48 : vector<16x16x32xf32> to vector<256x32xf32>
    %c0_68 = arith.constant 0 : index
    %c64_69 = arith.constant 64 : index
    %50 = vector.load %arg10[%c0_68, %c64_69] : memref<256x288xf32, #tpu.memory_space<vmem>>, vector<256x32xf32>
    tpu.vector_store %arg10[%c0_68, %c64_69], %49 {strides = array<i32>} : memref<256x288xf32, #tpu.memory_space<vmem>>, vector<256x32xf32>,
    %c1_70 = arith.constant 1 : index
    %c0_71 = arith.constant 0 : index
    %c0_72 = arith.constant 0 : index
    %51 = vector.load %arg9[%c1_70, %c0_71, %c0_72] : memref<18x18x32xf32, #tpu.memory_space<vmem>>, vector<16x16x32xf32>
    %52 = vector.shape_cast %51 : vector<16x16x32xf32> to vector<256x32xf32>
    %c0_73 = arith.constant 0 : index
    %c96_74 = arith.constant 96 : index
    %53 = vector.load %arg10[%c0_73, %c96_74] : memref<256x288xf32, #tpu.memory_space<vmem>>, vector<256x32xf32>
    tpu.vector_store %arg10[%c0_73, %c96_74], %52 {strides = array<i32>} : memref<256x288xf32, #tpu.memory_space<vmem>>, vector<256x32xf32>,
    %c1_75 = arith.constant 1 : index
    %c1_76 = arith.constant 1 : index
    %c0_77 = arith.constant 0 : index
    %54 = vector.load %arg9[%c1_75, %c1_76, %c0_77] : memref<18x18x32xf32, #tpu.memory_space<vmem>>, vector<16x16x32xf32>
    %55 = vector.shape_cast %54 : vector<16x16x32xf32> to vector<256x32xf32>
    %c0_78 = arith.constant 0 : index
    %c128_79 = arith.constant 128 : index
    %56 = vector.load %arg10[%c0_78, %c128_79] : memref<256x288xf32, #tpu.memory_space<vmem>>, vector<256x32xf32>
    tpu.vector_store %arg10[%c0_78, %c128_79], %55 {strides = array<i32>} : memref<256x288xf32, #tpu.memory_space<vmem>>, vector<256x32xf32>,
    %c1_80 = arith.constant 1 : index
    %c2_81 = arith.constant 2 : index
    %c0_82 = arith.constant 0 : index
    %57 = vector.load %arg9[%c1_80, %c2_81, %c0_82] : memref<18x18x32xf32, #tpu.memory_space<vmem>>, vector<16x16x32xf32>
    %58 = vector.shape_cast %57 : vector<16x16x32xf32> to vector<256x32xf32>
    %c0_83 = arith.constant 0 : index
    %c160_84 = arith.constant 160 : index
    %59 = vector.load %arg10[%c0_83, %c160_84] : memref<256x288xf32, #tpu.memory_space<vmem>>, vector<256x32xf32>
    tpu.vector_store %arg10[%c0_83, %c160_84], %58 {strides = array<i32>} : memref<256x288xf32, #tpu.memory_space<vmem>>, vector<256x32xf32>,
    %c2_85 = arith.constant 2 : index
    %c0_86 = arith.constant 0 : index
    %c0_87 = arith.constant 0 : index
    %60 = vector.load %arg9[%c2_85, %c0_86, %c0_87] : memref<18x18x32xf32, #tpu.memory_space<vmem>>, vector<16x16x32xf32>
    %61 = vector.shape_cast %60 : vector<16x16x32xf32> to vector<256x32xf32>
    %c0_88 = arith.constant 0 : index
    %c192_89 = arith.constant 192 : index
    %62 = vector.load %arg10[%c0_88, %c192_89] : memref<256x288xf32, #tpu.memory_space<vmem>>, vector<256x32xf32>
    tpu.vector_store %arg10[%c0_88, %c192_89], %61 {strides = array<i32>} : memref<256x288xf32, #tpu.memory_space<vmem>>, vector<256x32xf32>,
    %c2_90 = arith.constant 2 : index
    %c1_91 = arith.constant 1 : index
    %c0_92 = arith.constant 0 : index
    %63 = vector.load %arg9[%c2_90, %c1_91, %c0_92] : memref<18x18x32xf32, #tpu.memory_space<vmem>>, vector<16x16x32xf32>
    %64 = vector.shape_cast %63 : vector<16x16x32xf32> to vector<256x32xf32>
    %c0_93 = arith.constant 0 : index
    %c224_94 = arith.constant 224 : index
    %65 = vector.load %arg10[%c0_93, %c224_94] : memref<256x288xf32, #tpu.memory_space<vmem>>, vector<256x32xf32>
    tpu.vector_store %arg10[%c0_93, %c224_94], %64 {strides = array<i32>} : memref<256x288xf32, #tpu.memory_space<vmem>>, vector<256x32xf32>,
    %c2_95 = arith.constant 2 : index
    %c2_96 = arith.constant 2 : index
    %c0_97 = arith.constant 0 : index
    %66 = vector.load %arg9[%c2_95, %c2_96, %c0_97] : memref<18x18x32xf32, #tpu.memory_space<vmem>>, vector<16x16x32xf32>
    %67 = vector.shape_cast %66 : vector<16x16x32xf32> to vector<256x32xf32>
    %c0_98 = arith.constant 0 : index
    %c256_99 = arith.constant 256 : index
    %68 = vector.load %arg10[%c0_98, %c256_99] : memref<256x288xf32, #tpu.memory_space<vmem>>, vector<256x32xf32>
    tpu.vector_store %arg10[%c0_98, %c256_99], %67 {strides = array<i32>} : memref<256x288xf32, #tpu.memory_space<vmem>>, vector<256x32xf32>,
    %c0_100 = arith.constant 0 : index
    %c0_101 = arith.constant 0 : index
    %69 = vector.load %arg10[%c0_100, %c0_101] : memref<256x288xf32, #tpu.memory_space<vmem>>, vector<256x288xf32>
    %c0_102 = arith.constant 0 : index
    %c0_103 = arith.constant 0 : index
    %70 = vector.load %arg3[%c0_102, %c0_103] : memref<288x32xf32, #tpu.memory_space<vmem>>, vector<288x32xf32>
    %cst_104 = arith.constant dense<0.000000e+00> : vector<256x32xf32>
    %71 = tpu.matmul %69, %70, %cst_104 {dimension_numbers = #tpu.dot_dimension_numbers<[1], [0], [0], [1], [0, 0, 1, 1], [], []>} : vector<256x288xf32>, vector<288x32xf32>, vector<256x32xf32> -> vector<256x32xf32>
    %c0_105 = arith.constant 0 : index
    %c0_106 = arith.constant 0 : index
    %72 = vector.load %arg6[%c0_105, %c0_106] : memref<1x32xf32, #tpu.memory_space<vmem>>, vector<1x32xf32>
    %73 = vector.broadcast %72 : vector<1x32xf32> to vector<256x32xf32>
    %74 = arith.addf %71, %73 : vector<256x32xf32>
    %cst_107 = arith.constant 0.000000e+00 : f32
    %75 = vector.broadcast %cst_107 : f32 to vector<256x32xf32>
    %76 = arith.maximumf %74, %75 : vector<256x32xf32>
    %77 = vector.shape_cast %76 : vector<256x32xf32> to vector<16x16x32xf32>
    %c1_108 = arith.constant 1 : index
    %c1_109 = arith.constant 1 : index
    %c0_110 = arith.constant 0 : index
    %78 = vector.load %arg9[%c1_108, %c1_109, %c0_110] : memref<18x18x32xf32, #tpu.memory_space<vmem>>, vector<16x16x32xf32>
    tpu.vector_store %arg9[%c1_108, %c1_109, %c0_110], %77 {strides = array<i32>} : memref<18x18x32xf32, #tpu.memory_space<vmem>>, vector<16x16x32xf32>,
    %c0_111 = arith.constant 0 : index
    %c0_112 = arith.constant 0 : index
    %c0_113 = arith.constant 0 : index
    %79 = vector.load %arg9[%c0_111, %c0_112, %c0_113] : memref<18x18x32xf32, #tpu.memory_space<vmem>>, vector<16x16x32xf32>
    %80 = vector.shape_cast %79 : vector<16x16x32xf32> to vector<256x32xf32>
    %c0_114 = arith.constant 0 : index
    %c0_115 = arith.constant 0 : index
    %81 = vector.load %arg10[%c0_114, %c0_115] : memref<256x288xf32, #tpu.memory_space<vmem>>, vector<256x32xf32>
    tpu.vector_store %arg10[%c0_114, %c0_115], %80 {strides = array<i32>} : memref<256x288xf32, #tpu.memory_space<vmem>>, vector<256x32xf32>,
    %c0_116 = arith.constant 0 : index
    %c1_117 = arith.constant 1 : index
    %c0_118 = arith.constant 0 : index
    %82 = vector.load %arg9[%c0_116, %c1_117, %c0_118] : memref<18x18x32xf32, #tpu.memory_space<vmem>>, vector<16x16x32xf32>
    %83 = vector.shape_cast %82 : vector<16x16x32xf32> to vector<256x32xf32>
    %c0_119 = arith.constant 0 : index
    %c32_120 = arith.constant 32 : index
    %84 = vector.load %arg10[%c0_119, %c32_120] : memref<256x288xf32, #tpu.memory_space<vmem>>, vector<256x32xf32>
    tpu.vector_store %arg10[%c0_119, %c32_120], %83 {strides = array<i32>} : memref<256x288xf32, #tpu.memory_space<vmem>>, vector<256x32xf32>,
    %c0_121 = arith.constant 0 : index
    %c2_122 = arith.constant 2 : index
    %c0_123 = arith.constant 0 : index
    %85 = vector.load %arg9[%c0_121, %c2_122, %c0_123] : memref<18x18x32xf32, #tpu.memory_space<vmem>>, vector<16x16x32xf32>
    %86 = vector.shape_cast %85 : vector<16x16x32xf32> to vector<256x32xf32>
    %c0_124 = arith.constant 0 : index
    %c64_125 = arith.constant 64 : index
    %87 = vector.load %arg10[%c0_124, %c64_125] : memref<256x288xf32, #tpu.memory_space<vmem>>, vector<256x32xf32>
    tpu.vector_store %arg10[%c0_124, %c64_125], %86 {strides = array<i32>} : memref<256x288xf32, #tpu.memory_space<vmem>>, vector<256x32xf32>,
    %c1_126 = arith.constant 1 : index
    %c0_127 = arith.constant 0 : index
    %c0_128 = arith.constant 0 : index
    %88 = vector.load %arg9[%c1_126, %c0_127, %c0_128] : memref<18x18x32xf32, #tpu.memory_space<vmem>>, vector<16x16x32xf32>
    %89 = vector.shape_cast %88 : vector<16x16x32xf32> to vector<256x32xf32>
    %c0_129 = arith.constant 0 : index
    %c96_130 = arith.constant 96 : index
    %90 = vector.load %arg10[%c0_129, %c96_130] : memref<256x288xf32, #tpu.memory_space<vmem>>, vector<256x32xf32>
    tpu.vector_store %arg10[%c0_129, %c96_130], %89 {strides = array<i32>} : memref<256x288xf32, #tpu.memory_space<vmem>>, vector<256x32xf32>,
    %c1_131 = arith.constant 1 : index
    %c1_132 = arith.constant 1 : index
    %c0_133 = arith.constant 0 : index
    %91 = vector.load %arg9[%c1_131, %c1_132, %c0_133] : memref<18x18x32xf32, #tpu.memory_space<vmem>>, vector<16x16x32xf32>
    %92 = vector.shape_cast %91 : vector<16x16x32xf32> to vector<256x32xf32>
    %c0_134 = arith.constant 0 : index
    %c128_135 = arith.constant 128 : index
    %93 = vector.load %arg10[%c0_134, %c128_135] : memref<256x288xf32, #tpu.memory_space<vmem>>, vector<256x32xf32>
    tpu.vector_store %arg10[%c0_134, %c128_135], %92 {strides = array<i32>} : memref<256x288xf32, #tpu.memory_space<vmem>>, vector<256x32xf32>,
    %c1_136 = arith.constant 1 : index
    %c2_137 = arith.constant 2 : index
    %c0_138 = arith.constant 0 : index
    %94 = vector.load %arg9[%c1_136, %c2_137, %c0_138] : memref<18x18x32xf32, #tpu.memory_space<vmem>>, vector<16x16x32xf32>
    %95 = vector.shape_cast %94 : vector<16x16x32xf32> to vector<256x32xf32>
    %c0_139 = arith.constant 0 : index
    %c160_140 = arith.constant 160 : index
    %96 = vector.load %arg10[%c0_139, %c160_140] : memref<256x288xf32, #tpu.memory_space<vmem>>, vector<256x32xf32>
    tpu.vector_store %arg10[%c0_139, %c160_140], %95 {strides = array<i32>} : memref<256x288xf32, #tpu.memory_space<vmem>>, vector<256x32xf32>,
    %c2_141 = arith.constant 2 : index
    %c0_142 = arith.constant 0 : index
    %c0_143 = arith.constant 0 : index
    %97 = vector.load %arg9[%c2_141, %c0_142, %c0_143] : memref<18x18x32xf32, #tpu.memory_space<vmem>>, vector<16x16x32xf32>
    %98 = vector.shape_cast %97 : vector<16x16x32xf32> to vector<256x32xf32>
    %c0_144 = arith.constant 0 : index
    %c192_145 = arith.constant 192 : index
    %99 = vector.load %arg10[%c0_144, %c192_145] : memref<256x288xf32, #tpu.memory_space<vmem>>, vector<256x32xf32>
    tpu.vector_store %arg10[%c0_144, %c192_145], %98 {strides = array<i32>} : memref<256x288xf32, #tpu.memory_space<vmem>>, vector<256x32xf32>,
    %c2_146 = arith.constant 2 : index
    %c1_147 = arith.constant 1 : index
    %c0_148 = arith.constant 0 : index
    %100 = vector.load %arg9[%c2_146, %c1_147, %c0_148] : memref<18x18x32xf32, #tpu.memory_space<vmem>>, vector<16x16x32xf32>
    %101 = vector.shape_cast %100 : vector<16x16x32xf32> to vector<256x32xf32>
    %c0_149 = arith.constant 0 : index
    %c224_150 = arith.constant 224 : index
    %102 = vector.load %arg10[%c0_149, %c224_150] : memref<256x288xf32, #tpu.memory_space<vmem>>, vector<256x32xf32>
    tpu.vector_store %arg10[%c0_149, %c224_150], %101 {strides = array<i32>} : memref<256x288xf32, #tpu.memory_space<vmem>>, vector<256x32xf32>,
    %c2_151 = arith.constant 2 : index
    %c2_152 = arith.constant 2 : index
    %c0_153 = arith.constant 0 : index
    %103 = vector.load %arg9[%c2_151, %c2_152, %c0_153] : memref<18x18x32xf32, #tpu.memory_space<vmem>>, vector<16x16x32xf32>
    %104 = vector.shape_cast %103 : vector<16x16x32xf32> to vector<256x32xf32>
    %c0_154 = arith.constant 0 : index
    %c256_155 = arith.constant 256 : index
    %105 = vector.load %arg10[%c0_154, %c256_155] : memref<256x288xf32, #tpu.memory_space<vmem>>, vector<256x32xf32>
    tpu.vector_store %arg10[%c0_154, %c256_155], %104 {strides = array<i32>} : memref<256x288xf32, #tpu.memory_space<vmem>>, vector<256x32xf32>,
    %c0_156 = arith.constant 0 : index
    %c0_157 = arith.constant 0 : index
    %106 = vector.load %arg10[%c0_156, %c0_157] : memref<256x288xf32, #tpu.memory_space<vmem>>, vector<256x288xf32>
    %c0_158 = arith.constant 0 : index
    %c0_159 = arith.constant 0 : index
    %107 = vector.load %arg4[%c0_158, %c0_159] : memref<288x8xf32, #tpu.memory_space<vmem>>, vector<288x8xf32>
    %cst_160 = arith.constant dense<0.000000e+00> : vector<256x8xf32>
    %108 = tpu.matmul %106, %107, %cst_160 {dimension_numbers = #tpu.dot_dimension_numbers<[1], [0], [0], [1], [0, 0, 1, 1], [], []>} : vector<256x288xf32>, vector<288x8xf32>, vector<256x8xf32> -> vector<256x8xf32>
    %c0_161 = arith.constant 0 : index
    %c0_162 = arith.constant 0 : index
    %109 = vector.load %arg7[%c0_161, %c0_162] : memref<1x8xf32, #tpu.memory_space<vmem>>, vector<1x8xf32>
    %110 = vector.broadcast %109 : vector<1x8xf32> to vector<256x8xf32>
    %111 = arith.addf %108, %110 : vector<256x8xf32>
    %c0_163 = arith.constant 0 : index
    %c0_164 = arith.constant 0 : index
    %c0_165 = arith.constant 0 : index
    %112 = vector.load %arg8[%c0_163, %c0_164, %c0_165] : memref<1x256x8xf32, #tpu.memory_space<vmem>>, vector<1x256x8xf32>
    %113 = vector.shape_cast %112 : vector<1x256x8xf32> to vector<256x8xf32>
    %114 = vector.shape_cast %111 : vector<256x8xf32> to vector<1x256x8xf32>
    tpu.vector_store %arg8[%c0_163, %c0_164, %c0_165], %114 {strides = array<i32>} : memref<1x256x8xf32, #tpu.memory_space<vmem>>, vector<1x256x8xf32>,
    return
  }
  func.func @transform_0(%arg0: i32) -> (i32, i32, i32, i32) {
    %c0_i32 = arith.constant 0 : i32
    %c0_i32_0 = arith.constant 0 : i32
    %c0_i32_1 = arith.constant 0 : i32
    %c0_i32_2 = arith.constant 0 : i32
    return %arg0, %c0_i32, %c0_i32_0, %c0_i32_1 : i32, i32, i32, i32
  }
  func.func @transform_1(%arg0: i32) -> (i32, i32) {
    %c0_i32 = arith.constant 0 : i32
    %c0_i32_0 = arith.constant 0 : i32
    %c0_i32_1 = arith.constant 0 : i32
    return %c0_i32, %c0_i32_0 : i32, i32
  }
  func.func @transform_2(%arg0: i32) -> (i32, i32) {
    %c0_i32 = arith.constant 0 : i32
    %c0_i32_0 = arith.constant 0 : i32
    %c0_i32_1 = arith.constant 0 : i32
    return %c0_i32, %c0_i32_0 : i32, i32
  }
  func.func @transform_3(%arg0: i32) -> (i32, i32) {
    %c0_i32 = arith.constant 0 : i32
    %c0_i32_0 = arith.constant 0 : i32
    %c0_i32_1 = arith.constant 0 : i32
    return %c0_i32, %c0_i32_0 : i32, i32
  }
  func.func @transform_4(%arg0: i32) -> (i32, i32) {
    %c0_i32 = arith.constant 0 : i32
    %c0_i32_0 = arith.constant 0 : i32
    %c0_i32_1 = arith.constant 0 : i32
    return %c0_i32, %c0_i32_0 : i32, i32
  }
  func.func @transform_5(%arg0: i32) -> (i32, i32) {
    %c0_i32 = arith.constant 0 : i32
    %c0_i32_0 = arith.constant 0 : i32
    %c0_i32_1 = arith.constant 0 : i32
    return %c0_i32, %c0_i32_0 : i32, i32
  }
  func.func @transform_6(%arg0: i32) -> (i32, i32) {
    %c0_i32 = arith.constant 0 : i32
    %c0_i32_0 = arith.constant 0 : i32
    %c0_i32_1 = arith.constant 0 : i32
    return %c0_i32, %c0_i32_0 : i32, i32
  }
  func.func @transform_7(%arg0: i32) -> (i32, i32, i32) {
    %c0_i32 = arith.constant 0 : i32
    %c0_i32_0 = arith.constant 0 : i32
    %c0_i32_1 = arith.constant 0 : i32
    return %arg0, %c0_i32, %c0_i32_0 : i32, i32, i32
  }
}

</mosaic_0001>

<llo_original>
// kernel: _forward.1
$region0: #{_forward.1}
  #allocation0 [shape = 'u32[]', space=smem, size = 0x4, offset = 0x4, fixed_abs, tag = 'smem constant byte address 0x4 - core index']
  #allocation1 [shape = 'u32[72,128]{1,0:T(1,128)}', space=vmem, size = 0x9000, scoped, tag = 'internal scratch']
  #allocation2 [shape = 'f32[18,18,32]{2,1,0:T(8,128)}', space=vmem, size = 0x36000, scoped, tag = 'scratch operand']
  #allocation3 [shape = 'f32[256,288]{1,0:T(8,128)}', space=vmem, size = 0x60000, scoped, tag = 'scratch operand']
  %s0 = inlined_call_operand.vmem [shape: f32[2,16,16,32], index: 0, kind: input, shape index: {}]
  %s1 = inlined_call_operand.vmem [shape: f32[288,32], index: 1, kind: input, shape index: {}]
  %s2 = inlined_call_operand.vmem [shape: f32[288,32], index: 2, kind: input, shape index: {}]
  %s3 = inlined_call_operand.vmem [shape: f32[288,8], index: 3, kind: input, shape index: {}]
  %s4 = inlined_call_operand.vmem [shape: f32[1,32], index: 4, kind: input, shape index: {}]
  %s5 = inlined_call_operand.vmem [shape: f32[1,32], index: 5, kind: input, shape index: {}]
  %s6 = inlined_call_operand.vmem [shape: f32[1,8], index: 6, kind: input, shape index: {}]
  %s7 = inlined_call_operand.vmem [shape: f32[2,256,8], index: 7, kind: output, shape index: {}]
  %s8 = sld [smem:[#allocation0]]
  $region61: #{_forward.1} parent=0
    _
  %s10 = ssub.s32 1, %s8
  %s11 = scalar_select 0, %s10, %s8
  loop: start=0, step=1, limit=4
  $region2: #{_forward.1} parent=0 // loop_pre_header
    _
  $region3: #{_forward.1} parent=0 // loop_header
    %s13 = sphi 0, %s17
    %p14 = scmp.ge.s32.totalorder %s13, 4
    %s23 = sphi 0, %s25
    %s26 = sphi 0, %s23
    %s27 = sphi 0, %s26
    %s43 = sphi 0, %s27
    %s47 = sphi 0, %s47
    %s49 = sphi 0, %s47
    %s50 = sphi 0, %s49
    %s64 = sphi 0, %s50
    %s68 = sphi 0, %s68
    %s70 = sphi 0, %s68
    %s71 = sphi 0, %s70
    %s85 = sphi 0, %s71
    %s89 = sphi 0, %s89
    %s91 = sphi 0, %s89
    %s92 = sphi 0, %s91
    %s106 = sphi 0, %s92
    %s110 = sphi 0, %s110
    %s112 = sphi 0, %s110
    %s113 = sphi 0, %s112
    %s127 = sphi 0, %s113
    %s131 = sphi 0, %s131
    %s133 = sphi 0, %s131
    %s134 = sphi 0, %s133
    %s148 = sphi 0, %s134
    %s152 = sphi 0, %s152
    %s154 = sphi 0, %s152
    %s155 = sphi 0, %s154
    %s169 = sphi 0, %s155
    %s175 = sphi 0, %s177
    %s178 = sphi 0, %s175
    %s179 = sphi 0, %s178
    %s195 = sphi 0, %s179
  $region4: #{_forward.1} parent=0 // loop_header_branch
    %16 = sbr.rel (%p14) target = $region8
  $region5: #{_forward.1} parent=0 // loop_body
    %s18 = ssub.s32 %s13, 1
    %s19 = ssub.s32 %s13, 2
    %s20 = sadd.s32 %s13, 1
    %s21 = ssub.s32 %s13, %s20
    %p22 = scmp.eq.s32.totalorder %s21, 0
    %s24 = sadd.s32 %s23, 1
    %s25 = scalar_select %p22, %s23, %s24
    %p28 = pneg %p22
    %p29 = scmp.eq.s32.totalorder %s13, 1
    %p30 = por %p28, %p29
    %p31 = scmp.ne.s32.totalorder %s23, %s26
    %p32 = scmp.eq.s32.totalorder %s13, 0
    %p33 = por %p31, %p32
    %p34 = scmp.ne.s32.totalorder %s23, %s26
    %p35 = scmp.eq.s32.totalorder %s18, 1
    %p36 = por %p34, %p35
    %p37 = scmp.ne.s32.totalorder %s26, %s27
    %p38 = scmp.eq.s32.totalorder %s18, 0
    %p39 = por %p37, %p38
    %p40 = scmp.ne.s32.totalorder %s26, %s27
    %p41 = scmp.eq.s32.totalorder %s19, 1
    %p42 = por %p40, %p41
    %p44 = scmp.ne.s32.totalorder %s27, %s43
    %p45 = scmp.eq.s32.totalorder %s19, 0
    %p46 = por %p44, %p45
    %s48 = sadd.s32 %s47, 1
    %p51 = scmp.eq.s32.totalorder %s13, 1
    %p52 = scmp.ne.s32.totalorder %s47, %s49
    %p53 = scmp.eq.s32.totalorder %s13, 0
    %p54 = por %p52, %p53
    %p55 = scmp.ne.s32.totalorder %s47, %s49
    %p56 = scmp.eq.s32.totalorder %s18, 1
    %p57 = por %p55, %p56
    %p58 = scmp.ne.s32.totalorder %s49, %s50
    %p59 = scmp.eq.s32.totalorder %s18, 0
    %p60 = por %p58, %p59
    %p61 = scmp.ne.s32.totalorder %s49, %s50
    %p62 = scmp.eq.s32.totalorder %s19, 1
    %p63 = por %p61, %p62
    %p65 = scmp.ne.s32.totalorder %s50, %s64
    %p66 = scmp.eq.s32.totalorder %s19, 0
    %p67 = por %p65, %p66
    %s69 = sadd.s32 %s68, 1
    %p72 = scmp.eq.s32.totalorder %s13, 1
    %p73 = scmp.ne.s32.totalorder %s68, %s70
    %p74 = scmp.eq.s32.totalorder %s13, 0
    %p75 = por %p73, %p74
    %p76 = scmp.ne.s32.totalorder %s68, %s70
    %p77 = scmp.eq.s32.totalorder %s18, 1
    %p78 = por %p76, %p77
    %p79 = scmp.ne.s32.totalorder %s70, %s71
    %p80 = scmp.eq.s32.totalorder %s18, 0
    %p81 = por %p79, %p80
    %p82 = scmp.ne.s32.totalorder %s70, %s71
    %p83 = scmp.eq.s32.totalorder %s19, 1
    %p84 = por %p82, %p83
    %p86 = scmp.ne.s32.totalorder %s71, %s85
    %p87 = scmp.eq.s32.totalorder %s19, 0
    %p88 = por %p86, %p87
    %s90 = sadd.s32 %s89, 1
    %p93 = scmp.eq.s32.totalorder %s13, 1
    %p94 = scmp.ne.s32.totalorder %s89, %s91
    %p95 = scmp.eq.s32.totalorder %s13, 0
    %p96 = por %p94, %p95
    %p97 = scmp.ne.s32.totalorder %s89, %s91
    %p98 = scmp.eq.s32.totalorder %s18, 1
    %p99 = por %p97, %p98
    %p100 = scmp.ne.s32.totalorder %s91, %s92
    %p101 = scmp.eq.s32.totalorder %s18, 0
    %p102 = por %p100, %p101
    %p103 = scmp.ne.s32.totalorder %s91, %s92
    %p104 = scmp.eq.s32.totalorder %s19, 1
    %p105 = por %p103, %p104
    %p107 = scmp.ne.s32.totalorder %s92, %s106
    %p108 = scmp.eq.s32.totalorder %s19, 0
    %p109 = por %p107, %p108
    %s111 = sadd.s32 %s110, 1
    %p114 = scmp.eq.s32.totalorder %s13, 1
    %p115 = scmp.ne.s32.totalorder %s110, %s112
    %p116 = scmp.eq.s32.totalorder %s13, 0
    %p117 = por %p115, %p116
    %p118 = scmp.ne.s32.totalorder %s110, %s112
    %p119 = scmp.eq.s32.totalorder %s18, 1
    %p120 = por %p118, %p119
    %p121 = scmp.ne.s32.totalorder %s112, %s113
    %p122 = scmp.eq.s32.totalorder %s18, 0
    %p123 = por %p121, %p122
    %p124 = scmp.ne.s32.totalorder %s112, %s113
    %p125 = scmp.eq.s32.totalorder %s19, 1
    %p126 = por %p124, %p125
    %p128 = scmp.ne.s32.totalorder %s113, %s127
    %p129 = scmp.eq.s32.totalorder %s19, 0
    %p130 = por %p128, %p129
    %s132 = sadd.s32 %s131, 1
    %p135 = scmp.eq.s32.totalorder %s13, 1
    %p136 = scmp.ne.s32.totalorder %s131, %s133
    %p137 = scmp.eq.s32.totalorder %s13, 0
    %p138 = por %p136, %p137
    %p139 = scmp.ne.s32.totalorder %s131, %s133
    %p140 = scmp.eq.s32.totalorder %s18, 1
    %p141 = por %p139, %p140
    %p142 = scmp.ne.s32.totalorder %s133, %s134
    %p143 = scmp.eq.s32.totalorder %s18, 0
    %p144 = por %p142, %p143
    %p145 = scmp.ne.s32.totalorder %s133, %s134
    %p146 = scmp.eq.s32.totalorder %s19, 1
    %p147 = por %p145, %p146
    %p149 = scmp.ne.s32.totalorder %s134, %s148
    %p150 = scmp.eq.s32.totalorder %s19, 0
    %p151 = por %p149, %p150
    %s153 = sadd.s32 %s152, 1
    %p156 = scmp.eq.s32.totalorder %s13, 1
    %p157 = scmp.ne.s32.totalorder %s152, %s154
    %p158 = scmp.eq.s32.totalorder %s13, 0
    %p159 = por %p157, %p158
    %p160 = scmp.ne.s32.totalorder %s152, %s154
    %p161 = scmp.eq.s32.totalorder %s18, 1
    %p162 = por %p160, %p161
    %p163 = scmp.ne.s32.totalorder %s154, %s155
    %p164 = scmp.eq.s32.totalorder %s18, 0
    %p165 = por %p163, %p164
    %p166 = scmp.ne.s32.totalorder %s154, %s155
    %p167 = scmp.eq.s32.totalorder %s19, 1
    %p168 = por %p166, %p167
    %p170 = scmp.ne.s32.totalorder %s155, %s169
    %p171 = scmp.eq.s32.totalorder %s19, 0
    %p172 = por %p170, %p171
    %s173 = ssub.s32 %s13, %s20
    %p174 = scmp.eq.s32.totalorder %s173, 0
    %s176 = sadd.s32 %s175, 1
    %s177 = scalar_select %p174, %s175, %s176
    %p180 = pneg %p174
    %p181 = scmp.eq.s32.totalorder %s13, 1
    %p182 = por %p180, %p181
    %p183 = scmp.ne.s32.totalorder %s175, %s178
    %p184 = scmp.eq.s32.totalorder %s13, 0
    %p185 = por %p183, %p184
    %p186 = scmp.ne.s32.totalorder %s175, %s178
    %p187 = scmp.eq.s32.totalorder %s18, 1
    %p188 = por %p186, %p187
    %p189 = scmp.ne.s32.totalorder %s178, %s179
    %p190 = scmp.eq.s32.totalorder %s18, 0
    %p191 = por %p189, %p190
    %p192 = scmp.ne.s32.totalorder %s178, %s179
    %p193 = scmp.eq.s32.totalorder %s19, 1
    %p194 = por %p192, %p193
    %p196 = scmp.ne.s32.totalorder %s179, %s195
    %p197 = scmp.eq.s32.totalorder %s19, 0
    %p198 = por %p196, %p197
    %p199 = scmp.le.s32.totalorder 1, %s13
    %p200 = scmp.lt.s32.totalorder %s13, 3
    %p201 = pnand %p199, %p200
    %p202 = pneg %p201
    // Predicated region
    $region9: #{_forward.1} parent=5 // pred_check
      _
    $region10: #{_forward.1} parent=5 // pred_check_branch
      %204 = sbr.rel (%p201) target = $region12
    $region11: #{_forward.1} parent=5 // pred_region
      %s205 = ssub.s32 %s13, 1
      // Predicated region
      $region13: #{_forward.1} parent=11 // pred_check
        %p206 = pneg %p60
      $region14: #{_forward.1} parent=11 // pred_check_branch
        %208 = sbr.rel (%p206) target = $region16
      $region15: #{_forward.1} parent=11 // pred_region
        _
      $region16: #{_forward.1} parent=11 // pred_fallthru
        _
      // Predicated region
      $region17: #{_forward.1} parent=11 // pred_check
        %p209 = pneg %p81
      $region18: #{_forward.1} parent=11 // pred_check_branch
        %211 = sbr.rel (%p209) target = $region20
      $region19: #{_forward.1} parent=11 // pred_region
        _
      $region20: #{_forward.1} parent=11 // pred_fallthru
        _
      // Predicated region
      $region21: #{_forward.1} parent=11 // pred_check
        %p212 = pneg %p102
      $region22: #{_forward.1} parent=11 // pred_check_branch
        %214 = sbr.rel (%p212) target = $region24
      $region23: #{_forward.1} parent=11 // pred_region
        _
      $region24: #{_forward.1} parent=11 // pred_fallthru
        _
      // Predicated region
      $region25: #{_forward.1} parent=11 // pred_check
        %p215 = pneg %p123
      $region26: #{_forward.1} parent=11 // pred_check_branch
        %217 = sbr.rel (%p215) target = $region28
      $region27: #{_forward.1} parent=11 // pred_region
        _
      $region28: #{_forward.1} parent=11 // pred_fallthru
        _
      // Predicated region
      $region29: #{_forward.1} parent=11 // pred_check
        %p218 = pneg %p144
      $region30: #{_forward.1} parent=11 // pred_check_branch
        %220 = sbr.rel (%p218) target = $region32
      $region31: #{_forward.1} parent=11 // pred_region
        _
      $region32: #{_forward.1} parent=11 // pred_fallthru
        _
      // Predicated region
      $region33: #{_forward.1} parent=11 // pred_check
        %p221 = pneg %p165
      $region34: #{_forward.1} parent=11 // pred_check_branch
        %223 = sbr.rel (%p221) target = $region36
      $region35: #{_forward.1} parent=11 // pred_region
        _
      $region36: #{_forward.1} parent=11 // pred_fallthru
        _
    $region12: #{_forward.1} parent=5 // pred_fallthru
      _
    %p224 = scmp.lt.s32.totalorder %s13, 2
    // Predicated region
    $region37: #{_forward.1} parent=5 // pred_check
      %p225 = pneg %p224
    $region38: #{_forward.1} parent=5 // pred_check_branch
      %227 = sbr.rel (%p225) target = $region40
    $region39: #{_forward.1} parent=5 // pred_region
      // Predicated region
      $region41: #{_forward.1} parent=39 // pred_check
        %p228 = pneg %p33
      $region42: #{_forward.1} parent=39 // pred_check_branch
        %230 = sbr.rel (%p228) target = $region44
      $region43: #{_forward.1} parent=39 // pred_region
        %p231 = scmp.lt.s32.totalorder %s13, 1
        %s232 = scalar_select %p231, %s13, 1
        %s233 = smul.addr %s232, 32
        %s234 = smul.addr %s233, 8
        %s235 = scalar_lea.vmem %s0, %s234
      $region44: #{_forward.1} parent=39 // pred_fallthru
        _
    $region40: #{_forward.1} parent=5 // pred_fallthru
      _
    %p236 = scmp.le.s32.totalorder 1, %s13
    %p237 = scmp.lt.s32.totalorder %s13, 3
    %p238 = pnand %p236, %p237
    %p239 = pneg %p238
    // Predicated region
    $region45: #{_forward.1} parent=5 // pred_check
      _
    $region46: #{_forward.1} parent=5 // pred_check_branch
      %241 = sbr.rel (%p238) target = $region48
    $region47: #{_forward.1} parent=5 // pred_region
      %s242 = ssub.s32 %s13, 1
      %p243 = scmp.lt.s32.totalorder %s18, 1
      %s244 = scalar_select %p243, %s18, 1
      %s245 = smul.addr %s244, 32
      %s246 = smul.addr %s245, 8
      %s247 = scalar_lea.vmem %s0, %s246
      %p248 = pneg %p39
      %p249 = pneg %p36
      %p250 = pneg %p60
      %p251 = pneg %p57
      %p252 = pneg %p81
      %p253 = pneg %p78
      %p254 = pneg %p102
      %p255 = pneg %p99
      %p256 = pneg %p123
      %p257 = pneg %p120
      %p258 = pneg %p144
      %p259 = pneg %p141
      %p260 = pneg %p165
      %p261 = pneg %p162
      %p262 = pneg %p191
      %p263 = pneg %p188
      %p264 = scmp.lt.s32.totalorder %s18, 1
      %s265 = scalar_select %p264, %s18, 1
      %s266 = smul.addr %s265, 32
      %s267 = smul.addr %s266, 8
      %s268 = scalar_lea.vmem %s7, %s267
      %p269 = scmp.lt.s32.totalorder %s18, 1
      %s270 = scalar_select %p269, %s18, 1
      %s271 = smul.addr %s270, 32
      %s272 = smul.addr %s271, 8
      %s273 = scalar_lea.vmem %s0, %s272
      %p274 = scmp.lt.s32.totalorder %s18, 1
      %s275 = scalar_select %p274, %s18, 1
      %s276 = smul.addr %s275, 32
      %s277 = smul.addr %s276, 8
      %s278 = scalar_lea.vmem %s7, %s277
      %vm279 = vcmask 261120
      %280 = vst.msk [vmem:[#allocation2] sm:$0xff] %vm279, 0.0
      %281 = vst.msk [vmem:[#allocation2 + $0x8] sm:$0xff] %vm279, 0.0
      %vm282 = vcmask 254976
      %283 = vst.msk [vmem:[#allocation2 + $0x10] sm:$0x3] %vm282, 0.0
      %284 = vst.msk [vmem:[#allocation2 + $0x18] sm:$0xff] %vm279, 0.0
      %285 = vst.msk [vmem:[#allocation2 + $0x20] sm:$0xff] %vm279, 0.0
      %286 = vst.msk [vmem:[#allocation2 + $0x28] sm:$0x3] %vm282, 0.0
      %287 = vst.msk [vmem:[#allocation2 + $0x30] sm:$0xff] %vm279, 0.0
      %288 = vst.msk [vmem:[#allocation2 + $0x38] sm:$0xff] %vm279, 0.0
      %289 = vst.msk [vmem:[#allocation2 + $0x40] sm:$0x3] %vm282, 0.0
      %290 = vst.msk [vmem:[#allocation2 + $0x48] sm:$0xff] %vm279, 0.0
      %291 = vst.msk [vmem:[#allocation2 + $0x50] sm:$0xff] %vm279, 0.0
      %292 = vst.msk [vmem:[#allocation2 + $0x58] sm:$0x3] %vm282, 0.0
      %293 = vst.msk [vmem:[#allocation2 + $0x60] sm:$0xff] %vm279, 0.0
      %294 = vst.msk [vmem:[#allocation2 + $0x68] sm:$0xff] %vm279, 0.0
      %295 = vst.msk [vmem:[#allocation2 + $0x70] sm:$0x3] %vm282, 0.0
      %296 = vst.msk [vmem:[#allocation2 + $0x78] sm:$0xff] %vm279, 0.0
      %297 = vst.msk [vmem:[#allocation2 + $0x80] sm:$0xff] %vm279, 0.0
      %298 = vst.msk [vmem:[#allocation2 + $0x88] sm:$0x3] %vm282, 0.0
      %299 = vst.msk [vmem:[#allocation2 + $0x90] sm:$0xff] %vm279, 0.0
      %300 = vst.msk [vmem:[#allocation2 + $0x98] sm:$0xff] %vm279, 0.0
      %301 = vst.msk [vmem:[#allocation2 + $0xa0] sm:$0x3] %vm282, 0.0
      %302 = vst.msk [vmem:[#allocation2 + $0xa8] sm:$0xff] %vm279, 0.0
      %303 = vst.msk [vmem:[#allocation2 + $0xb0] sm:$0xff] %vm279, 0.0
      %304 = vst.msk [vmem:[#allocation2 + $0xb8] sm:$0x3] %vm282, 0.0
      %305 = vst.msk [vmem:[#allocation2 + $0xc0] sm:$0xff] %vm279, 0.0
      %306 = vst.msk [vmem:[#allocation2 + $0xc8] sm:$0xff] %vm279, 0.0
      %307 = vst.msk [vmem:[#allocation2 + $0xd0] sm:$0x3] %vm282, 0.0
      %308 = vst.msk [vmem:[#allocation2 + $0xd8] sm:$0xff] %vm279, 0.0
      %309 = vst.msk [vmem:[#allocation2 + $0xe0] sm:$0xff] %vm279, 0.0
      %310 = vst.msk [vmem:[#allocation2 + $0xe8] sm:$0x3] %vm282, 0.0
      %311 = vst.msk [vmem:[#allocation2 + $0xf0] sm:$0xff] %vm279, 0.0
      %312 = vst.msk [vmem:[#allocation2 + $0xf8] sm:$0xff] %vm279, 0.0
      %313 = vst.msk [vmem:[#allocation2 + $0x100] sm:$0x3] %vm282, 0.0
      %314 = vst.msk [vmem:[#allocation2 + $0x108] sm:$0xff] %vm279, 0.0
      %315 = vst.msk [vmem:[#allocation2 + $0x110] sm:$0xff] %vm279, 0.0
      %316 = vst.msk [vmem:[#allocation2 + $0x118] sm:$0x3] %vm282, 0.0
      %317 = vst.msk [vmem:[#allocation2 + $0x120] sm:$0xff] %vm279, 0.0
      %318 = vst.msk [vmem:[#allocation2 + $0x128] sm:$0xff] %vm279, 0.0
      %319 = vst.msk [vmem:[#allocation2 + $0x130] sm:$0x3] %vm282, 0.0
      %320 = vst.msk [vmem:[#allocation2 + $0x138] sm:$0xff] %vm279, 0.0
      %321 = vst.msk [vmem:[#allocation2 + $0x140] sm:$0xff] %vm279, 0.0
      %322 = vst.msk [vmem:[#allocation2 + $0x148] sm:$0x3] %vm282, 0.0
      %323 = vst.msk [vmem:[#allocation2 + $0x150] sm:$0xff] %vm279, 0.0
      %324 = vst.msk [vmem:[#allocation2 + $0x158] sm:$0xff] %vm279, 0.0
      %325 = vst.msk [vmem:[#allocation2 + $0x160] sm:$0x3] %vm282, 0.0
      %326 = vst.msk [vmem:[#allocation2 + $0x168] sm:$0xff] %vm279, 0.0
      %327 = vst.msk [vmem:[#allocation2 + $0x170] sm:$0xff] %vm279, 0.0
      %328 = vst.msk [vmem:[#allocation2 + $0x178] sm:$0x3] %vm282, 0.0
      %329 = vst.msk [vmem:[#allocation2 + $0x180] sm:$0xff] %vm279, 0.0
      %330 = vst.msk [vmem:[#allocation2 + $0x188] sm:$0xff] %vm279, 0.0
      %331 = vst.msk [vmem:[#allocation2 + $0x190] sm:$0x3] %vm282, 0.0
      %332 = vst.msk [vmem:[#allocation2 + $0x198] sm:$0xff] %vm279, 0.0
      %333 = vst.msk [vmem:[#allocation2 + $0x1a0] sm:$0xff] %vm279, 0.0
      %334 = vst.msk [vmem:[#allocation2 + $0x1a8] sm:$0x3] %vm282, 0.0
      %v335 = vld [vmem:[%s273] sm:$0xff]
      %v336 = vld [vmem:[%s273 + $0x8] sm:$0xff]
      %v337 = vld [vmem:[%s273 + $0x10] sm:$0xff]
      %v338 = vld [vmem:[%s273 + $0x18] sm:$0xff]
      %v339 = vld [vmem:[%s273 + $0x20] sm:$0xff]
      %v340 = vld [vmem:[%s273 + $0x28] sm:$0xff]
      %v341 = vld [vmem:[%s273 + $0x30] sm:$0xff]
      %v342 = vld [vmem:[%s273 + $0x38] sm:$0xff]
      %v343 = vld [vmem:[%s273 + $0x40] sm:$0xff]
      %v344 = vld [vmem:[%s273 + $0x48] sm:$0xff]
      %v345 = vld [vmem:[%s273 + $0x50] sm:$0xff]
      %v346 = vld [vmem:[%s273 + $0x58] sm:$0xff]
      %v347 = vld [vmem:[%s273 + $0x60] sm:$0xff]
      %v348 = vld [vmem:[%s273 + $0x68] sm:$0xff]
      %v349 = vld [vmem:[%s273 + $0x70] sm:$0xff]
      %v350 = vld [vmem:[%s273 + $0x78] sm:$0xff]
      %v351 = vld [vmem:[%s273 + $0x80] sm:$0xff]
      %v352 = vld [vmem:[%s273 + $0x88] sm:$0xff]
      %v353 = vld [vmem:[%s273 + $0x90] sm:$0xff]
      %v354 = vld [vmem:[%s273 + $0x98] sm:$0xff]
      %v355 = vld [vmem:[%s273 + $0xa0] sm:$0xff]
      %v356 = vld [vmem:[%s273 + $0xa8] sm:$0xff]
      %v357 = vld [vmem:[%s273 + $0xb0] sm:$0xff]
      %v358 = vld [vmem:[%s273 + $0xb8] sm:$0xff]
      %v359 = vld [vmem:[%s273 + $0xc0] sm:$0xff]
      %v360 = vld [vmem:[%s273 + $0xc8] sm:$0xff]
      %v361 = vld [vmem:[%s273 + $0xd0] sm:$0xff]
      %v362 = vld [vmem:[%s273 + $0xd8] sm:$0xff]
      %v363 = vld [vmem:[%s273 + $0xe0] sm:$0xff]
      %v364 = vld [vmem:[%s273 + $0xe8] sm:$0xff]
      %v365 = vld [vmem:[%s273 + $0xf0] sm:$0xff]
      %v366 = vld [vmem:[%s273 + $0xf8] sm:$0xff]
      %s367 = scalar_lea.vmem [#allocation2], 24
      %368 = vst.msk [vmem:[%s367 + $0x1] sm:$0xff] %vm279, %v335
      %369 = vst.msk [vmem:[%s367 + $0x9] sm:$0xff] %vm279, %v336
      %370 = vst.msk [vmem:[%s367 + $0x19] sm:$0xff] %vm279, %v337
      %371 = vst.msk [vmem:[%s367 + $0x21] sm:$0xff] %vm279, %v338
      %372 = vst.msk [vmem:[%s367 + $0x31] sm:$0xff] %vm279, %v339
      %373 = vst.msk [vmem:[%s367 + $0x39] sm:$0xff] %vm279, %v340
      %374 = vst.msk [vmem:[%s367 + $0x49] sm:$0xff] %vm279, %v341
      %375 = vst.msk [vmem:[%s367 + $0x51] sm:$0xff] %vm279, %v342
      %376 = vst.msk [vmem:[%s367 + $0x61] sm:$0xff] %vm279, %v343
      %377 = vst.msk [vmem:[%s367 + $0x69] sm:$0xff] %vm279, %v344
      %378 = vst.msk [vmem:[%s367 + $0x79] sm:$0xff] %vm279, %v345
      %379 = vst.msk [vmem:[%s367 + $0x81] sm:$0xff] %vm279, %v346
      %380 = vst.msk [vmem:[%s367 + $0x91] sm:$0xff] %vm279, %v347
      %381 = vst.msk [vmem:[%s367 + $0x99] sm:$0xff] %vm279, %v348
      %382 = vst.msk [vmem:[%s367 + $0xa9] sm:$0xff] %vm279, %v349
      %383 = vst.msk [vmem:[%s367 + $0xb1] sm:$0xff] %vm279, %v350
      %384 = vst.msk [vmem:[%s367 + $0xc1] sm:$0xff] %vm279, %v351
      %385 = vst.msk [vmem:[%s367 + $0xc9] sm:$0xff] %vm279, %v352
      %386 = vst.msk [vmem:[%s367 + $0xd9] sm:$0xff] %vm279, %v353
      %387 = vst.msk [vmem:[%s367 + $0xe1] sm:$0xff] %vm279, %v354
      %388 = vst.msk [vmem:[%s367 + $0xf1] sm:$0xff] %vm279, %v355
      %389 = vst.msk [vmem:[%s367 + $0xf9] sm:$0xff] %vm279, %v356
      %390 = vst.msk [vmem:[%s367 + $0x109] sm:$0xff] %vm279, %v357
      %391 = vst.msk [vmem:[%s367 + $0x111] sm:$0xff] %vm279, %v358
      %392 = vst.msk [vmem:[%s367 + $0x121] sm:$0xff] %vm279, %v359
      %393 = vst.msk [vmem:[%s367 + $0x129] sm:$0xff] %vm279, %v360
      %394 = vst.msk [vmem:[%s367 + $0x139] sm:$0xff] %vm279, %v361
      %395 = vst.msk [vmem:[%s367 + $0x141] sm:$0xff] %vm279, %v362
      %396 = vst.msk [vmem:[%s367 + $0x151] sm:$0xff] %vm279, %v363
      %397 = vst.msk [vmem:[%s367 + $0x159] sm:$0xff] %vm279, %v364
      %398 = vst.msk [vmem:[%s367 + $0x169] sm:$0xff] %vm279, %v365
      %399 = vst.msk [vmem:[%s367 + $0x171] sm:$0xff] %vm279, %v366
      %v400 = vld [vmem:[#allocation2] sm:$0xff]
      %v401 = vld [vmem:[#allocation2 + $0x8] sm:$0xff]
      %v402 = vld [vmem:[#allocation2 + $0x18] sm:$0xff]
      %v403 = vld [vmem:[#allocation2 + $0x20] sm:$0xff]
      %v404 = vld [vmem:[#allocation2 + $0x30] sm:$0xff]
      %v405 = vld [vmem:[#allocation2 + $0x38] sm:$0xff]
      %v406 = vld [vmem:[#allocation2 + $0x48] sm:$0xff]
      %v407 = vld [vmem:[#allocation2 + $0x50] sm:$0xff]
      %v408 = vld [vmem:[#allocation2 + $0x60] sm:$0xff]
      %v409 = vld [vmem:[#allocation2 + $0x68] sm:$0xff]
      %v410 = vld [vmem:[#allocation2 + $0x78] sm:$0xff]
      %v411 = vld [vmem:[#allocation2 + $0x80] sm:$0xff]
      %v412 = vld [vmem:[#allocation2 + $0x90] sm:$0xff]
      %v413 = vld [vmem:[#allocation2 + $0x98] sm:$0xff]
      %v414 = vld [vmem:[#allocation2 + $0xa8] sm:$0xff]
      %v415 = vld [vmem:[#allocation2 + $0xb0] sm:$0xff]
      %v416 = vld [vmem:[#allocation2 + $0xc0] sm:$0xff]
      %v417 = vld [vmem:[#allocation2 + $0xc8] sm:$0xff]
      %v418 = vld [vmem:[#allocation2 + $0xd8] sm:$0xff]
      %v419 = vld [vmem:[#allocation2 + $0xe0] sm:$0xff]
      %v420 = vld [vmem:[#allocation2 + $0xf0] sm:$0xff]
      %v421 = vld [vmem:[#allocation2 + $0xf8] sm:$0xff]
      %v422 = vld [vmem:[#allocation2 + $0x108] sm:$0xff]
      %v423 = vld [vmem:[#allocation2 + $0x110] sm:$0xff]
      %v424 = vld [vmem:[#allocation2 + $0x120] sm:$0xff]
      %v425 = vld [vmem:[#allocation2 + $0x128] sm:$0xff]
      %v426 = vld [vmem:[#allocation2 + $0x138] sm:$0xff]
      %v427 = vld [vmem:[#allocation2 + $0x140] sm:$0xff]
      %v428 = vld [vmem:[#allocation2 + $0x150] sm:$0xff]
      %v429 = vld [vmem:[#allocation2 + $0x158] sm:$0xff]
      %v430 = vld [vmem:[#allocation2 + $0x168] sm:$0xff]
      %v431 = vld [vmem:[#allocation2 + $0x170] sm:$0xff]
      %432 = vst.msk [vmem:[#allocation3] sm:$0xff] %vm279, %v400
      %433 = vst.msk [vmem:[#allocation3 + $0x18] sm:$0xff] %vm279, %v401
      %434 = vst.msk [vmem:[#allocation3 + $0x30] sm:$0xff] %vm279, %v402
      %435 = vst.msk [vmem:[#allocation3 + $0x48] sm:$0xff] %vm279, %v403
      %436 = vst.msk [vmem:[#allocation3 + $0x60] sm:$0xff] %vm279, %v404
      %437 = vst.msk [vmem:[#allocation3 + $0x78] sm:$0xff] %vm279, %v405
      %438 = vst.msk [vmem:[#allocation3 + $0x90] sm:$0xff] %vm279, %v406
      %439 = vst.msk [vmem:[#allocation3 + $0xa8] sm:$0xff] %vm279, %v407
      %440 = vst.msk [vmem:[#allocation3 + $0xc0] sm:$0xff] %vm279, %v408
      %441 = vst.msk [vmem:[#allocation3 + $0xd8] sm:$0xff] %vm279, %v409
      %442 = vst.msk [vmem:[#allocation3 + $0xf0] sm:$0xff] %vm279, %v410
      %443 = vst.msk [vmem:[#allocation3 + $0x108] sm:$0xff] %vm279, %v411
      %444 = vst.msk [vmem:[#allocation3 + $0x120] sm:$0xff] %vm279, %v412
      %445 = vst.msk [vmem:[#allocation3 + $0x138] sm:$0xff] %vm279, %v413
      %446 = vst.msk [vmem:[#allocation3 + $0x150] sm:$0xff] %vm279, %v414
      %447 = vst.msk [vmem:[#allocation3 + $0x168] sm:$0xff] %vm279, %v415
      %448 = vst.msk [vmem:[#allocation3 + $0x180] sm:$0xff] %vm279, %v416
      %449 = vst.msk [vmem:[#allocation3 + $0x198] sm:$0xff] %vm279, %v417
      %450 = vst.msk [vmem:[#allocation3 + $0x1b0] sm:$0xff] %vm279, %v418
      %451 = vst.msk [vmem:[#allocation3 + $0x1c8] sm:$0xff] %vm279, %v419
      %452 = vst.msk [vmem:[#allocation3 + $0x1e0] sm:$0xff] %vm279, %v420
      %453 = vst.msk [vmem:[#allocation3 + $0x1f8] sm:$0xff] %vm279, %v421
      %454 = vst.msk [vmem:[#allocation3 + $0x210] sm:$0xff] %vm279, %v422
      %455 = vst.msk [vmem:[#allocation3 + $0x228] sm:$0xff] %vm279, %v423
      %456 = vst.msk [vmem:[#allocation3 + $0x240] sm:$0xff] %vm279, %v424
      %457 = vst.msk [vmem:[#allocation3 + $0x258] sm:$0xff] %vm279, %v425
      %458 = vst.msk [vmem:[#allocation3 + $0x270] sm:$0xff] %vm279, %v426
      %459 = vst.msk [vmem:[#allocation3 + $0x288] sm:$0xff] %vm279, %v427
      %460 = vst.msk [vmem:[#allocation3 + $0x2a0] sm:$0xff] %vm279, %v428
      %461 = vst.msk [vmem:[#allocation3 + $0x2b8] sm:$0xff] %vm279, %v429
      %462 = vst.msk [vmem:[#allocation3 + $0x2d0] sm:$0xff] %vm279, %v430
      %463 = vst.msk [vmem:[#allocation3 + $0x2e8] sm:$0xff] %vm279, %v431
      %v464 = vld [vmem:[#allocation2 + $0x1] sm:$0xff]
      %v465 = vld [vmem:[#allocation2 + $0x9] sm:$0xff]
      %v466 = vld [vmem:[#allocation2 + $0x19] sm:$0xff]
      %v467 = vld [vmem:[#allocation2 + $0x21] sm:$0xff]
      %v468 = vld [vmem:[#allocation2 + $0x31] sm:$0xff]
      %v469 = vld [vmem:[#allocation2 + $0x39] sm:$0xff]
      %v470 = vld [vmem:[#allocation2 + $0x49] sm:$0xff]
      %v471 = vld [vmem:[#allocation2 + $0x51] sm:$0xff]
      %v472 = vld [vmem:[#allocation2 + $0x61] sm:$0xff]
      %v473 = vld [vmem:[#allocation2 + $0x69] sm:$0xff]
      %v474 = vld [vmem:[#allocation2 + $0x79] sm:$0xff]
      %v475 = vld [vmem:[#allocation2 + $0x81] sm:$0xff]
      %v476 = vld [vmem:[#allocation2 + $0x91] sm:$0xff]
      %v477 = vld [vmem:[#allocation2 + $0x99] sm:$0xff]
      %v478 = vld [vmem:[#allocation2 + $0xa9] sm:$0xff]
      %v479 = vld [vmem:[#allocation2 + $0xb1] sm:$0xff]
      %v480 = vld [vmem:[#allocation2 + $0xc1] sm:$0xff]
      %v481 = vld [vmem:[#allocation2 + $0xc9] sm:$0xff]
      %v482 = vld [vmem:[#allocation2 + $0xd9] sm:$0xff]
      %v483 = vld [vmem:[#allocation2 + $0xe1] sm:$0xff]
      %v484 = vld [vmem:[#allocation2 + $0xf1] sm:$0xff]
      %v485 = vld [vmem:[#allocation2 + $0xf9] sm:$0xff]
      %v486 = vld [vmem:[#allocation2 + $0x109] sm:$0xff]
      %v487 = vld [vmem:[#allocation2 + $0x111] sm:$0xff]
      %v488 = vld [vmem:[#allocation2 + $0x121] sm:$0xff]
      %v489 = vld [vmem:[#allocation2 + $0x129] sm:$0xff]
      %v490 = vld [vmem:[#allocation2 + $0x139] sm:$0xff]
      %v491 = vld [vmem:[#allocation2 + $0x141] sm:$0xff]
      %v492 = vld [vmem:[#allocation2 + $0x151] sm:$0xff]
      %v493 = vld [vmem:[#allocation2 + $0x159] sm:$0xff]
      %v494 = vld [vmem:[#allocation2 + $0x169] sm:$0xff]
      %v495 = vld [vmem:[#allocation2 + $0x171] sm:$0xff]
      %528 = vrot.lane.b32.xlu0 %v464, 32
      %v529 = vpop.permute.xlu0 %528
      %530 = vrot.lane.b32.xlu0 %v465, 32
      %v531 = vpop.permute.xlu0 %530
      %532 = vrot.lane.b32.xlu0 %v466, 32
      %v533 = vpop.permute.xlu0 %532
      %534 = vrot.lane.b32.xlu0 %v467, 32
      %v535 = vpop.permute.xlu0 %534
      %536 = vrot.lane.b32.xlu0 %v468, 32
      %v537 = vpop.permute.xlu0 %536
      %538 = vrot.lane.b32.xlu0 %v469, 32
      %v539 = vpop.permute.xlu0 %538
      %540 = vrot.lane.b32.xlu0 %v470, 32
      %v541 = vpop.permute.xlu0 %540
      %542 = vrot.lane.b32.xlu0 %v471, 32
      %v543 = vpop.permute.xlu0 %542
      %544 = vrot.lane.b32.xlu0 %v472, 32
      %v545 = vpop.permute.xlu0 %544
      %546 = vrot.lane.b32.xlu0 %v473, 32
      %v547 = vpop.permute.xlu0 %546
      %548 = vrot.lane.b32.xlu0 %v474, 32
      %v549 = vpop.permute.xlu0 %548
      %550 = vrot.lane.b32.xlu0 %v475, 32
      %v551 = vpop.permute.xlu0 %550
      %552 = vrot.lane.b32.xlu0 %v476, 32
      %v553 = vpop.permute.xlu0 %552
      %554 = vrot.lane.b32.xlu0 %v477, 32
      %v555 = vpop.permute.xlu0 %554
      %556 = vrot.lane.b32.xlu0 %v478, 32
      %v557 = vpop.permute.xlu0 %556
      %558 = vrot.lane.b32.xlu0 %v479, 32
      %v559 = vpop.permute.xlu0 %558
      %560 = vrot.lane.b32.xlu0 %v480, 32
      %v561 = vpop.permute.xlu0 %560
      %562 = vrot.lane.b32.xlu0 %v481, 32
      %v563 = vpop.permute.xlu0 %562
      %564 = vrot.lane.b32.xlu0 %v482, 32
      %v565 = vpop.permute.xlu0 %564
      %566 = vrot.lane.b32.xlu0 %v483, 32
      %v567 = vpop.permute.xlu0 %566
      %568 = vrot.lane.b32.xlu0 %v484, 32
      %v569 = vpop.permute.xlu0 %568
      %570 = vrot.lane.b32.xlu0 %v485, 32
      %v571 = vpop.permute.xlu0 %570
      %572 = vrot.lane.b32.xlu0 %v486, 32
      %v573 = vpop.permute.xlu0 %572
      %574 = vrot.lane.b32.xlu0 %v487, 32
      %v575 = vpop.permute.xlu0 %574
      %576 = vrot.lane.b32.xlu0 %v488, 32
      %v577 = vpop.permute.xlu0 %576
      %578 = vrot.lane.b32.xlu0 %v489, 32
      %v579 = vpop.permute.xlu0 %578
      %580 = vrot.lane.b32.xlu0 %v490, 32
      %v581 = vpop.permute.xlu0 %580
      %582 = vrot.lane.b32.xlu0 %v491, 32
      %v583 = vpop.permute.xlu0 %582
      %584 = vrot.lane.b32.xlu0 %v492, 32
      %v585 = vpop.permute.xlu0 %584
      %586 = vrot.lane.b32.xlu0 %v493, 32
      %v587 = vpop.permute.xlu0 %586
      %588 = vrot.lane.b32.xlu0 %v494, 32
      %v589 = vpop.permute.xlu0 %588
      %590 = vrot.lane.b32.xlu0 %v495, 32
      %v591 = vpop.permute.xlu0 %590
      %vm624 = vcmask 523520
      %625 = vst.msk [vmem:[#allocation3] sm:$0xff] %vm624, %v529
      %626 = vst.msk [vmem:[#allocation3 + $0x18] sm:$0xff] %vm624, %v531
      %627 = vst.msk [vmem:[#allocation3 + $0x30] sm:$0xff] %vm624, %v533
      %628 = vst.msk [vmem:[#allocation3 + $0x48] sm:$0xff] %vm624, %v535
      %629 = vst.msk [vmem:[#allocation3 + $0x60] sm:$0xff] %vm624, %v537
      %630 = vst.msk [vmem:[#allocation3 + $0x78] sm:$0xff] %vm624, %v539
      %631 = vst.msk [vmem:[#allocation3 + $0x90] sm:$0xff] %vm624, %v541
      %632 = vst.msk [vmem:[#allocation3 + $0xa8] sm:$0xff] %vm624, %v543
      %633 = vst.msk [vmem:[#allocation3 + $0xc0] sm:$0xff] %vm624, %v545
      %634 = vst.msk [vmem:[#allocation3 + $0xd8] sm:$0xff] %vm624, %v547
      %635 = vst.msk [vmem:[#allocation3 + $0xf0] sm:$0xff] %vm624, %v549
      %636 = vst.msk [vmem:[#allocation3 + $0x108] sm:$0xff] %vm624, %v551
      %637 = vst.msk [vmem:[#allocation3 + $0x120] sm:$0xff] %vm624, %v553
      %638 = vst.msk [vmem:[#allocation3 + $0x138] sm:$0xff] %vm624, %v555
      %639 = vst.msk [vmem:[#allocation3 + $0x150] sm:$0xff] %vm624, %v557
      %640 = vst.msk [vmem:[#allocation3 + $0x168] sm:$0xff] %vm624, %v559
      %641 = vst.msk [vmem:[#allocation3 + $0x180] sm:$0xff] %vm624, %v561
      %642 = vst.msk [vmem:[#allocation3 + $0x198] sm:$0xff] %vm624, %v563
      %643 = vst.msk [vmem:[#allocation3 + $0x1b0] sm:$0xff] %vm624, %v565
      %644 = vst.msk [vmem:[#allocation3 + $0x1c8] sm:$0xff] %vm624, %v567
      %645 = vst.msk [vmem:[#allocation3 + $0x1e0] sm:$0xff] %vm624, %v569
      %646 = vst.msk [vmem:[#allocation3 + $0x1f8] sm:$0xff] %vm624, %v571
      %647 = vst.msk [vmem:[#allocation3 + $0x210] sm:$0xff] %vm624, %v573
      %648 = vst.msk [vmem:[#allocation3 + $0x228] sm:$0xff] %vm624, %v575
      %649 = vst.msk [vmem:[#allocation3 + $0x240] sm:$0xff] %vm624, %v577
      %650 = vst.msk [vmem:[#allocation3 + $0x258] sm:$0xff] %vm624, %v579
      %651 = vst.msk [vmem:[#allocation3 + $0x270] sm:$0xff] %vm624, %v581
      %652 = vst.msk [vmem:[#allocation3 + $0x288] sm:$0xff] %vm624, %v583
      %653 = vst.msk [vmem:[#allocation3 + $0x2a0] sm:$0xff] %vm624, %v585
      %654 = vst.msk [vmem:[#allocation3 + $0x2b8] sm:$0xff] %vm624, %v587
      %655 = vst.msk [vmem:[#allocation3 + $0x2d0] sm:$0xff] %vm624, %v589
      %656 = vst.msk [vmem:[#allocation3 + $0x2e8] sm:$0xff] %vm624, %v591
      %v657 = vld [vmem:[#allocation2 + $0x2] sm:$0xff]
      %v658 = vld [vmem:[#allocation2 + $0xa] sm:$0xff]
      %v659 = vld [vmem:[#allocation2 + $0x1a] sm:$0xff]
      %v660 = vld [vmem:[#allocation2 + $0x22] sm:$0xff]
      %v661 = vld [vmem:[#allocation2 + $0x32] sm:$0xff]
      %v662 = vld [vmem:[#allocation2 + $0x3a] sm:$0xff]
      %v663 = vld [vmem:[#allocation2 + $0x4a] sm:$0xff]
      %v664 = vld [vmem:[#allocation2 + $0x52] sm:$0xff]
      %v665 = vld [vmem:[#allocation2 + $0x62] sm:$0xff]
      %v666 = vld [vmem:[#allocation2 + $0x6a] sm:$0xff]
      %v667 = vld [vmem:[#allocation2 + $0x7a] sm:$0xff]
      %v668 = vld [vmem:[#allocation2 + $0x82] sm:$0xff]
      %v669 = vld [vmem:[#allocation2 + $0x92] sm:$0xff]
      %v670 = vld [vmem:[#allocation2 + $0x9a] sm:$0xff]
      %v671 = vld [vmem:[#allocation2 + $0xaa] sm:$0xff]
      %v672 = vld [vmem:[#allocation2 + $0xb2] sm:$0xff]
      %v673 = vld [vmem:[#allocation2 + $0xc2] sm:$0xff]
      %v674 = vld [vmem:[#allocation2 + $0xca] sm:$0xff]
      %v675 = vld [vmem:[#allocation2 + $0xda] sm:$0xff]
      %v676 = vld [vmem:[#allocation2 + $0xe2] sm:$0xff]
      %v677 = vld [vmem:[#allocation2 + $0xf2] sm:$0xff]
      %v678 = vld [vmem:[#allocation2 + $0xfa] sm:$0xff]
      %v679 = vld [vmem:[#allocation2 + $0x10a] sm:$0xff]
      %v680 = vld [vmem:[#allocation2 + $0x112] sm:$0xff]
      %v681 = vld [vmem:[#allocation2 + $0x122] sm:$0xff]
      %v682 = vld [vmem:[#allocation2 + $0x12a] sm:$0xff]
      %v683 = vld [vmem:[#allocation2 + $0x13a] sm:$0xff]
      %v684 = vld [vmem:[#allocation2 + $0x142] sm:$0xff]
      %v685 = vld [vmem:[#allocation2 + $0x152] sm:$0xff]
      %v686 = vld [vmem:[#allocation2 + $0x15a] sm:$0xff]
      %v687 = vld [vmem:[#allocation2 + $0x16a] sm:$0xff]
      %v688 = vld [vmem:[#allocation2 + $0x172] sm:$0xff]
      %721 = vrot.lane.b32.xlu0 %v657, 64
      %v722 = vpop.permute.xlu0 %721
      %723 = vrot.lane.b32.xlu0 %v658, 64
      %v724 = vpop.permute.xlu0 %723
      %725 = vrot.lane.b32.xlu0 %v659, 64
      %v726 = vpop.permute.xlu0 %725
      %727 = vrot.lane.b32.xlu0 %v660, 64
      %v728 = vpop.permute.xlu0 %727
      %729 = vrot.lane.b32.xlu0 %v661, 64
      %v730 = vpop.permute.xlu0 %729
      %731 = vrot.lane.b32.xlu0 %v662, 64
      %v732 = vpop.permute.xlu0 %731
      %733 = vrot.lane.b32.xlu0 %v663, 64
      %v734 = vpop.permute.xlu0 %733
      %735 = vrot.lane.b32.xlu0 %v664, 64
      %v736 = vpop.permute.xlu0 %735
      %737 = vrot.lane.b32.xlu0 %v665, 64
      %v738 = vpop.permute.xlu0 %737
      %739 = vrot.lane.b32.xlu0 %v666, 64
      %v740 = vpop.permute.xlu0 %739
      %741 = vrot.lane.b32.xlu0 %v667, 64
      %v742 = vpop.permute.xlu0 %741
      %743 = vrot.lane.b32.xlu0 %v668, 64
      %v744 = vpop.permute.xlu0 %743
      %745 = vrot.lane.b32.xlu0 %v669, 64
      %v746 = vpop.permute.xlu0 %745
      %747 = vrot.lane.b32.xlu0 %v670, 64
      %v748 = vpop.permute.xlu0 %747
      %749 = vrot.lane.b32.xlu0 %v671, 64
      %v750 = vpop.permute.xlu0 %749
      %751 = vrot.lane.b32.xlu0 %v672, 64
      %v752 = vpop.permute.xlu0 %751
      %753 = vrot.lane.b32.xlu0 %v673, 64
      %v754 = vpop.permute.xlu0 %753
      %755 = vrot.lane.b32.xlu0 %v674, 64
      %v756 = vpop.permute.xlu0 %755
      %757 = vrot.lane.b32.xlu0 %v675, 64
      %v758 = vpop.permute.xlu0 %757
      %759 = vrot.lane.b32.xlu0 %v676, 64
      %v760 = vpop.permute.xlu0 %759
      %761 = vrot.lane.b32.xlu0 %v677, 64
      %v762 = vpop.permute.xlu0 %761
      %763 = vrot.lane.b32.xlu0 %v678, 64
      %v764 = vpop.permute.xlu0 %763
      %765 = vrot.lane.b32.xlu0 %v679, 64
      %v766 = vpop.permute.xlu0 %765
      %767 = vrot.lane.b32.xlu0 %v680, 64
      %v768 = vpop.permute.xlu0 %767
      %769 = vrot.lane.b32.xlu0 %v681, 64
      %v770 = vpop.permute.xlu0 %769
      %771 = vrot.lane.b32.xlu0 %v682, 64
      %v772 = vpop.permute.xlu0 %771
      %773 = vrot.lane.b32.xlu0 %v683, 64
      %v774 = vpop.permute.xlu0 %773
      %775 = vrot.lane.b32.xlu0 %v684, 64
      %v776 = vpop.permute.xlu0 %775
      %777 = vrot.lane.b32.xlu0 %v685, 64
      %v778 = vpop.permute.xlu0 %777
      %779 = vrot.lane.b32.xlu0 %v686, 64
      %v780 = vpop.permute.xlu0 %779
      %781 = vrot.lane.b32.xlu0 %v687, 64
      %v782 = vpop.permute.xlu0 %781
      %783 = vrot.lane.b32.xlu0 %v688, 64
      %v784 = vpop.permute.xlu0 %783
      %vm817 = vcmask 785920
      %818 = vst.msk [vmem:[#allocation3] sm:$0xff] %vm817, %v722
      %819 = vst.msk [vmem:[#allocation3 + $0x18] sm:$0xff] %vm817, %v724
      %820 = vst.msk [vmem:[#allocation3 + $0x30] sm:$0xff] %vm817, %v726
      %821 = vst.msk [vmem:[#allocation3 + $0x48] sm:$0xff] %vm817, %v728
      %822 = vst.msk [vmem:[#allocation3 + $0x60] sm:$0xff] %vm817, %v730
      %823 = vst.msk [vmem:[#allocation3 + $0x78] sm:$0xff] %vm817, %v732
      %824 = vst.msk [vmem:[#allocation3 + $0x90] sm:$0xff] %vm817, %v734
      %825 = vst.msk [vmem:[#allocation3 + $0xa8] sm:$0xff] %vm817, %v736
      %826 = vst.msk [vmem:[#allocation3 + $0xc0] sm:$0xff] %vm817, %v738
      %827 = vst.msk [vmem:[#allocation3 + $0xd8] sm:$0xff] %vm817, %v740
      %828 = vst.msk [vmem:[#allocation3 + $0xf0] sm:$0xff] %vm817, %v742
      %829 = vst.msk [vmem:[#allocation3 + $0x108] sm:$0xff] %vm817, %v744
      %830 = vst.msk [vmem:[#allocation3 + $0x120] sm:$0xff] %vm817, %v746
      %831 = vst.msk [vmem:[#allocation3 + $0x138] sm:$0xff] %vm817, %v748
      %832 = vst.msk [vmem:[#allocation3 + $0x150] sm:$0xff] %vm817, %v750
      %833 = vst.msk [vmem:[#allocation3 + $0x168] sm:$0xff] %vm817, %v752
      %834 = vst.msk [vmem:[#allocation3 + $0x180] sm:$0xff] %vm817, %v754
      %835 = vst.msk [vmem:[#allocation3 + $0x198] sm:$0xff] %vm817, %v756
      %836 = vst.msk [vmem:[#allocation3 + $0x1b0] sm:$0xff] %vm817, %v758
      %837 = vst.msk [vmem:[#allocation3 + $0x1c8] sm:$0xff] %vm817, %v760
      %838 = vst.msk [vmem:[#allocation3 + $0x1e0] sm:$0xff] %vm817, %v762
      %839 = vst.msk [vmem:[#allocation3 + $0x1f8] sm:$0xff] %vm817, %v764
      %840 = vst.msk [vmem:[#allocation3 + $0x210] sm:$0xff] %vm817, %v766
      %841 = vst.msk [vmem:[#allocation3 + $0x228] sm:$0xff] %vm817, %v768
      %842 = vst.msk [vmem:[#allocation3 + $0x240] sm:$0xff] %vm817, %v770
      %843 = vst.msk [vmem:[#allocation3 + $0x258] sm:$0xff] %vm817, %v772
      %844 = vst.msk [vmem:[#allocation3 + $0x270] sm:$0xff] %vm817, %v774
      %845 = vst.msk [vmem:[#allocation3 + $0x288] sm:$0xff] %vm817, %v776
      %846 = vst.msk [vmem:[#allocation3 + $0x2a0] sm:$0xff] %vm817, %v778
      %847 = vst.msk [vmem:[#allocation3 + $0x2b8] sm:$0xff] %vm817, %v780
      %848 = vst.msk [vmem:[#allocation3 + $0x2d0] sm:$0xff] %vm817, %v782
      %849 = vst.msk [vmem:[#allocation3 + $0x2e8] sm:$0xff] %vm817, %v784
      %v850 = vld [vmem:[%s367] sm:$0xff]
      %v851 = vld [vmem:[%s367 + $0x8] sm:$0xff]
      %v852 = vld [vmem:[%s367 + $0x18] sm:$0xff]
      %v853 = vld [vmem:[%s367 + $0x20] sm:$0xff]
      %v854 = vld [vmem:[%s367 + $0x30] sm:$0xff]
      %v855 = vld [vmem:[%s367 + $0x38] sm:$0xff]
      %v856 = vld [vmem:[%s367 + $0x48] sm:$0xff]
      %v857 = vld [vmem:[%s367 + $0x50] sm:$0xff]
      %v858 = vld [vmem:[%s367 + $0x60] sm:$0xff]
      %v859 = vld [vmem:[%s367 + $0x68] sm:$0xff]
      %v860 = vld [vmem:[%s367 + $0x78] sm:$0xff]
      %v861 = vld [vmem:[%s367 + $0x80] sm:$0xff]
      %v862 = vld [vmem:[%s367 + $0x90] sm:$0xff]
      %v863 = vld [vmem:[%s367 + $0x98] sm:$0xff]
      %v864 = vld [vmem:[%s367 + $0xa8] sm:$0xff]
      %v865 = vld [vmem:[%s367 + $0xb0] sm:$0xff]
      %v866 = vld [vmem:[%s367 + $0xc0] sm:$0xff]
      %v867 = vld [vmem:[%s367 + $0xc8] sm:$0xff]
      %v868 = vld [vmem:[%s367 + $0xd8] sm:$0xff]
      %v869 = vld [vmem:[%s367 + $0xe0] sm:$0xff]
      %v870 = vld [vmem:[%s367 + $0xf0] sm:$0xff]
      %v871 = vld [vmem:[%s367 + $0xf8] sm:$0xff]
      %v872 = vld [vmem:[%s367 + $0x108] sm:$0xff]
      %v873 = vld [vmem:[%s367 + $0x110] sm:$0xff]
      %v874 = vld [vmem:[%s367 + $0x120] sm:$0xff]
      %v875 = vld [vmem:[%s367 + $0x128] sm:$0xff]
      %v876 = vld [vmem:[%s367 + $0x138] sm:$0xff]
      %v877 = vld [vmem:[%s367 + $0x140] sm:$0xff]
      %v878 = vld [vmem:[%s367 + $0x150] sm:$0xff]
      %v879 = vld [vmem:[%s367 + $0x158] sm:$0xff]
      %v880 = vld [vmem:[%s367 + $0x168] sm:$0xff]
      %v881 = vld [vmem:[%s367 + $0x170] sm:$0xff]
      %914 = vrot.lane.b32.xlu0 %v850, 96
      %v915 = vpop.permute.xlu0 %914
      %916 = vrot.lane.b32.xlu0 %v851, 96
      %v917 = vpop.permute.xlu0 %916
      %918 = vrot.lane.b32.xlu0 %v852, 96
      %v919 = vpop.permute.xlu0 %918
      %920 = vrot.lane.b32.xlu0 %v853, 96
      %v921 = vpop.permute.xlu0 %920
      %922 = vrot.lane.b32.xlu0 %v854, 96
      %v923 = vpop.permute.xlu0 %922
      %924 = vrot.lane.b32.xlu0 %v855, 96
      %v925 = vpop.permute.xlu0 %924
      %926 = vrot.lane.b32.xlu0 %v856, 96
      %v927 = vpop.permute.xlu0 %926
      %928 = vrot.lane.b32.xlu0 %v857, 96
      %v929 = vpop.permute.xlu0 %928
      %930 = vrot.lane.b32.xlu0 %v858, 96
      %v931 = vpop.permute.xlu0 %930
      %932 = vrot.lane.b32.xlu0 %v859, 96
      %v933 = vpop.permute.xlu0 %932
      %934 = vrot.lane.b32.xlu0 %v860, 96
      %v935 = vpop.permute.xlu0 %934
      %936 = vrot.lane.b32.xlu0 %v861, 96
      %v937 = vpop.permute.xlu0 %936
      %938 = vrot.lane.b32.xlu0 %v862, 96
      %v939 = vpop.permute.xlu0 %938
      %940 = vrot.lane.b32.xlu0 %v863, 96
      %v941 = vpop.permute.xlu0 %940
      %942 = vrot.lane.b32.xlu0 %v864, 96
      %v943 = vpop.permute.xlu0 %942
      %944 = vrot.lane.b32.xlu0 %v865, 96
      %v945 = vpop.permute.xlu0 %944
      %946 = vrot.lane.b32.xlu0 %v866, 96
      %v947 = vpop.permute.xlu0 %946
      %948 = vrot.lane.b32.xlu0 %v867, 96
      %v949 = vpop.permute.xlu0 %948
      %950 = vrot.lane.b32.xlu0 %v868, 96
      %v951 = vpop.permute.xlu0 %950
      %952 = vrot.lane.b32.xlu0 %v869, 96
      %v953 = vpop.permute.xlu0 %952
      %954 = vrot.lane.b32.xlu0 %v870, 96
      %v955 = vpop.permute.xlu0 %954
      %956 = vrot.lane.b32.xlu0 %v871, 96
      %v957 = vpop.permute.xlu0 %956
      %958 = vrot.lane.b32.xlu0 %v872, 96
      %v959 = vpop.permute.xlu0 %958
      %960 = vrot.lane.b32.xlu0 %v873, 96
      %v961 = vpop.permute.xlu0 %960
      %962 = vrot.lane.b32.xlu0 %v874, 96
      %v963 = vpop.permute.xlu0 %962
      %964 = vrot.lane.b32.xlu0 %v875, 96
      %v965 = vpop.permute.xlu0 %964
      %966 = vrot.lane.b32.xlu0 %v876, 96
      %v967 = vpop.permute.xlu0 %966
      %968 = vrot.lane.b32.xlu0 %v877, 96
      %v969 = vpop.permute.xlu0 %968
      %970 = vrot.lane.b32.xlu0 %v878, 96
      %v971 = vpop.permute.xlu0 %970
      %972 = vrot.lane.b32.xlu0 %v879, 96
      %v973 = vpop.permute.xlu0 %972
      %974 = vrot.lane.b32.xlu0 %v880, 96
      %v975 = vpop.permute.xlu0 %974
      %976 = vrot.lane.b32.xlu0 %v881, 96
      %v977 = vpop.permute.xlu0 %976
      %vm1010 = vcmask 1048320
      %1011 = vst.msk [vmem:[#allocation3] sm:$0xff] %vm1010, %v915
      %1012 = vst.msk [vmem:[#allocation3 + $0x18] sm:$0xff] %vm1010, %v917
      %1013 = vst.msk [vmem:[#allocation3 + $0x30] sm:$0xff] %vm1010, %v919
      %1014 = vst.msk [vmem:[#allocation3 + $0x48] sm:$0xff] %vm1010, %v921
      %1015 = vst.msk [vmem:[#allocation3 + $0x60] sm:$0xff] %vm1010, %v923
      %1016 = vst.msk [vmem:[#allocation3 + $0x78] sm:$0xff] %vm1010, %v925
      %1017 = vst.msk [vmem:[#allocation3 + $0x90] sm:$0xff] %vm1010, %v927
      %1018 = vst.msk [vmem:[#allocation3 + $0xa8] sm:$0xff] %vm1010, %v929
      %1019 = vst.msk [vmem:[#allocation3 + $0xc0] sm:$0xff] %vm1010, %v931
      %1020 = vst.msk [vmem:[#allocation3 + $0xd8] sm:$0xff] %vm1010, %v933
      %1021 = vst.msk [vmem:[#allocation3 + $0xf0] sm:$0xff] %vm1010, %v935
      %1022 = vst.msk [vmem:[#allocation3 + $0x108] sm:$0xff] %vm1010, %v937
      %1023 = vst.msk [vmem:[#allocation3 + $0x120] sm:$0xff] %vm1010, %v939
      %1024 = vst.msk [vmem:[#allocation3 + $0x138] sm:$0xff] %vm1010, %v941
      %1025 = vst.msk [vmem:[#allocation3 + $0x150] sm:$0xff] %vm1010, %v943
      %1026 = vst.msk [vmem:[#allocation3 + $0x168] sm:$0xff] %vm1010, %v945
      %1027 = vst.msk [vmem:[#allocation3 + $0x180] sm:$0xff] %vm1010, %v947
      %1028 = vst.msk [vmem:[#allocation3 + $0x198] sm:$0xff] %vm1010, %v949
      %1029 = vst.msk [vmem:[#allocation3 + $0x1b0] sm:$0xff] %vm1010, %v951
      %1030 = vst.msk [vmem:[#allocation3 + $0x1c8] sm:$0xff] %vm1010, %v953
      %1031 = vst.msk [vmem:[#allocation3 + $0x1e0] sm:$0xff] %vm1010, %v955
      %1032 = vst.msk [vmem:[#allocation3 + $0x1f8] sm:$0xff] %vm1010, %v957
      %1033 = vst.msk [vmem:[#allocation3 + $0x210] sm:$0xff] %vm1010, %v959
      %1034 = vst.msk [vmem:[#allocation3 + $0x228] sm:$0xff] %vm1010, %v961
      %1035 = vst.msk [vmem:[#allocation3 + $0x240] sm:$0xff] %vm1010, %v963
      %1036 = vst.msk [vmem:[#allocation3 + $0x258] sm:$0xff] %vm1010, %v965
      %1037 = vst.msk [vmem:[#allocation3 + $0x270] sm:$0xff] %vm1010, %v967
      %1038 = vst.msk [vmem:[#allocation3 + $0x288] sm:$0xff] %vm1010, %v969
      %1039 = vst.msk [vmem:[#allocation3 + $0x2a0] sm:$0xff] %vm1010, %v971
      %1040 = vst.msk [vmem:[#allocation3 + $0x2b8] sm:$0xff] %vm1010, %v973
      %1041 = vst.msk [vmem:[#allocation3 + $0x2d0] sm:$0xff] %vm1010, %v975
      %1042 = vst.msk [vmem:[#allocation3 + $0x2e8] sm:$0xff] %vm1010, %v977
      %v1043 = vld [vmem:[%s367 + $0x1] sm:$0xff]
      %v1044 = vld [vmem:[%s367 + $0x9] sm:$0xff]
      %v1045 = vld [vmem:[%s367 + $0x19] sm:$0xff]
      %v1046 = vld [vmem:[%s367 + $0x21] sm:$0xff]
      %v1047 = vld [vmem:[%s367 + $0x31] sm:$0xff]
      %v1048 = vld [vmem:[%s367 + $0x39] sm:$0xff]
      %v1049 = vld [vmem:[%s367 + $0x49] sm:$0xff]
      %v1050 = vld [vmem:[%s367 + $0x51] sm:$0xff]
      %v1051 = vld [vmem:[%s367 + $0x61] sm:$0xff]
      %v1052 = vld [vmem:[%s367 + $0x69] sm:$0xff]
      %v1053 = vld [vmem:[%s367 + $0x79] sm:$0xff]
      %v1054 = vld [vmem:[%s367 + $0x81] sm:$0xff]
      %v1055 = vld [vmem:[%s367 + $0x91] sm:$0xff]
      %v1056 = vld [vmem:[%s367 + $0x99] sm:$0xff]
      %v1057 = vld [vmem:[%s367 + $0xa9] sm:$0xff]
      %v1058 = vld [vmem:[%s367 + $0xb1] sm:$0xff]
      %v1059 = vld [vmem:[%s367 + $0xc1] sm:$0xff]
      %v1060 = vld [vmem:[%s367 + $0xc9] sm:$0xff]
      %v1061 = vld [vmem:[%s367 + $0xd9] sm:$0xff]
      %v1062 = vld [vmem:[%s367 + $0xe1] sm:$0xff]
      %v1063 = vld [vmem:[%s367 + $0xf1] sm:$0xff]
      %v1064 = vld [vmem:[%s367 + $0xf9] sm:$0xff]
      %v1065 = vld [vmem:[%s367 + $0x109] sm:$0xff]
      %v1066 = vld [vmem:[%s367 + $0x111] sm:$0xff]
      %v1067 = vld [vmem:[%s367 + $0x121] sm:$0xff]
      %v1068 = vld [vmem:[%s367 + $0x129] sm:$0xff]
      %v1069 = vld [vmem:[%s367 + $0x139] sm:$0xff]
      %v1070 = vld [vmem:[%s367 + $0x141] sm:$0xff]
      %v1071 = vld [vmem:[%s367 + $0x151] sm:$0xff]
      %v1072 = vld [vmem:[%s367 + $0x159] sm:$0xff]
      %v1073 = vld [vmem:[%s367 + $0x169] sm:$0xff]
      %v1074 = vld [vmem:[%s367 + $0x171] sm:$0xff]
      %1075 = vst.msk [vmem:[#allocation3 + $0x8] sm:$0xff] %vm279, %v1043
      %1076 = vst.msk [vmem:[#allocation3 + $0x20] sm:$0xff] %vm279, %v1044
      %1077 = vst.msk [vmem:[#allocation3 + $0x38] sm:$0xff] %vm279, %v1045
      %1078 = vst.msk [vmem:[#allocation3 + $0x50] sm:$0xff] %vm279, %v1046
      %1079 = vst.msk [vmem:[#allocation3 + $0x68] sm:$0xff] %vm279, %v1047
      %1080 = vst.msk [vmem:[#allocation3 + $0x80] sm:$0xff] %vm279, %v1048
      %1081 = vst.msk [vmem:[#allocation3 + $0x98] sm:$0xff] %vm279, %v1049
      %1082 = vst.msk [vmem:[#allocation3 + $0xb0] sm:$0xff] %vm279, %v1050
      %1083 = vst.msk [vmem:[#allocation3 + $0xc8] sm:$0xff] %vm279, %v1051
      %1084 = vst.msk [vmem:[#allocation3 + $0xe0] sm:$0xff] %vm279, %v1052
      %1085 = vst.msk [vmem:[#allocation3 + $0xf8] sm:$0xff] %vm279, %v1053
      %1086 = vst.msk [vmem:[#allocation3 + $0x110] sm:$0xff] %vm279, %v1054
      %1087 = vst.msk [vmem:[#allocation3 + $0x128] sm:$0xff] %vm279, %v1055
      %1088 = vst.msk [vmem:[#allocation3 + $0x140] sm:$0xff] %vm279, %v1056
      %1089 = vst.msk [vmem:[#allocation3 + $0x158] sm:$0xff] %vm279, %v1057
      %1090 = vst.msk [vmem:[#allocation3 + $0x170] sm:$0xff] %vm279, %v1058
      %1091 = vst.msk [vmem:[#allocation3 + $0x188] sm:$0xff] %vm279, %v1059
      %1092 = vst.msk [vmem:[#allocation3 + $0x1a0] sm:$0xff] %vm279, %v1060
      %1093 = vst.msk [vmem:[#allocation3 + $0x1b8] sm:$0xff] %vm279, %v1061
      %1094 = vst.msk [vmem:[#allocation3 + $0x1d0] sm:$0xff] %vm279, %v1062
      %1095 = vst.msk [vmem:[#allocation3 + $0x1e8] sm:$0xff] %vm279, %v1063
      %1096 = vst.msk [vmem:[#allocation3 + $0x200] sm:$0xff] %vm279, %v1064
      %1097 = vst.msk [vmem:[#allocation3 + $0x218] sm:$0xff] %vm279, %v1065
      %1098 = vst.msk [vmem:[#allocation3 + $0x230] sm:$0xff] %vm279, %v1066
      %1099 = vst.msk [vmem:[#allocation3 + $0x248] sm:$0xff] %vm279, %v1067
      %1100 = vst.msk [vmem:[#allocation3 + $0x260] sm:$0xff] %vm279, %v1068
      %1101 = vst.msk [vmem:[#allocation3 + $0x278] sm:$0xff] %vm279, %v1069
      %1102 = vst.msk [vmem:[#allocation3 + $0x290] sm:$0xff] %vm279, %v1070
      %1103 = vst.msk [vmem:[#allocation3 + $0x2a8] sm:$0xff] %vm279, %v1071
      %1104 = vst.msk [vmem:[#allocation3 + $0x2c0] sm:$0xff] %vm279, %v1072
      %1105 = vst.msk [vmem:[#allocation3 + $0x2d8] sm:$0xff] %vm279, %v1073
      %1106 = vst.msk [vmem:[#allocation3 + $0x2f0] sm:$0xff] %vm279, %v1074
      %v1107 = vld [vmem:[%s367 + $0x2] sm:$0xff]
      %v1108 = vld [vmem:[%s367 + $0xa] sm:$0xff]
      %v1109 = vld [vmem:[%s367 + $0x1a] sm:$0xff]
      %v1110 = vld [vmem:[%s367 + $0x22] sm:$0xff]
      %v1111 = vld [vmem:[%s367 + $0x32] sm:$0xff]
      %v1112 = vld [vmem:[%s367 + $0x3a] sm:$0xff]
      %v1113 = vld [vmem:[%s367 + $0x4a] sm:$0xff]
      %v1114 = vld [vmem:[%s367 + $0x52] sm:$0xff]
      %v1115 = vld [vmem:[%s367 + $0x62] sm:$0xff]
      %v1116 = vld [vmem:[%s367 + $0x6a] sm:$0xff]
      %v1117 = vld [vmem:[%s367 + $0x7a] sm:$0xff]
      %v1118 = vld [vmem:[%s367 + $0x82] sm:$0xff]
      %v1119 = vld [vmem:[%s367 + $0x92] sm:$0xff]
      %v1120 = vld [vmem:[%s367 + $0x9a] sm:$0xff]
      %v1121 = vld [vmem:[%s367 + $0xaa] sm:$0xff]
      %v1122 = vld [vmem:[%s367 + $0xb2] sm:$0xff]
      %v1123 = vld [vmem:[%s367 + $0xc2] sm:$0xff]
      %v1124 = vld [vmem:[%s367 + $0xca] sm:$0xff]
      %v1125 = vld [vmem:[%s367 + $0xda] sm:$0xff]
      %v1126 = vld [vmem:[%s367 + $0xe2] sm:$0xff]
      %v1127 = vld [vmem:[%s367 + $0xf2] sm:$0xff]
      %v1128 = vld [vmem:[%s367 + $0xfa] sm:$0xff]
      %v1129 = vld [vmem:[%s367 + $0x10a] sm:$0xff]
      %v1130 = vld [vmem:[%s367 + $0x112] sm:$0xff]
      %v1131 = vld [vmem:[%s367 + $0x122] sm:$0xff]
      %v1132 = vld [vmem:[%s367 + $0x12a] sm:$0xff]
      %v1133 = vld [vmem:[%s367 + $0x13a] sm:$0xff]
      %v1134 = vld [vmem:[%s367 + $0x142] sm:$0xff]
      %v1135 = vld [vmem:[%s367 + $0x152] sm:$0xff]
      %v1136 = vld [vmem:[%s367 + $0x15a] sm:$0xff]
      %v1137 = vld [vmem:[%s367 + $0x16a] sm:$0xff]
      %v1138 = vld [vmem:[%s367 + $0x172] sm:$0xff]
      %1171 = vrot.lane.b32.xlu0 %v1107, 32
      %v1172 = vpop.permute.xlu0 %1171
      %1173 = vrot.lane.b32.xlu0 %v1108, 32
      %v1174 = vpop.permute.xlu0 %1173
      %1175 = vrot.lane.b32.xlu0 %v1109, 32
      %v1176 = vpop.permute.xlu0 %1175
      %1177 = vrot.lane.b32.xlu0 %v1110, 32
      %v1178 = vpop.permute.xlu0 %1177
      %1179 = vrot.lane.b32.xlu0 %v1111, 32
      %v1180 = vpop.permute.xlu0 %1179
      %1181 = vrot.lane.b32.xlu0 %v1112, 32
      %v1182 = vpop.permute.xlu0 %1181
      %1183 = vrot.lane.b32.xlu0 %v1113, 32
      %v1184 = vpop.permute.xlu0 %1183
      %1185 = vrot.lane.b32.xlu0 %v1114, 32
      %v1186 = vpop.permute.xlu0 %1185
      %1187 = vrot.lane.b32.xlu0 %v1115, 32
      %v1188 = vpop.permute.xlu0 %1187
      %1189 = vrot.lane.b32.xlu0 %v1116, 32
      %v1190 = vpop.permute.xlu0 %1189
      %1191 = vrot.lane.b32.xlu0 %v1117, 32
      %v1192 = vpop.permute.xlu0 %1191
      %1193 = vrot.lane.b32.xlu0 %v1118, 32
      %v1194 = vpop.permute.xlu0 %1193
      %1195 = vrot.lane.b32.xlu0 %v1119, 32
      %v1196 = vpop.permute.xlu0 %1195
      %1197 = vrot.lane.b32.xlu0 %v1120, 32
      %v1198 = vpop.permute.xlu0 %1197
      %1199 = vrot.lane.b32.xlu0 %v1121, 32
      %v1200 = vpop.permute.xlu0 %1199
      %1201 = vrot.lane.b32.xlu0 %v1122, 32
      %v1202 = vpop.permute.xlu0 %1201
      %1203 = vrot.lane.b32.xlu0 %v1123, 32
      %v1204 = vpop.permute.xlu0 %1203
      %1205 = vrot.lane.b32.xlu0 %v1124, 32
      %v1206 = vpop.permute.xlu0 %1205
      %1207 = vrot.lane.b32.xlu0 %v1125, 32
      %v1208 = vpop.permute.xlu0 %1207
      %1209 = vrot.lane.b32.xlu0 %v1126, 32
      %v1210 = vpop.permute.xlu0 %1209
      %1211 = vrot.lane.b32.xlu0 %v1127, 32
      %v1212 = vpop.permute.xlu0 %1211
      %1213 = vrot.lane.b32.xlu0 %v1128, 32
      %v1214 = vpop.permute.xlu0 %1213
      %1215 = vrot.lane.b32.xlu0 %v1129, 32
      %v1216 = vpop.permute.xlu0 %1215
      %1217 = vrot.lane.b32.xlu0 %v1130, 32
      %v1218 = vpop.permute.xlu0 %1217
      %1219 = vrot.lane.b32.xlu0 %v1131, 32
      %v1220 = vpop.permute.xlu0 %1219
      %1221 = vrot.lane.b32.xlu0 %v1132, 32
      %v1222 = vpop.permute.xlu0 %1221
      %1223 = vrot.lane.b32.xlu0 %v1133, 32
      %v1224 = vpop.permute.xlu0 %1223
      %1225 = vrot.lane.b32.xlu0 %v1134, 32
      %v1226 = vpop.permute.xlu0 %1225
      %1227 = vrot.lane.b32.xlu0 %v1135, 32
      %v1228 = vpop.permute.xlu0 %1227
      %1229 = vrot.lane.b32.xlu0 %v1136, 32
      %v1230 = vpop.permute.xlu0 %1229
      %1231 = vrot.lane.b32.xlu0 %v1137, 32
      %v1232 = vpop.permute.xlu0 %1231
      %1233 = vrot.lane.b32.xlu0 %v1138, 32
      %v1234 = vpop.permute.xlu0 %1233
      %1267 = vst.msk [vmem:[#allocation3 + $0x8] sm:$0xff] %vm624, %v1172
      %1268 = vst.msk [vmem:[#allocation3 + $0x20] sm:$0xff] %vm624, %v1174
      %1269 = vst.msk [vmem:[#allocation3 + $0x38] sm:$0xff] %vm624, %v1176
      %1270 = vst.msk [vmem:[#allocation3 + $0x50] sm:$0xff] %vm624, %v1178
      %1271 = vst.msk [vmem:[#allocation3 + $0x68] sm:$0xff] %vm624, %v1180
      %1272 = vst.msk [vmem:[#allocation3 + $0x80] sm:$0xff] %vm624, %v1182
      %1273 = vst.msk [vmem:[#allocation3 + $0x98] sm:$0xff] %vm624, %v1184
      %1274 = vst.msk [vmem:[#allocation3 + $0xb0] sm:$0xff] %vm624, %v1186
      %1275 = vst.msk [vmem:[#allocation3 + $0xc8] sm:$0xff] %vm624, %v1188
      %1276 = vst.msk [vmem:[#allocation3 + $0xe0] sm:$0xff] %vm624, %v1190
      %1277 = vst.msk [vmem:[#allocation3 + $0xf8] sm:$0xff] %vm624, %v1192
      %1278 = vst.msk [vmem:[#allocation3 + $0x110] sm:$0xff] %vm624, %v1194
      %1279 = vst.msk [vmem:[#allocation3 + $0x128] sm:$0xff] %vm624, %v1196
      %1280 = vst.msk [vmem:[#allocation3 + $0x140] sm:$0xff] %vm624, %v1198
      %1281 = vst.msk [vmem:[#allocation3 + $0x158] sm:$0xff] %vm624, %v1200
      %1282 = vst.msk [vmem:[#allocation3 + $0x170] sm:$0xff] %vm624, %v1202
      %1283 = vst.msk [vmem:[#allocation3 + $0x188] sm:$0xff] %vm624, %v1204
      %1284 = vst.msk [vmem:[#allocation3 + $0x1a0] sm:$0xff] %vm624, %v1206
      %1285 = vst.msk [vmem:[#allocation3 + $0x1b8] sm:$0xff] %vm624, %v1208
      %1286 = vst.msk [vmem:[#allocation3 + $0x1d0] sm:$0xff] %vm624, %v1210
      %1287 = vst.msk [vmem:[#allocation3 + $0x1e8] sm:$0xff] %vm624, %v1212
      %1288 = vst.msk [vmem:[#allocation3 + $0x200] sm:$0xff] %vm624, %v1214
      %1289 = vst.msk [vmem:[#allocation3 + $0x218] sm:$0xff] %vm624, %v1216
      %1290 = vst.msk [vmem:[#allocation3 + $0x230] sm:$0xff] %vm624, %v1218
      %1291 = vst.msk [vmem:[#allocation3 + $0x248] sm:$0xff] %vm624, %v1220
      %1292 = vst.msk [vmem:[#allocation3 + $0x260] sm:$0xff] %vm624, %v1222
      %1293 = vst.msk [vmem:[#allocation3 + $0x278] sm:$0xff] %vm624, %v1224
      %1294 = vst.msk [vmem:[#allocation3 + $0x290] sm:$0xff] %vm624, %v1226
      %1295 = vst.msk [vmem:[#allocation3 + $0x2a8] sm:$0xff] %vm624, %v1228
      %1296 = vst.msk [vmem:[#allocation3 + $0x2c0] sm:$0xff] %vm624, %v1230
      %1297 = vst.msk [vmem:[#allocation3 + $0x2d8] sm:$0xff] %vm624, %v1232
      %1298 = vst.msk [vmem:[#allocation3 + $0x2f0] sm:$0xff] %vm624, %v1234
      %s1299 = scalar_lea.vmem [#allocation2], 48
      %v1300 = vld [vmem:[%s1299] sm:$0xff]
      %v1301 = vld [vmem:[%s1299 + $0x8] sm:$0xff]
      %v1302 = vld [vmem:[%s1299 + $0x18] sm:$0xff]
      %v1303 = vld [vmem:[%s1299 + $0x20] sm:$0xff]
      %v1304 = vld [vmem:[%s1299 + $0x30] sm:$0xff]
      %v1305 = vld [vmem:[%s1299 + $0x38] sm:$0xff]
      %v1306 = vld [vmem:[%s1299 + $0x48] sm:$0xff]
      %v1307 = vld [vmem:[%s1299 + $0x50] sm:$0xff]
      %v1308 = vld [vmem:[%s1299 + $0x60] sm:$0xff]
      %v1309 = vld [vmem:[%s1299 + $0x68] sm:$0xff]
      %v1310 = vld [vmem:[%s1299 + $0x78] sm:$0xff]
      %v1311 = vld [vmem:[%s1299 + $0x80] sm:$0xff]
      %v1312 = vld [vmem:[%s1299 + $0x90] sm:$0xff]
      %v1313 = vld [vmem:[%s1299 + $0x98] sm:$0xff]
      %v1314 = vld [vmem:[%s1299 + $0xa8] sm:$0xff]
      %v1315 = vld [vmem:[%s1299 + $0xb0] sm:$0xff]
      %v1316 = vld [vmem:[%s1299 + $0xc0] sm:$0xff]
      %v1317 = vld [vmem:[%s1299 + $0xc8] sm:$0xff]
      %v1318 = vld [vmem:[%s1299 + $0xd8] sm:$0xff]
      %v1319 = vld [vmem:[%s1299 + $0xe0] sm:$0xff]
      %v1320 = vld [vmem:[%s1299 + $0xf0] sm:$0xff]
      %v1321 = vld [vmem:[%s1299 + $0xf8] sm:$0xff]
      %v1322 = vld [vmem:[%s1299 + $0x108] sm:$0xff]
      %v1323 = vld [vmem:[%s1299 + $0x110] sm:$0xff]
      %v1324 = vld [vmem:[%s1299 + $0x120] sm:$0xff]
      %v1325 = vld [vmem:[%s1299 + $0x128] sm:$0xff]
      %v1326 = vld [vmem:[%s1299 + $0x138] sm:$0xff]
      %v1327 = vld [vmem:[%s1299 + $0x140] sm:$0xff]
      %v1328 = vld [vmem:[%s1299 + $0x150] sm:$0xff]
      %v1329 = vld [vmem:[%s1299 + $0x158] sm:$0xff]
      %v1330 = vld [vmem:[%s1299 + $0x168] sm:$0xff]
      %v1331 = vld [vmem:[%s1299 + $0x170] sm:$0xff]
      %1364 = vrot.lane.b32.xlu0 %v1300, 64
      %v1365 = vpop.permute.xlu0 %1364
      %1366 = vrot.lane.b32.xlu0 %v1301, 64
      %v1367 = vpop.permute.xlu0 %1366
      %1368 = vrot.lane.b32.xlu0 %v1302, 64
      %v1369 = vpop.permute.xlu0 %1368
      %1370 = vrot.lane.b32.xlu0 %v1303, 64
      %v1371 = vpop.permute.xlu0 %1370
      %1372 = vrot.lane.b32.xlu0 %v1304, 64
      %v1373 = vpop.permute.xlu0 %1372
      %1374 = vrot.lane.b32.xlu0 %v1305, 64
      %v1375 = vpop.permute.xlu0 %1374
      %1376 = vrot.lane.b32.xlu0 %v1306, 64
      %v1377 = vpop.permute.xlu0 %1376
      %1378 = vrot.lane.b32.xlu0 %v1307, 64
      %v1379 = vpop.permute.xlu0 %1378
      %1380 = vrot.lane.b32.xlu0 %v1308, 64
      %v1381 = vpop.permute.xlu0 %1380
      %1382 = vrot.lane.b32.xlu0 %v1309, 64
      %v1383 = vpop.permute.xlu0 %1382
      %1384 = vrot.lane.b32.xlu0 %v1310, 64
      %v1385 = vpop.permute.xlu0 %1384
      %1386 = vrot.lane.b32.xlu0 %v1311, 64
      %v1387 = vpop.permute.xlu0 %1386
      %1388 = vrot.lane.b32.xlu0 %v1312, 64
      %v1389 = vpop.permute.xlu0 %1388
      %1390 = vrot.lane.b32.xlu0 %v1313, 64
      %v1391 = vpop.permute.xlu0 %1390
      %1392 = vrot.lane.b32.xlu0 %v1314, 64
      %v1393 = vpop.permute.xlu0 %1392
      %1394 = vrot.lane.b32.xlu0 %v1315, 64
      %v1395 = vpop.permute.xlu0 %1394
      %1396 = vrot.lane.b32.xlu0 %v1316, 64
      %v1397 = vpop.permute.xlu0 %1396
      %1398 = vrot.lane.b32.xlu0 %v1317, 64
      %v1399 = vpop.permute.xlu0 %1398
      %1400 = vrot.lane.b32.xlu0 %v1318, 64
      %v1401 = vpop.permute.xlu0 %1400
      %1402 = vrot.lane.b32.xlu0 %v1319, 64
      %v1403 = vpop.permute.xlu0 %1402
      %1404 = vrot.lane.b32.xlu0 %v1320, 64
      %v1405 = vpop.permute.xlu0 %1404
      %1406 = vrot.lane.b32.xlu0 %v1321, 64
      %v1407 = vpop.permute.xlu0 %1406
      %1408 = vrot.lane.b32.xlu0 %v1322, 64
      %v1409 = vpop.permute.xlu0 %1408
      %1410 = vrot.lane.b32.xlu0 %v1323, 64
      %v1411 = vpop.permute.xlu0 %1410
      %1412 = vrot.lane.b32.xlu0 %v1324, 64
      %v1413 = vpop.permute.xlu0 %1412
      %1414 = vrot.lane.b32.xlu0 %v1325, 64
      %v1415 = vpop.permute.xlu0 %1414
      %1416 = vrot.lane.b32.xlu0 %v1326, 64
      %v1417 = vpop.permute.xlu0 %1416
      %1418 = vrot.lane.b32.xlu0 %v1327, 64
      %v1419 = vpop.permute.xlu0 %1418
      %1420 = vrot.lane.b32.xlu0 %v1328, 64
      %v1421 = vpop.permute.xlu0 %1420
      %1422 = vrot.lane.b32.xlu0 %v1329, 64
      %v1423 = vpop.permute.xlu0 %1422
      %1424 = vrot.lane.b32.xlu0 %v1330, 64
      %v1425 = vpop.permute.xlu0 %1424
      %1426 = vrot.lane.b32.xlu0 %v1331, 64
      %v1427 = vpop.permute.xlu0 %1426
      %1460 = vst.msk [vmem:[#allocation3 + $0x8] sm:$0xff] %vm817, %v1365
      %1461 = vst.msk [vmem:[#allocation3 + $0x20] sm:$0xff] %vm817, %v1367
      %1462 = vst.msk [vmem:[#allocation3 + $0x38] sm:$0xff] %vm817, %v1369
      %1463 = vst.msk [vmem:[#allocation3 + $0x50] sm:$0xff] %vm817, %v1371
      %1464 = vst.msk [vmem:[#allocation3 + $0x68] sm:$0xff] %vm817, %v1373
      %1465 = vst.msk [vmem:[#allocation3 + $0x80] sm:$0xff] %vm817, %v1375
      %1466 = vst.msk [vmem:[#allocation3 + $0x98] sm:$0xff] %vm817, %v1377
      %1467 = vst.msk [vmem:[#allocation3 + $0xb0] sm:$0xff] %vm817, %v1379
      %1468 = vst.msk [vmem:[#allocation3 + $0xc8] sm:$0xff] %vm817, %v1381
      %1469 = vst.msk [vmem:[#allocation3 + $0xe0] sm:$0xff] %vm817, %v1383
      %1470 = vst.msk [vmem:[#allocation3 + $0xf8] sm:$0xff] %vm817, %v1385
      %1471 = vst.msk [vmem:[#allocation3 + $0x110] sm:$0xff] %vm817, %v1387
      %1472 = vst.msk [vmem:[#allocation3 + $0x128] sm:$0xff] %vm817, %v1389
      %1473 = vst.msk [vmem:[#allocation3 + $0x140] sm:$0xff] %vm817, %v1391
      %1474 = vst.msk [vmem:[#allocation3 + $0x158] sm:$0xff] %vm817, %v1393
      %1475 = vst.msk [vmem:[#allocation3 + $0x170] sm:$0xff] %vm817, %v1395
      %1476 = vst.msk [vmem:[#allocation3 + $0x188] sm:$0xff] %vm817, %v1397
      %1477 = vst.msk [vmem:[#allocation3 + $0x1a0] sm:$0xff] %vm817, %v1399
      %1478 = vst.msk [vmem:[#allocation3 + $0x1b8] sm:$0xff] %vm817, %v1401
      %1479 = vst.msk [vmem:[#allocation3 + $0x1d0] sm:$0xff] %vm817, %v1403
      %1480 = vst.msk [vmem:[#allocation3 + $0x1e8] sm:$0xff] %vm817, %v1405
      %1481 = vst.msk [vmem:[#allocation3 + $0x200] sm:$0xff] %vm817, %v1407
      %1482 = vst.msk [vmem:[#allocation3 + $0x218] sm:$0xff] %vm817, %v1409
      %1483 = vst.msk [vmem:[#allocation3 + $0x230] sm:$0xff] %vm817, %v1411
      %1484 = vst.msk [vmem:[#allocation3 + $0x248] sm:$0xff] %vm817, %v1413
      %1485 = vst.msk [vmem:[#allocation3 + $0x260] sm:$0xff] %vm817, %v1415
      %1486 = vst.msk [vmem:[#allocation3 + $0x278] sm:$0xff] %vm817, %v1417
      %1487 = vst.msk [vmem:[#allocation3 + $0x290] sm:$0xff] %vm817, %v1419
      %1488 = vst.msk [vmem:[#allocation3 + $0x2a8] sm:$0xff] %vm817, %v1421
      %1489 = vst.msk [vmem:[#allocation3 + $0x2c0] sm:$0xff] %vm817, %v1423
      %1490 = vst.msk [vmem:[#allocation3 + $0x2d8] sm:$0xff] %vm817, %v1425
      %1491 = vst.msk [vmem:[#allocation3 + $0x2f0] sm:$0xff] %vm817, %v1427
      %v1492 = vld [vmem:[%s1299 + $0x1] sm:$0xff]
      %v1493 = vld [vmem:[%s1299 + $0x9] sm:$0xff]
      %v1494 = vld [vmem:[%s1299 + $0x19] sm:$0xff]
      %v1495 = vld [vmem:[%s1299 + $0x21] sm:$0xff]
      %v1496 = vld [vmem:[%s1299 + $0x31] sm:$0xff]
      %v1497 = vld [vmem:[%s1299 + $0x39] sm:$0xff]
      %v1498 = vld [vmem:[%s1299 + $0x49] sm:$0xff]
      %v1499 = vld [vmem:[%s1299 + $0x51] sm:$0xff]
      %v1500 = vld [vmem:[%s1299 + $0x61] sm:$0xff]
      %v1501 = vld [vmem:[%s1299 + $0x69] sm:$0xff]
      %v1502 = vld [vmem:[%s1299 + $0x79] sm:$0xff]
      %v1503 = vld [vmem:[%s1299 + $0x81] sm:$0xff]
      %v1504 = vld [vmem:[%s1299 + $0x91] sm:$0xff]
      %v1505 = vld [vmem:[%s1299 + $0x99] sm:$0xff]
      %v1506 = vld [vmem:[%s1299 + $0xa9] sm:$0xff]
      %v1507 = vld [vmem:[%s1299 + $0xb1] sm:$0xff]
      %v1508 = vld [vmem:[%s1299 + $0xc1] sm:$0xff]
      %v1509 = vld [vmem:[%s1299 + $0xc9] sm:$0xff]
      %v1510 = vld [vmem:[%s1299 + $0xd9] sm:$0xff]
      %v1511 = vld [vmem:[%s1299 + $0xe1] sm:$0xff]
      %v1512 = vld [vmem:[%s1299 + $0xf1] sm:$0xff]
      %v1513 = vld [vmem:[%s1299 + $0xf9] sm:$0xff]
      %v1514 = vld [vmem:[%s1299 + $0x109] sm:$0xff]
      %v1515 = vld [vmem:[%s1299 + $0x111] sm:$0xff]
      %v1516 = vld [vmem:[%s1299 + $0x121] sm:$0xff]
      %v1517 = vld [vmem:[%s1299 + $0x129] sm:$0xff]
      %v1518 = vld [vmem:[%s1299 + $0x139] sm:$0xff]
      %v1519 = vld [vmem:[%s1299 + $0x141] sm:$0xff]
      %v1520 = vld [vmem:[%s1299 + $0x151] sm:$0xff]
      %v1521 = vld [vmem:[%s1299 + $0x159] sm:$0xff]
      %v1522 = vld [vmem:[%s1299 + $0x169] sm:$0xff]
      %v1523 = vld [vmem:[%s1299 + $0x171] sm:$0xff]
      %1556 = vrot.lane.b32.xlu0 %v1492, 96
      %v1557 = vpop.permute.xlu0 %1556
      %1558 = vrot.lane.b32.xlu0 %v1493, 96
      %v1559 = vpop.permute.xlu0 %1558
      %1560 = vrot.lane.b32.xlu0 %v1494, 96
      %v1561 = vpop.permute.xlu0 %1560
      %1562 = vrot.lane.b32.xlu0 %v1495, 96
      %v1563 = vpop.permute.xlu0 %1562
      %1564 = vrot.lane.b32.xlu0 %v1496, 96
      %v1565 = vpop.permute.xlu0 %1564
      %1566 = vrot.lane.b32.xlu0 %v1497, 96
      %v1567 = vpop.permute.xlu0 %1566
      %1568 = vrot.lane.b32.xlu0 %v1498, 96
      %v1569 = vpop.permute.xlu0 %1568
      %1570 = vrot.lane.b32.xlu0 %v1499, 96
      %v1571 = vpop.permute.xlu0 %1570
      %1572 = vrot.lane.b32.xlu0 %v1500, 96
      %v1573 = vpop.permute.xlu0 %1572
      %1574 = vrot.lane.b32.xlu0 %v1501, 96
      %v1575 = vpop.permute.xlu0 %1574
      %1576 = vrot.lane.b32.xlu0 %v1502, 96
      %v1577 = vpop.permute.xlu0 %1576
      %1578 = vrot.lane.b32.xlu0 %v1503, 96
      %v1579 = vpop.permute.xlu0 %1578
      %1580 = vrot.lane.b32.xlu0 %v1504, 96
      %v1581 = vpop.permute.xlu0 %1580
      %1582 = vrot.lane.b32.xlu0 %v1505, 96
      %v1583 = vpop.permute.xlu0 %1582
      %1584 = vrot.lane.b32.xlu0 %v1506, 96
      %v1585 = vpop.permute.xlu0 %1584
      %1586 = vrot.lane.b32.xlu0 %v1507, 96
      %v1587 = vpop.permute.xlu0 %1586
      %1588 = vrot.lane.b32.xlu0 %v1508, 96
      %v1589 = vpop.permute.xlu0 %1588
      %1590 = vrot.lane.b32.xlu0 %v1509, 96
      %v1591 = vpop.permute.xlu0 %1590
      %1592 = vrot.lane.b32.xlu0 %v1510, 96
      %v1593 = vpop.permute.xlu0 %1592
      %1594 = vrot.lane.b32.xlu0 %v1511, 96
      %v1595 = vpop.permute.xlu0 %1594
      %1596 = vrot.lane.b32.xlu0 %v1512, 96
      %v1597 = vpop.permute.xlu0 %1596
      %1598 = vrot.lane.b32.xlu0 %v1513, 96
      %v1599 = vpop.permute.xlu0 %1598
      %1600 = vrot.lane.b32.xlu0 %v1514, 96
      %v1601 = vpop.permute.xlu0 %1600
      %1602 = vrot.lane.b32.xlu0 %v1515, 96
      %v1603 = vpop.permute.xlu0 %1602
      %1604 = vrot.lane.b32.xlu0 %v1516, 96
      %v1605 = vpop.permute.xlu0 %1604
      %1606 = vrot.lane.b32.xlu0 %v1517, 96
      %v1607 = vpop.permute.xlu0 %1606
      %1608 = vrot.lane.b32.xlu0 %v1518, 96
      %v1609 = vpop.permute.xlu0 %1608
      %1610 = vrot.lane.b32.xlu0 %v1519, 96
      %v1611 = vpop.permute.xlu0 %1610
      %1612 = vrot.lane.b32.xlu0 %v1520, 96
      %v1613 = vpop.permute.xlu0 %1612
      %1614 = vrot.lane.b32.xlu0 %v1521, 96
      %v1615 = vpop.permute.xlu0 %1614
      %1616 = vrot.lane.b32.xlu0 %v1522, 96
      %v1617 = vpop.permute.xlu0 %1616
      %1618 = vrot.lane.b32.xlu0 %v1523, 96
      %v1619 = vpop.permute.xlu0 %1618
      %1652 = vst.msk [vmem:[#allocation3 + $0x8] sm:$0xff] %vm1010, %v1557
      %1653 = vst.msk [vmem:[#allocation3 + $0x20] sm:$0xff] %vm1010, %v1559
      %1654 = vst.msk [vmem:[#allocation3 + $0x38] sm:$0xff] %vm1010, %v1561
      %1655 = vst.msk [vmem:[#allocation3 + $0x50] sm:$0xff] %vm1010, %v1563
      %1656 = vst.msk [vmem:[#allocation3 + $0x68] sm:$0xff] %vm1010, %v1565
      %1657 = vst.msk [vmem:[#allocation3 + $0x80] sm:$0xff] %vm1010, %v1567
      %1658 = vst.msk [vmem:[#allocation3 + $0x98] sm:$0xff] %vm1010, %v1569
      %1659 = vst.msk [vmem:[#allocation3 + $0xb0] sm:$0xff] %vm1010, %v1571
      %1660 = vst.msk [vmem:[#allocation3 + $0xc8] sm:$0xff] %vm1010, %v1573
      %1661 = vst.msk [vmem:[#allocation3 + $0xe0] sm:$0xff] %vm1010, %v1575
      %1662 = vst.msk [vmem:[#allocation3 + $0xf8] sm:$0xff] %vm1010, %v1577
      %1663 = vst.msk [vmem:[#allocation3 + $0x110] sm:$0xff] %vm1010, %v1579
      %1664 = vst.msk [vmem:[#allocation3 + $0x128] sm:$0xff] %vm1010, %v1581
      %1665 = vst.msk [vmem:[#allocation3 + $0x140] sm:$0xff] %vm1010, %v1583
      %1666 = vst.msk [vmem:[#allocation3 + $0x158] sm:$0xff] %vm1010, %v1585
      %1667 = vst.msk [vmem:[#allocation3 + $0x170] sm:$0xff] %vm1010, %v1587
      %1668 = vst.msk [vmem:[#allocation3 + $0x188] sm:$0xff] %vm1010, %v1589
      %1669 = vst.msk [vmem:[#allocation3 + $0x1a0] sm:$0xff] %vm1010, %v1591
      %1670 = vst.msk [vmem:[#allocation3 + $0x1b8] sm:$0xff] %vm1010, %v1593
      %1671 = vst.msk [vmem:[#allocation3 + $0x1d0] sm:$0xff] %vm1010, %v1595
      %1672 = vst.msk [vmem:[#allocation3 + $0x1e8] sm:$0xff] %vm1010, %v1597
      %1673 = vst.msk [vmem:[#allocation3 + $0x200] sm:$0xff] %vm1010, %v1599
      %1674 = vst.msk [vmem:[#allocation3 + $0x218] sm:$0xff] %vm1010, %v1601
      %1675 = vst.msk [vmem:[#allocation3 + $0x230] sm:$0xff] %vm1010, %v1603
      %1676 = vst.msk [vmem:[#allocation3 + $0x248] sm:$0xff] %vm1010, %v1605
      %1677 = vst.msk [vmem:[#allocation3 + $0x260] sm:$0xff] %vm1010, %v1607
      %1678 = vst.msk [vmem:[#allocation3 + $0x278] sm:$0xff] %vm1010, %v1609
      %1679 = vst.msk [vmem:[#allocation3 + $0x290] sm:$0xff] %vm1010, %v1611
      %1680 = vst.msk [vmem:[#allocation3 + $0x2a8] sm:$0xff] %vm1010, %v1613
      %1681 = vst.msk [vmem:[#allocation3 + $0x2c0] sm:$0xff] %vm1010, %v1615
      %1682 = vst.msk [vmem:[#allocation3 + $0x2d8] sm:$0xff] %vm1010, %v1617
      %1683 = vst.msk [vmem:[#allocation3 + $0x2f0] sm:$0xff] %vm1010, %v1619
      %v1684 = vld [vmem:[%s1299 + $0x2] sm:$0xff]
      %v1685 = vld [vmem:[%s1299 + $0xa] sm:$0xff]
      %v1686 = vld [vmem:[%s1299 + $0x1a] sm:$0xff]
      %v1687 = vld [vmem:[%s1299 + $0x22] sm:$0xff]
      %v1688 = vld [vmem:[%s1299 + $0x32] sm:$0xff]
      %v1689 = vld [vmem:[%s1299 + $0x3a] sm:$0xff]
      %v1690 = vld [vmem:[%s1299 + $0x4a] sm:$0xff]
      %v1691 = vld [vmem:[%s1299 + $0x52] sm:$0xff]
      %v1692 = vld [vmem:[%s1299 + $0x62] sm:$0xff]
      %v1693 = vld [vmem:[%s1299 + $0x6a] sm:$0xff]
      %v1694 = vld [vmem:[%s1299 + $0x7a] sm:$0xff]
      %v1695 = vld [vmem:[%s1299 + $0x82] sm:$0xff]
      %v1696 = vld [vmem:[%s1299 + $0x92] sm:$0xff]
      %v1697 = vld [vmem:[%s1299 + $0x9a] sm:$0xff]
      %v1698 = vld [vmem:[%s1299 + $0xaa] sm:$0xff]
      %v1699 = vld [vmem:[%s1299 + $0xb2] sm:$0xff]
      %v1700 = vld [vmem:[%s1299 + $0xc2] sm:$0xff]
      %v1701 = vld [vmem:[%s1299 + $0xca] sm:$0xff]
      %v1702 = vld [vmem:[%s1299 + $0xda] sm:$0xff]
      %v1703 = vld [vmem:[%s1299 + $0xe2] sm:$0xff]
      %v1704 = vld [vmem:[%s1299 + $0xf2] sm:$0xff]
      %v1705 = vld [vmem:[%s1299 + $0xfa] sm:$0xff]
      %v1706 = vld [vmem:[%s1299 + $0x10a] sm:$0xff]
      %v1707 = vld [vmem:[%s1299 + $0x112] sm:$0xff]
      %v1708 = vld [vmem:[%s1299 + $0x122] sm:$0xff]
      %v1709 = vld [vmem:[%s1299 + $0x12a] sm:$0xff]
      %v1710 = vld [vmem:[%s1299 + $0x13a] sm:$0xff]
      %v1711 = vld [vmem:[%s1299 + $0x142] sm:$0xff]
      %v1712 = vld [vmem:[%s1299 + $0x152] sm:$0xff]
      %v1713 = vld [vmem:[%s1299 + $0x15a] sm:$0xff]
      %v1714 = vld [vmem:[%s1299 + $0x16a] sm:$0xff]
      %v1715 = vld [vmem:[%s1299 + $0x172] sm:$0xff]
      %1716 = vst.msk [vmem:[#allocation3 + $0x10] sm:$0xff] %vm279, %v1684
      %1717 = vst.msk [vmem:[#allocation3 + $0x28] sm:$0xff] %vm279, %v1685
      %1718 = vst.msk [vmem:[#allocation3 + $0x40] sm:$0xff] %vm279, %v1686
      %1719 = vst.msk [vmem:[#allocation3 + $0x58] sm:$0xff] %vm279, %v1687
      %1720 = vst.msk [vmem:[#allocation3 + $0x70] sm:$0xff] %vm279, %v1688
      %1721 = vst.msk [vmem:[#allocation3 + $0x88] sm:$0xff] %vm279, %v1689
      %1722 = vst.msk [vmem:[#allocation3 + $0xa0] sm:$0xff] %vm279, %v1690
      %1723 = vst.msk [vmem:[#allocation3 + $0xb8] sm:$0xff] %vm279, %v1691
      %1724 = vst.msk [vmem:[#allocation3 + $0xd0] sm:$0xff] %vm279, %v1692
      %1725 = vst.msk [vmem:[#allocation3 + $0xe8] sm:$0xff] %vm279, %v1693
      %1726 = vst.msk [vmem:[#allocation3 + $0x100] sm:$0xff] %vm279, %v1694
      %1727 = vst.msk [vmem:[#allocation3 + $0x118] sm:$0xff] %vm279, %v1695
      %1728 = vst.msk [vmem:[#allocation3 + $0x130] sm:$0xff] %vm279, %v1696
      %1729 = vst.msk [vmem:[#allocation3 + $0x148] sm:$0xff] %vm279, %v1697
      %1730 = vst.msk [vmem:[#allocation3 + $0x160] sm:$0xff] %vm279, %v1698
      %1731 = vst.msk [vmem:[#allocation3 + $0x178] sm:$0xff] %vm279, %v1699
      %1732 = vst.msk [vmem:[#allocation3 + $0x190] sm:$0xff] %vm279, %v1700
      %1733 = vst.msk [vmem:[#allocation3 + $0x1a8] sm:$0xff] %vm279, %v1701
      %1734 = vst.msk [vmem:[#allocation3 + $0x1c0] sm:$0xff] %vm279, %v1702
      %1735 = vst.msk [vmem:[#allocation3 + $0x1d8] sm:$0xff] %vm279, %v1703
      %1736 = vst.msk [vmem:[#allocation3 + $0x1f0] sm:$0xff] %vm279, %v1704
      %1737 = vst.msk [vmem:[#allocation3 + $0x208] sm:$0xff] %vm279, %v1705
      %1738 = vst.msk [vmem:[#allocation3 + $0x220] sm:$0xff] %vm279, %v1706
      %1739 = vst.msk [vmem:[#allocation3 + $0x238] sm:$0xff] %vm279, %v1707
      %1740 = vst.msk [vmem:[#allocation3 + $0x250] sm:$0xff] %vm279, %v1708
      %1741 = vst.msk [vmem:[#allocation3 + $0x268] sm:$0xff] %vm279, %v1709
      %1742 = vst.msk [vmem:[#allocation3 + $0x280] sm:$0xff] %vm279, %v1710
      %1743 = vst.msk [vmem:[#allocation3 + $0x298] sm:$0xff] %vm279, %v1711
      %1744 = vst.msk [vmem:[#allocation3 + $0x2b0] sm:$0xff] %vm279, %v1712
      %1745 = vst.msk [vmem:[#allocation3 + $0x2c8] sm:$0xff] %vm279, %v1713
      %1746 = vst.msk [vmem:[#allocation3 + $0x2e0] sm:$0xff] %vm279, %v1714
      %1747 = vst.msk [vmem:[#allocation3 + $0x2f8] sm:$0xff] %vm279, %v1715
      %v1748 = vld [vmem:[#allocation3] sm:$0xff]
      %v1749 = vld [vmem:[#allocation3 + $0x8] sm:$0xff]
      %v1750 = vld [vmem:[#allocation3 + $0x10] sm:$0xff]
      %v1751 = vld [vmem:[#allocation3 + $0x18] sm:$0xff]
      %v1752 = vld [vmem:[#allocation3 + $0x20] sm:$0xff]
      %v1753 = vld [vmem:[#allocation3 + $0x28] sm:$0xff]
      %v1754 = vld [vmem:[#allocation3 + $0x30] sm:$0xff]
      %v1755 = vld [vmem:[#allocation3 + $0x38] sm:$0xff]
      %v1756 = vld [vmem:[#allocation3 + $0x40] sm:$0xff]
      %v1757 = vld [vmem:[#allocation3 + $0x48] sm:$0xff]
      %v1758 = vld [vmem:[#allocation3 + $0x50] sm:$0xff]
      %v1759 = vld [vmem:[#allocation3 + $0x58] sm:$0xff]
      %v1760 = vld [vmem:[#allocation3 + $0x60] sm:$0xff]
      %v1761 = vld [vmem:[#allocation3 + $0x68] sm:$0xff]
      %v1762 = vld [vmem:[#allocation3 + $0x70] sm:$0xff]
      %v1763 = vld [vmem:[#allocation3 + $0x78] sm:$0xff]
      %v1764 = vld [vmem:[#allocation3 + $0x80] sm:$0xff]
      %v1765 = vld [vmem:[#allocation3 + $0x88] sm:$0xff]
      %v1766 = vld [vmem:[#allocation3 + $0x90] sm:$0xff]
      %v1767 = vld [vmem:[#allocation3 + $0x98] sm:$0xff]
      %v1768 = vld [vmem:[#allocation3 + $0xa0] sm:$0xff]
      %v1769 = vld [vmem:[#allocation3 + $0xa8] sm:$0xff]
      %v1770 = vld [vmem:[#allocation3 + $0xb0] sm:$0xff]
      %v1771 = vld [vmem:[#allocation3 + $0xb8] sm:$0xff]
      %v1772 = vld [vmem:[#allocation3 + $0xc0] sm:$0xff]
      %v1773 = vld [vmem:[#allocation3 + $0xc8] sm:$0xff]
      %v1774 = vld [vmem:[#allocation3 + $0xd0] sm:$0xff]
      %v1775 = vld [vmem:[#allocation3 + $0xd8] sm:$0xff]
      %v1776 = vld [vmem:[#allocation3 + $0xe0] sm:$0xff]
      %v1777 = vld [vmem:[#allocation3 + $0xe8] sm:$0xff]
      %v1778 = vld [vmem:[#allocation3 + $0xf0] sm:$0xff]
      %v1779 = vld [vmem:[#allocation3 + $0xf8] sm:$0xff]
      %v1780 = vld [vmem:[#allocation3 + $0x100] sm:$0xff]
      %v1781 = vld [vmem:[#allocation3 + $0x108] sm:$0xff]
      %v1782 = vld [vmem:[#allocation3 + $0x110] sm:$0xff]
      %v1783 = vld [vmem:[#allocation3 + $0x118] sm:$0xff]
      %v1784 = vld [vmem:[#allocation3 + $0x120] sm:$0xff]
      %v1785 = vld [vmem:[#allocation3 + $0x128] sm:$0xff]
      %v1786 = vld [vmem:[#allocation3 + $0x130] sm:$0xff]
      %v1787 = vld [vmem:[#allocation3 + $0x138] sm:$0xff]
      %v1788 = vld [vmem:[#allocation3 + $0x140] sm:$0xff]
      %v1789 = vld [vmem:[#allocation3 + $0x148] sm:$0xff]
      %v1790 = vld [vmem:[#allocation3 + $0x150] sm:$0xff]
      %v1791 = vld [vmem:[#allocation3 + $0x158] sm:$0xff]
      %v1792 = vld [vmem:[#allocation3 + $0x160] sm:$0xff]
      %v1793 = vld [vmem:[#allocation3 + $0x168] sm:$0xff]
      %v1794 = vld [vmem:[#allocation3 + $0x170] sm:$0xff]
      %v1795 = vld [vmem:[#allocation3 + $0x178] sm:$0xff]
      %v1796 = vld [vmem:[#allocation3 + $0x180] sm:$0xff]
      %v1797 = vld [vmem:[#allocation3 + $0x188] sm:$0xff]
      %v1798 = vld [vmem:[#allocation3 + $0x190] sm:$0xff]
      %v1799 = vld [vmem:[#allocation3 + $0x198] sm:$0xff]
      %v1800 = vld [vmem:[#allocation3 + $0x1a0] sm:$0xff]
      %v1801 = vld [vmem:[#allocation3 + $0x1a8] sm:$0xff]
      %v1802 = vld [vmem:[#allocation3 + $0x1b0] sm:$0xff]
      %v1803 = vld [vmem:[#allocation3 + $0x1b8] sm:$0xff]
      %v1804 = vld [vmem:[#allocation3 + $0x1c0] sm:$0xff]
      %v1805 = vld [vmem:[#allocation3 + $0x1c8] sm:$0xff]
      %v1806 = vld [vmem:[#allocation3 + $0x1d0] sm:$0xff]
      %v1807 = vld [vmem:[#allocation3 + $0x1d8] sm:$0xff]
      %v1808 = vld [vmem:[#allocation3 + $0x1e0] sm:$0xff]
      %v1809 = vld [vmem:[#allocation3 + $0x1e8] sm:$0xff]
      %v1810 = vld [vmem:[#allocation3 + $0x1f0] sm:$0xff]
      %v1811 = vld [vmem:[#allocation3 + $0x1f8] sm:$0xff]
      %v1812 = vld [vmem:[#allocation3 + $0x200] sm:$0xff]
      %v1813 = vld [vmem:[#allocation3 + $0x208] sm:$0xff]
      %v1814 = vld [vmem:[#allocation3 + $0x210] sm:$0xff]
      %v1815 = vld [vmem:[#allocation3 + $0x218] sm:$0xff]
      %v1816 = vld [vmem:[#allocation3 + $0x220] sm:$0xff]
      %v1817 = vld [vmem:[#allocation3 + $0x228] sm:$0xff]
      %v1818 = vld [vmem:[#allocation3 + $0x230] sm:$0xff]
      %v1819 = vld [vmem:[#allocation3 + $0x238] sm:$0xff]
      %v1820 = vld [vmem:[#allocation3 + $0x240] sm:$0xff]
      %v1821 = vld [vmem:[#allocation3 + $0x248] sm:$0xff]
      %v1822 = vld [vmem:[#allocation3 + $0x250] sm:$0xff]
      %v1823 = vld [vmem:[#allocation3 + $0x258] sm:$0xff]
      %v1824 = vld [vmem:[#allocation3 + $0x260] sm:$0xff]
      %v1825 = vld [vmem:[#allocation3 + $0x268] sm:$0xff]
      %v1826 = vld [vmem:[#allocation3 + $0x270] sm:$0xff]
      %v1827 = vld [vmem:[#allocation3 + $0x278] sm:$0xff]
      %v1828 = vld [vmem:[#allocation3 + $0x280] sm:$0xff]
      %v1829 = vld [vmem:[#allocation3 + $0x288] sm:$0xff]
      %v1830 = vld [vmem:[#allocation3 + $0x290] sm:$0xff]
      %v1831 = vld [vmem:[#allocation3 + $0x298] sm:$0xff]
      %v1832 = vld [vmem:[#allocation3 + $0x2a0] sm:$0xff]
      %v1833 = vld [vmem:[#allocation3 + $0x2a8] sm:$0xff]
      %v1834 = vld [vmem:[#allocation3 + $0x2b0] sm:$0xff]
      %v1835 = vld [vmem:[#allocation3 + $0x2b8] sm:$0xff]
      %v1836 = vld [vmem:[#allocation3 + $0x2c0] sm:$0xff]
      %v1837 = vld [vmem:[#allocation3 + $0x2c8] sm:$0xff]
      %v1838 = vld [vmem:[#allocation3 + $0x2d0] sm:$0xff]
      %v1839 = vld [vmem:[#allocation3 + $0x2d8] sm:$0xff]
      %v1840 = vld [vmem:[#allocation3 + $0x2e0] sm:$0xff]
      %v1841 = vld [vmem:[#allocation3 + $0x2e8] sm:$0xff]
      %v1842 = vld [vmem:[#allocation3 + $0x2f0] sm:$0xff]
      %v1843 = vld [vmem:[#allocation3 + $0x2f8] sm:$0xff]
      %v1844 = vld [vmem:[%s1] sm:$0xff]
      %v1845 = vld [vmem:[%s1 + $0x8] sm:$0xff]
      %v1846 = vld [vmem:[%s1 + $0x10] sm:$0xff]
      %v1847 = vld [vmem:[%s1 + $0x18] sm:$0xff]
      %v1848 = vld [vmem:[%s1 + $0x20] sm:$0xff]
      %v1849 = vld [vmem:[%s1 + $0x28] sm:$0xff]
      %v1850 = vld [vmem:[%s1 + $0x30] sm:$0xff]
      %v1851 = vld [vmem:[%s1 + $0x38] sm:$0xff]
      %v1852 = vld [vmem:[%s1 + $0x40] sm:$0xff]
      %v1853 = vld [vmem:[%s1 + $0x48] sm:$0xff]
      %v1854 = vld [vmem:[%s1 + $0x50] sm:$0xff]
      %v1855 = vld [vmem:[%s1 + $0x58] sm:$0xff]
      %v1856 = vld [vmem:[%s1 + $0x60] sm:$0xff]
      %v1857 = vld [vmem:[%s1 + $0x68] sm:$0xff]
      %v1858 = vld [vmem:[%s1 + $0x70] sm:$0xff]
      %v1859 = vld [vmem:[%s1 + $0x78] sm:$0xff]
      %v1860 = vld [vmem:[%s1 + $0x80] sm:$0xff]
      %v1861 = vld [vmem:[%s1 + $0x88] sm:$0xff]
      %v1862 = vld [vmem:[%s1 + $0x90] sm:$0xff]
      %v1863 = vld [vmem:[%s1 + $0x98] sm:$0xff]
      %v1864 = vld [vmem:[%s1 + $0xa0] sm:$0xff]
      %v1865 = vld [vmem:[%s1 + $0xa8] sm:$0xff]
      %v1866 = vld [vmem:[%s1 + $0xb0] sm:$0xff]
      %v1867 = vld [vmem:[%s1 + $0xb8] sm:$0xff]
      %v1868 = vld [vmem:[%s1 + $0xc0] sm:$0xff]
      %v1869 = vld [vmem:[%s1 + $0xc8] sm:$0xff]
      %v1870 = vld [vmem:[%s1 + $0xd0] sm:$0xff]
      %v1871 = vld [vmem:[%s1 + $0xd8] sm:$0xff]
      %v1872 = vld [vmem:[%s1 + $0xe0] sm:$0xff]
      %v1873 = vld [vmem:[%s1 + $0xe8] sm:$0xff]
      %v1874 = vld [vmem:[%s1 + $0xf0] sm:$0xff]
      %v1875 = vld [vmem:[%s1 + $0xf8] sm:$0xff]
      %v1876 = vld [vmem:[%s1 + $0x100] sm:$0xff]
      %v1877 = vld [vmem:[%s1 + $0x108] sm:$0xff]
      %v1878 = vld [vmem:[%s1 + $0x110] sm:$0xff]
      %v1879 = vld [vmem:[%s1 + $0x118] sm:$0xff]
      %v1880 = vld [vmem:[%s4] sm:$0x1]
      %v1882 = vperm.slane %v1880, 0
      %v1885 = vsel %vm279, %v1750, 0
      %v1888 = vsel %vm279, %v1753, 0
      %v1891 = vsel %vm279, %v1756, 0
      %v1894 = vsel %vm279, %v1759, 0
      %v1897 = vsel %vm279, %v1762, 0
      %v1900 = vsel %vm279, %v1765, 0
      %v1903 = vsel %vm279, %v1768, 0
      %v1906 = vsel %vm279, %v1771, 0
      %v1909 = vsel %vm279, %v1774, 0
      %v1912 = vsel %vm279, %v1777, 0
      %v1915 = vsel %vm279, %v1780, 0
      %v1918 = vsel %vm279, %v1783, 0
      %v1921 = vsel %vm279, %v1786, 0
      %v1924 = vsel %vm279, %v1789, 0
      %v1927 = vsel %vm279, %v1792, 0
      %v1930 = vsel %vm279, %v1795, 0
      %v1933 = vsel %vm279, %v1798, 0
      %v1936 = vsel %vm279, %v1801, 0
      %v1939 = vsel %vm279, %v1804, 0
      %v1942 = vsel %vm279, %v1807, 0
      %v1945 = vsel %vm279, %v1810, 0
      %v1948 = vsel %vm279, %v1813, 0
      %v1951 = vsel %vm279, %v1816, 0
      %v1954 = vsel %vm279, %v1819, 0
      %v1957 = vsel %vm279, %v1822, 0
      %v1960 = vsel %vm279, %v1825, 0
      %v1963 = vsel %vm279, %v1828, 0
      %v1966 = vsel %vm279, %v1831, 0
      %v1969 = vsel %vm279, %v1834, 0
      %v1972 = vsel %vm279, %v1837, 0
      %v1975 = vsel %vm279, %v1840, 0
      %v1978 = vsel %vm279, %v1843, 0
      %1980 = vmatpush.msra.mxu0 %v1859
      %1981 = vmatpush.msra.mxu0 %v1858
      %1982 = vmatpush.msra.mxu0 %v1857
      %1983 = vmatpush.msra.mxu0 %v1856
      %1984 = vmatpush.msra.mxu0 %v1855
      %1985 = vmatpush.msra.mxu0 %v1854
      %1986 = vmatpush.msra.mxu0 %v1853
      %1987 = vmatpush.msra.mxu0 %v1852
      %1988 = vmatpush.msra.mxu0 %v1851
      %1989 = vmatpush.msra.mxu0 %v1850
      %1990 = vmatpush.msra.mxu0 %v1849
      %1991 = vmatpush.msra.mxu0 %v1848
      %1992 = vmatpush.msra.mxu0 %v1847
      %1993 = vmatpush.msra.mxu0 %v1846
      %1994 = vmatpush.msra.mxu0 %v1845
      %1995 = vmatpush.msra.mxu0 %v1844
      %1996 = vmatmul.f32.gmra.mxu0 %v1748
      %v1997 = vpop.f32.mrf.mxu0
      %v1998 = vadd.f32 %v1882, %v1997
      %1999 = vmatmul.f32.gmra.mxu0 %v1751
      %v2000 = vpop.f32.mrf.mxu0
      %v2001 = vadd.f32 %v1882, %v2000
      %2002 = vmatmul.f32.gmra.mxu0 %v1754
      %v2003 = vpop.f32.mrf.mxu0
      %v2004 = vadd.f32 %v1882, %v2003
      %2005 = vmatmul.f32.gmra.mxu0 %v1757
      %v2006 = vpop.f32.mrf.mxu0
      %v2007 = vadd.f32 %v1882, %v2006
      %2008 = vmatmul.f32.gmra.mxu0 %v1760
      %v2009 = vpop.f32.mrf.mxu0
      %v2010 = vadd.f32 %v1882, %v2009
      %2011 = vmatmul.f32.gmra.mxu0 %v1763
      %v2012 = vpop.f32.mrf.mxu0
      %v2013 = vadd.f32 %v1882, %v2012
      %2014 = vmatmul.f32.gmra.mxu0 %v1766
      %v2015 = vpop.f32.mrf.mxu0
      %v2016 = vadd.f32 %v1882, %v2015
      %2017 = vmatmul.f32.gmra.mxu0 %v1769
      %v2018 = vpop.f32.mrf.mxu0
      %v2019 = vadd.f32 %v1882, %v2018
      %2020 = vmatmul.f32.gmra.mxu0 %v1772
      %v2021 = vpop.f32.mrf.mxu0
      %v2022 = vadd.f32 %v1882, %v2021
      %2023 = vmatmul.f32.gmra.mxu0 %v1775
      %v2024 = vpop.f32.mrf.mxu0
      %v2025 = vadd.f32 %v1882, %v2024
      %2026 = vmatmul.f32.gmra.mxu0 %v1778
      %v2027 = vpop.f32.mrf.mxu0
      %v2028 = vadd.f32 %v1882, %v2027
      %2029 = vmatmul.f32.gmra.mxu0 %v1781
      %v2030 = vpop.f32.mrf.mxu0
      %v2031 = vadd.f32 %v1882, %v2030
      %2032 = vmatmul.f32.gmra.mxu0 %v1784
      %v2033 = vpop.f32.mrf.mxu0
      %v2034 = vadd.f32 %v1882, %v2033
      %2035 = vmatmul.f32.gmra.mxu0 %v1787
      %v2036 = vpop.f32.mrf.mxu0
      %v2037 = vadd.f32 %v1882, %v2036
      %2038 = vmatmul.f32.gmra.mxu0 %v1790
      %v2039 = vpop.f32.mrf.mxu0
      %v2040 = vadd.f32 %v1882, %v2039
      %2041 = vmatmul.f32.gmra.mxu0 %v1793
      %v2042 = vpop.f32.mrf.mxu0
      %v2043 = vadd.f32 %v1882, %v2042
      %2044 = vmatmul.f32.gmra.mxu0 %v1796
      %v2045 = vpop.f32.mrf.mxu0
      %v2046 = vadd.f32 %v1882, %v2045
      %2047 = vmatmul.f32.gmra.mxu0 %v1799
      %v2048 = vpop.f32.mrf.mxu0
      %v2049 = vadd.f32 %v1882, %v2048
      %2050 = vmatmul.f32.gmra.mxu0 %v1802
      %v2051 = vpop.f32.mrf.mxu0
      %v2052 = vadd.f32 %v1882, %v2051
      %2053 = vmatmul.f32.gmra.mxu0 %v1805
      %v2054 = vpop.f32.mrf.mxu0
      %v2055 = vadd.f32 %v1882, %v2054
      %2056 = vmatmul.f32.gmra.mxu0 %v1808
      %v2057 = vpop.f32.mrf.mxu0
      %v2058 = vadd.f32 %v1882, %v2057
      %2059 = vmatmul.f32.gmra.mxu0 %v1811
      %v2060 = vpop.f32.mrf.mxu0
      %v2061 = vadd.f32 %v1882, %v2060
      %2062 = vmatmul.f32.gmra.mxu0 %v1814
      %v2063 = vpop.f32.mrf.mxu0
      %v2064 = vadd.f32 %v1882, %v2063
      %2065 = vmatmul.f32.gmra.mxu0 %v1817
      %v2066 = vpop.f32.mrf.mxu0
      %v2067 = vadd.f32 %v1882, %v2066
      %2068 = vmatmul.f32.gmra.mxu0 %v1820
      %v2069 = vpop.f32.mrf.mxu0
      %v2070 = vadd.f32 %v1882, %v2069
      %2071 = vmatmul.f32.gmra.mxu0 %v1823
      %v2072 = vpop.f32.mrf.mxu0
      %v2073 = vadd.f32 %v1882, %v2072
      %2074 = vmatmul.f32.gmra.mxu0 %v1826
      %v2075 = vpop.f32.mrf.mxu0
      %v2076 = vadd.f32 %v1882, %v2075
      %2077 = vmatmul.f32.gmra.mxu0 %v1829
      %v2078 = vpop.f32.mrf.mxu0
      %v2079 = vadd.f32 %v1882, %v2078
      %2080 = vmatmul.f32.gmra.mxu0 %v1832
      %v2081 = vpop.f32.mrf.mxu0
      %v2082 = vadd.f32 %v1882, %v2081
      %2083 = vmatmul.f32.gmra.mxu0 %v1835
      %v2084 = vpop.f32.mrf.mxu0
      %v2085 = vadd.f32 %v1882, %v2084
      %2086 = vmatmul.f32.gmra.mxu0 %v1838
      %v2087 = vpop.f32.mrf.mxu0
      %v2088 = vadd.f32 %v1882, %v2087
      %2089 = vmatmul.f32.gmra.mxu0 %v1841
      %v2090 = vpop.f32.mrf.mxu0
      %v2091 = vadd.f32 %v1882, %v2090
      %2092 = vdwg.mxu0
      %2093 = vmatpush.msra.mxu0 %v1875
      %2094 = vmatpush.msra.mxu0 %v1874
      %2095 = vmatpush.msra.mxu0 %v1873
      %2096 = vmatpush.msra.mxu0 %v1872
      %2097 = vmatpush.msra.mxu0 %v1871
      %2098 = vmatpush.msra.mxu0 %v1870
      %2099 = vmatpush.msra.mxu0 %v1869
      %2100 = vmatpush.msra.mxu0 %v1868
      %2101 = vmatpush.msra.mxu0 %v1867
      %2102 = vmatpush.msra.mxu0 %v1866
      %2103 = vmatpush.msra.mxu0 %v1865
      %2104 = vmatpush.msra.mxu0 %v1864
      %2105 = vmatpush.msra.mxu0 %v1863
      %2106 = vmatpush.msra.mxu0 %v1862
      %2107 = vmatpush.msra.mxu0 %v1861
      %2108 = vmatpush.msra.mxu0 %v1860
      %2109 = vmatmul.f32.gmra.mxu0 %v1749
      %v2110 = vpop.f32.mrf.mxu0
      %v2111 = vadd.f32 %v1998, %v2110
      %2112 = vmatmul.f32.gmra.mxu0 %v1752
      %v2113 = vpop.f32.mrf.mxu0
      %v2114 = vadd.f32 %v2001, %v2113
      %2115 = vmatmul.f32.gmra.mxu0 %v1755
      %v2116 = vpop.f32.mrf.mxu0
      %v2117 = vadd.f32 %v2004, %v2116
      %2118 = vmatmul.f32.gmra.mxu0 %v1758
      %v2119 = vpop.f32.mrf.mxu0
      %v2120 = vadd.f32 %v2007, %v2119
      %2121 = vmatmul.f32.gmra.mxu0 %v1761
      %v2122 = vpop.f32.mrf.mxu0
      %v2123 = vadd.f32 %v2010, %v2122
      %2124 = vmatmul.f32.gmra.mxu0 %v1764
      %v2125 = vpop.f32.mrf.mxu0
      %v2126 = vadd.f32 %v2013, %v2125
      %2127 = vmatmul.f32.gmra.mxu0 %v1767
      %v2128 = vpop.f32.mrf.mxu0
      %v2129 = vadd.f32 %v2016, %v2128
      %2130 = vmatmul.f32.gmra.mxu0 %v1770
      %v2131 = vpop.f32.mrf.mxu0
      %v2132 = vadd.f32 %v2019, %v2131
      %2133 = vmatmul.f32.gmra.mxu0 %v1773
      %v2134 = vpop.f32.mrf.mxu0
      %v2135 = vadd.f32 %v2022, %v2134
      %2136 = vmatmul.f32.gmra.mxu0 %v1776
      %v2137 = vpop.f32.mrf.mxu0
      %v2138 = vadd.f32 %v2025, %v2137
      %2139 = vmatmul.f32.gmra.mxu0 %v1779
      %v2140 = vpop.f32.mrf.mxu0
      %v2141 = vadd.f32 %v2028, %v2140
      %2142 = vmatmul.f32.gmra.mxu0 %v1782
      %v2143 = vpop.f32.mrf.mxu0
      %v2144 = vadd.f32 %v2031, %v2143
      %2145 = vmatmul.f32.gmra.mxu0 %v1785
      %v2146 = vpop.f32.mrf.mxu0
      %v2147 = vadd.f32 %v2034, %v2146
      %2148 = vmatmul.f32.gmra.mxu0 %v1788
      %v2149 = vpop.f32.mrf.mxu0
      %v2150 = vadd.f32 %v2037, %v2149
      %2151 = vmatmul.f32.gmra.mxu0 %v1791
      %v2152 = vpop.f32.mrf.mxu0
      %v2153 = vadd.f32 %v2040, %v2152
      %2154 = vmatmul.f32.gmra.mxu0 %v1794
      %v2155 = vpop.f32.mrf.mxu0
      %v2156 = vadd.f32 %v2043, %v2155
      %2157 = vmatmul.f32.gmra.mxu0 %v1797
      %v2158 = vpop.f32.mrf.mxu0
      %v2159 = vadd.f32 %v2046, %v2158
      %2160 = vmatmul.f32.gmra.mxu0 %v1800
      %v2161 = vpop.f32.mrf.mxu0
      %v2162 = vadd.f32 %v2049, %v2161
      %2163 = vmatmul.f32.gmra.mxu0 %v1803
      %v2164 = vpop.f32.mrf.mxu0
      %v2165 = vadd.f32 %v2052, %v2164
      %2166 = vmatmul.f32.gmra.mxu0 %v1806
      %v2167 = vpop.f32.mrf.mxu0
      %v2168 = vadd.f32 %v2055, %v2167
      %2169 = vmatmul.f32.gmra.mxu0 %v1809
      %v2170 = vpop.f32.mrf.mxu0
      %v2171 = vadd.f32 %v2058, %v2170
      %2172 = vmatmul.f32.gmra.mxu0 %v1812
      %v2173 = vpop.f32.mrf.mxu0
      %v2174 = vadd.f32 %v2061, %v2173
      %2175 = vmatmul.f32.gmra.mxu0 %v1815
      %v2176 = vpop.f32.mrf.mxu0
      %v2177 = vadd.f32 %v2064, %v2176
      %2178 = vmatmul.f32.gmra.mxu0 %v1818
      %v2179 = vpop.f32.mrf.mxu0
      %v2180 = vadd.f32 %v2067, %v2179
      %2181 = vmatmul.f32.gmra.mxu0 %v1821
      %v2182 = vpop.f32.mrf.mxu0
      %v2183 = vadd.f32 %v2070, %v2182
      %2184 = vmatmul.f32.gmra.mxu0 %v1824
      %v2185 = vpop.f32.mrf.mxu0
      %v2186 = vadd.f32 %v2073, %v2185
      %2187 = vmatmul.f32.gmra.mxu0 %v1827
      %v2188 = vpop.f32.mrf.mxu0
      %v2189 = vadd.f32 %v2076, %v2188
      %2190 = vmatmul.f32.gmra.mxu0 %v1830
      %v2191 = vpop.f32.mrf.mxu0
      %v2192 = vadd.f32 %v2079, %v2191
      %2193 = vmatmul.f32.gmra.mxu0 %v1833
      %v2194 = vpop.f32.mrf.mxu0
      %v2195 = vadd.f32 %v2082, %v2194
      %2196 = vmatmul.f32.gmra.mxu0 %v1836
      %v2197 = vpop.f32.mrf.mxu0
      %v2198 = vadd.f32 %v2085, %v2197
      %2199 = vmatmul.f32.gmra.mxu0 %v1839
      %v2200 = vpop.f32.mrf.mxu0
      %v2201 = vadd.f32 %v2088, %v2200
      %2202 = vmatmul.f32.gmra.mxu0 %v1842
      %v2203 = vpop.f32.mrf.mxu0
      %v2204 = vadd.f32 %v2091, %v2203
      %2205 = vdwg.mxu0
      %2206 = vmatpush.msra.mxu0 0.0
      %2207 = vmatpush.msra.mxu0 0.0
      %2208 = vmatpush.msra.mxu0 0.0
      %2209 = vmatpush.msra.mxu0 0.0
      %2210 = vmatpush.msra.mxu0 0.0
      %2211 = vmatpush.msra.mxu0 0.0
      %2212 = vmatpush.msra.mxu0 0.0
      %2213 = vmatpush.msra.mxu0 0.0
      %2214 = vmatpush.msra.mxu0 0.0
      %2215 = vmatpush.msra.mxu0 0.0
      %2216 = vmatpush.msra.mxu0 0.0
      %2217 = vmatpush.msra.mxu0 0.0
      %2218 = vmatpush.msra.mxu0 %v1879
      %2219 = vmatpush.msra.mxu0 %v1878
      %2220 = vmatpush.msra.mxu0 %v1877
      %2221 = vmatpush.msra.mxu0 %v1876
      %2222 = vmatmul.f32.gmra.mxu0 %v1885
      %v2223 = vpop.f32.mrf.mxu0
      %v2224 = vadd.f32 %v2111, %v2223
      %2225 = vmatmul.f32.gmra.mxu0 %v1888
      %v2226 = vpop.f32.mrf.mxu0
      %v2227 = vadd.f32 %v2114, %v2226
      %2228 = vmatmul.f32.gmra.mxu0 %v1891
      %v2229 = vpop.f32.mrf.mxu0
      %v2230 = vadd.f32 %v2117, %v2229
      %2231 = vmatmul.f32.gmra.mxu0 %v1894
      %v2232 = vpop.f32.mrf.mxu0
      %v2233 = vadd.f32 %v2120, %v2232
      %2234 = vmatmul.f32.gmra.mxu0 %v1897
      %v2235 = vpop.f32.mrf.mxu0
      %v2236 = vadd.f32 %v2123, %v2235
      %2237 = vmatmul.f32.gmra.mxu0 %v1900
      %v2238 = vpop.f32.mrf.mxu0
      %v2239 = vadd.f32 %v2126, %v2238
      %2240 = vmatmul.f32.gmra.mxu0 %v1903
      %v2241 = vpop.f32.mrf.mxu0
      %v2242 = vadd.f32 %v2129, %v2241
      %2243 = vmatmul.f32.gmra.mxu0 %v1906
      %v2244 = vpop.f32.mrf.mxu0
      %v2245 = vadd.f32 %v2132, %v2244
      %2246 = vmatmul.f32.gmra.mxu0 %v1909
      %v2247 = vpop.f32.mrf.mxu0
      %v2248 = vadd.f32 %v2135, %v2247
      %2249 = vmatmul.f32.gmra.mxu0 %v1912
      %v2250 = vpop.f32.mrf.mxu0
      %v2251 = vadd.f32 %v2138, %v2250
      %2252 = vmatmul.f32.gmra.mxu0 %v1915
      %v2253 = vpop.f32.mrf.mxu0
      %v2254 = vadd.f32 %v2141, %v2253
      %2255 = vmatmul.f32.gmra.mxu0 %v1918
      %v2256 = vpop.f32.mrf.mxu0
      %v2257 = vadd.f32 %v2144, %v2256
      %2258 = vmatmul.f32.gmra.mxu0 %v1921
      %v2259 = vpop.f32.mrf.mxu0
      %v2260 = vadd.f32 %v2147, %v2259
      %2261 = vmatmul.f32.gmra.mxu0 %v1924
      %v2262 = vpop.f32.mrf.mxu0
      %v2263 = vadd.f32 %v2150, %v2262
      %2264 = vmatmul.f32.gmra.mxu0 %v1927
      %v2265 = vpop.f32.mrf.mxu0
      %v2266 = vadd.f32 %v2153, %v2265
      %2267 = vmatmul.f32.gmra.mxu0 %v1930
      %v2268 = vpop.f32.mrf.mxu0
      %v2269 = vadd.f32 %v2156, %v2268
      %2270 = vmatmul.f32.gmra.mxu0 %v1933
      %v2271 = vpop.f32.mrf.mxu0
      %v2272 = vadd.f32 %v2159, %v2271
      %2273 = vmatmul.f32.gmra.mxu0 %v1936
      %v2274 = vpop.f32.mrf.mxu0
      %v2275 = vadd.f32 %v2162, %v2274
      %2276 = vmatmul.f32.gmra.mxu0 %v1939
      %v2277 = vpop.f32.mrf.mxu0
      %v2278 = vadd.f32 %v2165, %v2277
      %2279 = vmatmul.f32.gmra.mxu0 %v1942
      %v2280 = vpop.f32.mrf.mxu0
      %v2281 = vadd.f32 %v2168, %v2280
      %2282 = vmatmul.f32.gmra.mxu0 %v1945
      %v2283 = vpop.f32.mrf.mxu0
      %v2284 = vadd.f32 %v2171, %v2283
      %2285 = vmatmul.f32.gmra.mxu0 %v1948
      %v2286 = vpop.f32.mrf.mxu0
      %v2287 = vadd.f32 %v2174, %v2286
      %2288 = vmatmul.f32.gmra.mxu0 %v1951
      %v2289 = vpop.f32.mrf.mxu0
      %v2290 = vadd.f32 %v2177, %v2289
      %2291 = vmatmul.f32.gmra.mxu0 %v1954
      %v2292 = vpop.f32.mrf.mxu0
      %v2293 = vadd.f32 %v2180, %v2292
      %2294 = vmatmul.f32.gmra.mxu0 %v1957
      %v2295 = vpop.f32.mrf.mxu0
      %v2296 = vadd.f32 %v2183, %v2295
      %2297 = vmatmul.f32.gmra.mxu0 %v1960
      %v2298 = vpop.f32.mrf.mxu0
      %v2299 = vadd.f32 %v2186, %v2298
      %2300 = vmatmul.f32.gmra.mxu0 %v1963
      %v2301 = vpop.f32.mrf.mxu0
      %v2302 = vadd.f32 %v2189, %v2301
      %2303 = vmatmul.f32.gmra.mxu0 %v1966
      %v2304 = vpop.f32.mrf.mxu0
      %v2305 = vadd.f32 %v2192, %v2304
      %2306 = vmatmul.f32.gmra.mxu0 %v1969
      %v2307 = vpop.f32.mrf.mxu0
      %v2308 = vadd.f32 %v2195, %v2307
      %2309 = vmatmul.f32.gmra.mxu0 %v1972
      %v2310 = vpop.f32.mrf.mxu0
      %v2311 = vadd.f32 %v2198, %v2310
      %2312 = vmatmul.f32.gmra.mxu0 %v1975
      %v2313 = vpop.f32.mrf.mxu0
      %v2314 = vadd.f32 %v2201, %v2313
      %2315 = vmatmul.f32.gmra.mxu0 %v1978
      %v2316 = vpop.f32.mrf.mxu0
      %v2317 = vadd.f32 %v2204, %v2316
      %2318 = vdwg.mxu0
      %v2319 = vmax.f32 %v2224, 0.0
      %v2320 = vmax.f32 %v2227, 0.0
      %v2321 = vmax.f32 %v2230, 0.0
      %v2322 = vmax.f32 %v2233, 0.0
      %v2323 = vmax.f32 %v2236, 0.0
      %v2324 = vmax.f32 %v2239, 0.0
      %v2325 = vmax.f32 %v2242, 0.0
      %v2326 = vmax.f32 %v2245, 0.0
      %v2327 = vmax.f32 %v2248, 0.0
      %v2328 = vmax.f32 %v2251, 0.0
      %v2329 = vmax.f32 %v2254, 0.0
      %v2330 = vmax.f32 %v2257, 0.0
      %v2331 = vmax.f32 %v2260, 0.0
      %v2332 = vmax.f32 %v2263, 0.0
      %v2333 = vmax.f32 %v2266, 0.0
      %v2334 = vmax.f32 %v2269, 0.0
      %v2335 = vmax.f32 %v2272, 0.0
      %v2336 = vmax.f32 %v2275, 0.0
      %v2337 = vmax.f32 %v2278, 0.0
      %v2338 = vmax.f32 %v2281, 0.0
      %v2339 = vmax.f32 %v2284, 0.0
      %v2340 = vmax.f32 %v2287, 0.0
      %v2341 = vmax.f32 %v2290, 0.0
      %v2342 = vmax.f32 %v2293, 0.0
      %v2343 = vmax.f32 %v2296, 0.0
      %v2344 = vmax.f32 %v2299, 0.0
      %v2345 = vmax.f32 %v2302, 0.0
      %v2346 = vmax.f32 %v2305, 0.0
      %v2347 = vmax.f32 %v2308, 0.0
      %v2348 = vmax.f32 %v2311, 0.0
      %v2349 = vmax.f32 %v2314, 0.0
      %v2350 = vmax.f32 %v2317, 0.0
      %2351 = vst.msk [vmem:[%s367 + $0x1] sm:$0xff] %vm279, %v2319
      %2352 = vst.msk [vmem:[%s367 + $0x9] sm:$0xff] %vm279, %v2320
      %2353 = vst.msk [vmem:[%s367 + $0x19] sm:$0xff] %vm279, %v2321
      %2354 = vst.msk [vmem:[%s367 + $0x21] sm:$0xff] %vm279, %v2322
      %2355 = vst.msk [vmem:[%s367 + $0x31] sm:$0xff] %vm279, %v2323
      %2356 = vst.msk [vmem:[%s367 + $0x39] sm:$0xff] %vm279, %v2324
      %2357 = vst.msk [vmem:[%s367 + $0x49] sm:$0xff] %vm279, %v2325
      %2358 = vst.msk [vmem:[%s367 + $0x51] sm:$0xff] %vm279, %v2326
      %2359 = vst.msk [vmem:[%s367 + $0x61] sm:$0xff] %vm279, %v2327
      %2360 = vst.msk [vmem:[%s367 + $0x69] sm:$0xff] %vm279, %v2328
      %2361 = vst.msk [vmem:[%s367 + $0x79] sm:$0xff] %vm279, %v2329
      %2362 = vst.msk [vmem:[%s367 + $0x81] sm:$0xff] %vm279, %v2330
      %2363 = vst.msk [vmem:[%s367 + $0x91] sm:$0xff] %vm279, %v2331
      %2364 = vst.msk [vmem:[%s367 + $0x99] sm:$0xff] %vm279, %v2332
      %2365 = vst.msk [vmem:[%s367 + $0xa9] sm:$0xff] %vm279, %v2333
      %2366 = vst.msk [vmem:[%s367 + $0xb1] sm:$0xff] %vm279, %v2334
      %2367 = vst.msk [vmem:[%s367 + $0xc1] sm:$0xff] %vm279, %v2335
      %2368 = vst.msk [vmem:[%s367 + $0xc9] sm:$0xff] %vm279, %v2336
      %2369 = vst.msk [vmem:[%s367 + $0xd9] sm:$0xff] %vm279, %v2337
      %2370 = vst.msk [vmem:[%s367 + $0xe1] sm:$0xff] %vm279, %v2338
      %2371 = vst.msk [vmem:[%s367 + $0xf1] sm:$0xff] %vm279, %v2339
      %2372 = vst.msk [vmem:[%s367 + $0xf9] sm:$0xff] %vm279, %v2340
      %2373 = vst.msk [vmem:[%s367 + $0x109] sm:$0xff] %vm279, %v2341
      %2374 = vst.msk [vmem:[%s367 + $0x111] sm:$0xff] %vm279, %v2342
      %2375 = vst.msk [vmem:[%s367 + $0x121] sm:$0xff] %vm279, %v2343
      %2376 = vst.msk [vmem:[%s367 + $0x129] sm:$0xff] %vm279, %v2344
      %2377 = vst.msk [vmem:[%s367 + $0x139] sm:$0xff] %vm279, %v2345
      %2378 = vst.msk [vmem:[%s367 + $0x141] sm:$0xff] %vm279, %v2346
      %2379 = vst.msk [vmem:[%s367 + $0x151] sm:$0xff] %vm279, %v2347
      %2380 = vst.msk [vmem:[%s367 + $0x159] sm:$0xff] %vm279, %v2348
      %2381 = vst.msk [vmem:[%s367 + $0x169] sm:$0xff] %vm279, %v2349
      %2382 = vst.msk [vmem:[%s367 + $0x171] sm:$0xff] %vm279, %v2350
      %v2383 = vld [vmem:[#allocation2] sm:$0xff]
      %v2384 = vld [vmem:[#allocation2 + $0x8] sm:$0xff]
      %v2385 = vld [vmem:[#allocation2 + $0x18] sm:$0xff]
      %v2386 = vld [vmem:[#allocation2 + $0x20] sm:$0xff]
      %v2387 = vld [vmem:[#allocation2 + $0x30] sm:$0xff]
      %v2388 = vld [vmem:[#allocation2 + $0x38] sm:$0xff]
      %v2389 = vld [vmem:[#allocation2 + $0x48] sm:$0xff]
      %v2390 = vld [vmem:[#allocation2 + $0x50] sm:$0xff]
      %v2391 = vld [vmem:[#allocation2 + $0x60] sm:$0xff]
      %v2392 = vld [vmem:[#allocation2 + $0x68] sm:$0xff]
      %v2393 = vld [vmem:[#allocation2 + $0x78] sm:$0xff]
      %v2394 = vld [vmem:[#allocation2 + $0x80] sm:$0xff]
      %v2395 = vld [vmem:[#allocation2 + $0x90] sm:$0xff]
      %v2396 = vld [vmem:[#allocation2 + $0x98] sm:$0xff]
      %v2397 = vld [vmem:[#allocation2 + $0xa8] sm:$0xff]
      %v2398 = vld [vmem:[#allocation2 + $0xb0] sm:$0xff]
      %v2399 = vld [vmem:[#allocation2 + $0xc0] sm:$0xff]
      %v2400 = vld [vmem:[#allocation2 + $0xc8] sm:$0xff]
      %v2401 = vld [vmem:[#allocation2 + $0xd8] sm:$0xff]
      %v2402 = vld [vmem:[#allocation2 + $0xe0] sm:$0xff]
      %v2403 = vld [vmem:[#allocation2 + $0xf0] sm:$0xff]
      %v2404 = vld [vmem:[#allocation2 + $0xf8] sm:$0xff]
      %v2405 = vld [vmem:[#allocation2 + $0x108] sm:$0xff]
      %v2406 = vld [vmem:[#allocation2 + $0x110] sm:$0xff]
      %v2407 = vld [vmem:[#allocation2 + $0x120] sm:$0xff]
      %v2408 = vld [vmem:[#allocation2 + $0x128] sm:$0xff]
      %v2409 = vld [vmem:[#allocation2 + $0x138] sm:$0xff]
      %v2410 = vld [vmem:[#allocation2 + $0x140] sm:$0xff]
      %v2411 = vld [vmem:[#allocation2 + $0x150] sm:$0xff]
      %v2412 = vld [vmem:[#allocation2 + $0x158] sm:$0xff]
      %v2413 = vld [vmem:[#allocation2 + $0x168] sm:$0xff]
      %v2414 = vld [vmem:[#allocation2 + $0x170] sm:$0xff]
      %2415 = vst.msk [vmem:[#allocation3] sm:$0xff] %vm279, %v2383
      %2416 = vst.msk [vmem:[#allocation3 + $0x18] sm:$0xff] %vm279, %v2384
      %2417 = vst.msk [vmem:[#allocation3 + $0x30] sm:$0xff] %vm279, %v2385
      %2418 = vst.msk [vmem:[#allocation3 + $0x48] sm:$0xff] %vm279, %v2386
      %2419 = vst.msk [vmem:[#allocation3 + $0x60] sm:$0xff] %vm279, %v2387
      %2420 = vst.msk [vmem:[#allocation3 + $0x78] sm:$0xff] %vm279, %v2388
      %2421 = vst.msk [vmem:[#allocation3 + $0x90] sm:$0xff] %vm279, %v2389
      %2422 = vst.msk [vmem:[#allocation3 + $0xa8] sm:$0xff] %vm279, %v2390
      %2423 = vst.msk [vmem:[#allocation3 + $0xc0] sm:$0xff] %vm279, %v2391
      %2424 = vst.msk [vmem:[#allocation3 + $0xd8] sm:$0xff] %vm279, %v2392
      %2425 = vst.msk [vmem:[#allocation3 + $0xf0] sm:$0xff] %vm279, %v2393
      %2426 = vst.msk [vmem:[#allocation3 + $0x108] sm:$0xff] %vm279, %v2394
      %2427 = vst.msk [vmem:[#allocation3 + $0x120] sm:$0xff] %vm279, %v2395
      %2428 = vst.msk [vmem:[#allocation3 + $0x138] sm:$0xff] %vm279, %v2396
      %2429 = vst.msk [vmem:[#allocation3 + $0x150] sm:$0xff] %vm279, %v2397
      %2430 = vst.msk [vmem:[#allocation3 + $0x168] sm:$0xff] %vm279, %v2398
      %2431 = vst.msk [vmem:[#allocation3 + $0x180] sm:$0xff] %vm279, %v2399
      %2432 = vst.msk [vmem:[#allocation3 + $0x198] sm:$0xff] %vm279, %v2400
      %2433 = vst.msk [vmem:[#allocation3 + $0x1b0] sm:$0xff] %vm279, %v2401
      %2434 = vst.msk [vmem:[#allocation3 + $0x1c8] sm:$0xff] %vm279, %v2402
      %2435 = vst.msk [vmem:[#allocation3 + $0x1e0] sm:$0xff] %vm279, %v2403
      %2436 = vst.msk [vmem:[#allocation3 + $0x1f8] sm:$0xff] %vm279, %v2404
      %2437 = vst.msk [vmem:[#allocation3 + $0x210] sm:$0xff] %vm279, %v2405
      %2438 = vst.msk [vmem:[#allocation3 + $0x228] sm:$0xff] %vm279, %v2406
      %2439 = vst.msk [vmem:[#allocation3 + $0x240] sm:$0xff] %vm279, %v2407
      %2440 = vst.msk [vmem:[#allocation3 + $0x258] sm:$0xff] %vm279, %v2408
      %2441 = vst.msk [vmem:[#allocation3 + $0x270] sm:$0xff] %vm279, %v2409
      %2442 = vst.msk [vmem:[#allocation3 + $0x288] sm:$0xff] %vm279, %v2410
      %2443 = vst.msk [vmem:[#allocation3 + $0x2a0] sm:$0xff] %vm279, %v2411
      %2444 = vst.msk [vmem:[#allocation3 + $0x2b8] sm:$0xff] %vm279, %v2412
      %2445 = vst.msk [vmem:[#allocation3 + $0x2d0] sm:$0xff] %vm279, %v2413
      %2446 = vst.msk [vmem:[#allocation3 + $0x2e8] sm:$0xff] %vm279, %v2414
      %v2447 = vld [vmem:[#allocation2 + $0x1] sm:$0xff]
      %v2448 = vld [vmem:[#allocation2 + $0x9] sm:$0xff]
      %v2449 = vld [vmem:[#allocation2 + $0x19] sm:$0xff]
      %v2450 = vld [vmem:[#allocation2 + $0x21] sm:$0xff]
      %v2451 = vld [vmem:[#allocation2 + $0x31] sm:$0xff]
      %v2452 = vld [vmem:[#allocation2 + $0x39] sm:$0xff]
      %v2453 = vld [vmem:[#allocation2 + $0x49] sm:$0xff]
      %v2454 = vld [vmem:[#allocation2 + $0x51] sm:$0xff]
      %v2455 = vld [vmem:[#allocation2 + $0x61] sm:$0xff]
      %v2456 = vld [vmem:[#allocation2 + $0x69] sm:$0xff]
      %v2457 = vld [vmem:[#allocation2 + $0x79] sm:$0xff]
      %v2458 = vld [vmem:[#allocation2 + $0x81] sm:$0xff]
      %v2459 = vld [vmem:[#allocation2 + $0x91] sm:$0xff]
      %v2460 = vld [vmem:[#allocation2 + $0x99] sm:$0xff]
      %v2461 = vld [vmem:[#allocation2 + $0xa9] sm:$0xff]
      %v2462 = vld [vmem:[#allocation2 + $0xb1] sm:$0xff]
      %v2463 = vld [vmem:[#allocation2 + $0xc1] sm:$0xff]
      %v2464 = vld [vmem:[#allocation2 + $0xc9] sm:$0xff]
      %v2465 = vld [vmem:[#allocation2 + $0xd9] sm:$0xff]
      %v2466 = vld [vmem:[#allocation2 + $0xe1] sm:$0xff]
      %v2467 = vld [vmem:[#allocation2 + $0xf1] sm:$0xff]
      %v2468 = vld [vmem:[#allocation2 + $0xf9] sm:$0xff]
      %v2469 = vld [vmem:[#allocation2 + $0x109] sm:$0xff]
      %v2470 = vld [vmem:[#allocation2 + $0x111] sm:$0xff]
      %v2471 = vld [vmem:[#allocation2 + $0x121] sm:$0xff]
      %v2472 = vld [vmem:[#allocation2 + $0x129] sm:$0xff]
      %v2473 = vld [vmem:[#allocation2 + $0x139] sm:$0xff]
      %v2474 = vld [vmem:[#allocation2 + $0x141] sm:$0xff]
      %v2475 = vld [vmem:[#allocation2 + $0x151] sm:$0xff]
      %v2476 = vld [vmem:[#allocation2 + $0x159] sm:$0xff]
      %v2477 = vld [vmem:[#allocation2 + $0x169] sm:$0xff]
      %v2478 = vld [vmem:[#allocation2 + $0x171] sm:$0xff]
      %2511 = vrot.lane.b32.xlu0 %v2447, 32
      %v2512 = vpop.permute.xlu0 %2511
      %2513 = vrot.lane.b32.xlu0 %v2448, 32
      %v2514 = vpop.permute.xlu0 %2513
      %2515 = vrot.lane.b32.xlu0 %v2449, 32
      %v2516 = vpop.permute.xlu0 %2515
      %2517 = vrot.lane.b32.xlu0 %v2450, 32
      %v2518 = vpop.permute.xlu0 %2517
      %2519 = vrot.lane.b32.xlu0 %v2451, 32
      %v2520 = vpop.permute.xlu0 %2519
      %2521 = vrot.lane.b32.xlu0 %v2452, 32
      %v2522 = vpop.permute.xlu0 %2521
      %2523 = vrot.lane.b32.xlu0 %v2453, 32
      %v2524 = vpop.permute.xlu0 %2523
      %2525 = vrot.lane.b32.xlu0 %v2454, 32
      %v2526 = vpop.permute.xlu0 %2525
      %2527 = vrot.lane.b32.xlu0 %v2455, 32
      %v2528 = vpop.permute.xlu0 %2527
      %2529 = vrot.lane.b32.xlu0 %v2456, 32
      %v2530 = vpop.permute.xlu0 %2529
      %2531 = vrot.lane.b32.xlu0 %v2457, 32
      %v2532 = vpop.permute.xlu0 %2531
      %2533 = vrot.lane.b32.xlu0 %v2458, 32
      %v2534 = vpop.permute.xlu0 %2533
      %2535 = vrot.lane.b32.xlu0 %v2459, 32
      %v2536 = vpop.permute.xlu0 %2535
      %2537 = vrot.lane.b32.xlu0 %v2460, 32
      %v2538 = vpop.permute.xlu0 %2537
      %2539 = vrot.lane.b32.xlu0 %v2461, 32
      %v2540 = vpop.permute.xlu0 %2539
      %2541 = vrot.lane.b32.xlu0 %v2462, 32
      %v2542 = vpop.permute.xlu0 %2541
      %2543 = vrot.lane.b32.xlu0 %v2463, 32
      %v2544 = vpop.permute.xlu0 %2543
      %2545 = vrot.lane.b32.xlu0 %v2464, 32
      %v2546 = vpop.permute.xlu0 %2545
      %2547 = vrot.lane.b32.xlu0 %v2465, 32
      %v2548 = vpop.permute.xlu0 %2547
      %2549 = vrot.lane.b32.xlu0 %v2466, 32
      %v2550 = vpop.permute.xlu0 %2549
      %2551 = vrot.lane.b32.xlu0 %v2467, 32
      %v2552 = vpop.permute.xlu0 %2551
      %2553 = vrot.lane.b32.xlu0 %v2468, 32
      %v2554 = vpop.permute.xlu0 %2553
      %2555 = vrot.lane.b32.xlu0 %v2469, 32
      %v2556 = vpop.permute.xlu0 %2555
      %2557 = vrot.lane.b32.xlu0 %v2470, 32
      %v2558 = vpop.permute.xlu0 %2557
      %2559 = vrot.lane.b32.xlu0 %v2471, 32
      %v2560 = vpop.permute.xlu0 %2559
      %2561 = vrot.lane.b32.xlu0 %v2472, 32
      %v2562 = vpop.permute.xlu0 %2561
      %2563 = vrot.lane.b32.xlu0 %v2473, 32
      %v2564 = vpop.permute.xlu0 %2563
      %2565 = vrot.lane.b32.xlu0 %v2474, 32
      %v2566 = vpop.permute.xlu0 %2565
      %2567 = vrot.lane.b32.xlu0 %v2475, 32
      %v2568 = vpop.permute.xlu0 %2567
      %2569 = vrot.lane.b32.xlu0 %v2476, 32
      %v2570 = vpop.permute.xlu0 %2569
      %2571 = vrot.lane.b32.xlu0 %v2477, 32
      %v2572 = vpop.permute.xlu0 %2571
      %2573 = vrot.lane.b32.xlu0 %v2478, 32
      %v2574 = vpop.permute.xlu0 %2573
      %2607 = vst.msk [vmem:[#allocation3] sm:$0xff] %vm624, %v2512
      %2608 = vst.msk [vmem:[#allocation3 + $0x18] sm:$0xff] %vm624, %v2514
      %2609 = vst.msk [vmem:[#allocation3 + $0x30] sm:$0xff] %vm624, %v2516
      %2610 = vst.msk [vmem:[#allocation3 + $0x48] sm:$0xff] %vm624, %v2518
      %2611 = vst.msk [vmem:[#allocation3 + $0x60] sm:$0xff] %vm624, %v2520
      %2612 = vst.msk [vmem:[#allocation3 + $0x78] sm:$0xff] %vm624, %v2522
      %2613 = vst.msk [vmem:[#allocation3 + $0x90] sm:$0xff] %vm624, %v2524
      %2614 = vst.msk [vmem:[#allocation3 + $0xa8] sm:$0xff] %vm624, %v2526
      %2615 = vst.msk [vmem:[#allocation3 + $0xc0] sm:$0xff] %vm624, %v2528
      %2616 = vst.msk [vmem:[#allocation3 + $0xd8] sm:$0xff] %vm624, %v2530
      %2617 = vst.msk [vmem:[#allocation3 + $0xf0] sm:$0xff] %vm624, %v2532
      %2618 = vst.msk [vmem:[#allocation3 + $0x108] sm:$0xff] %vm624, %v2534
      %2619 = vst.msk [vmem:[#allocation3 + $0x120] sm:$0xff] %vm624, %v2536
      %2620 = vst.msk [vmem:[#allocation3 + $0x138] sm:$0xff] %vm624, %v2538
      %2621 = vst.msk [vmem:[#allocation3 + $0x150] sm:$0xff] %vm624, %v2540
      %2622 = vst.msk [vmem:[#allocation3 + $0x168] sm:$0xff] %vm624, %v2542
      %2623 = vst.msk [vmem:[#allocation3 + $0x180] sm:$0xff] %vm624, %v2544
      %2624 = vst.msk [vmem:[#allocation3 + $0x198] sm:$0xff] %vm624, %v2546
      %2625 = vst.msk [vmem:[#allocation3 + $0x1b0] sm:$0xff] %vm624, %v2548
      %2626 = vst.msk [vmem:[#allocation3 + $0x1c8] sm:$0xff] %vm624, %v2550
      %2627 = vst.msk [vmem:[#allocation3 + $0x1e0] sm:$0xff] %vm624, %v2552
      %2628 = vst.msk [vmem:[#allocation3 + $0x1f8] sm:$0xff] %vm624, %v2554
      %2629 = vst.msk [vmem:[#allocation3 + $0x210] sm:$0xff] %vm624, %v2556
      %2630 = vst.msk [vmem:[#allocation3 + $0x228] sm:$0xff] %vm624, %v2558
      %2631 = vst.msk [vmem:[#allocation3 + $0x240] sm:$0xff] %vm624, %v2560
      %2632 = vst.msk [vmem:[#allocation3 + $0x258] sm:$0xff] %vm624, %v2562
      %2633 = vst.msk [vmem:[#allocation3 + $0x270] sm:$0xff] %vm624, %v2564
      %2634 = vst.msk [vmem:[#allocation3 + $0x288] sm:$0xff] %vm624, %v2566
      %2635 = vst.msk [vmem:[#allocation3 + $0x2a0] sm:$0xff] %vm624, %v2568
      %2636 = vst.msk [vmem:[#allocation3 + $0x2b8] sm:$0xff] %vm624, %v2570
      %2637 = vst.msk [vmem:[#allocation3 + $0x2d0] sm:$0xff] %vm624, %v2572
      %2638 = vst.msk [vmem:[#allocation3 + $0x2e8] sm:$0xff] %vm624, %v2574
      %v2639 = vld [vmem:[#allocation2 + $0x2] sm:$0xff]
      %v2640 = vld [vmem:[#allocation2 + $0xa] sm:$0xff]
      %v2641 = vld [vmem:[#allocation2 + $0x1a] sm:$0xff]
      %v2642 = vld [vmem:[#allocation2 + $0x22] sm:$0xff]
      %v2643 = vld [vmem:[#allocation2 + $0x32] sm:$0xff]
      %v2644 = vld [vmem:[#allocation2 + $0x3a] sm:$0xff]
      %v2645 = vld [vmem:[#allocation2 + $0x4a] sm:$0xff]
      %v2646 = vld [vmem:[#allocation2 + $0x52] sm:$0xff]
      %v2647 = vld [vmem:[#allocation2 + $0x62] sm:$0xff]
      %v2648 = vld [vmem:[#allocation2 + $0x6a] sm:$0xff]
      %v2649 = vld [vmem:[#allocation2 + $0x7a] sm:$0xff]
      %v2650 = vld [vmem:[#allocation2 + $0x82] sm:$0xff]
      %v2651 = vld [vmem:[#allocation2 + $0x92] sm:$0xff]
      %v2652 = vld [vmem:[#allocation2 + $0x9a] sm:$0xff]
      %v2653 = vld [vmem:[#allocation2 + $0xaa] sm:$0xff]
      %v2654 = vld [vmem:[#allocation2 + $0xb2] sm:$0xff]
      %v2655 = vld [vmem:[#allocation2 + $0xc2] sm:$0xff]
      %v2656 = vld [vmem:[#allocation2 + $0xca] sm:$0xff]
      %v2657 = vld [vmem:[#allocation2 + $0xda] sm:$0xff]
      %v2658 = vld [vmem:[#allocation2 + $0xe2] sm:$0xff]
      %v2659 = vld [vmem:[#allocation2 + $0xf2] sm:$0xff]
      %v2660 = vld [vmem:[#allocation2 + $0xfa] sm:$0xff]
      %v2661 = vld [vmem:[#allocation2 + $0x10a] sm:$0xff]
      %v2662 = vld [vmem:[#allocation2 + $0x112] sm:$0xff]
      %v2663 = vld [vmem:[#allocation2 + $0x122] sm:$0xff]
      %v2664 = vld [vmem:[#allocation2 + $0x12a] sm:$0xff]
      %v2665 = vld [vmem:[#allocation2 + $0x13a] sm:$0xff]
      %v2666 = vld [vmem:[#allocation2 + $0x142] sm:$0xff]
      %v2667 = vld [vmem:[#allocation2 + $0x152] sm:$0xff]
      %v2668 = vld [vmem:[#allocation2 + $0x15a] sm:$0xff]
      %v2669 = vld [vmem:[#allocation2 + $0x16a] sm:$0xff]
      %v2670 = vld [vmem:[#allocation2 + $0x172] sm:$0xff]
      %2703 = vrot.lane.b32.xlu0 %v2639, 64
      %v2704 = vpop.permute.xlu0 %2703
      %2705 = vrot.lane.b32.xlu0 %v2640, 64
      %v2706 = vpop.permute.xlu0 %2705
      %2707 = vrot.lane.b32.xlu0 %v2641, 64
      %v2708 = vpop.permute.xlu0 %2707
      %2709 = vrot.lane.b32.xlu0 %v2642, 64
      %v2710 = vpop.permute.xlu0 %2709
      %2711 = vrot.lane.b32.xlu0 %v2643, 64
      %v2712 = vpop.permute.xlu0 %2711
      %2713 = vrot.lane.b32.xlu0 %v2644, 64
      %v2714 = vpop.permute.xlu0 %2713
      %2715 = vrot.lane.b32.xlu0 %v2645, 64
      %v2716 = vpop.permute.xlu0 %2715
      %2717 = vrot.lane.b32.xlu0 %v2646, 64
      %v2718 = vpop.permute.xlu0 %2717
      %2719 = vrot.lane.b32.xlu0 %v2647, 64
      %v2720 = vpop.permute.xlu0 %2719
      %2721 = vrot.lane.b32.xlu0 %v2648, 64
      %v2722 = vpop.permute.xlu0 %2721
      %2723 = vrot.lane.b32.xlu0 %v2649, 64
      %v2724 = vpop.permute.xlu0 %2723
      %2725 = vrot.lane.b32.xlu0 %v2650, 64
      %v2726 = vpop.permute.xlu0 %2725
      %2727 = vrot.lane.b32.xlu0 %v2651, 64
      %v2728 = vpop.permute.xlu0 %2727
      %2729 = vrot.lane.b32.xlu0 %v2652, 64
      %v2730 = vpop.permute.xlu0 %2729
      %2731 = vrot.lane.b32.xlu0 %v2653, 64
      %v2732 = vpop.permute.xlu0 %2731
      %2733 = vrot.lane.b32.xlu0 %v2654, 64
      %v2734 = vpop.permute.xlu0 %2733
      %2735 = vrot.lane.b32.xlu0 %v2655, 64
      %v2736 = vpop.permute.xlu0 %2735
      %2737 = vrot.lane.b32.xlu0 %v2656, 64
      %v2738 = vpop.permute.xlu0 %2737
      %2739 = vrot.lane.b32.xlu0 %v2657, 64
      %v2740 = vpop.permute.xlu0 %2739
      %2741 = vrot.lane.b32.xlu0 %v2658, 64
      %v2742 = vpop.permute.xlu0 %2741
      %2743 = vrot.lane.b32.xlu0 %v2659, 64
      %v2744 = vpop.permute.xlu0 %2743
      %2745 = vrot.lane.b32.xlu0 %v2660, 64
      %v2746 = vpop.permute.xlu0 %2745
      %2747 = vrot.lane.b32.xlu0 %v2661, 64
      %v2748 = vpop.permute.xlu0 %2747
      %2749 = vrot.lane.b32.xlu0 %v2662, 64
      %v2750 = vpop.permute.xlu0 %2749
      %2751 = vrot.lane.b32.xlu0 %v2663, 64
      %v2752 = vpop.permute.xlu0 %2751
      %2753 = vrot.lane.b32.xlu0 %v2664, 64
      %v2754 = vpop.permute.xlu0 %2753
      %2755 = vrot.lane.b32.xlu0 %v2665, 64
      %v2756 = vpop.permute.xlu0 %2755
      %2757 = vrot.lane.b32.xlu0 %v2666, 64
      %v2758 = vpop.permute.xlu0 %2757
      %2759 = vrot.lane.b32.xlu0 %v2667, 64
      %v2760 = vpop.permute.xlu0 %2759
      %2761 = vrot.lane.b32.xlu0 %v2668, 64
      %v2762 = vpop.permute.xlu0 %2761
      %2763 = vrot.lane.b32.xlu0 %v2669, 64
      %v2764 = vpop.permute.xlu0 %2763
      %2765 = vrot.lane.b32.xlu0 %v2670, 64
      %v2766 = vpop.permute.xlu0 %2765
      %2799 = vst.msk [vmem:[#allocation3] sm:$0xff] %vm817, %v2704
      %2800 = vst.msk [vmem:[#allocation3 + $0x18] sm:$0xff] %vm817, %v2706
      %2801 = vst.msk [vmem:[#allocation3 + $0x30] sm:$0xff] %vm817, %v2708
      %2802 = vst.msk [vmem:[#allocation3 + $0x48] sm:$0xff] %vm817, %v2710
      %2803 = vst.msk [vmem:[#allocation3 + $0x60] sm:$0xff] %vm817, %v2712
      %2804 = vst.msk [vmem:[#allocation3 + $0x78] sm:$0xff] %vm817, %v2714
      %2805 = vst.msk [vmem:[#allocation3 + $0x90] sm:$0xff] %vm817, %v2716
      %2806 = vst.msk [vmem:[#allocation3 + $0xa8] sm:$0xff] %vm817, %v2718
      %2807 = vst.msk [vmem:[#allocation3 + $0xc0] sm:$0xff] %vm817, %v2720
      %2808 = vst.msk [vmem:[#allocation3 + $0xd8] sm:$0xff] %vm817, %v2722
      %2809 = vst.msk [vmem:[#allocation3 + $0xf0] sm:$0xff] %vm817, %v2724
      %2810 = vst.msk [vmem:[#allocation3 + $0x108] sm:$0xff] %vm817, %v2726
      %2811 = vst.msk [vmem:[#allocation3 + $0x120] sm:$0xff] %vm817, %v2728
      %2812 = vst.msk [vmem:[#allocation3 + $0x138] sm:$0xff] %vm817, %v2730
      %2813 = vst.msk [vmem:[#allocation3 + $0x150] sm:$0xff] %vm817, %v2732
      %2814 = vst.msk [vmem:[#allocation3 + $0x168] sm:$0xff] %vm817, %v2734
      %2815 = vst.msk [vmem:[#allocation3 + $0x180] sm:$0xff] %vm817, %v2736
      %2816 = vst.msk [vmem:[#allocation3 + $0x198] sm:$0xff] %vm817, %v2738
      %2817 = vst.msk [vmem:[#allocation3 + $0x1b0] sm:$0xff] %vm817, %v2740
      %2818 = vst.msk [vmem:[#allocation3 + $0x1c8] sm:$0xff] %vm817, %v2742
      %2819 = vst.msk [vmem:[#allocation3 + $0x1e0] sm:$0xff] %vm817, %v2744
      %2820 = vst.msk [vmem:[#allocation3 + $0x1f8] sm:$0xff] %vm817, %v2746
      %2821 = vst.msk [vmem:[#allocation3 + $0x210] sm:$0xff] %vm817, %v2748
      %2822 = vst.msk [vmem:[#allocation3 + $0x228] sm:$0xff] %vm817, %v2750
      %2823 = vst.msk [vmem:[#allocation3 + $0x240] sm:$0xff] %vm817, %v2752
      %2824 = vst.msk [vmem:[#allocation3 + $0x258] sm:$0xff] %vm817, %v2754
      %2825 = vst.msk [vmem:[#allocation3 + $0x270] sm:$0xff] %vm817, %v2756
      %2826 = vst.msk [vmem:[#allocation3 + $0x288] sm:$0xff] %vm817, %v2758
      %2827 = vst.msk [vmem:[#allocation3 + $0x2a0] sm:$0xff] %vm817, %v2760
      %2828 = vst.msk [vmem:[#allocation3 + $0x2b8] sm:$0xff] %vm817, %v2762
      %2829 = vst.msk [vmem:[#allocation3 + $0x2d0] sm:$0xff] %vm817, %v2764
      %2830 = vst.msk [vmem:[#allocation3 + $0x2e8] sm:$0xff] %vm817, %v2766
      %v2831 = vld [vmem:[%s367] sm:$0xff]
      %v2832 = vld [vmem:[%s367 + $0x8] sm:$0xff]
      %v2833 = vld [vmem:[%s367 + $0x18] sm:$0xff]
      %v2834 = vld [vmem:[%s367 + $0x20] sm:$0xff]
      %v2835 = vld [vmem:[%s367 + $0x30] sm:$0xff]
      %v2836 = vld [vmem:[%s367 + $0x38] sm:$0xff]
      %v2837 = vld [vmem:[%s367 + $0x48] sm:$0xff]
      %v2838 = vld [vmem:[%s367 + $0x50] sm:$0xff]
      %v2839 = vld [vmem:[%s367 + $0x60] sm:$0xff]
      %v2840 = vld [vmem:[%s367 + $0x68] sm:$0xff]
      %v2841 = vld [vmem:[%s367 + $0x78] sm:$0xff]
      %v2842 = vld [vmem:[%s367 + $0x80] sm:$0xff]
      %v2843 = vld [vmem:[%s367 + $0x90] sm:$0xff]
      %v2844 = vld [vmem:[%s367 + $0x98] sm:$0xff]
      %v2845 = vld [vmem:[%s367 + $0xa8] sm:$0xff]
      %v2846 = vld [vmem:[%s367 + $0xb0] sm:$0xff]
      %v2847 = vld [vmem:[%s367 + $0xc0] sm:$0xff]
      %v2848 = vld [vmem:[%s367 + $0xc8] sm:$0xff]
      %v2849 = vld [vmem:[%s367 + $0xd8] sm:$0xff]
      %v2850 = vld [vmem:[%s367 + $0xe0] sm:$0xff]
      %v2851 = vld [vmem:[%s367 + $0xf0] sm:$0xff]
      %v2852 = vld [vmem:[%s367 + $0xf8] sm:$0xff]
      %v2853 = vld [vmem:[%s367 + $0x108] sm:$0xff]
      %v2854 = vld [vmem:[%s367 + $0x110] sm:$0xff]
      %v2855 = vld [vmem:[%s367 + $0x120] sm:$0xff]
      %v2856 = vld [vmem:[%s367 + $0x128] sm:$0xff]
      %v2857 = vld [vmem:[%s367 + $0x138] sm:$0xff]
      %v2858 = vld [vmem:[%s367 + $0x140] sm:$0xff]
      %v2859 = vld [vmem:[%s367 + $0x150] sm:$0xff]
      %v2860 = vld [vmem:[%s367 + $0x158] sm:$0xff]
      %v2861 = vld [vmem:[%s367 + $0x168] sm:$0xff]
      %v2862 = vld [vmem:[%s367 + $0x170] sm:$0xff]
      %2895 = vrot.lane.b32.xlu0 %v2831, 96
      %v2896 = vpop.permute.xlu0 %2895
      %2897 = vrot.lane.b32.xlu0 %v2832, 96
      %v2898 = vpop.permute.xlu0 %2897
      %2899 = vrot.lane.b32.xlu0 %v2833, 96
      %v2900 = vpop.permute.xlu0 %2899
      %2901 = vrot.lane.b32.xlu0 %v2834, 96
      %v2902 = vpop.permute.xlu0 %2901
      %2903 = vrot.lane.b32.xlu0 %v2835, 96
      %v2904 = vpop.permute.xlu0 %2903
      %2905 = vrot.lane.b32.xlu0 %v2836, 96
      %v2906 = vpop.permute.xlu0 %2905
      %2907 = vrot.lane.b32.xlu0 %v2837, 96
      %v2908 = vpop.permute.xlu0 %2907
      %2909 = vrot.lane.b32.xlu0 %v2838, 96
      %v2910 = vpop.permute.xlu0 %2909
      %2911 = vrot.lane.b32.xlu0 %v2839, 96
      %v2912 = vpop.permute.xlu0 %2911
      %2913 = vrot.lane.b32.xlu0 %v2840, 96
      %v2914 = vpop.permute.xlu0 %2913
      %2915 = vrot.lane.b32.xlu0 %v2841, 96
      %v2916 = vpop.permute.xlu0 %2915
      %2917 = vrot.lane.b32.xlu0 %v2842, 96
      %v2918 = vpop.permute.xlu0 %2917
      %2919 = vrot.lane.b32.xlu0 %v2843, 96
      %v2920 = vpop.permute.xlu0 %2919
      %2921 = vrot.lane.b32.xlu0 %v2844, 96
      %v2922 = vpop.permute.xlu0 %2921
      %2923 = vrot.lane.b32.xlu0 %v2845, 96
      %v2924 = vpop.permute.xlu0 %2923
      %2925 = vrot.lane.b32.xlu0 %v2846, 96
      %v2926 = vpop.permute.xlu0 %2925
      %2927 = vrot.lane.b32.xlu0 %v2847, 96
      %v2928 = vpop.permute.xlu0 %2927
      %2929 = vrot.lane.b32.xlu0 %v2848, 96
      %v2930 = vpop.permute.xlu0 %2929
      %2931 = vrot.lane.b32.xlu0 %v2849, 96
      %v2932 = vpop.permute.xlu0 %2931
      %2933 = vrot.lane.b32.xlu0 %v2850, 96
      %v2934 = vpop.permute.xlu0 %2933
      %2935 = vrot.lane.b32.xlu0 %v2851, 96
      %v2936 = vpop.permute.xlu0 %2935
      %2937 = vrot.lane.b32.xlu0 %v2852, 96
      %v2938 = vpop.permute.xlu0 %2937
      %2939 = vrot.lane.b32.xlu0 %v2853, 96
      %v2940 = vpop.permute.xlu0 %2939
      %2941 = vrot.lane.b32.xlu0 %v2854, 96
      %v2942 = vpop.permute.xlu0 %2941
      %2943 = vrot.lane.b32.xlu0 %v2855, 96
      %v2944 = vpop.permute.xlu0 %2943
      %2945 = vrot.lane.b32.xlu0 %v2856, 96
      %v2946 = vpop.permute.xlu0 %2945
      %2947 = vrot.lane.b32.xlu0 %v2857, 96
      %v2948 = vpop.permute.xlu0 %2947
      %2949 = vrot.lane.b32.xlu0 %v2858, 96
      %v2950 = vpop.permute.xlu0 %2949
      %2951 = vrot.lane.b32.xlu0 %v2859, 96
      %v2952 = vpop.permute.xlu0 %2951
      %2953 = vrot.lane.b32.xlu0 %v2860, 96
      %v2954 = vpop.permute.xlu0 %2953
      %2955 = vrot.lane.b32.xlu0 %v2861, 96
      %v2956 = vpop.permute.xlu0 %2955
      %2957 = vrot.lane.b32.xlu0 %v2862, 96
      %v2958 = vpop.permute.xlu0 %2957
      %2991 = vst.msk [vmem:[#allocation3] sm:$0xff] %vm1010, %v2896
      %2992 = vst.msk [vmem:[#allocation3 + $0x18] sm:$0xff] %vm1010, %v2898
      %2993 = vst.msk [vmem:[#allocation3 + $0x30] sm:$0xff] %vm1010, %v2900
      %2994 = vst.msk [vmem:[#allocation3 + $0x48] sm:$0xff] %vm1010, %v2902
      %2995 = vst.msk [vmem:[#allocation3 + $0x60] sm:$0xff] %vm1010, %v2904
      %2996 = vst.msk [vmem:[#allocation3 + $0x78] sm:$0xff] %vm1010, %v2906
      %2997 = vst.msk [vmem:[#allocation3 + $0x90] sm:$0xff] %vm1010, %v2908
      %2998 = vst.msk [vmem:[#allocation3 + $0xa8] sm:$0xff] %vm1010, %v2910
      %2999 = vst.msk [vmem:[#allocation3 + $0xc0] sm:$0xff] %vm1010, %v2912
      %3000 = vst.msk [vmem:[#allocation3 + $0xd8] sm:$0xff] %vm1010, %v2914
      %3001 = vst.msk [vmem:[#allocation3 + $0xf0] sm:$0xff] %vm1010, %v2916
      %3002 = vst.msk [vmem:[#allocation3 + $0x108] sm:$0xff] %vm1010, %v2918
      %3003 = vst.msk [vmem:[#allocation3 + $0x120] sm:$0xff] %vm1010, %v2920
      %3004 = vst.msk [vmem:[#allocation3 + $0x138] sm:$0xff] %vm1010, %v2922
      %3005 = vst.msk [vmem:[#allocation3 + $0x150] sm:$0xff] %vm1010, %v2924
      %3006 = vst.msk [vmem:[#allocation3 + $0x168] sm:$0xff] %vm1010, %v2926
      %3007 = vst.msk [vmem:[#allocation3 + $0x180] sm:$0xff] %vm1010, %v2928
      %3008 = vst.msk [vmem:[#allocation3 + $0x198] sm:$0xff] %vm1010, %v2930
      %3009 = vst.msk [vmem:[#allocation3 + $0x1b0] sm:$0xff] %vm1010, %v2932
      %3010 = vst.msk [vmem:[#allocation3 + $0x1c8] sm:$0xff] %vm1010, %v2934
      %3011 = vst.msk [vmem:[#allocation3 + $0x1e0] sm:$0xff] %vm1010, %v2936
      %3012 = vst.msk [vmem:[#allocation3 + $0x1f8] sm:$0xff] %vm1010, %v2938
      %3013 = vst.msk [vmem:[#allocation3 + $0x210] sm:$0xff] %vm1010, %v2940
      %3014 = vst.msk [vmem:[#allocation3 + $0x228] sm:$0xff] %vm1010, %v2942
      %3015 = vst.msk [vmem:[#allocation3 + $0x240] sm:$0xff] %vm1010, %v2944
      %3016 = vst.msk [vmem:[#allocation3 + $0x258] sm:$0xff] %vm1010, %v2946
      %3017 = vst.msk [vmem:[#allocation3 + $0x270] sm:$0xff] %vm1010, %v2948
      %3018 = vst.msk [vmem:[#allocation3 + $0x288] sm:$0xff] %vm1010, %v2950
      %3019 = vst.msk [vmem:[#allocation3 + $0x2a0] sm:$0xff] %vm1010, %v2952
      %3020 = vst.msk [vmem:[#allocation3 + $0x2b8] sm:$0xff] %vm1010, %v2954
      %3021 = vst.msk [vmem:[#allocation3 + $0x2d0] sm:$0xff] %vm1010, %v2956
      %3022 = vst.msk [vmem:[#allocation3 + $0x2e8] sm:$0xff] %vm1010, %v2958
      %v3023 = vld [vmem:[%s367 + $0x1] sm:$0xff]
      %v3024 = vld [vmem:[%s367 + $0x9] sm:$0xff]
      %v3025 = vld [vmem:[%s367 + $0x19] sm:$0xff]
      %v3026 = vld [vmem:[%s367 + $0x21] sm:$0xff]
      %v3027 = vld [vmem:[%s367 + $0x31] sm:$0xff]
      %v3028 = vld [vmem:[%s367 + $0x39] sm:$0xff]
      %v3029 = vld [vmem:[%s367 + $0x49] sm:$0xff]
      %v3030 = vld [vmem:[%s367 + $0x51] sm:$0xff]
      %v3031 = vld [vmem:[%s367 + $0x61] sm:$0xff]
      %v3032 = vld [vmem:[%s367 + $0x69] sm:$0xff]
      %v3033 = vld [vmem:[%s367 + $0x79] sm:$0xff]
      %v3034 = vld [vmem:[%s367 + $0x81] sm:$0xff]
      %v3035 = vld [vmem:[%s367 + $0x91] sm:$0xff]
      %v3036 = vld [vmem:[%s367 + $0x99] sm:$0xff]
      %v3037 = vld [vmem:[%s367 + $0xa9] sm:$0xff]
      %v3038 = vld [vmem:[%s367 + $0xb1] sm:$0xff]
      %v3039 = vld [vmem:[%s367 + $0xc1] sm:$0xff]
      %v3040 = vld [vmem:[%s367 + $0xc9] sm:$0xff]
      %v3041 = vld [vmem:[%s367 + $0xd9] sm:$0xff]
      %v3042 = vld [vmem:[%s367 + $0xe1] sm:$0xff]
      %v3043 = vld [vmem:[%s367 + $0xf1] sm:$0xff]
      %v3044 = vld [vmem:[%s367 + $0xf9] sm:$0xff]
      %v3045 = vld [vmem:[%s367 + $0x109] sm:$0xff]
      %v3046 = vld [vmem:[%s367 + $0x111] sm:$0xff]
      %v3047 = vld [vmem:[%s367 + $0x121] sm:$0xff]
      %v3048 = vld [vmem:[%s367 + $0x129] sm:$0xff]
      %v3049 = vld [vmem:[%s367 + $0x139] sm:$0xff]
      %v3050 = vld [vmem:[%s367 + $0x141] sm:$0xff]
      %v3051 = vld [vmem:[%s367 + $0x151] sm:$0xff]
      %v3052 = vld [vmem:[%s367 + $0x159] sm:$0xff]
      %v3053 = vld [vmem:[%s367 + $0x169] sm:$0xff]
      %v3054 = vld [vmem:[%s367 + $0x171] sm:$0xff]
      %3055 = vst.msk [vmem:[#allocation3 + $0x8] sm:$0xff] %vm279, %v3023
      %3056 = vst.msk [vmem:[#allocation3 + $0x20] sm:$0xff] %vm279, %v3024
      %3057 = vst.msk [vmem:[#allocation3 + $0x38] sm:$0xff] %vm279, %v3025
      %3058 = vst.msk [vmem:[#allocation3 + $0x50] sm:$0xff] %vm279, %v3026
      %3059 = vst.msk [vmem:[#allocation3 + $0x68] sm:$0xff] %vm279, %v3027
      %3060 = vst.msk [vmem:[#allocation3 + $0x80] sm:$0xff] %vm279, %v3028
      %3061 = vst.msk [vmem:[#allocation3 + $0x98] sm:$0xff] %vm279, %v3029
      %3062 = vst.msk [vmem:[#allocation3 + $0xb0] sm:$0xff] %vm279, %v3030
      %3063 = vst.msk [vmem:[#allocation3 + $0xc8] sm:$0xff] %vm279, %v3031
      %3064 = vst.msk [vmem:[#allocation3 + $0xe0] sm:$0xff] %vm279, %v3032
      %3065 = vst.msk [vmem:[#allocation3 + $0xf8] sm:$0xff] %vm279, %v3033
      %3066 = vst.msk [vmem:[#allocation3 + $0x110] sm:$0xff] %vm279, %v3034
      %3067 = vst.msk [vmem:[#allocation3 + $0x128] sm:$0xff] %vm279, %v3035
      %3068 = vst.msk [vmem:[#allocation3 + $0x140] sm:$0xff] %vm279, %v3036
      %3069 = vst.msk [vmem:[#allocation3 + $0x158] sm:$0xff] %vm279, %v3037
      %3070 = vst.msk [vmem:[#allocation3 + $0x170] sm:$0xff] %vm279, %v3038
      %3071 = vst.msk [vmem:[#allocation3 + $0x188] sm:$0xff] %vm279, %v3039
      %3072 = vst.msk [vmem:[#allocation3 + $0x1a0] sm:$0xff] %vm279, %v3040
      %3073 = vst.msk [vmem:[#allocation3 + $0x1b8] sm:$0xff] %vm279, %v3041
      %3074 = vst.msk [vmem:[#allocation3 + $0x1d0] sm:$0xff] %vm279, %v3042
      %3075 = vst.msk [vmem:[#allocation3 + $0x1e8] sm:$0xff] %vm279, %v3043
      %3076 = vst.msk [vmem:[#allocation3 + $0x200] sm:$0xff] %vm279, %v3044
      %3077 = vst.msk [vmem:[#allocation3 + $0x218] sm:$0xff] %vm279, %v3045
      %3078 = vst.msk [vmem:[#allocation3 + $0x230] sm:$0xff] %vm279, %v3046
      %3079 = vst.msk [vmem:[#allocation3 + $0x248] sm:$0xff] %vm279, %v3047
      %3080 = vst.msk [vmem:[#allocation3 + $0x260] sm:$0xff] %vm279, %v3048
      %3081 = vst.msk [vmem:[#allocation3 + $0x278] sm:$0xff] %vm279, %v3049
      %3082 = vst.msk [vmem:[#allocation3 + $0x290] sm:$0xff] %vm279, %v3050
      %3083 = vst.msk [vmem:[#allocation3 + $0x2a8] sm:$0xff] %vm279, %v3051
      %3084 = vst.msk [vmem:[#allocation3 + $0x2c0] sm:$0xff] %vm279, %v3052
      %3085 = vst.msk [vmem:[#allocation3 + $0x2d8] sm:$0xff] %vm279, %v3053
      %3086 = vst.msk [vmem:[#allocation3 + $0x2f0] sm:$0xff] %vm279, %v3054
      %v3087 = vld [vmem:[%s367 + $0x2] sm:$0xff]
      %v3088 = vld [vmem:[%s367 + $0xa] sm:$0xff]
      %v3089 = vld [vmem:[%s367 + $0x1a] sm:$0xff]
      %v3090 = vld [vmem:[%s367 + $0x22] sm:$0xff]
      %v3091 = vld [vmem:[%s367 + $0x32] sm:$0xff]
      %v3092 = vld [vmem:[%s367 + $0x3a] sm:$0xff]
      %v3093 = vld [vmem:[%s367 + $0x4a] sm:$0xff]
      %v3094 = vld [vmem:[%s367 + $0x52] sm:$0xff]
      %v3095 = vld [vmem:[%s367 + $0x62] sm:$0xff]
      %v3096 = vld [vmem:[%s367 + $0x6a] sm:$0xff]
      %v3097 = vld [vmem:[%s367 + $0x7a] sm:$0xff]
      %v3098 = vld [vmem:[%s367 + $0x82] sm:$0xff]
      %v3099 = vld [vmem:[%s367 + $0x92] sm:$0xff]
      %v3100 = vld [vmem:[%s367 + $0x9a] sm:$0xff]
      %v3101 = vld [vmem:[%s367 + $0xaa] sm:$0xff]
      %v3102 = vld [vmem:[%s367 + $0xb2] sm:$0xff]
      %v3103 = vld [vmem:[%s367 + $0xc2] sm:$0xff]
      %v3104 = vld [vmem:[%s367 + $0xca] sm:$0xff]
      %v3105 = vld [vmem:[%s367 + $0xda] sm:$0xff]
      %v3106 = vld [vmem:[%s367 + $0xe2] sm:$0xff]
      %v3107 = vld [vmem:[%s367 + $0xf2] sm:$0xff]
      %v3108 = vld [vmem:[%s367 + $0xfa] sm:$0xff]
      %v3109 = vld [vmem:[%s367 + $0x10a] sm:$0xff]
      %v3110 = vld [vmem:[%s367 + $0x112] sm:$0xff]
      %v3111 = vld [vmem:[%s367 + $0x122] sm:$0xff]
      %v3112 = vld [vmem:[%s367 + $0x12a] sm:$0xff]
      %v3113 = vld [vmem:[%s367 + $0x13a] sm:$0xff]
      %v3114 = vld [vmem:[%s367 + $0x142] sm:$0xff]
      %v3115 = vld [vmem:[%s367 + $0x152] sm:$0xff]
      %v3116 = vld [vmem:[%s367 + $0x15a] sm:$0xff]
      %v3117 = vld [vmem:[%s367 + $0x16a] sm:$0xff]
      %v3118 = vld [vmem:[%s367 + $0x172] sm:$0xff]
      %3151 = vrot.lane.b32.xlu0 %v3087, 32
      %v3152 = vpop.permute.xlu0 %3151
      %3153 = vrot.lane.b32.xlu0 %v3088, 32
      %v3154 = vpop.permute.xlu0 %3153
      %3155 = vrot.lane.b32.xlu0 %v3089, 32
      %v3156 = vpop.permute.xlu0 %3155
      %3157 = vrot.lane.b32.xlu0 %v3090, 32
      %v3158 = vpop.permute.xlu0 %3157
      %3159 = vrot.lane.b32.xlu0 %v3091, 32
      %v3160 = vpop.permute.xlu0 %3159
      %3161 = vrot.lane.b32.xlu0 %v3092, 32
      %v3162 = vpop.permute.xlu0 %3161
      %3163 = vrot.lane.b32.xlu0 %v3093, 32
      %v3164 = vpop.permute.xlu0 %3163
      %3165 = vrot.lane.b32.xlu0 %v3094, 32
      %v3166 = vpop.permute.xlu0 %3165
      %3167 = vrot.lane.b32.xlu0 %v3095, 32
      %v3168 = vpop.permute.xlu0 %3167
      %3169 = vrot.lane.b32.xlu0 %v3096, 32
      %v3170 = vpop.permute.xlu0 %3169
      %3171 = vrot.lane.b32.xlu0 %v3097, 32
      %v3172 = vpop.permute.xlu0 %3171
      %3173 = vrot.lane.b32.xlu0 %v3098, 32
      %v3174 = vpop.permute.xlu0 %3173
      %3175 = vrot.lane.b32.xlu0 %v3099, 32
      %v3176 = vpop.permute.xlu0 %3175
      %3177 = vrot.lane.b32.xlu0 %v3100, 32
      %v3178 = vpop.permute.xlu0 %3177
      %3179 = vrot.lane.b32.xlu0 %v3101, 32
      %v3180 = vpop.permute.xlu0 %3179
      %3181 = vrot.lane.b32.xlu0 %v3102, 32
      %v3182 = vpop.permute.xlu0 %3181
      %3183 = vrot.lane.b32.xlu0 %v3103, 32
      %v3184 = vpop.permute.xlu0 %3183
      %3185 = vrot.lane.b32.xlu0 %v3104, 32
      %v3186 = vpop.permute.xlu0 %3185
      %3187 = vrot.lane.b32.xlu0 %v3105, 32
      %v3188 = vpop.permute.xlu0 %3187
      %3189 = vrot.lane.b32.xlu0 %v3106, 32
      %v3190 = vpop.permute.xlu0 %3189
      %3191 = vrot.lane.b32.xlu0 %v3107, 32
      %v3192 = vpop.permute.xlu0 %3191
      %3193 = vrot.lane.b32.xlu0 %v3108, 32
      %v3194 = vpop.permute.xlu0 %3193
      %3195 = vrot.lane.b32.xlu0 %v3109, 32
      %v3196 = vpop.permute.xlu0 %3195
      %3197 = vrot.lane.b32.xlu0 %v3110, 32
      %v3198 = vpop.permute.xlu0 %3197
      %3199 = vrot.lane.b32.xlu0 %v3111, 32
      %v3200 = vpop.permute.xlu0 %3199
      %3201 = vrot.lane.b32.xlu0 %v3112, 32
      %v3202 = vpop.permute.xlu0 %3201
      %3203 = vrot.lane.b32.xlu0 %v3113, 32
      %v3204 = vpop.permute.xlu0 %3203
      %3205 = vrot.lane.b32.xlu0 %v3114, 32
      %v3206 = vpop.permute.xlu0 %3205
      %3207 = vrot.lane.b32.xlu0 %v3115, 32
      %v3208 = vpop.permute.xlu0 %3207
      %3209 = vrot.lane.b32.xlu0 %v3116, 32
      %v3210 = vpop.permute.xlu0 %3209
      %3211 = vrot.lane.b32.xlu0 %v3117, 32
      %v3212 = vpop.permute.xlu0 %3211
      %3213 = vrot.lane.b32.xlu0 %v3118, 32
      %v3214 = vpop.permute.xlu0 %3213
      %3247 = vst.msk [vmem:[#allocation3 + $0x8] sm:$0xff] %vm624, %v3152
      %3248 = vst.msk [vmem:[#allocation3 + $0x20] sm:$0xff] %vm624, %v3154
      %3249 = vst.msk [vmem:[#allocation3 + $0x38] sm:$0xff] %vm624, %v3156
      %3250 = vst.msk [vmem:[#allocation3 + $0x50] sm:$0xff] %vm624, %v3158
      %3251 = vst.msk [vmem:[#allocation3 + $0x68] sm:$0xff] %vm624, %v3160
      %3252 = vst.msk [vmem:[#allocation3 + $0x80] sm:$0xff] %vm624, %v3162
      %3253 = vst.msk [vmem:[#allocation3 + $0x98] sm:$0xff] %vm624, %v3164
      %3254 = vst.msk [vmem:[#allocation3 + $0xb0] sm:$0xff] %vm624, %v3166
      %3255 = vst.msk [vmem:[#allocation3 + $0xc8] sm:$0xff] %vm624, %v3168
      %3256 = vst.msk [vmem:[#allocation3 + $0xe0] sm:$0xff] %vm624, %v3170
      %3257 = vst.msk [vmem:[#allocation3 + $0xf8] sm:$0xff] %vm624, %v3172
      %3258 = vst.msk [vmem:[#allocation3 + $0x110] sm:$0xff] %vm624, %v3174
      %3259 = vst.msk [vmem:[#allocation3 + $0x128] sm:$0xff] %vm624, %v3176
      %3260 = vst.msk [vmem:[#allocation3 + $0x140] sm:$0xff] %vm624, %v3178
      %3261 = vst.msk [vmem:[#allocation3 + $0x158] sm:$0xff] %vm624, %v3180
      %3262 = vst.msk [vmem:[#allocation3 + $0x170] sm:$0xff] %vm624, %v3182
      %3263 = vst.msk [vmem:[#allocation3 + $0x188] sm:$0xff] %vm624, %v3184
      %3264 = vst.msk [vmem:[#allocation3 + $0x1a0] sm:$0xff] %vm624, %v3186
      %3265 = vst.msk [vmem:[#allocation3 + $0x1b8] sm:$0xff] %vm624, %v3188
      %3266 = vst.msk [vmem:[#allocation3 + $0x1d0] sm:$0xff] %vm624, %v3190
      %3267 = vst.msk [vmem:[#allocation3 + $0x1e8] sm:$0xff] %vm624, %v3192
      %3268 = vst.msk [vmem:[#allocation3 + $0x200] sm:$0xff] %vm624, %v3194
      %3269 = vst.msk [vmem:[#allocation3 + $0x218] sm:$0xff] %vm624, %v3196
      %3270 = vst.msk [vmem:[#allocation3 + $0x230] sm:$0xff] %vm624, %v3198
      %3271 = vst.msk [vmem:[#allocation3 + $0x248] sm:$0xff] %vm624, %v3200
      %3272 = vst.msk [vmem:[#allocation3 + $0x260] sm:$0xff] %vm624, %v3202
      %3273 = vst.msk [vmem:[#allocation3 + $0x278] sm:$0xff] %vm624, %v3204
      %3274 = vst.msk [vmem:[#allocation3 + $0x290] sm:$0xff] %vm624, %v3206
      %3275 = vst.msk [vmem:[#allocation3 + $0x2a8] sm:$0xff] %vm624, %v3208
      %3276 = vst.msk [vmem:[#allocation3 + $0x2c0] sm:$0xff] %vm624, %v3210
      %3277 = vst.msk [vmem:[#allocation3 + $0x2d8] sm:$0xff] %vm624, %v3212
      %3278 = vst.msk [vmem:[#allocation3 + $0x2f0] sm:$0xff] %vm624, %v3214
      %v3279 = vld [vmem:[%s1299] sm:$0xff]
      %v3280 = vld [vmem:[%s1299 + $0x8] sm:$0xff]
      %v3281 = vld [vmem:[%s1299 + $0x18] sm:$0xff]
      %v3282 = vld [vmem:[%s1299 + $0x20] sm:$0xff]
      %v3283 = vld [vmem:[%s1299 + $0x30] sm:$0xff]
      %v3284 = vld [vmem:[%s1299 + $0x38] sm:$0xff]
      %v3285 = vld [vmem:[%s1299 + $0x48] sm:$0xff]
      %v3286 = vld [vmem:[%s1299 + $0x50] sm:$0xff]
      %v3287 = vld [vmem:[%s1299 + $0x60] sm:$0xff]
      %v3288 = vld [vmem:[%s1299 + $0x68] sm:$0xff]
      %v3289 = vld [vmem:[%s1299 + $0x78] sm:$0xff]
      %v3290 = vld [vmem:[%s1299 + $0x80] sm:$0xff]
      %v3291 = vld [vmem:[%s1299 + $0x90] sm:$0xff]
      %v3292 = vld [vmem:[%s1299 + $0x98] sm:$0xff]
      %v3293 = vld [vmem:[%s1299 + $0xa8] sm:$0xff]
      %v3294 = vld [vmem:[%s1299 + $0xb0] sm:$0xff]
      %v3295 = vld [vmem:[%s1299 + $0xc0] sm:$0xff]
      %v3296 = vld [vmem:[%s1299 + $0xc8] sm:$0xff]
      %v3297 = vld [vmem:[%s1299 + $0xd8] sm:$0xff]
      %v3298 = vld [vmem:[%s1299 + $0xe0] sm:$0xff]
      %v3299 = vld [vmem:[%s1299 + $0xf0] sm:$0xff]
      %v3300 = vld [vmem:[%s1299 + $0xf8] sm:$0xff]
      %v3301 = vld [vmem:[%s1299 + $0x108] sm:$0xff]
      %v3302 = vld [vmem:[%s1299 + $0x110] sm:$0xff]
      %v3303 = vld [vmem:[%s1299 + $0x120] sm:$0xff]
      %v3304 = vld [vmem:[%s1299 + $0x128] sm:$0xff]
      %v3305 = vld [vmem:[%s1299 + $0x138] sm:$0xff]
      %v3306 = vld [vmem:[%s1299 + $0x140] sm:$0xff]
      %v3307 = vld [vmem:[%s1299 + $0x150] sm:$0xff]
      %v3308 = vld [vmem:[%s1299 + $0x158] sm:$0xff]
      %v3309 = vld [vmem:[%s1299 + $0x168] sm:$0xff]
      %v3310 = vld [vmem:[%s1299 + $0x170] sm:$0xff]
      %3343 = vrot.lane.b32.xlu0 %v3279, 64
      %v3344 = vpop.permute.xlu0 %3343
      %3345 = vrot.lane.b32.xlu0 %v3280, 64
      %v3346 = vpop.permute.xlu0 %3345
      %3347 = vrot.lane.b32.xlu0 %v3281, 64
      %v3348 = vpop.permute.xlu0 %3347
      %3349 = vrot.lane.b32.xlu0 %v3282, 64
      %v3350 = vpop.permute.xlu0 %3349
      %3351 = vrot.lane.b32.xlu0 %v3283, 64
      %v3352 = vpop.permute.xlu0 %3351
      %3353 = vrot.lane.b32.xlu0 %v3284, 64
      %v3354 = vpop.permute.xlu0 %3353
      %3355 = vrot.lane.b32.xlu0 %v3285, 64
      %v3356 = vpop.permute.xlu0 %3355
      %3357 = vrot.lane.b32.xlu0 %v3286, 64
      %v3358 = vpop.permute.xlu0 %3357
      %3359 = vrot.lane.b32.xlu0 %v3287, 64
      %v3360 = vpop.permute.xlu0 %3359
      %3361 = vrot.lane.b32.xlu0 %v3288, 64
      %v3362 = vpop.permute.xlu0 %3361
      %3363 = vrot.lane.b32.xlu0 %v3289, 64
      %v3364 = vpop.permute.xlu0 %3363
      %3365 = vrot.lane.b32.xlu0 %v3290, 64
      %v3366 = vpop.permute.xlu0 %3365
      %3367 = vrot.lane.b32.xlu0 %v3291, 64
      %v3368 = vpop.permute.xlu0 %3367
      %3369 = vrot.lane.b32.xlu0 %v3292, 64
      %v3370 = vpop.permute.xlu0 %3369
      %3371 = vrot.lane.b32.xlu0 %v3293, 64
      %v3372 = vpop.permute.xlu0 %3371
      %3373 = vrot.lane.b32.xlu0 %v3294, 64
      %v3374 = vpop.permute.xlu0 %3373
      %3375 = vrot.lane.b32.xlu0 %v3295, 64
      %v3376 = vpop.permute.xlu0 %3375
      %3377 = vrot.lane.b32.xlu0 %v3296, 64
      %v3378 = vpop.permute.xlu0 %3377
      %3379 = vrot.lane.b32.xlu0 %v3297, 64
      %v3380 = vpop.permute.xlu0 %3379
      %3381 = vrot.lane.b32.xlu0 %v3298, 64
      %v3382 = vpop.permute.xlu0 %3381
      %3383 = vrot.lane.b32.xlu0 %v3299, 64
      %v3384 = vpop.permute.xlu0 %3383
      %3385 = vrot.lane.b32.xlu0 %v3300, 64
      %v3386 = vpop.permute.xlu0 %3385
      %3387 = vrot.lane.b32.xlu0 %v3301, 64
      %v3388 = vpop.permute.xlu0 %3387
      %3389 = vrot.lane.b32.xlu0 %v3302, 64
      %v3390 = vpop.permute.xlu0 %3389
      %3391 = vrot.lane.b32.xlu0 %v3303, 64
      %v3392 = vpop.permute.xlu0 %3391
      %3393 = vrot.lane.b32.xlu0 %v3304, 64
      %v3394 = vpop.permute.xlu0 %3393
      %3395 = vrot.lane.b32.xlu0 %v3305, 64
      %v3396 = vpop.permute.xlu0 %3395
      %3397 = vrot.lane.b32.xlu0 %v3306, 64
      %v3398 = vpop.permute.xlu0 %3397
      %3399 = vrot.lane.b32.xlu0 %v3307, 64
      %v3400 = vpop.permute.xlu0 %3399
      %3401 = vrot.lane.b32.xlu0 %v3308, 64
      %v3402 = vpop.permute.xlu0 %3401
      %3403 = vrot.lane.b32.xlu0 %v3309, 64
      %v3404 = vpop.permute.xlu0 %3403
      %3405 = vrot.lane.b32.xlu0 %v3310, 64
      %v3406 = vpop.permute.xlu0 %3405
      %3439 = vst.msk [vmem:[#allocation3 + $0x8] sm:$0xff] %vm817, %v3344
      %3440 = vst.msk [vmem:[#allocation3 + $0x20] sm:$0xff] %vm817, %v3346
      %3441 = vst.msk [vmem:[#allocation3 + $0x38] sm:$0xff] %vm817, %v3348
      %3442 = vst.msk [vmem:[#allocation3 + $0x50] sm:$0xff] %vm817, %v3350
      %3443 = vst.msk [vmem:[#allocation3 + $0x68] sm:$0xff] %vm817, %v3352
      %3444 = vst.msk [vmem:[#allocation3 + $0x80] sm:$0xff] %vm817, %v3354
      %3445 = vst.msk [vmem:[#allocation3 + $0x98] sm:$0xff] %vm817, %v3356
      %3446 = vst.msk [vmem:[#allocation3 + $0xb0] sm:$0xff] %vm817, %v3358
      %3447 = vst.msk [vmem:[#allocation3 + $0xc8] sm:$0xff] %vm817, %v3360
      %3448 = vst.msk [vmem:[#allocation3 + $0xe0] sm:$0xff] %vm817, %v3362
      %3449 = vst.msk [vmem:[#allocation3 + $0xf8] sm:$0xff] %vm817, %v3364
      %3450 = vst.msk [vmem:[#allocation3 + $0x110] sm:$0xff] %vm817, %v3366
      %3451 = vst.msk [vmem:[#allocation3 + $0x128] sm:$0xff] %vm817, %v3368
      %3452 = vst.msk [vmem:[#allocation3 + $0x140] sm:$0xff] %vm817, %v3370
      %3453 = vst.msk [vmem:[#allocation3 + $0x158] sm:$0xff] %vm817, %v3372
      %3454 = vst.msk [vmem:[#allocation3 + $0x170] sm:$0xff] %vm817, %v3374
      %3455 = vst.msk [vmem:[#allocation3 + $0x188] sm:$0xff] %vm817, %v3376
      %3456 = vst.msk [vmem:[#allocation3 + $0x1a0] sm:$0xff] %vm817, %v3378
      %3457 = vst.msk [vmem:[#allocation3 + $0x1b8] sm:$0xff] %vm817, %v3380
      %3458 = vst.msk [vmem:[#allocation3 + $0x1d0] sm:$0xff] %vm817, %v3382
      %3459 = vst.msk [vmem:[#allocation3 + $0x1e8] sm:$0xff] %vm817, %v3384
      %3460 = vst.msk [vmem:[#allocation3 + $0x200] sm:$0xff] %vm817, %v3386
      %3461 = vst.msk [vmem:[#allocation3 + $0x218] sm:$0xff] %vm817, %v3388
      %3462 = vst.msk [vmem:[#allocation3 + $0x230] sm:$0xff] %vm817, %v3390
      %3463 = vst.msk [vmem:[#allocation3 + $0x248] sm:$0xff] %vm817, %v3392
      %3464 = vst.msk [vmem:[#allocation3 + $0x260] sm:$0xff] %vm817, %v3394
      %3465 = vst.msk [vmem:[#allocation3 + $0x278] sm:$0xff] %vm817, %v3396
      %3466 = vst.msk [vmem:[#allocation3 + $0x290] sm:$0xff] %vm817, %v3398
      %3467 = vst.msk [vmem:[#allocation3 + $0x2a8] sm:$0xff] %vm817, %v3400
      %3468 = vst.msk [vmem:[#allocation3 + $0x2c0] sm:$0xff] %vm817, %v3402
      %3469 = vst.msk [vmem:[#allocation3 + $0x2d8] sm:$0xff] %vm817, %v3404
      %3470 = vst.msk [vmem:[#allocation3 + $0x2f0] sm:$0xff] %vm817, %v3406
      %v3471 = vld [vmem:[%s1299 + $0x1] sm:$0xff]
      %v3472 = vld [vmem:[%s1299 + $0x9] sm:$0xff]
      %v3473 = vld [vmem:[%s1299 + $0x19] sm:$0xff]
      %v3474 = vld [vmem:[%s1299 + $0x21] sm:$0xff]
      %v3475 = vld [vmem:[%s1299 + $0x31] sm:$0xff]
      %v3476 = vld [vmem:[%s1299 + $0x39] sm:$0xff]
      %v3477 = vld [vmem:[%s1299 + $0x49] sm:$0xff]
      %v3478 = vld [vmem:[%s1299 + $0x51] sm:$0xff]
      %v3479 = vld [vmem:[%s1299 + $0x61] sm:$0xff]
      %v3480 = vld [vmem:[%s1299 + $0x69] sm:$0xff]
      %v3481 = vld [vmem:[%s1299 + $0x79] sm:$0xff]
      %v3482 = vld [vmem:[%s1299 + $0x81] sm:$0xff]
      %v3483 = vld [vmem:[%s1299 + $0x91] sm:$0xff]
      %v3484 = vld [vmem:[%s1299 + $0x99] sm:$0xff]
      %v3485 = vld [vmem:[%s1299 + $0xa9] sm:$0xff]
      %v3486 = vld [vmem:[%s1299 + $0xb1] sm:$0xff]
      %v3487 = vld [vmem:[%s1299 + $0xc1] sm:$0xff]
      %v3488 = vld [vmem:[%s1299 + $0xc9] sm:$0xff]
      %v3489 = vld [vmem:[%s1299 + $0xd9] sm:$0xff]
      %v3490 = vld [vmem:[%s1299 + $0xe1] sm:$0xff]
      %v3491 = vld [vmem:[%s1299 + $0xf1] sm:$0xff]
      %v3492 = vld [vmem:[%s1299 + $0xf9] sm:$0xff]
      %v3493 = vld [vmem:[%s1299 + $0x109] sm:$0xff]
      %v3494 = vld [vmem:[%s1299 + $0x111] sm:$0xff]
      %v3495 = vld [vmem:[%s1299 + $0x121] sm:$0xff]
      %v3496 = vld [vmem:[%s1299 + $0x129] sm:$0xff]
      %v3497 = vld [vmem:[%s1299 + $0x139] sm:$0xff]
      %v3498 = vld [vmem:[%s1299 + $0x141] sm:$0xff]
      %v3499 = vld [vmem:[%s1299 + $0x151] sm:$0xff]
      %v3500 = vld [vmem:[%s1299 + $0x159] sm:$0xff]
      %v3501 = vld [vmem:[%s1299 + $0x169] sm:$0xff]
      %v3502 = vld [vmem:[%s1299 + $0x171] sm:$0xff]
      %3535 = vrot.lane.b32.xlu0 %v3471, 96
      %v3536 = vpop.permute.xlu0 %3535
      %3537 = vrot.lane.b32.xlu0 %v3472, 96
      %v3538 = vpop.permute.xlu0 %3537
      %3539 = vrot.lane.b32.xlu0 %v3473, 96
      %v3540 = vpop.permute.xlu0 %3539
      %3541 = vrot.lane.b32.xlu0 %v3474, 96
      %v3542 = vpop.permute.xlu0 %3541
      %3543 = vrot.lane.b32.xlu0 %v3475, 96
      %v3544 = vpop.permute.xlu0 %3543
      %3545 = vrot.lane.b32.xlu0 %v3476, 96
      %v3546 = vpop.permute.xlu0 %3545
      %3547 = vrot.lane.b32.xlu0 %v3477, 96
      %v3548 = vpop.permute.xlu0 %3547
      %3549 = vrot.lane.b32.xlu0 %v3478, 96
      %v3550 = vpop.permute.xlu0 %3549
      %3551 = vrot.lane.b32.xlu0 %v3479, 96
      %v3552 = vpop.permute.xlu0 %3551
      %3553 = vrot.lane.b32.xlu0 %v3480, 96
      %v3554 = vpop.permute.xlu0 %3553
      %3555 = vrot.lane.b32.xlu0 %v3481, 96
      %v3556 = vpop.permute.xlu0 %3555
      %3557 = vrot.lane.b32.xlu0 %v3482, 96
      %v3558 = vpop.permute.xlu0 %3557
      %3559 = vrot.lane.b32.xlu0 %v3483, 96
      %v3560 = vpop.permute.xlu0 %3559
      %3561 = vrot.lane.b32.xlu0 %v3484, 96
      %v3562 = vpop.permute.xlu0 %3561
      %3563 = vrot.lane.b32.xlu0 %v3485, 96
      %v3564 = vpop.permute.xlu0 %3563
      %3565 = vrot.lane.b32.xlu0 %v3486, 96
      %v3566 = vpop.permute.xlu0 %3565
      %3567 = vrot.lane.b32.xlu0 %v3487, 96
      %v3568 = vpop.permute.xlu0 %3567
      %3569 = vrot.lane.b32.xlu0 %v3488, 96
      %v3570 = vpop.permute.xlu0 %3569
      %3571 = vrot.lane.b32.xlu0 %v3489, 96
      %v3572 = vpop.permute.xlu0 %3571
      %3573 = vrot.lane.b32.xlu0 %v3490, 96
      %v3574 = vpop.permute.xlu0 %3573
      %3575 = vrot.lane.b32.xlu0 %v3491, 96
      %v3576 = vpop.permute.xlu0 %3575
      %3577 = vrot.lane.b32.xlu0 %v3492, 96
      %v3578 = vpop.permute.xlu0 %3577
      %3579 = vrot.lane.b32.xlu0 %v3493, 96
      %v3580 = vpop.permute.xlu0 %3579
      %3581 = vrot.lane.b32.xlu0 %v3494, 96
      %v3582 = vpop.permute.xlu0 %3581
      %3583 = vrot.lane.b32.xlu0 %v3495, 96
      %v3584 = vpop.permute.xlu0 %3583
      %3585 = vrot.lane.b32.xlu0 %v3496, 96
      %v3586 = vpop.permute.xlu0 %3585
      %3587 = vrot.lane.b32.xlu0 %v3497, 96
      %v3588 = vpop.permute.xlu0 %3587
      %3589 = vrot.lane.b32.xlu0 %v3498, 96
      %v3590 = vpop.permute.xlu0 %3589
      %3591 = vrot.lane.b32.xlu0 %v3499, 96
      %v3592 = vpop.permute.xlu0 %3591
      %3593 = vrot.lane.b32.xlu0 %v3500, 96
      %v3594 = vpop.permute.xlu0 %3593
      %3595 = vrot.lane.b32.xlu0 %v3501, 96
      %v3596 = vpop.permute.xlu0 %3595
      %3597 = vrot.lane.b32.xlu0 %v3502, 96
      %v3598 = vpop.permute.xlu0 %3597
      %3631 = vst.msk [vmem:[#allocation3 + $0x8] sm:$0xff] %vm1010, %v3536
      %3632 = vst.msk [vmem:[#allocation3 + $0x20] sm:$0xff] %vm1010, %v3538
      %3633 = vst.msk [vmem:[#allocation3 + $0x38] sm:$0xff] %vm1010, %v3540
      %3634 = vst.msk [vmem:[#allocation3 + $0x50] sm:$0xff] %vm1010, %v3542
      %3635 = vst.msk [vmem:[#allocation3 + $0x68] sm:$0xff] %vm1010, %v3544
      %3636 = vst.msk [vmem:[#allocation3 + $0x80] sm:$0xff] %vm1010, %v3546
      %3637 = vst.msk [vmem:[#allocation3 + $0x98] sm:$0xff] %vm1010, %v3548
      %3638 = vst.msk [vmem:[#allocation3 + $0xb0] sm:$0xff] %vm1010, %v3550
      %3639 = vst.msk [vmem:[#allocation3 + $0xc8] sm:$0xff] %vm1010, %v3552
      %3640 = vst.msk [vmem:[#allocation3 + $0xe0] sm:$0xff] %vm1010, %v3554
      %3641 = vst.msk [vmem:[#allocation3 + $0xf8] sm:$0xff] %vm1010, %v3556
      %3642 = vst.msk [vmem:[#allocation3 + $0x110] sm:$0xff] %vm1010, %v3558
      %3643 = vst.msk [vmem:[#allocation3 + $0x128] sm:$0xff] %vm1010, %v3560
      %3644 = vst.msk [vmem:[#allocation3 + $0x140] sm:$0xff] %vm1010, %v3562
      %3645 = vst.msk [vmem:[#allocation3 + $0x158] sm:$0xff] %vm1010, %v3564
      %3646 = vst.msk [vmem:[#allocation3 + $0x170] sm:$0xff] %vm1010, %v3566
      %3647 = vst.msk [vmem:[#allocation3 + $0x188] sm:$0xff] %vm1010, %v3568
      %3648 = vst.msk [vmem:[#allocation3 + $0x1a0] sm:$0xff] %vm1010, %v3570
      %3649 = vst.msk [vmem:[#allocation3 + $0x1b8] sm:$0xff] %vm1010, %v3572
      %3650 = vst.msk [vmem:[#allocation3 + $0x1d0] sm:$0xff] %vm1010, %v3574
      %3651 = vst.msk [vmem:[#allocation3 + $0x1e8] sm:$0xff] %vm1010, %v3576
      %3652 = vst.msk [vmem:[#allocation3 + $0x200] sm:$0xff] %vm1010, %v3578
      %3653 = vst.msk [vmem:[#allocation3 + $0x218] sm:$0xff] %vm1010, %v3580
      %3654 = vst.msk [vmem:[#allocation3 + $0x230] sm:$0xff] %vm1010, %v3582
      %3655 = vst.msk [vmem:[#allocation3 + $0x248] sm:$0xff] %vm1010, %v3584
      %3656 = vst.msk [vmem:[#allocation3 + $0x260] sm:$0xff] %vm1010, %v3586
      %3657 = vst.msk [vmem:[#allocation3 + $0x278] sm:$0xff] %vm1010, %v3588
      %3658 = vst.msk [vmem:[#allocation3 + $0x290] sm:$0xff] %vm1010, %v3590
      %3659 = vst.msk [vmem:[#allocation3 + $0x2a8] sm:$0xff] %vm1010, %v3592
      %3660 = vst.msk [vmem:[#allocation3 + $0x2c0] sm:$0xff] %vm1010, %v3594
      %3661 = vst.msk [vmem:[#allocation3 + $0x2d8] sm:$0xff] %vm1010, %v3596
      %3662 = vst.msk [vmem:[#allocation3 + $0x2f0] sm:$0xff] %vm1010, %v3598
      %v3663 = vld [vmem:[%s1299 + $0x2] sm:$0xff]
      %v3664 = vld [vmem:[%s1299 + $0xa] sm:$0xff]
      %v3665 = vld [vmem:[%s1299 + $0x1a] sm:$0xff]
      %v3666 = vld [vmem:[%s1299 + $0x22] sm:$0xff]
      %v3667 = vld [vmem:[%s1299 + $0x32] sm:$0xff]
      %v3668 = vld [vmem:[%s1299 + $0x3a] sm:$0xff]
      %v3669 = vld [vmem:[%s1299 + $0x4a] sm:$0xff]
      %v3670 = vld [vmem:[%s1299 + $0x52] sm:$0xff]
      %v3671 = vld [vmem:[%s1299 + $0x62] sm:$0xff]
      %v3672 = vld [vmem:[%s1299 + $0x6a] sm:$0xff]
      %v3673 = vld [vmem:[%s1299 + $0x7a] sm:$0xff]
      %v3674 = vld [vmem:[%s1299 + $0x82] sm:$0xff]
      %v3675 = vld [vmem:[%s1299 + $0x92] sm:$0xff]
      %v3676 = vld [vmem:[%s1299 + $0x9a] sm:$0xff]
      %v3677 = vld [vmem:[%s1299 + $0xaa] sm:$0xff]
      %v3678 = vld [vmem:[%s1299 + $0xb2] sm:$0xff]
      %v3679 = vld [vmem:[%s1299 + $0xc2] sm:$0xff]
      %v3680 = vld [vmem:[%s1299 + $0xca] sm:$0xff]
      %v3681 = vld [vmem:[%s1299 + $0xda] sm:$0xff]
      %v3682 = vld [vmem:[%s1299 + $0xe2] sm:$0xff]
      %v3683 = vld [vmem:[%s1299 + $0xf2] sm:$0xff]
      %v3684 = vld [vmem:[%s1299 + $0xfa] sm:$0xff]
      %v3685 = vld [vmem:[%s1299 + $0x10a] sm:$0xff]
      %v3686 = vld [vmem:[%s1299 + $0x112] sm:$0xff]
      %v3687 = vld [vmem:[%s1299 + $0x122] sm:$0xff]
      %v3688 = vld [vmem:[%s1299 + $0x12a] sm:$0xff]
      %v3689 = vld [vmem:[%s1299 + $0x13a] sm:$0xff]
      %v3690 = vld [vmem:[%s1299 + $0x142] sm:$0xff]
      %v3691 = vld [vmem:[%s1299 + $0x152] sm:$0xff]
      %v3692 = vld [vmem:[%s1299 + $0x15a] sm:$0xff]
      %v3693 = vld [vmem:[%s1299 + $0x16a] sm:$0xff]
      %v3694 = vld [vmem:[%s1299 + $0x172] sm:$0xff]
      %3695 = vst.msk [vmem:[#allocation3 + $0x10] sm:$0xff] %vm279, %v3663
      %3696 = vst.msk [vmem:[#allocation3 + $0x28] sm:$0xff] %vm279, %v3664
      %3697 = vst.msk [vmem:[#allocation3 + $0x40] sm:$0xff] %vm279, %v3665
      %3698 = vst.msk [vmem:[#allocation3 + $0x58] sm:$0xff] %vm279, %v3666
      %3699 = vst.msk [vmem:[#allocation3 + $0x70] sm:$0xff] %vm279, %v3667
      %3700 = vst.msk [vmem:[#allocation3 + $0x88] sm:$0xff] %vm279, %v3668
      %3701 = vst.msk [vmem:[#allocation3 + $0xa0] sm:$0xff] %vm279, %v3669
      %3702 = vst.msk [vmem:[#allocation3 + $0xb8] sm:$0xff] %vm279, %v3670
      %3703 = vst.msk [vmem:[#allocation3 + $0xd0] sm:$0xff] %vm279, %v3671
      %3704 = vst.msk [vmem:[#allocation3 + $0xe8] sm:$0xff] %vm279, %v3672
      %3705 = vst.msk [vmem:[#allocation3 + $0x100] sm:$0xff] %vm279, %v3673
      %3706 = vst.msk [vmem:[#allocation3 + $0x118] sm:$0xff] %vm279, %v3674
      %3707 = vst.msk [vmem:[#allocation3 + $0x130] sm:$0xff] %vm279, %v3675
      %3708 = vst.msk [vmem:[#allocation3 + $0x148] sm:$0xff] %vm279, %v3676
      %3709 = vst.msk [vmem:[#allocation3 + $0x160] sm:$0xff] %vm279, %v3677
      %3710 = vst.msk [vmem:[#allocation3 + $0x178] sm:$0xff] %vm279, %v3678
      %3711 = vst.msk [vmem:[#allocation3 + $0x190] sm:$0xff] %vm279, %v3679
      %3712 = vst.msk [vmem:[#allocation3 + $0x1a8] sm:$0xff] %vm279, %v3680
      %3713 = vst.msk [vmem:[#allocation3 + $0x1c0] sm:$0xff] %vm279, %v3681
      %3714 = vst.msk [vmem:[#allocation3 + $0x1d8] sm:$0xff] %vm279, %v3682
      %3715 = vst.msk [vmem:[#allocation3 + $0x1f0] sm:$0xff] %vm279, %v3683
      %3716 = vst.msk [vmem:[#allocation3 + $0x208] sm:$0xff] %vm279, %v3684
      %3717 = vst.msk [vmem:[#allocation3 + $0x220] sm:$0xff] %vm279, %v3685
      %3718 = vst.msk [vmem:[#allocation3 + $0x238] sm:$0xff] %vm279, %v3686
      %3719 = vst.msk [vmem:[#allocation3 + $0x250] sm:$0xff] %vm279, %v3687
      %3720 = vst.msk [vmem:[#allocation3 + $0x268] sm:$0xff] %vm279, %v3688
      %3721 = vst.msk [vmem:[#allocation3 + $0x280] sm:$0xff] %vm279, %v3689
      %3722 = vst.msk [vmem:[#allocation3 + $0x298] sm:$0xff] %vm279, %v3690
      %3723 = vst.msk [vmem:[#allocation3 + $0x2b0] sm:$0xff] %vm279, %v3691
      %3724 = vst.msk [vmem:[#allocation3 + $0x2c8] sm:$0xff] %vm279, %v3692
      %3725 = vst.msk [vmem:[#allocation3 + $0x2e0] sm:$0xff] %vm279, %v3693
      %3726 = vst.msk [vmem:[#allocation3 + $0x2f8] sm:$0xff] %vm279, %v3694
      %v3727 = vld [vmem:[#allocation3] sm:$0xff]
      %v3728 = vld [vmem:[#allocation3 + $0x8] sm:$0xff]
      %v3729 = vld [vmem:[#allocation3 + $0x10] sm:$0xff]
      %v3730 = vld [vmem:[#allocation3 + $0x18] sm:$0xff]
      %v3731 = vld [vmem:[#allocation3 + $0x20] sm:$0xff]
      %v3732 = vld [vmem:[#allocation3 + $0x28] sm:$0xff]
      %v3733 = vld [vmem:[#allocation3 + $0x30] sm:$0xff]
      %v3734 = vld [vmem:[#allocation3 + $0x38] sm:$0xff]
      %v3735 = vld [vmem:[#allocation3 + $0x40] sm:$0xff]
      %v3736 = vld [vmem:[#allocation3 + $0x48] sm:$0xff]
      %v3737 = vld [vmem:[#allocation3 + $0x50] sm:$0xff]
      %v3738 = vld [vmem:[#allocation3 + $0x58] sm:$0xff]
      %v3739 = vld [vmem:[#allocation3 + $0x60] sm:$0xff]
      %v3740 = vld [vmem:[#allocation3 + $0x68] sm:$0xff]
      %v3741 = vld [vmem:[#allocation3 + $0x70] sm:$0xff]
      %v3742 = vld [vmem:[#allocation3 + $0x78] sm:$0xff]
      %v3743 = vld [vmem:[#allocation3 + $0x80] sm:$0xff]
      %v3744 = vld [vmem:[#allocation3 + $0x88] sm:$0xff]
      %v3745 = vld [vmem:[#allocation3 + $0x90] sm:$0xff]
      %v3746 = vld [vmem:[#allocation3 + $0x98] sm:$0xff]
      %v3747 = vld [vmem:[#allocation3 + $0xa0] sm:$0xff]
      %v3748 = vld [vmem:[#allocation3 + $0xa8] sm:$0xff]
      %v3749 = vld [vmem:[#allocation3 + $0xb0] sm:$0xff]
      %v3750 = vld [vmem:[#allocation3 + $0xb8] sm:$0xff]
      %v3751 = vld [vmem:[#allocation3 + $0xc0] sm:$0xff]
      %v3752 = vld [vmem:[#allocation3 + $0xc8] sm:$0xff]
      %v3753 = vld [vmem:[#allocation3 + $0xd0] sm:$0xff]
      %v3754 = vld [vmem:[#allocation3 + $0xd8] sm:$0xff]
      %v3755 = vld [vmem:[#allocation3 + $0xe0] sm:$0xff]
      %v3756 = vld [vmem:[#allocation3 + $0xe8] sm:$0xff]
      %v3757 = vld [vmem:[#allocation3 + $0xf0] sm:$0xff]
      %v3758 = vld [vmem:[#allocation3 + $0xf8] sm:$0xff]
      %v3759 = vld [vmem:[#allocation3 + $0x100] sm:$0xff]
      %v3760 = vld [vmem:[#allocation3 + $0x108] sm:$0xff]
      %v3761 = vld [vmem:[#allocation3 + $0x110] sm:$0xff]
      %v3762 = vld [vmem:[#allocation3 + $0x118] sm:$0xff]
      %v3763 = vld [vmem:[#allocation3 + $0x120] sm:$0xff]
      %v3764 = vld [vmem:[#allocation3 + $0x128] sm:$0xff]
      %v3765 = vld [vmem:[#allocation3 + $0x130] sm:$0xff]
      %v3766 = vld [vmem:[#allocation3 + $0x138] sm:$0xff]
      %v3767 = vld [vmem:[#allocation3 + $0x140] sm:$0xff]
      %v3768 = vld [vmem:[#allocation3 + $0x148] sm:$0xff]
      %v3769 = vld [vmem:[#allocation3 + $0x150] sm:$0xff]
      %v3770 = vld [vmem:[#allocation3 + $0x158] sm:$0xff]
      %v3771 = vld [vmem:[#allocation3 + $0x160] sm:$0xff]
      %v3772 = vld [vmem:[#allocation3 + $0x168] sm:$0xff]
      %v3773 = vld [vmem:[#allocation3 + $0x170] sm:$0xff]
      %v3774 = vld [vmem:[#allocation3 + $0x178] sm:$0xff]
      %v3775 = vld [vmem:[#allocation3 + $0x180] sm:$0xff]
      %v3776 = vld [vmem:[#allocation3 + $0x188] sm:$0xff]
      %v3777 = vld [vmem:[#allocation3 + $0x190] sm:$0xff]
      %v3778 = vld [vmem:[#allocation3 + $0x198] sm:$0xff]
      %v3779 = vld [vmem:[#allocation3 + $0x1a0] sm:$0xff]
      %v3780 = vld [vmem:[#allocation3 + $0x1a8] sm:$0xff]
      %v3781 = vld [vmem:[#allocation3 + $0x1b0] sm:$0xff]
      %v3782 = vld [vmem:[#allocation3 + $0x1b8] sm:$0xff]
      %v3783 = vld [vmem:[#allocation3 + $0x1c0] sm:$0xff]
      %v3784 = vld [vmem:[#allocation3 + $0x1c8] sm:$0xff]
      %v3785 = vld [vmem:[#allocation3 + $0x1d0] sm:$0xff]
      %v3786 = vld [vmem:[#allocation3 + $0x1d8] sm:$0xff]
      %v3787 = vld [vmem:[#allocation3 + $0x1e0] sm:$0xff]
      %v3788 = vld [vmem:[#allocation3 + $0x1e8] sm:$0xff]
      %v3789 = vld [vmem:[#allocation3 + $0x1f0] sm:$0xff]
      %v3790 = vld [vmem:[#allocation3 + $0x1f8] sm:$0xff]
      %v3791 = vld [vmem:[#allocation3 + $0x200] sm:$0xff]
      %v3792 = vld [vmem:[#allocation3 + $0x208] sm:$0xff]
      %v3793 = vld [vmem:[#allocation3 + $0x210] sm:$0xff]
      %v3794 = vld [vmem:[#allocation3 + $0x218] sm:$0xff]
      %v3795 = vld [vmem:[#allocation3 + $0x220] sm:$0xff]
      %v3796 = vld [vmem:[#allocation3 + $0x228] sm:$0xff]
      %v3797 = vld [vmem:[#allocation3 + $0x230] sm:$0xff]
      %v3798 = vld [vmem:[#allocation3 + $0x238] sm:$0xff]
      %v3799 = vld [vmem:[#allocation3 + $0x240] sm:$0xff]
      %v3800 = vld [vmem:[#allocation3 + $0x248] sm:$0xff]
      %v3801 = vld [vmem:[#allocation3 + $0x250] sm:$0xff]
      %v3802 = vld [vmem:[#allocation3 + $0x258] sm:$0xff]
      %v3803 = vld [vmem:[#allocation3 + $0x260] sm:$0xff]
      %v3804 = vld [vmem:[#allocation3 + $0x268] sm:$0xff]
      %v3805 = vld [vmem:[#allocation3 + $0x270] sm:$0xff]
      %v3806 = vld [vmem:[#allocation3 + $0x278] sm:$0xff]
      %v3807 = vld [vmem:[#allocation3 + $0x280] sm:$0xff]
      %v3808 = vld [vmem:[#allocation3 + $0x288] sm:$0xff]
      %v3809 = vld [vmem:[#allocation3 + $0x290] sm:$0xff]
      %v3810 = vld [vmem:[#allocation3 + $0x298] sm:$0xff]
      %v3811 = vld [vmem:[#allocation3 + $0x2a0] sm:$0xff]
      %v3812 = vld [vmem:[#allocation3 + $0x2a8] sm:$0xff]
      %v3813 = vld [vmem:[#allocation3 + $0x2b0] sm:$0xff]
      %v3814 = vld [vmem:[#allocation3 + $0x2b8] sm:$0xff]
      %v3815 = vld [vmem:[#allocation3 + $0x2c0] sm:$0xff]
      %v3816 = vld [vmem:[#allocation3 + $0x2c8] sm:$0xff]
      %v3817 = vld [vmem:[#allocation3 + $0x2d0] sm:$0xff]
      %v3818 = vld [vmem:[#allocation3 + $0x2d8] sm:$0xff]
      %v3819 = vld [vmem:[#allocation3 + $0x2e0] sm:$0xff]
      %v3820 = vld [vmem:[#allocation3 + $0x2e8] sm:$0xff]
      %v3821 = vld [vmem:[#allocation3 + $0x2f0] sm:$0xff]
      %v3822 = vld [vmem:[#allocation3 + $0x2f8] sm:$0xff]
      %v3823 = vld [vmem:[%s2] sm:$0xff]
      %v3824 = vld [vmem:[%s2 + $0x8] sm:$0xff]
      %v3825 = vld [vmem:[%s2 + $0x10] sm:$0xff]
      %v3826 = vld [vmem:[%s2 + $0x18] sm:$0xff]
      %v3827 = vld [vmem:[%s2 + $0x20] sm:$0xff]
      %v3828 = vld [vmem:[%s2 + $0x28] sm:$0xff]
      %v3829 = vld [vmem:[%s2 + $0x30] sm:$0xff]
      %v3830 = vld [vmem:[%s2 + $0x38] sm:$0xff]
      %v3831 = vld [vmem:[%s2 + $0x40] sm:$0xff]
      %v3832 = vld [vmem:[%s2 + $0x48] sm:$0xff]
      %v3833 = vld [vmem:[%s2 + $0x50] sm:$0xff]
      %v3834 = vld [vmem:[%s2 + $0x58] sm:$0xff]
      %v3835 = vld [vmem:[%s2 + $0x60] sm:$0xff]
      %v3836 = vld [vmem:[%s2 + $0x68] sm:$0xff]
      %v3837 = vld [vmem:[%s2 + $0x70] sm:$0xff]
      %v3838 = vld [vmem:[%s2 + $0x78] sm:$0xff]
      %v3839 = vld [vmem:[%s2 + $0x80] sm:$0xff]
      %v3840 = vld [vmem:[%s2 + $0x88] sm:$0xff]
      %v3841 = vld [vmem:[%s2 + $0x90] sm:$0xff]
      %v3842 = vld [vmem:[%s2 + $0x98] sm:$0xff]
      %v3843 = vld [vmem:[%s2 + $0xa0] sm:$0xff]
      %v3844 = vld [vmem:[%s2 + $0xa8] sm:$0xff]
      %v3845 = vld [vmem:[%s2 + $0xb0] sm:$0xff]
      %v3846 = vld [vmem:[%s2 + $0xb8] sm:$0xff]
      %v3847 = vld [vmem:[%s2 + $0xc0] sm:$0xff]
      %v3848 = vld [vmem:[%s2 + $0xc8] sm:$0xff]
      %v3849 = vld [vmem:[%s2 + $0xd0] sm:$0xff]
      %v3850 = vld [vmem:[%s2 + $0xd8] sm:$0xff]
      %v3851 = vld [vmem:[%s2 + $0xe0] sm:$0xff]
      %v3852 = vld [vmem:[%s2 + $0xe8] sm:$0xff]
      %v3853 = vld [vmem:[%s2 + $0xf0] sm:$0xff]
      %v3854 = vld [vmem:[%s2 + $0xf8] sm:$0xff]
      %v3855 = vld [vmem:[%s2 + $0x100] sm:$0xff]
      %v3856 = vld [vmem:[%s2 + $0x108] sm:$0xff]
      %v3857 = vld [vmem:[%s2 + $0x110] sm:$0xff]
      %v3858 = vld [vmem:[%s2 + $0x118] sm:$0xff]
      %v3859 = vld [vmem:[%s5] sm:$0x1]
      %v3861 = vperm.slane %v3859, 0
      %v3864 = vsel %vm279, %v3729, 0
      %v3867 = vsel %vm279, %v3732, 0
      %v3870 = vsel %vm279, %v3735, 0
      %v3873 = vsel %vm279, %v3738, 0
      %v3876 = vsel %vm279, %v3741, 0
      %v3879 = vsel %vm279, %v3744, 0
      %v3882 = vsel %vm279, %v3747, 0
      %v3885 = vsel %vm279, %v3750, 0
      %v3888 = vsel %vm279, %v3753, 0
      %v3891 = vsel %vm279, %v3756, 0
      %v3894 = vsel %vm279, %v3759, 0
      %v3897 = vsel %vm279, %v3762, 0
      %v3900 = vsel %vm279, %v3765, 0
      %v3903 = vsel %vm279, %v3768, 0
      %v3906 = vsel %vm279, %v3771, 0
      %v3909 = vsel %vm279, %v3774, 0
      %v3912 = vsel %vm279, %v3777, 0
      %v3915 = vsel %vm279, %v3780, 0
      %v3918 = vsel %vm279, %v3783, 0
      %v3921 = vsel %vm279, %v3786, 0
      %v3924 = vsel %vm279, %v3789, 0
      %v3927 = vsel %vm279, %v3792, 0
      %v3930 = vsel %vm279, %v3795, 0
      %v3933 = vsel %vm279, %v3798, 0
      %v3936 = vsel %vm279, %v3801, 0
      %v3939 = vsel %vm279, %v3804, 0
      %v3942 = vsel %vm279, %v3807, 0
      %v3945 = vsel %vm279, %v3810, 0
      %v3948 = vsel %vm279, %v3813, 0
      %v3951 = vsel %vm279, %v3816, 0
      %v3954 = vsel %vm279, %v3819, 0
      %v3957 = vsel %vm279, %v3822, 0
      %3959 = vmatpush.msra.mxu0 %v3838
      %3960 = vmatpush.msra.mxu0 %v3837
      %3961 = vmatpush.msra.mxu0 %v3836
      %3962 = vmatpush.msra.mxu0 %v3835
      %3963 = vmatpush.msra.mxu0 %v3834
      %3964 = vmatpush.msra.mxu0 %v3833
      %3965 = vmatpush.msra.mxu0 %v3832
      %3966 = vmatpush.msra.mxu0 %v3831
      %3967 = vmatpush.msra.mxu0 %v3830
      %3968 = vmatpush.msra.mxu0 %v3829
      %3969 = vmatpush.msra.mxu0 %v3828
      %3970 = vmatpush.msra.mxu0 %v3827
      %3971 = vmatpush.msra.mxu0 %v3826
      %3972 = vmatpush.msra.mxu0 %v3825
      %3973 = vmatpush.msra.mxu0 %v3824
      %3974 = vmatpush.msra.mxu0 %v3823
      %3975 = vmatmul.f32.gmra.mxu0 %v3727
      %v3976 = vpop.f32.mrf.mxu0
      %v3977 = vadd.f32 %v3861, %v3976
      %3978 = vmatmul.f32.gmra.mxu0 %v3730
      %v3979 = vpop.f32.mrf.mxu0
      %v3980 = vadd.f32 %v3861, %v3979
      %3981 = vmatmul.f32.gmra.mxu0 %v3733
      %v3982 = vpop.f32.mrf.mxu0
      %v3983 = vadd.f32 %v3861, %v3982
      %3984 = vmatmul.f32.gmra.mxu0 %v3736
      %v3985 = vpop.f32.mrf.mxu0
      %v3986 = vadd.f32 %v3861, %v3985
      %3987 = vmatmul.f32.gmra.mxu0 %v3739
      %v3988 = vpop.f32.mrf.mxu0
      %v3989 = vadd.f32 %v3861, %v3988
      %3990 = vmatmul.f32.gmra.mxu0 %v3742
      %v3991 = vpop.f32.mrf.mxu0
      %v3992 = vadd.f32 %v3861, %v3991
      %3993 = vmatmul.f32.gmra.mxu0 %v3745
      %v3994 = vpop.f32.mrf.mxu0
      %v3995 = vadd.f32 %v3861, %v3994
      %3996 = vmatmul.f32.gmra.mxu0 %v3748
      %v3997 = vpop.f32.mrf.mxu0
      %v3998 = vadd.f32 %v3861, %v3997
      %3999 = vmatmul.f32.gmra.mxu0 %v3751
      %v4000 = vpop.f32.mrf.mxu0
      %v4001 = vadd.f32 %v3861, %v4000
      %4002 = vmatmul.f32.gmra.mxu0 %v3754
      %v4003 = vpop.f32.mrf.mxu0
      %v4004 = vadd.f32 %v3861, %v4003
      %4005 = vmatmul.f32.gmra.mxu0 %v3757
      %v4006 = vpop.f32.mrf.mxu0
      %v4007 = vadd.f32 %v3861, %v4006
      %4008 = vmatmul.f32.gmra.mxu0 %v3760
      %v4009 = vpop.f32.mrf.mxu0
      %v4010 = vadd.f32 %v3861, %v4009
      %4011 = vmatmul.f32.gmra.mxu0 %v3763
      %v4012 = vpop.f32.mrf.mxu0
      %v4013 = vadd.f32 %v3861, %v4012
      %4014 = vmatmul.f32.gmra.mxu0 %v3766
      %v4015 = vpop.f32.mrf.mxu0
      %v4016 = vadd.f32 %v3861, %v4015
      %4017 = vmatmul.f32.gmra.mxu0 %v3769
      %v4018 = vpop.f32.mrf.mxu0
      %v4019 = vadd.f32 %v3861, %v4018
      %4020 = vmatmul.f32.gmra.mxu0 %v3772
      %v4021 = vpop.f32.mrf.mxu0
      %v4022 = vadd.f32 %v3861, %v4021
      %4023 = vmatmul.f32.gmra.mxu0 %v3775
      %v4024 = vpop.f32.mrf.mxu0
      %v4025 = vadd.f32 %v3861, %v4024
      %4026 = vmatmul.f32.gmra.mxu0 %v3778
      %v4027 = vpop.f32.mrf.mxu0
      %v4028 = vadd.f32 %v3861, %v4027
      %4029 = vmatmul.f32.gmra.mxu0 %v3781
      %v4030 = vpop.f32.mrf.mxu0
      %v4031 = vadd.f32 %v3861, %v4030
      %4032 = vmatmul.f32.gmra.mxu0 %v3784
      %v4033 = vpop.f32.mrf.mxu0
      %v4034 = vadd.f32 %v3861, %v4033
      %4035 = vmatmul.f32.gmra.mxu0 %v3787
      %v4036 = vpop.f32.mrf.mxu0
      %v4037 = vadd.f32 %v3861, %v4036
      %4038 = vmatmul.f32.gmra.mxu0 %v3790
      %v4039 = vpop.f32.mrf.mxu0
      %v4040 = vadd.f32 %v3861, %v4039
      %4041 = vmatmul.f32.gmra.mxu0 %v3793
      %v4042 = vpop.f32.mrf.mxu0
      %v4043 = vadd.f32 %v3861, %v4042
      %4044 = vmatmul.f32.gmra.mxu0 %v3796
      %v4045 = vpop.f32.mrf.mxu0
      %v4046 = vadd.f32 %v3861, %v4045
      %4047 = vmatmul.f32.gmra.mxu0 %v3799
      %v4048 = vpop.f32.mrf.mxu0
      %v4049 = vadd.f32 %v3861, %v4048
      %4050 = vmatmul.f32.gmra.mxu0 %v3802
      %v4051 = vpop.f32.mrf.mxu0
      %v4052 = vadd.f32 %v3861, %v4051
      %4053 = vmatmul.f32.gmra.mxu0 %v3805
      %v4054 = vpop.f32.mrf.mxu0
      %v4055 = vadd.f32 %v3861, %v4054
      %4056 = vmatmul.f32.gmra.mxu0 %v3808
      %v4057 = vpop.f32.mrf.mxu0
      %v4058 = vadd.f32 %v3861, %v4057
      %4059 = vmatmul.f32.gmra.mxu0 %v3811
      %v4060 = vpop.f32.mrf.mxu0
      %v4061 = vadd.f32 %v3861, %v4060
      %4062 = vmatmul.f32.gmra.mxu0 %v3814
      %v4063 = vpop.f32.mrf.mxu0
      %v4064 = vadd.f32 %v3861, %v4063
      %4065 = vmatmul.f32.gmra.mxu0 %v3817
      %v4066 = vpop.f32.mrf.mxu0
      %v4067 = vadd.f32 %v3861, %v4066
      %4068 = vmatmul.f32.gmra.mxu0 %v3820
      %v4069 = vpop.f32.mrf.mxu0
      %v4070 = vadd.f32 %v3861, %v4069
      %4071 = vdwg.mxu0
      %4072 = vmatpush.msra.mxu0 %v3854
      %4073 = vmatpush.msra.mxu0 %v3853
      %4074 = vmatpush.msra.mxu0 %v3852
      %4075 = vmatpush.msra.mxu0 %v3851
      %4076 = vmatpush.msra.mxu0 %v3850
      %4077 = vmatpush.msra.mxu0 %v3849
      %4078 = vmatpush.msra.mxu0 %v3848
      %4079 = vmatpush.msra.mxu0 %v3847
      %4080 = vmatpush.msra.mxu0 %v3846
      %4081 = vmatpush.msra.mxu0 %v3845
      %4082 = vmatpush.msra.mxu0 %v3844
      %4083 = vmatpush.msra.mxu0 %v3843
      %4084 = vmatpush.msra.mxu0 %v3842
      %4085 = vmatpush.msra.mxu0 %v3841
      %4086 = vmatpush.msra.mxu0 %v3840
      %4087 = vmatpush.msra.mxu0 %v3839
      %4088 = vmatmul.f32.gmra.mxu0 %v3728
      %v4089 = vpop.f32.mrf.mxu0
      %v4090 = vadd.f32 %v3977, %v4089
      %4091 = vmatmul.f32.gmra.mxu0 %v3731
      %v4092 = vpop.f32.mrf.mxu0
      %v4093 = vadd.f32 %v3980, %v4092
      %4094 = vmatmul.f32.gmra.mxu0 %v3734
      %v4095 = vpop.f32.mrf.mxu0
      %v4096 = vadd.f32 %v3983, %v4095
      %4097 = vmatmul.f32.gmra.mxu0 %v3737
      %v4098 = vpop.f32.mrf.mxu0
      %v4099 = vadd.f32 %v3986, %v4098
      %4100 = vmatmul.f32.gmra.mxu0 %v3740
      %v4101 = vpop.f32.mrf.mxu0
      %v4102 = vadd.f32 %v3989, %v4101
      %4103 = vmatmul.f32.gmra.mxu0 %v3743
      %v4104 = vpop.f32.mrf.mxu0
      %v4105 = vadd.f32 %v3992, %v4104
      %4106 = vmatmul.f32.gmra.mxu0 %v3746
      %v4107 = vpop.f32.mrf.mxu0
      %v4108 = vadd.f32 %v3995, %v4107
      %4109 = vmatmul.f32.gmra.mxu0 %v3749
      %v4110 = vpop.f32.mrf.mxu0
      %v4111 = vadd.f32 %v3998, %v4110
      %4112 = vmatmul.f32.gmra.mxu0 %v3752
      %v4113 = vpop.f32.mrf.mxu0
      %v4114 = vadd.f32 %v4001, %v4113
      %4115 = vmatmul.f32.gmra.mxu0 %v3755
      %v4116 = vpop.f32.mrf.mxu0
      %v4117 = vadd.f32 %v4004, %v4116
      %4118 = vmatmul.f32.gmra.mxu0 %v3758
      %v4119 = vpop.f32.mrf.mxu0
      %v4120 = vadd.f32 %v4007, %v4119
      %4121 = vmatmul.f32.gmra.mxu0 %v3761
      %v4122 = vpop.f32.mrf.mxu0
      %v4123 = vadd.f32 %v4010, %v4122
      %4124 = vmatmul.f32.gmra.mxu0 %v3764
      %v4125 = vpop.f32.mrf.mxu0
      %v4126 = vadd.f32 %v4013, %v4125
      %4127 = vmatmul.f32.gmra.mxu0 %v3767
      %v4128 = vpop.f32.mrf.mxu0
      %v4129 = vadd.f32 %v4016, %v4128
      %4130 = vmatmul.f32.gmra.mxu0 %v3770
      %v4131 = vpop.f32.mrf.mxu0
      %v4132 = vadd.f32 %v4019, %v4131
      %4133 = vmatmul.f32.gmra.mxu0 %v3773
      %v4134 = vpop.f32.mrf.mxu0
      %v4135 = vadd.f32 %v4022, %v4134
      %4136 = vmatmul.f32.gmra.mxu0 %v3776
      %v4137 = vpop.f32.mrf.mxu0
      %v4138 = vadd.f32 %v4025, %v4137
      %4139 = vmatmul.f32.gmra.mxu0 %v3779
      %v4140 = vpop.f32.mrf.mxu0
      %v4141 = vadd.f32 %v4028, %v4140
      %4142 = vmatmul.f32.gmra.mxu0 %v3782
      %v4143 = vpop.f32.mrf.mxu0
      %v4144 = vadd.f32 %v4031, %v4143
      %4145 = vmatmul.f32.gmra.mxu0 %v3785
      %v4146 = vpop.f32.mrf.mxu0
      %v4147 = vadd.f32 %v4034, %v4146
      %4148 = vmatmul.f32.gmra.mxu0 %v3788
      %v4149 = vpop.f32.mrf.mxu0
      %v4150 = vadd.f32 %v4037, %v4149
      %4151 = vmatmul.f32.gmra.mxu0 %v3791
      %v4152 = vpop.f32.mrf.mxu0
      %v4153 = vadd.f32 %v4040, %v4152
      %4154 = vmatmul.f32.gmra.mxu0 %v3794
      %v4155 = vpop.f32.mrf.mxu0
      %v4156 = vadd.f32 %v4043, %v4155
      %4157 = vmatmul.f32.gmra.mxu0 %v3797
      %v4158 = vpop.f32.mrf.mxu0
      %v4159 = vadd.f32 %v4046, %v4158
      %4160 = vmatmul.f32.gmra.mxu0 %v3800
      %v4161 = vpop.f32.mrf.mxu0
      %v4162 = vadd.f32 %v4049, %v4161
      %4163 = vmatmul.f32.gmra.mxu0 %v3803
      %v4164 = vpop.f32.mrf.mxu0
      %v4165 = vadd.f32 %v4052, %v4164
      %4166 = vmatmul.f32.gmra.mxu0 %v3806
      %v4167 = vpop.f32.mrf.mxu0
      %v4168 = vadd.f32 %v4055, %v4167
      %4169 = vmatmul.f32.gmra.mxu0 %v3809
      %v4170 = vpop.f32.mrf.mxu0
      %v4171 = vadd.f32 %v4058, %v4170
      %4172 = vmatmul.f32.gmra.mxu0 %v3812
      %v4173 = vpop.f32.mrf.mxu0
      %v4174 = vadd.f32 %v4061, %v4173
      %4175 = vmatmul.f32.gmra.mxu0 %v3815
      %v4176 = vpop.f32.mrf.mxu0
      %v4177 = vadd.f32 %v4064, %v4176
      %4178 = vmatmul.f32.gmra.mxu0 %v3818
      %v4179 = vpop.f32.mrf.mxu0
      %v4180 = vadd.f32 %v4067, %v4179
      %4181 = vmatmul.f32.gmra.mxu0 %v3821
      %v4182 = vpop.f32.mrf.mxu0
      %v4183 = vadd.f32 %v4070, %v4182
      %4184 = vdwg.mxu0
      %4185 = vmatpush.msra.mxu0 0.0
      %4186 = vmatpush.msra.mxu0 0.0
      %4187 = vmatpush.msra.mxu0 0.0
      %4188 = vmatpush.msra.mxu0 0.0
      %4189 = vmatpush.msra.mxu0 0.0
      %4190 = vmatpush.msra.mxu0 0.0
      %4191 = vmatpush.msra.mxu0 0.0
      %4192 = vmatpush.msra.mxu0 0.0
      %4193 = vmatpush.msra.mxu0 0.0
      %4194 = vmatpush.msra.mxu0 0.0
      %4195 = vmatpush.msra.mxu0 0.0
      %4196 = vmatpush.msra.mxu0 0.0
      %4197 = vmatpush.msra.mxu0 %v3858
      %4198 = vmatpush.msra.mxu0 %v3857
      %4199 = vmatpush.msra.mxu0 %v3856
      %4200 = vmatpush.msra.mxu0 %v3855
      %4201 = vmatmul.f32.gmra.mxu0 %v3864
      %v4202 = vpop.f32.mrf.mxu0
      %v4203 = vadd.f32 %v4090, %v4202
      %4204 = vmatmul.f32.gmra.mxu0 %v3867
      %v4205 = vpop.f32.mrf.mxu0
      %v4206 = vadd.f32 %v4093, %v4205
      %4207 = vmatmul.f32.gmra.mxu0 %v3870
      %v4208 = vpop.f32.mrf.mxu0
      %v4209 = vadd.f32 %v4096, %v4208
      %4210 = vmatmul.f32.gmra.mxu0 %v3873
      %v4211 = vpop.f32.mrf.mxu0
      %v4212 = vadd.f32 %v4099, %v4211
      %4213 = vmatmul.f32.gmra.mxu0 %v3876
      %v4214 = vpop.f32.mrf.mxu0
      %v4215 = vadd.f32 %v4102, %v4214
      %4216 = vmatmul.f32.gmra.mxu0 %v3879
      %v4217 = vpop.f32.mrf.mxu0
      %v4218 = vadd.f32 %v4105, %v4217
      %4219 = vmatmul.f32.gmra.mxu0 %v3882
      %v4220 = vpop.f32.mrf.mxu0
      %v4221 = vadd.f32 %v4108, %v4220
      %4222 = vmatmul.f32.gmra.mxu0 %v3885
      %v4223 = vpop.f32.mrf.mxu0
      %v4224 = vadd.f32 %v4111, %v4223
      %4225 = vmatmul.f32.gmra.mxu0 %v3888
      %v4226 = vpop.f32.mrf.mxu0
      %v4227 = vadd.f32 %v4114, %v4226
      %4228 = vmatmul.f32.gmra.mxu0 %v3891
      %v4229 = vpop.f32.mrf.mxu0
      %v4230 = vadd.f32 %v4117, %v4229
      %4231 = vmatmul.f32.gmra.mxu0 %v3894
      %v4232 = vpop.f32.mrf.mxu0
      %v4233 = vadd.f32 %v4120, %v4232
      %4234 = vmatmul.f32.gmra.mxu0 %v3897
      %v4235 = vpop.f32.mrf.mxu0
      %v4236 = vadd.f32 %v4123, %v4235
      %4237 = vmatmul.f32.gmra.mxu0 %v3900
      %v4238 = vpop.f32.mrf.mxu0
      %v4239 = vadd.f32 %v4126, %v4238
      %4240 = vmatmul.f32.gmra.mxu0 %v3903
      %v4241 = vpop.f32.mrf.mxu0
      %v4242 = vadd.f32 %v4129, %v4241
      %4243 = vmatmul.f32.gmra.mxu0 %v3906
      %v4244 = vpop.f32.mrf.mxu0
      %v4245 = vadd.f32 %v4132, %v4244
      %4246 = vmatmul.f32.gmra.mxu0 %v3909
      %v4247 = vpop.f32.mrf.mxu0
      %v4248 = vadd.f32 %v4135, %v4247
      %4249 = vmatmul.f32.gmra.mxu0 %v3912
      %v4250 = vpop.f32.mrf.mxu0
      %v4251 = vadd.f32 %v4138, %v4250
      %4252 = vmatmul.f32.gmra.mxu0 %v3915
      %v4253 = vpop.f32.mrf.mxu0
      %v4254 = vadd.f32 %v4141, %v4253
      %4255 = vmatmul.f32.gmra.mxu0 %v3918
      %v4256 = vpop.f32.mrf.mxu0
      %v4257 = vadd.f32 %v4144, %v4256
      %4258 = vmatmul.f32.gmra.mxu0 %v3921
      %v4259 = vpop.f32.mrf.mxu0
      %v4260 = vadd.f32 %v4147, %v4259
      %4261 = vmatmul.f32.gmra.mxu0 %v3924
      %v4262 = vpop.f32.mrf.mxu0
      %v4263 = vadd.f32 %v4150, %v4262
      %4264 = vmatmul.f32.gmra.mxu0 %v3927
      %v4265 = vpop.f32.mrf.mxu0
      %v4266 = vadd.f32 %v4153, %v4265
      %4267 = vmatmul.f32.gmra.mxu0 %v3930
      %v4268 = vpop.f32.mrf.mxu0
      %v4269 = vadd.f32 %v4156, %v4268
      %4270 = vmatmul.f32.gmra.mxu0 %v3933
      %v4271 = vpop.f32.mrf.mxu0
      %v4272 = vadd.f32 %v4159, %v4271
      %4273 = vmatmul.f32.gmra.mxu0 %v3936
      %v4274 = vpop.f32.mrf.mxu0
      %v4275 = vadd.f32 %v4162, %v4274
      %4276 = vmatmul.f32.gmra.mxu0 %v3939
      %v4277 = vpop.f32.mrf.mxu0
      %v4278 = vadd.f32 %v4165, %v4277
      %4279 = vmatmul.f32.gmra.mxu0 %v3942
      %v4280 = vpop.f32.mrf.mxu0
      %v4281 = vadd.f32 %v4168, %v4280
      %4282 = vmatmul.f32.gmra.mxu0 %v3945
      %v4283 = vpop.f32.mrf.mxu0
      %v4284 = vadd.f32 %v4171, %v4283
      %4285 = vmatmul.f32.gmra.mxu0 %v3948
      %v4286 = vpop.f32.mrf.mxu0
      %v4287 = vadd.f32 %v4174, %v4286
      %4288 = vmatmul.f32.gmra.mxu0 %v3951
      %v4289 = vpop.f32.mrf.mxu0
      %v4290 = vadd.f32 %v4177, %v4289
      %4291 = vmatmul.f32.gmra.mxu0 %v3954
      %v4292 = vpop.f32.mrf.mxu0
      %v4293 = vadd.f32 %v4180, %v4292
      %4294 = vmatmul.f32.gmra.mxu0 %v3957
      %v4295 = vpop.f32.mrf.mxu0
      %v4296 = vadd.f32 %v4183, %v4295
      %4297 = vdwg.mxu0
      %v4298 = vmax.f32 %v4203, 0.0
      %v4299 = vmax.f32 %v4206, 0.0
      %v4300 = vmax.f32 %v4209, 0.0
      %v4301 = vmax.f32 %v4212, 0.0
      %v4302 = vmax.f32 %v4215, 0.0
      %v4303 = vmax.f32 %v4218, 0.0
      %v4304 = vmax.f32 %v4221, 0.0
      %v4305 = vmax.f32 %v4224, 0.0
      %v4306 = vmax.f32 %v4227, 0.0
      %v4307 = vmax.f32 %v4230, 0.0
      %v4308 = vmax.f32 %v4233, 0.0
      %v4309 = vmax.f32 %v4236, 0.0
      %v4310 = vmax.f32 %v4239, 0.0
      %v4311 = vmax.f32 %v4242, 0.0
      %v4312 = vmax.f32 %v4245, 0.0
      %v4313 = vmax.f32 %v4248, 0.0
      %v4314 = vmax.f32 %v4251, 0.0
      %v4315 = vmax.f32 %v4254, 0.0
      %v4316 = vmax.f32 %v4257, 0.0
      %v4317 = vmax.f32 %v4260, 0.0
      %v4318 = vmax.f32 %v4263, 0.0
      %v4319 = vmax.f32 %v4266, 0.0
      %v4320 = vmax.f32 %v4269, 0.0
      %v4321 = vmax.f32 %v4272, 0.0
      %v4322 = vmax.f32 %v4275, 0.0
      %v4323 = vmax.f32 %v4278, 0.0
      %v4324 = vmax.f32 %v4281, 0.0
      %v4325 = vmax.f32 %v4284, 0.0
      %v4326 = vmax.f32 %v4287, 0.0
      %v4327 = vmax.f32 %v4290, 0.0
      %v4328 = vmax.f32 %v4293, 0.0
      %v4329 = vmax.f32 %v4296, 0.0
      %4330 = vst.msk [vmem:[%s367 + $0x1] sm:$0xff] %vm279, %v4298
      %4331 = vst.msk [vmem:[%s367 + $0x9] sm:$0xff] %vm279, %v4299
      %4332 = vst.msk [vmem:[%s367 + $0x19] sm:$0xff] %vm279, %v4300
      %4333 = vst.msk [vmem:[%s367 + $0x21] sm:$0xff] %vm279, %v4301
      %4334 = vst.msk [vmem:[%s367 + $0x31] sm:$0xff] %vm279, %v4302
      %4335 = vst.msk [vmem:[%s367 + $0x39] sm:$0xff] %vm279, %v4303
      %4336 = vst.msk [vmem:[%s367 + $0x49] sm:$0xff] %vm279, %v4304
      %4337 = vst.msk [vmem:[%s367 + $0x51] sm:$0xff] %vm279, %v4305
      %4338 = vst.msk [vmem:[%s367 + $0x61] sm:$0xff] %vm279, %v4306
      %4339 = vst.msk [vmem:[%s367 + $0x69] sm:$0xff] %vm279, %v4307
      %4340 = vst.msk [vmem:[%s367 + $0x79] sm:$0xff] %vm279, %v4308
      %4341 = vst.msk [vmem:[%s367 + $0x81] sm:$0xff] %vm279, %v4309
      %4342 = vst.msk [vmem:[%s367 + $0x91] sm:$0xff] %vm279, %v4310
      %4343 = vst.msk [vmem:[%s367 + $0x99] sm:$0xff] %vm279, %v4311
      %4344 = vst.msk [vmem:[%s367 + $0xa9] sm:$0xff] %vm279, %v4312
      %4345 = vst.msk [vmem:[%s367 + $0xb1] sm:$0xff] %vm279, %v4313
      %4346 = vst.msk [vmem:[%s367 + $0xc1] sm:$0xff] %vm279, %v4314
      %4347 = vst.msk [vmem:[%s367 + $0xc9] sm:$0xff] %vm279, %v4315
      %4348 = vst.msk [vmem:[%s367 + $0xd9] sm:$0xff] %vm279, %v4316
      %4349 = vst.msk [vmem:[%s367 + $0xe1] sm:$0xff] %vm279, %v4317
      %4350 = vst.msk [vmem:[%s367 + $0xf1] sm:$0xff] %vm279, %v4318
      %4351 = vst.msk [vmem:[%s367 + $0xf9] sm:$0xff] %vm279, %v4319
      %4352 = vst.msk [vmem:[%s367 + $0x109] sm:$0xff] %vm279, %v4320
      %4353 = vst.msk [vmem:[%s367 + $0x111] sm:$0xff] %vm279, %v4321
      %4354 = vst.msk [vmem:[%s367 + $0x121] sm:$0xff] %vm279, %v4322
      %4355 = vst.msk [vmem:[%s367 + $0x129] sm:$0xff] %vm279, %v4323
      %4356 = vst.msk [vmem:[%s367 + $0x139] sm:$0xff] %vm279, %v4324
      %4357 = vst.msk [vmem:[%s367 + $0x141] sm:$0xff] %vm279, %v4325
      %4358 = vst.msk [vmem:[%s367 + $0x151] sm:$0xff] %vm279, %v4326
      %4359 = vst.msk [vmem:[%s367 + $0x159] sm:$0xff] %vm279, %v4327
      %4360 = vst.msk [vmem:[%s367 + $0x169] sm:$0xff] %vm279, %v4328
      %4361 = vst.msk [vmem:[%s367 + $0x171] sm:$0xff] %vm279, %v4329
      %v4362 = vld [vmem:[#allocation2] sm:$0xff]
      %v4363 = vld [vmem:[#allocation2 + $0x8] sm:$0xff]
      %v4364 = vld [vmem:[#allocation2 + $0x18] sm:$0xff]
      %v4365 = vld [vmem:[#allocation2 + $0x20] sm:$0xff]
      %v4366 = vld [vmem:[#allocation2 + $0x30] sm:$0xff]
      %v4367 = vld [vmem:[#allocation2 + $0x38] sm:$0xff]
      %v4368 = vld [vmem:[#allocation2 + $0x48] sm:$0xff]
      %v4369 = vld [vmem:[#allocation2 + $0x50] sm:$0xff]
      %v4370 = vld [vmem:[#allocation2 + $0x60] sm:$0xff]
      %v4371 = vld [vmem:[#allocation2 + $0x68] sm:$0xff]
      %v4372 = vld [vmem:[#allocation2 + $0x78] sm:$0xff]
      %v4373 = vld [vmem:[#allocation2 + $0x80] sm:$0xff]
      %v4374 = vld [vmem:[#allocation2 + $0x90] sm:$0xff]
      %v4375 = vld [vmem:[#allocation2 + $0x98] sm:$0xff]
      %v4376 = vld [vmem:[#allocation2 + $0xa8] sm:$0xff]
      %v4377 = vld [vmem:[#allocation2 + $0xb0] sm:$0xff]
      %v4378 = vld [vmem:[#allocation2 + $0xc0] sm:$0xff]
      %v4379 = vld [vmem:[#allocation2 + $0xc8] sm:$0xff]
      %v4380 = vld [vmem:[#allocation2 + $0xd8] sm:$0xff]
      %v4381 = vld [vmem:[#allocation2 + $0xe0] sm:$0xff]
      %v4382 = vld [vmem:[#allocation2 + $0xf0] sm:$0xff]
      %v4383 = vld [vmem:[#allocation2 + $0xf8] sm:$0xff]
      %v4384 = vld [vmem:[#allocation2 + $0x108] sm:$0xff]
      %v4385 = vld [vmem:[#allocation2 + $0x110] sm:$0xff]
      %v4386 = vld [vmem:[#allocation2 + $0x120] sm:$0xff]
      %v4387 = vld [vmem:[#allocation2 + $0x128] sm:$0xff]
      %v4388 = vld [vmem:[#allocation2 + $0x138] sm:$0xff]
      %v4389 = vld [vmem:[#allocation2 + $0x140] sm:$0xff]
      %v4390 = vld [vmem:[#allocation2 + $0x150] sm:$0xff]
      %v4391 = vld [vmem:[#allocation2 + $0x158] sm:$0xff]
      %v4392 = vld [vmem:[#allocation2 + $0x168] sm:$0xff]
      %v4393 = vld [vmem:[#allocation2 + $0x170] sm:$0xff]
      %4394 = vst.msk [vmem:[#allocation3] sm:$0xff] %vm279, %v4362
      %4395 = vst.msk [vmem:[#allocation3 + $0x18] sm:$0xff] %vm279, %v4363
      %4396 = vst.msk [vmem:[#allocation3 + $0x30] sm:$0xff] %vm279, %v4364
      %4397 = vst.msk [vmem:[#allocation3 + $0x48] sm:$0xff] %vm279, %v4365
      %4398 = vst.msk [vmem:[#allocation3 + $0x60] sm:$0xff] %vm279, %v4366
      %4399 = vst.msk [vmem:[#allocation3 + $0x78] sm:$0xff] %vm279, %v4367
      %4400 = vst.msk [vmem:[#allocation3 + $0x90] sm:$0xff] %vm279, %v4368
      %4401 = vst.msk [vmem:[#allocation3 + $0xa8] sm:$0xff] %vm279, %v4369
      %4402 = vst.msk [vmem:[#allocation3 + $0xc0] sm:$0xff] %vm279, %v4370
      %4403 = vst.msk [vmem:[#allocation3 + $0xd8] sm:$0xff] %vm279, %v4371
      %4404 = vst.msk [vmem:[#allocation3 + $0xf0] sm:$0xff] %vm279, %v4372
      %4405 = vst.msk [vmem:[#allocation3 + $0x108] sm:$0xff] %vm279, %v4373
      %4406 = vst.msk [vmem:[#allocation3 + $0x120] sm:$0xff] %vm279, %v4374
      %4407 = vst.msk [vmem:[#allocation3 + $0x138] sm:$0xff] %vm279, %v4375
      %4408 = vst.msk [vmem:[#allocation3 + $0x150] sm:$0xff] %vm279, %v4376
      %4409 = vst.msk [vmem:[#allocation3 + $0x168] sm:$0xff] %vm279, %v4377
      %4410 = vst.msk [vmem:[#allocation3 + $0x180] sm:$0xff] %vm279, %v4378
      %4411 = vst.msk [vmem:[#allocation3 + $0x198] sm:$0xff] %vm279, %v4379
      %4412 = vst.msk [vmem:[#allocation3 + $0x1b0] sm:$0xff] %vm279, %v4380
      %4413 = vst.msk [vmem:[#allocation3 + $0x1c8] sm:$0xff] %vm279, %v4381
      %4414 = vst.msk [vmem:[#allocation3 + $0x1e0] sm:$0xff] %vm279, %v4382
      %4415 = vst.msk [vmem:[#allocation3 + $0x1f8] sm:$0xff] %vm279, %v4383
      %4416 = vst.msk [vmem:[#allocation3 + $0x210] sm:$0xff] %vm279, %v4384
      %4417 = vst.msk [vmem:[#allocation3 + $0x228] sm:$0xff] %vm279, %v4385
      %4418 = vst.msk [vmem:[#allocation3 + $0x240] sm:$0xff] %vm279, %v4386
      %4419 = vst.msk [vmem:[#allocation3 + $0x258] sm:$0xff] %vm279, %v4387
      %4420 = vst.msk [vmem:[#allocation3 + $0x270] sm:$0xff] %vm279, %v4388
      %4421 = vst.msk [vmem:[#allocation3 + $0x288] sm:$0xff] %vm279, %v4389
      %4422 = vst.msk [vmem:[#allocation3 + $0x2a0] sm:$0xff] %vm279, %v4390
      %4423 = vst.msk [vmem:[#allocation3 + $0x2b8] sm:$0xff] %vm279, %v4391
      %4424 = vst.msk [vmem:[#allocation3 + $0x2d0] sm:$0xff] %vm279, %v4392
      %4425 = vst.msk [vmem:[#allocation3 + $0x2e8] sm:$0xff] %vm279, %v4393
      %v4426 = vld [vmem:[#allocation2 + $0x1] sm:$0xff]
      %v4427 = vld [vmem:[#allocation2 + $0x9] sm:$0xff]
      %v4428 = vld [vmem:[#allocation2 + $0x19] sm:$0xff]
      %v4429 = vld [vmem:[#allocation2 + $0x21] sm:$0xff]
      %v4430 = vld [vmem:[#allocation2 + $0x31] sm:$0xff]
      %v4431 = vld [vmem:[#allocation2 + $0x39] sm:$0xff]
      %v4432 = vld [vmem:[#allocation2 + $0x49] sm:$0xff]
      %v4433 = vld [vmem:[#allocation2 + $0x51] sm:$0xff]
      %v4434 = vld [vmem:[#allocation2 + $0x61] sm:$0xff]
      %v4435 = vld [vmem:[#allocation2 + $0x69] sm:$0xff]
      %v4436 = vld [vmem:[#allocation2 + $0x79] sm:$0xff]
      %v4437 = vld [vmem:[#allocation2 + $0x81] sm:$0xff]
      %v4438 = vld [vmem:[#allocation2 + $0x91] sm:$0xff]
      %v4439 = vld [vmem:[#allocation2 + $0x99] sm:$0xff]
      %v4440 = vld [vmem:[#allocation2 + $0xa9] sm:$0xff]
      %v4441 = vld [vmem:[#allocation2 + $0xb1] sm:$0xff]
      %v4442 = vld [vmem:[#allocation2 + $0xc1] sm:$0xff]
      %v4443 = vld [vmem:[#allocation2 + $0xc9] sm:$0xff]
      %v4444 = vld [vmem:[#allocation2 + $0xd9] sm:$0xff]
      %v4445 = vld [vmem:[#allocation2 + $0xe1] sm:$0xff]
      %v4446 = vld [vmem:[#allocation2 + $0xf1] sm:$0xff]
      %v4447 = vld [vmem:[#allocation2 + $0xf9] sm:$0xff]
      %v4448 = vld [vmem:[#allocation2 + $0x109] sm:$0xff]
      %v4449 = vld [vmem:[#allocation2 + $0x111] sm:$0xff]
      %v4450 = vld [vmem:[#allocation2 + $0x121] sm:$0xff]
      %v4451 = vld [vmem:[#allocation2 + $0x129] sm:$0xff]
      %v4452 = vld [vmem:[#allocation2 + $0x139] sm:$0xff]
      %v4453 = vld [vmem:[#allocation2 + $0x141] sm:$0xff]
      %v4454 = vld [vmem:[#allocation2 + $0x151] sm:$0xff]
      %v4455 = vld [vmem:[#allocation2 + $0x159] sm:$0xff]
      %v4456 = vld [vmem:[#allocation2 + $0x169] sm:$0xff]
      %v4457 = vld [vmem:[#allocation2 + $0x171] sm:$0xff]
      %4490 = vrot.lane.b32.xlu0 %v4426, 32
      %v4491 = vpop.permute.xlu0 %4490
      %4492 = vrot.lane.b32.xlu0 %v4427, 32
      %v4493 = vpop.permute.xlu0 %4492
      %4494 = vrot.lane.b32.xlu0 %v4428, 32
      %v4495 = vpop.permute.xlu0 %4494
      %4496 = vrot.lane.b32.xlu0 %v4429, 32
      %v4497 = vpop.permute.xlu0 %4496
      %4498 = vrot.lane.b32.xlu0 %v4430, 32
      %v4499 = vpop.permute.xlu0 %4498
      %4500 = vrot.lane.b32.xlu0 %v4431, 32
      %v4501 = vpop.permute.xlu0 %4500
      %4502 = vrot.lane.b32.xlu0 %v4432, 32
      %v4503 = vpop.permute.xlu0 %4502
      %4504 = vrot.lane.b32.xlu0 %v4433, 32
      %v4505 = vpop.permute.xlu0 %4504
      %4506 = vrot.lane.b32.xlu0 %v4434, 32
      %v4507 = vpop.permute.xlu0 %4506
      %4508 = vrot.lane.b32.xlu0 %v4435, 32
      %v4509 = vpop.permute.xlu0 %4508
      %4510 = vrot.lane.b32.xlu0 %v4436, 32
      %v4511 = vpop.permute.xlu0 %4510
      %4512 = vrot.lane.b32.xlu0 %v4437, 32
      %v4513 = vpop.permute.xlu0 %4512
      %4514 = vrot.lane.b32.xlu0 %v4438, 32
      %v4515 = vpop.permute.xlu0 %4514
      %4516 = vrot.lane.b32.xlu0 %v4439, 32
      %v4517 = vpop.permute.xlu0 %4516
      %4518 = vrot.lane.b32.xlu0 %v4440, 32
      %v4519 = vpop.permute.xlu0 %4518
      %4520 = vrot.lane.b32.xlu0 %v4441, 32
      %v4521 = vpop.permute.xlu0 %4520
      %4522 = vrot.lane.b32.xlu0 %v4442, 32
      %v4523 = vpop.permute.xlu0 %4522
      %4524 = vrot.lane.b32.xlu0 %v4443, 32
      %v4525 = vpop.permute.xlu0 %4524
      %4526 = vrot.lane.b32.xlu0 %v4444, 32
      %v4527 = vpop.permute.xlu0 %4526
      %4528 = vrot.lane.b32.xlu0 %v4445, 32
      %v4529 = vpop.permute.xlu0 %4528
      %4530 = vrot.lane.b32.xlu0 %v4446, 32
      %v4531 = vpop.permute.xlu0 %4530
      %4532 = vrot.lane.b32.xlu0 %v4447, 32
      %v4533 = vpop.permute.xlu0 %4532
      %4534 = vrot.lane.b32.xlu0 %v4448, 32
      %v4535 = vpop.permute.xlu0 %4534
      %4536 = vrot.lane.b32.xlu0 %v4449, 32
      %v4537 = vpop.permute.xlu0 %4536
      %4538 = vrot.lane.b32.xlu0 %v4450, 32
      %v4539 = vpop.permute.xlu0 %4538
      %4540 = vrot.lane.b32.xlu0 %v4451, 32
      %v4541 = vpop.permute.xlu0 %4540
      %4542 = vrot.lane.b32.xlu0 %v4452, 32
      %v4543 = vpop.permute.xlu0 %4542
      %4544 = vrot.lane.b32.xlu0 %v4453, 32
      %v4545 = vpop.permute.xlu0 %4544
      %4546 = vrot.lane.b32.xlu0 %v4454, 32
      %v4547 = vpop.permute.xlu0 %4546
      %4548 = vrot.lane.b32.xlu0 %v4455, 32
      %v4549 = vpop.permute.xlu0 %4548
      %4550 = vrot.lane.b32.xlu0 %v4456, 32
      %v4551 = vpop.permute.xlu0 %4550
      %4552 = vrot.lane.b32.xlu0 %v4457, 32
      %v4553 = vpop.permute.xlu0 %4552
      %4586 = vst.msk [vmem:[#allocation3] sm:$0xff] %vm624, %v4491
      %4587 = vst.msk [vmem:[#allocation3 + $0x18] sm:$0xff] %vm624, %v4493
      %4588 = vst.msk [vmem:[#allocation3 + $0x30] sm:$0xff] %vm624, %v4495
      %4589 = vst.msk [vmem:[#allocation3 + $0x48] sm:$0xff] %vm624, %v4497
      %4590 = vst.msk [vmem:[#allocation3 + $0x60] sm:$0xff] %vm624, %v4499
      %4591 = vst.msk [vmem:[#allocation3 + $0x78] sm:$0xff] %vm624, %v4501
      %4592 = vst.msk [vmem:[#allocation3 + $0x90] sm:$0xff] %vm624, %v4503
      %4593 = vst.msk [vmem:[#allocation3 + $0xa8] sm:$0xff] %vm624, %v4505
      %4594 = vst.msk [vmem:[#allocation3 + $0xc0] sm:$0xff] %vm624, %v4507
      %4595 = vst.msk [vmem:[#allocation3 + $0xd8] sm:$0xff] %vm624, %v4509
      %4596 = vst.msk [vmem:[#allocation3 + $0xf0] sm:$0xff] %vm624, %v4511
      %4597 = vst.msk [vmem:[#allocation3 + $0x108] sm:$0xff] %vm624, %v4513
      %4598 = vst.msk [vmem:[#allocation3 + $0x120] sm:$0xff] %vm624, %v4515
      %4599 = vst.msk [vmem:[#allocation3 + $0x138] sm:$0xff] %vm624, %v4517
      %4600 = vst.msk [vmem:[#allocation3 + $0x150] sm:$0xff] %vm624, %v4519
      %4601 = vst.msk [vmem:[#allocation3 + $0x168] sm:$0xff] %vm624, %v4521
      %4602 = vst.msk [vmem:[#allocation3 + $0x180] sm:$0xff] %vm624, %v4523
      %4603 = vst.msk [vmem:[#allocation3 + $0x198] sm:$0xff] %vm624, %v4525
      %4604 = vst.msk [vmem:[#allocation3 + $0x1b0] sm:$0xff] %vm624, %v4527
      %4605 = vst.msk [vmem:[#allocation3 + $0x1c8] sm:$0xff] %vm624, %v4529
      %4606 = vst.msk [vmem:[#allocation3 + $0x1e0] sm:$0xff] %vm624, %v4531
      %4607 = vst.msk [vmem:[#allocation3 + $0x1f8] sm:$0xff] %vm624, %v4533
      %4608 = vst.msk [vmem:[#allocation3 + $0x210] sm:$0xff] %vm624, %v4535
      %4609 = vst.msk [vmem:[#allocation3 + $0x228] sm:$0xff] %vm624, %v4537
      %4610 = vst.msk [vmem:[#allocation3 + $0x240] sm:$0xff] %vm624, %v4539
      %4611 = vst.msk [vmem:[#allocation3 + $0x258] sm:$0xff] %vm624, %v4541
      %4612 = vst.msk [vmem:[#allocation3 + $0x270] sm:$0xff] %vm624, %v4543
      %4613 = vst.msk [vmem:[#allocation3 + $0x288] sm:$0xff] %vm624, %v4545
      %4614 = vst.msk [vmem:[#allocation3 + $0x2a0] sm:$0xff] %vm624, %v4547
      %4615 = vst.msk [vmem:[#allocation3 + $0x2b8] sm:$0xff] %vm624, %v4549
      %4616 = vst.msk [vmem:[#allocation3 + $0x2d0] sm:$0xff] %vm624, %v4551
      %4617 = vst.msk [vmem:[#allocation3 + $0x2e8] sm:$0xff] %vm624, %v4553
      %v4618 = vld [vmem:[#allocation2 + $0x2] sm:$0xff]
      %v4619 = vld [vmem:[#allocation2 + $0xa] sm:$0xff]
      %v4620 = vld [vmem:[#allocation2 + $0x1a] sm:$0xff]
      %v4621 = vld [vmem:[#allocation2 + $0x22] sm:$0xff]
      %v4622 = vld [vmem:[#allocation2 + $0x32] sm:$0xff]
      %v4623 = vld [vmem:[#allocation2 + $0x3a] sm:$0xff]
      %v4624 = vld [vmem:[#allocation2 + $0x4a] sm:$0xff]
      %v4625 = vld [vmem:[#allocation2 + $0x52] sm:$0xff]
      %v4626 = vld [vmem:[#allocation2 + $0x62] sm:$0xff]
      %v4627 = vld [vmem:[#allocation2 + $0x6a] sm:$0xff]
      %v4628 = vld [vmem:[#allocation2 + $0x7a] sm:$0xff]
      %v4629 = vld [vmem:[#allocation2 + $0x82] sm:$0xff]
      %v4630 = vld [vmem:[#allocation2 + $0x92] sm:$0xff]
      %v4631 = vld [vmem:[#allocation2 + $0x9a] sm:$0xff]
      %v4632 = vld [vmem:[#allocation2 + $0xaa] sm:$0xff]
      %v4633 = vld [vmem:[#allocation2 + $0xb2] sm:$0xff]
      %v4634 = vld [vmem:[#allocation2 + $0xc2] sm:$0xff]
      %v4635 = vld [vmem:[#allocation2 + $0xca] sm:$0xff]
      %v4636 = vld [vmem:[#allocation2 + $0xda] sm:$0xff]
      %v4637 = vld [vmem:[#allocation2 + $0xe2] sm:$0xff]
      %v4638 = vld [vmem:[#allocation2 + $0xf2] sm:$0xff]
      %v4639 = vld [vmem:[#allocation2 + $0xfa] sm:$0xff]
      %v4640 = vld [vmem:[#allocation2 + $0x10a] sm:$0xff]
      %v4641 = vld [vmem:[#allocation2 + $0x112] sm:$0xff]
      %v4642 = vld [vmem:[#allocation2 + $0x122] sm:$0xff]
      %v4643 = vld [vmem:[#allocation2 + $0x12a] sm:$0xff]
      %v4644 = vld [vmem:[#allocation2 + $0x13a] sm:$0xff]
      %v4645 = vld [vmem:[#allocation2 + $0x142] sm:$0xff]
      %v4646 = vld [vmem:[#allocation2 + $0x152] sm:$0xff]
      %v4647 = vld [vmem:[#allocation2 + $0x15a] sm:$0xff]
      %v4648 = vld [vmem:[#allocation2 + $0x16a] sm:$0xff]
      %v4649 = vld [vmem:[#allocation2 + $0x172] sm:$0xff]
      %4682 = vrot.lane.b32.xlu0 %v4618, 64
      %v4683 = vpop.permute.xlu0 %4682
      %4684 = vrot.lane.b32.xlu0 %v4619, 64
      %v4685 = vpop.permute.xlu0 %4684
      %4686 = vrot.lane.b32.xlu0 %v4620, 64
      %v4687 = vpop.permute.xlu0 %4686
      %4688 = vrot.lane.b32.xlu0 %v4621, 64
      %v4689 = vpop.permute.xlu0 %4688
      %4690 = vrot.lane.b32.xlu0 %v4622, 64
      %v4691 = vpop.permute.xlu0 %4690
      %4692 = vrot.lane.b32.xlu0 %v4623, 64
      %v4693 = vpop.permute.xlu0 %4692
      %4694 = vrot.lane.b32.xlu0 %v4624, 64
      %v4695 = vpop.permute.xlu0 %4694
      %4696 = vrot.lane.b32.xlu0 %v4625, 64
      %v4697 = vpop.permute.xlu0 %4696
      %4698 = vrot.lane.b32.xlu0 %v4626, 64
      %v4699 = vpop.permute.xlu0 %4698
      %4700 = vrot.lane.b32.xlu0 %v4627, 64
      %v4701 = vpop.permute.xlu0 %4700
      %4702 = vrot.lane.b32.xlu0 %v4628, 64
      %v4703 = vpop.permute.xlu0 %4702
      %4704 = vrot.lane.b32.xlu0 %v4629, 64
      %v4705 = vpop.permute.xlu0 %4704
      %4706 = vrot.lane.b32.xlu0 %v4630, 64
      %v4707 = vpop.permute.xlu0 %4706
      %4708 = vrot.lane.b32.xlu0 %v4631, 64
      %v4709 = vpop.permute.xlu0 %4708
      %4710 = vrot.lane.b32.xlu0 %v4632, 64
      %v4711 = vpop.permute.xlu0 %4710
      %4712 = vrot.lane.b32.xlu0 %v4633, 64
      %v4713 = vpop.permute.xlu0 %4712
      %4714 = vrot.lane.b32.xlu0 %v4634, 64
      %v4715 = vpop.permute.xlu0 %4714
      %4716 = vrot.lane.b32.xlu0 %v4635, 64
      %v4717 = vpop.permute.xlu0 %4716
      %4718 = vrot.lane.b32.xlu0 %v4636, 64
      %v4719 = vpop.permute.xlu0 %4718
      %4720 = vrot.lane.b32.xlu0 %v4637, 64
      %v4721 = vpop.permute.xlu0 %4720
      %4722 = vrot.lane.b32.xlu0 %v4638, 64
      %v4723 = vpop.permute.xlu0 %4722
      %4724 = vrot.lane.b32.xlu0 %v4639, 64
      %v4725 = vpop.permute.xlu0 %4724
      %4726 = vrot.lane.b32.xlu0 %v4640, 64
      %v4727 = vpop.permute.xlu0 %4726
      %4728 = vrot.lane.b32.xlu0 %v4641, 64
      %v4729 = vpop.permute.xlu0 %4728
      %4730 = vrot.lane.b32.xlu0 %v4642, 64
      %v4731 = vpop.permute.xlu0 %4730
      %4732 = vrot.lane.b32.xlu0 %v4643, 64
      %v4733 = vpop.permute.xlu0 %4732
      %4734 = vrot.lane.b32.xlu0 %v4644, 64
      %v4735 = vpop.permute.xlu0 %4734
      %4736 = vrot.lane.b32.xlu0 %v4645, 64
      %v4737 = vpop.permute.xlu0 %4736
      %4738 = vrot.lane.b32.xlu0 %v4646, 64
      %v4739 = vpop.permute.xlu0 %4738
      %4740 = vrot.lane.b32.xlu0 %v4647, 64
      %v4741 = vpop.permute.xlu0 %4740
      %4742 = vrot.lane.b32.xlu0 %v4648, 64
      %v4743 = vpop.permute.xlu0 %4742
      %4744 = vrot.lane.b32.xlu0 %v4649, 64
      %v4745 = vpop.permute.xlu0 %4744
      %4778 = vst.msk [vmem:[#allocation3] sm:$0xff] %vm817, %v4683
      %4779 = vst.msk [vmem:[#allocation3 + $0x18] sm:$0xff] %vm817, %v4685
      %4780 = vst.msk [vmem:[#allocation3 + $0x30] sm:$0xff] %vm817, %v4687
      %4781 = vst.msk [vmem:[#allocation3 + $0x48] sm:$0xff] %vm817, %v4689
      %4782 = vst.msk [vmem:[#allocation3 + $0x60] sm:$0xff] %vm817, %v4691
      %4783 = vst.msk [vmem:[#allocation3 + $0x78] sm:$0xff] %vm817, %v4693
      %4784 = vst.msk [vmem:[#allocation3 + $0x90] sm:$0xff] %vm817, %v4695
      %4785 = vst.msk [vmem:[#allocation3 + $0xa8] sm:$0xff] %vm817, %v4697
      %4786 = vst.msk [vmem:[#allocation3 + $0xc0] sm:$0xff] %vm817, %v4699
      %4787 = vst.msk [vmem:[#allocation3 + $0xd8] sm:$0xff] %vm817, %v4701
      %4788 = vst.msk [vmem:[#allocation3 + $0xf0] sm:$0xff] %vm817, %v4703
      %4789 = vst.msk [vmem:[#allocation3 + $0x108] sm:$0xff] %vm817, %v4705
      %4790 = vst.msk [vmem:[#allocation3 + $0x120] sm:$0xff] %vm817, %v4707
      %4791 = vst.msk [vmem:[#allocation3 + $0x138] sm:$0xff] %vm817, %v4709
      %4792 = vst.msk [vmem:[#allocation3 + $0x150] sm:$0xff] %vm817, %v4711
      %4793 = vst.msk [vmem:[#allocation3 + $0x168] sm:$0xff] %vm817, %v4713
      %4794 = vst.msk [vmem:[#allocation3 + $0x180] sm:$0xff] %vm817, %v4715
      %4795 = vst.msk [vmem:[#allocation3 + $0x198] sm:$0xff] %vm817, %v4717
      %4796 = vst.msk [vmem:[#allocation3 + $0x1b0] sm:$0xff] %vm817, %v4719
      %4797 = vst.msk [vmem:[#allocation3 + $0x1c8] sm:$0xff] %vm817, %v4721
      %4798 = vst.msk [vmem:[#allocation3 + $0x1e0] sm:$0xff] %vm817, %v4723
      %4799 = vst.msk [vmem:[#allocation3 + $0x1f8] sm:$0xff] %vm817, %v4725
      %4800 = vst.msk [vmem:[#allocation3 + $0x210] sm:$0xff] %vm817, %v4727
      %4801 = vst.msk [vmem:[#allocation3 + $0x228] sm:$0xff] %vm817, %v4729
      %4802 = vst.msk [vmem:[#allocation3 + $0x240] sm:$0xff] %vm817, %v4731
      %4803 = vst.msk [vmem:[#allocation3 + $0x258] sm:$0xff] %vm817, %v4733
      %4804 = vst.msk [vmem:[#allocation3 + $0x270] sm:$0xff] %vm817, %v4735
      %4805 = vst.msk [vmem:[#allocation3 + $0x288] sm:$0xff] %vm817, %v4737
      %4806 = vst.msk [vmem:[#allocation3 + $0x2a0] sm:$0xff] %vm817, %v4739
      %4807 = vst.msk [vmem:[#allocation3 + $0x2b8] sm:$0xff] %vm817, %v4741
      %4808 = vst.msk [vmem:[#allocation3 + $0x2d0] sm:$0xff] %vm817, %v4743
      %4809 = vst.msk [vmem:[#allocation3 + $0x2e8] sm:$0xff] %vm817, %v4745
      %v4810 = vld [vmem:[%s367] sm:$0xff]
      %v4811 = vld [vmem:[%s367 + $0x8] sm:$0xff]
      %v4812 = vld [vmem:[%s367 + $0x18] sm:$0xff]
      %v4813 = vld [vmem:[%s367 + $0x20] sm:$0xff]
      %v4814 = vld [vmem:[%s367 + $0x30] sm:$0xff]
      %v4815 = vld [vmem:[%s367 + $0x38] sm:$0xff]
      %v4816 = vld [vmem:[%s367 + $0x48] sm:$0xff]
      %v4817 = vld [vmem:[%s367 + $0x50] sm:$0xff]
      %v4818 = vld [vmem:[%s367 + $0x60] sm:$0xff]
      %v4819 = vld [vmem:[%s367 + $0x68] sm:$0xff]
      %v4820 = vld [vmem:[%s367 + $0x78] sm:$0xff]
      %v4821 = vld [vmem:[%s367 + $0x80] sm:$0xff]
      %v4822 = vld [vmem:[%s367 + $0x90] sm:$0xff]
      %v4823 = vld [vmem:[%s367 + $0x98] sm:$0xff]
      %v4824 = vld [vmem:[%s367 + $0xa8] sm:$0xff]
      %v4825 = vld [vmem:[%s367 + $0xb0] sm:$0xff]
      %v4826 = vld [vmem:[%s367 + $0xc0] sm:$0xff]
      %v4827 = vld [vmem:[%s367 + $0xc8] sm:$0xff]
      %v4828 = vld [vmem:[%s367 + $0xd8] sm:$0xff]
      %v4829 = vld [vmem:[%s367 + $0xe0] sm:$0xff]
      %v4830 = vld [vmem:[%s367 + $0xf0] sm:$0xff]
      %v4831 = vld [vmem:[%s367 + $0xf8] sm:$0xff]
      %v4832 = vld [vmem:[%s367 + $0x108] sm:$0xff]
      %v4833 = vld [vmem:[%s367 + $0x110] sm:$0xff]
      %v4834 = vld [vmem:[%s367 + $0x120] sm:$0xff]
      %v4835 = vld [vmem:[%s367 + $0x128] sm:$0xff]
      %v4836 = vld [vmem:[%s367 + $0x138] sm:$0xff]
      %v4837 = vld [vmem:[%s367 + $0x140] sm:$0xff]
      %v4838 = vld [vmem:[%s367 + $0x150] sm:$0xff]
      %v4839 = vld [vmem:[%s367 + $0x158] sm:$0xff]
      %v4840 = vld [vmem:[%s367 + $0x168] sm:$0xff]
      %v4841 = vld [vmem:[%s367 + $0x170] sm:$0xff]
      %4874 = vrot.lane.b32.xlu0 %v4810, 96
      %v4875 = vpop.permute.xlu0 %4874
      %4876 = vrot.lane.b32.xlu0 %v4811, 96
      %v4877 = vpop.permute.xlu0 %4876
      %4878 = vrot.lane.b32.xlu0 %v4812, 96
      %v4879 = vpop.permute.xlu0 %4878
      %4880 = vrot.lane.b32.xlu0 %v4813, 96
      %v4881 = vpop.permute.xlu0 %4880
      %4882 = vrot.lane.b32.xlu0 %v4814, 96
      %v4883 = vpop.permute.xlu0 %4882
      %4884 = vrot.lane.b32.xlu0 %v4815, 96
      %v4885 = vpop.permute.xlu0 %4884
      %4886 = vrot.lane.b32.xlu0 %v4816, 96
      %v4887 = vpop.permute.xlu0 %4886
      %4888 = vrot.lane.b32.xlu0 %v4817, 96
      %v4889 = vpop.permute.xlu0 %4888
      %4890 = vrot.lane.b32.xlu0 %v4818, 96
      %v4891 = vpop.permute.xlu0 %4890
      %4892 = vrot.lane.b32.xlu0 %v4819, 96
      %v4893 = vpop.permute.xlu0 %4892
      %4894 = vrot.lane.b32.xlu0 %v4820, 96
      %v4895 = vpop.permute.xlu0 %4894
      %4896 = vrot.lane.b32.xlu0 %v4821, 96
      %v4897 = vpop.permute.xlu0 %4896
      %4898 = vrot.lane.b32.xlu0 %v4822, 96
      %v4899 = vpop.permute.xlu0 %4898
      %4900 = vrot.lane.b32.xlu0 %v4823, 96
      %v4901 = vpop.permute.xlu0 %4900
      %4902 = vrot.lane.b32.xlu0 %v4824, 96
      %v4903 = vpop.permute.xlu0 %4902
      %4904 = vrot.lane.b32.xlu0 %v4825, 96
      %v4905 = vpop.permute.xlu0 %4904
      %4906 = vrot.lane.b32.xlu0 %v4826, 96
      %v4907 = vpop.permute.xlu0 %4906
      %4908 = vrot.lane.b32.xlu0 %v4827, 96
      %v4909 = vpop.permute.xlu0 %4908
      %4910 = vrot.lane.b32.xlu0 %v4828, 96
      %v4911 = vpop.permute.xlu0 %4910
      %4912 = vrot.lane.b32.xlu0 %v4829, 96
      %v4913 = vpop.permute.xlu0 %4912
      %4914 = vrot.lane.b32.xlu0 %v4830, 96
      %v4915 = vpop.permute.xlu0 %4914
      %4916 = vrot.lane.b32.xlu0 %v4831, 96
      %v4917 = vpop.permute.xlu0 %4916
      %4918 = vrot.lane.b32.xlu0 %v4832, 96
      %v4919 = vpop.permute.xlu0 %4918
      %4920 = vrot.lane.b32.xlu0 %v4833, 96
      %v4921 = vpop.permute.xlu0 %4920
      %4922 = vrot.lane.b32.xlu0 %v4834, 96
      %v4923 = vpop.permute.xlu0 %4922
      %4924 = vrot.lane.b32.xlu0 %v4835, 96
      %v4925 = vpop.permute.xlu0 %4924
      %4926 = vrot.lane.b32.xlu0 %v4836, 96
      %v4927 = vpop.permute.xlu0 %4926
      %4928 = vrot.lane.b32.xlu0 %v4837, 96
      %v4929 = vpop.permute.xlu0 %4928
      %4930 = vrot.lane.b32.xlu0 %v4838, 96
      %v4931 = vpop.permute.xlu0 %4930
      %4932 = vrot.lane.b32.xlu0 %v4839, 96
      %v4933 = vpop.permute.xlu0 %4932
      %4934 = vrot.lane.b32.xlu0 %v4840, 96
      %v4935 = vpop.permute.xlu0 %4934
      %4936 = vrot.lane.b32.xlu0 %v4841, 96
      %v4937 = vpop.permute.xlu0 %4936
      %4970 = vst.msk [vmem:[#allocation3] sm:$0xff] %vm1010, %v4875
      %4971 = vst.msk [vmem:[#allocation3 + $0x18] sm:$0xff] %vm1010, %v4877
      %4972 = vst.msk [vmem:[#allocation3 + $0x30] sm:$0xff] %vm1010, %v4879
      %4973 = vst.msk [vmem:[#allocation3 + $0x48] sm:$0xff] %vm1010, %v4881
      %4974 = vst.msk [vmem:[#allocation3 + $0x60] sm:$0xff] %vm1010, %v4883
      %4975 = vst.msk [vmem:[#allocation3 + $0x78] sm:$0xff] %vm1010, %v4885
      %4976 = vst.msk [vmem:[#allocation3 + $0x90] sm:$0xff] %vm1010, %v4887
      %4977 = vst.msk [vmem:[#allocation3 + $0xa8] sm:$0xff] %vm1010, %v4889
      %4978 = vst.msk [vmem:[#allocation3 + $0xc0] sm:$0xff] %vm1010, %v4891
      %4979 = vst.msk [vmem:[#allocation3 + $0xd8] sm:$0xff] %vm1010, %v4893
      %4980 = vst.msk [vmem:[#allocation3 + $0xf0] sm:$0xff] %vm1010, %v4895
      %4981 = vst.msk [vmem:[#allocation3 + $0x108] sm:$0xff] %vm1010, %v4897
      %4982 = vst.msk [vmem:[#allocation3 + $0x120] sm:$0xff] %vm1010, %v4899
      %4983 = vst.msk [vmem:[#allocation3 + $0x138] sm:$0xff] %vm1010, %v4901
      %4984 = vst.msk [vmem:[#allocation3 + $0x150] sm:$0xff] %vm1010, %v4903
      %4985 = vst.msk [vmem:[#allocation3 + $0x168] sm:$0xff] %vm1010, %v4905
      %4986 = vst.msk [vmem:[#allocation3 + $0x180] sm:$0xff] %vm1010, %v4907
      %4987 = vst.msk [vmem:[#allocation3 + $0x198] sm:$0xff] %vm1010, %v4909
      %4988 = vst.msk [vmem:[#allocation3 + $0x1b0] sm:$0xff] %vm1010, %v4911
      %4989 = vst.msk [vmem:[#allocation3 + $0x1c8] sm:$0xff] %vm1010, %v4913
      %4990 = vst.msk [vmem:[#allocation3 + $0x1e0] sm:$0xff] %vm1010, %v4915
      %4991 = vst.msk [vmem:[#allocation3 + $0x1f8] sm:$0xff] %vm1010, %v4917
      %4992 = vst.msk [vmem:[#allocation3 + $0x210] sm:$0xff] %vm1010, %v4919
      %4993 = vst.msk [vmem:[#allocation3 + $0x228] sm:$0xff] %vm1010, %v4921
      %4994 = vst.msk [vmem:[#allocation3 + $0x240] sm:$0xff] %vm1010, %v4923
      %4995 = vst.msk [vmem:[#allocation3 + $0x258] sm:$0xff] %vm1010, %v4925
      %4996 = vst.msk [vmem:[#allocation3 + $0x270] sm:$0xff] %vm1010, %v4927
      %4997 = vst.msk [vmem:[#allocation3 + $0x288] sm:$0xff] %vm1010, %v4929
      %4998 = vst.msk [vmem:[#allocation3 + $0x2a0] sm:$0xff] %vm1010, %v4931
      %4999 = vst.msk [vmem:[#allocation3 + $0x2b8] sm:$0xff] %vm1010, %v4933
      %5000 = vst.msk [vmem:[#allocation3 + $0x2d0] sm:$0xff] %vm1010, %v4935
      %5001 = vst.msk [vmem:[#allocation3 + $0x2e8] sm:$0xff] %vm1010, %v4937
      %v5002 = vld [vmem:[%s367 + $0x1] sm:$0xff]
      %v5003 = vld [vmem:[%s367 + $0x9] sm:$0xff]
      %v5004 = vld [vmem:[%s367 + $0x19] sm:$0xff]
      %v5005 = vld [vmem:[%s367 + $0x21] sm:$0xff]
      %v5006 = vld [vmem:[%s367 + $0x31] sm:$0xff]
      %v5007 = vld [vmem:[%s367 + $0x39] sm:$0xff]
      %v5008 = vld [vmem:[%s367 + $0x49] sm:$0xff]
      %v5009 = vld [vmem:[%s367 + $0x51] sm:$0xff]
      %v5010 = vld [vmem:[%s367 + $0x61] sm:$0xff]
      %v5011 = vld [vmem:[%s367 + $0x69] sm:$0xff]
      %v5012 = vld [vmem:[%s367 + $0x79] sm:$0xff]
      %v5013 = vld [vmem:[%s367 + $0x81] sm:$0xff]
      %v5014 = vld [vmem:[%s367 + $0x91] sm:$0xff]
      %v5015 = vld [vmem:[%s367 + $0x99] sm:$0xff]
      %v5016 = vld [vmem:[%s367 + $0xa9] sm:$0xff]
      %v5017 = vld [vmem:[%s367 + $0xb1] sm:$0xff]
      %v5018 = vld [vmem:[%s367 + $0xc1] sm:$0xff]
      %v5019 = vld [vmem:[%s367 + $0xc9] sm:$0xff]
      %v5020 = vld [vmem:[%s367 + $0xd9] sm:$0xff]
      %v5021 = vld [vmem:[%s367 + $0xe1] sm:$0xff]
      %v5022 = vld [vmem:[%s367 + $0xf1] sm:$0xff]
      %v5023 = vld [vmem:[%s367 + $0xf9] sm:$0xff]
      %v5024 = vld [vmem:[%s367 + $0x109] sm:$0xff]
      %v5025 = vld [vmem:[%s367 + $0x111] sm:$0xff]
      %v5026 = vld [vmem:[%s367 + $0x121] sm:$0xff]
      %v5027 = vld [vmem:[%s367 + $0x129] sm:$0xff]
      %v5028 = vld [vmem:[%s367 + $0x139] sm:$0xff]
      %v5029 = vld [vmem:[%s367 + $0x141] sm:$0xff]
      %v5030 = vld [vmem:[%s367 + $0x151] sm:$0xff]
      %v5031 = vld [vmem:[%s367 + $0x159] sm:$0xff]
      %v5032 = vld [vmem:[%s367 + $0x169] sm:$0xff]
      %v5033 = vld [vmem:[%s367 + $0x171] sm:$0xff]
      %5034 = vst.msk [vmem:[#allocation3 + $0x8] sm:$0xff] %vm279, %v5002
      %5035 = vst.msk [vmem:[#allocation3 + $0x20] sm:$0xff] %vm279, %v5003
      %5036 = vst.msk [vmem:[#allocation3 + $0x38] sm:$0xff] %vm279, %v5004
      %5037 = vst.msk [vmem:[#allocation3 + $0x50] sm:$0xff] %vm279, %v5005
      %5038 = vst.msk [vmem:[#allocation3 + $0x68] sm:$0xff] %vm279, %v5006
      %5039 = vst.msk [vmem:[#allocation3 + $0x80] sm:$0xff] %vm279, %v5007
      %5040 = vst.msk [vmem:[#allocation3 + $0x98] sm:$0xff] %vm279, %v5008
      %5041 = vst.msk [vmem:[#allocation3 + $0xb0] sm:$0xff] %vm279, %v5009
      %5042 = vst.msk [vmem:[#allocation3 + $0xc8] sm:$0xff] %vm279, %v5010
      %5043 = vst.msk [vmem:[#allocation3 + $0xe0] sm:$0xff] %vm279, %v5011
      %5044 = vst.msk [vmem:[#allocation3 + $0xf8] sm:$0xff] %vm279, %v5012
      %5045 = vst.msk [vmem:[#allocation3 + $0x110] sm:$0xff] %vm279, %v5013
      %5046 = vst.msk [vmem:[#allocation3 + $0x128] sm:$0xff] %vm279, %v5014
      %5047 = vst.msk [vmem:[#allocation3 + $0x140] sm:$0xff] %vm279, %v5015
      %5048 = vst.msk [vmem:[#allocation3 + $0x158] sm:$0xff] %vm279, %v5016
      %5049 = vst.msk [vmem:[#allocation3 + $0x170] sm:$0xff] %vm279, %v5017
      %5050 = vst.msk [vmem:[#allocation3 + $0x188] sm:$0xff] %vm279, %v5018
      %5051 = vst.msk [vmem:[#allocation3 + $0x1a0] sm:$0xff] %vm279, %v5019
      %5052 = vst.msk [vmem:[#allocation3 + $0x1b8] sm:$0xff] %vm279, %v5020
      %5053 = vst.msk [vmem:[#allocation3 + $0x1d0] sm:$0xff] %vm279, %v5021
      %5054 = vst.msk [vmem:[#allocation3 + $0x1e8] sm:$0xff] %vm279, %v5022
      %5055 = vst.msk [vmem:[#allocation3 + $0x200] sm:$0xff] %vm279, %v5023
      %5056 = vst.msk [vmem:[#allocation3 + $0x218] sm:$0xff] %vm279, %v5024
      %5057 = vst.msk [vmem:[#allocation3 + $0x230] sm:$0xff] %vm279, %v5025
      %5058 = vst.msk [vmem:[#allocation3 + $0x248] sm:$0xff] %vm279, %v5026
      %5059 = vst.msk [vmem:[#allocation3 + $0x260] sm:$0xff] %vm279, %v5027
      %5060 = vst.msk [vmem:[#allocation3 + $0x278] sm:$0xff] %vm279, %v5028
      %5061 = vst.msk [vmem:[#allocation3 + $0x290] sm:$0xff] %vm279, %v5029
      %5062 = vst.msk [vmem:[#allocation3 + $0x2a8] sm:$0xff] %vm279, %v5030
      %5063 = vst.msk [vmem:[#allocation3 + $0x2c0] sm:$0xff] %vm279, %v5031
      %5064 = vst.msk [vmem:[#allocation3 + $0x2d8] sm:$0xff] %vm279, %v5032
      %5065 = vst.msk [vmem:[#allocation3 + $0x2f0] sm:$0xff] %vm279, %v5033
      %v5066 = vld [vmem:[%s367 + $0x2] sm:$0xff]
      %v5067 = vld [vmem:[%s367 + $0xa] sm:$0xff]
      %v5068 = vld [vmem:[%s367 + $0x1a] sm:$0xff]
      %v5069 = vld [vmem:[%s367 + $0x22] sm:$0xff]
      %v5070 = vld [vmem:[%s367 + $0x32] sm:$0xff]
      %v5071 = vld [vmem:[%s367 + $0x3a] sm:$0xff]
      %v5072 = vld [vmem:[%s367 + $0x4a] sm:$0xff]
      %v5073 = vld [vmem:[%s367 + $0x52] sm:$0xff]
      %v5074 = vld [vmem:[%s367 + $0x62] sm:$0xff]
      %v5075 = vld [vmem:[%s367 + $0x6a] sm:$0xff]
      %v5076 = vld [vmem:[%s367 + $0x7a] sm:$0xff]
      %v5077 = vld [vmem:[%s367 + $0x82] sm:$0xff]
      %v5078 = vld [vmem:[%s367 + $0x92] sm:$0xff]
      %v5079 = vld [vmem:[%s367 + $0x9a] sm:$0xff]
      %v5080 = vld [vmem:[%s367 + $0xaa] sm:$0xff]
      %v5081 = vld [vmem:[%s367 + $0xb2] sm:$0xff]
      %v5082 = vld [vmem:[%s367 + $0xc2] sm:$0xff]
      %v5083 = vld [vmem:[%s367 + $0xca] sm:$0xff]
      %v5084 = vld [vmem:[%s367 + $0xda] sm:$0xff]
      %v5085 = vld [vmem:[%s367 + $0xe2] sm:$0xff]
      %v5086 = vld [vmem:[%s367 + $0xf2] sm:$0xff]
      %v5087 = vld [vmem:[%s367 + $0xfa] sm:$0xff]
      %v5088 = vld [vmem:[%s367 + $0x10a] sm:$0xff]
      %v5089 = vld [vmem:[%s367 + $0x112] sm:$0xff]
      %v5090 = vld [vmem:[%s367 + $0x122] sm:$0xff]
      %v5091 = vld [vmem:[%s367 + $0x12a] sm:$0xff]
      %v5092 = vld [vmem:[%s367 + $0x13a] sm:$0xff]
      %v5093 = vld [vmem:[%s367 + $0x142] sm:$0xff]
      %v5094 = vld [vmem:[%s367 + $0x152] sm:$0xff]
      %v5095 = vld [vmem:[%s367 + $0x15a] sm:$0xff]
      %v5096 = vld [vmem:[%s367 + $0x16a] sm:$0xff]
      %v5097 = vld [vmem:[%s367 + $0x172] sm:$0xff]
      %5130 = vrot.lane.b32.xlu0 %v5066, 32
      %v5131 = vpop.permute.xlu0 %5130
      %5132 = vrot.lane.b32.xlu0 %v5067, 32
      %v5133 = vpop.permute.xlu0 %5132
      %5134 = vrot.lane.b32.xlu0 %v5068, 32
      %v5135 = vpop.permute.xlu0 %5134
      %5136 = vrot.lane.b32.xlu0 %v5069, 32
      %v5137 = vpop.permute.xlu0 %5136
      %5138 = vrot.lane.b32.xlu0 %v5070, 32
      %v5139 = vpop.permute.xlu0 %5138
      %5140 = vrot.lane.b32.xlu0 %v5071, 32
      %v5141 = vpop.permute.xlu0 %5140
      %5142 = vrot.lane.b32.xlu0 %v5072, 32
      %v5143 = vpop.permute.xlu0 %5142
      %5144 = vrot.lane.b32.xlu0 %v5073, 32
      %v5145 = vpop.permute.xlu0 %5144
      %5146 = vrot.lane.b32.xlu0 %v5074, 32
      %v5147 = vpop.permute.xlu0 %5146
      %5148 = vrot.lane.b32.xlu0 %v5075, 32
      %v5149 = vpop.permute.xlu0 %5148
      %5150 = vrot.lane.b32.xlu0 %v5076, 32
      %v5151 = vpop.permute.xlu0 %5150
      %5152 = vrot.lane.b32.xlu0 %v5077, 32
      %v5153 = vpop.permute.xlu0 %5152
      %5154 = vrot.lane.b32.xlu0 %v5078, 32
      %v5155 = vpop.permute.xlu0 %5154
      %5156 = vrot.lane.b32.xlu0 %v5079, 32
      %v5157 = vpop.permute.xlu0 %5156
      %5158 = vrot.lane.b32.xlu0 %v5080, 32
      %v5159 = vpop.permute.xlu0 %5158
      %5160 = vrot.lane.b32.xlu0 %v5081, 32
      %v5161 = vpop.permute.xlu0 %5160
      %5162 = vrot.lane.b32.xlu0 %v5082, 32
      %v5163 = vpop.permute.xlu0 %5162
      %5164 = vrot.lane.b32.xlu0 %v5083, 32
      %v5165 = vpop.permute.xlu0 %5164
      %5166 = vrot.lane.b32.xlu0 %v5084, 32
      %v5167 = vpop.permute.xlu0 %5166
      %5168 = vrot.lane.b32.xlu0 %v5085, 32
      %v5169 = vpop.permute.xlu0 %5168
      %5170 = vrot.lane.b32.xlu0 %v5086, 32
      %v5171 = vpop.permute.xlu0 %5170
      %5172 = vrot.lane.b32.xlu0 %v5087, 32
      %v5173 = vpop.permute.xlu0 %5172
      %5174 = vrot.lane.b32.xlu0 %v5088, 32
      %v5175 = vpop.permute.xlu0 %5174
      %5176 = vrot.lane.b32.xlu0 %v5089, 32
      %v5177 = vpop.permute.xlu0 %5176
      %5178 = vrot.lane.b32.xlu0 %v5090, 32
      %v5179 = vpop.permute.xlu0 %5178
      %5180 = vrot.lane.b32.xlu0 %v5091, 32
      %v5181 = vpop.permute.xlu0 %5180
      %5182 = vrot.lane.b32.xlu0 %v5092, 32
      %v5183 = vpop.permute.xlu0 %5182
      %5184 = vrot.lane.b32.xlu0 %v5093, 32
      %v5185 = vpop.permute.xlu0 %5184
      %5186 = vrot.lane.b32.xlu0 %v5094, 32
      %v5187 = vpop.permute.xlu0 %5186
      %5188 = vrot.lane.b32.xlu0 %v5095, 32
      %v5189 = vpop.permute.xlu0 %5188
      %5190 = vrot.lane.b32.xlu0 %v5096, 32
      %v5191 = vpop.permute.xlu0 %5190
      %5192 = vrot.lane.b32.xlu0 %v5097, 32
      %v5193 = vpop.permute.xlu0 %5192
      %5226 = vst.msk [vmem:[#allocation3 + $0x8] sm:$0xff] %vm624, %v5131
      %5227 = vst.msk [vmem:[#allocation3 + $0x20] sm:$0xff] %vm624, %v5133
      %5228 = vst.msk [vmem:[#allocation3 + $0x38] sm:$0xff] %vm624, %v5135
      %5229 = vst.msk [vmem:[#allocation3 + $0x50] sm:$0xff] %vm624, %v5137
      %5230 = vst.msk [vmem:[#allocation3 + $0x68] sm:$0xff] %vm624, %v5139
      %5231 = vst.msk [vmem:[#allocation3 + $0x80] sm:$0xff] %vm624, %v5141
      %5232 = vst.msk [vmem:[#allocation3 + $0x98] sm:$0xff] %vm624, %v5143
      %5233 = vst.msk [vmem:[#allocation3 + $0xb0] sm:$0xff] %vm624, %v5145
      %5234 = vst.msk [vmem:[#allocation3 + $0xc8] sm:$0xff] %vm624, %v5147
      %5235 = vst.msk [vmem:[#allocation3 + $0xe0] sm:$0xff] %vm624, %v5149
      %5236 = vst.msk [vmem:[#allocation3 + $0xf8] sm:$0xff] %vm624, %v5151
      %5237 = vst.msk [vmem:[#allocation3 + $0x110] sm:$0xff] %vm624, %v5153
      %5238 = vst.msk [vmem:[#allocation3 + $0x128] sm:$0xff] %vm624, %v5155
      %5239 = vst.msk [vmem:[#allocation3 + $0x140] sm:$0xff] %vm624, %v5157
      %5240 = vst.msk [vmem:[#allocation3 + $0x158] sm:$0xff] %vm624, %v5159
      %5241 = vst.msk [vmem:[#allocation3 + $0x170] sm:$0xff] %vm624, %v5161
      %5242 = vst.msk [vmem:[#allocation3 + $0x188] sm:$0xff] %vm624, %v5163
      %5243 = vst.msk [vmem:[#allocation3 + $0x1a0] sm:$0xff] %vm624, %v5165
      %5244 = vst.msk [vmem:[#allocation3 + $0x1b8] sm:$0xff] %vm624, %v5167
      %5245 = vst.msk [vmem:[#allocation3 + $0x1d0] sm:$0xff] %vm624, %v5169
      %5246 = vst.msk [vmem:[#allocation3 + $0x1e8] sm:$0xff] %vm624, %v5171
      %5247 = vst.msk [vmem:[#allocation3 + $0x200] sm:$0xff] %vm624, %v5173
      %5248 = vst.msk [vmem:[#allocation3 + $0x218] sm:$0xff] %vm624, %v5175
      %5249 = vst.msk [vmem:[#allocation3 + $0x230] sm:$0xff] %vm624, %v5177
      %5250 = vst.msk [vmem:[#allocation3 + $0x248] sm:$0xff] %vm624, %v5179
      %5251 = vst.msk [vmem:[#allocation3 + $0x260] sm:$0xff] %vm624, %v5181
      %5252 = vst.msk [vmem:[#allocation3 + $0x278] sm:$0xff] %vm624, %v5183
      %5253 = vst.msk [vmem:[#allocation3 + $0x290] sm:$0xff] %vm624, %v5185
      %5254 = vst.msk [vmem:[#allocation3 + $0x2a8] sm:$0xff] %vm624, %v5187
      %5255 = vst.msk [vmem:[#allocation3 + $0x2c0] sm:$0xff] %vm624, %v5189
      %5256 = vst.msk [vmem:[#allocation3 + $0x2d8] sm:$0xff] %vm624, %v5191
      %5257 = vst.msk [vmem:[#allocation3 + $0x2f0] sm:$0xff] %vm624, %v5193
      %v5258 = vld [vmem:[%s1299] sm:$0xff]
      %v5259 = vld [vmem:[%s1299 + $0x8] sm:$0xff]
      %v5260 = vld [vmem:[%s1299 + $0x18] sm:$0xff]
      %v5261 = vld [vmem:[%s1299 + $0x20] sm:$0xff]
      %v5262 = vld [vmem:[%s1299 + $0x30] sm:$0xff]
      %v5263 = vld [vmem:[%s1299 + $0x38] sm:$0xff]
      %v5264 = vld [vmem:[%s1299 + $0x48] sm:$0xff]
      %v5265 = vld [vmem:[%s1299 + $0x50] sm:$0xff]
      %v5266 = vld [vmem:[%s1299 + $0x60] sm:$0xff]
      %v5267 = vld [vmem:[%s1299 + $0x68] sm:$0xff]
      %v5268 = vld [vmem:[%s1299 + $0x78] sm:$0xff]
      %v5269 = vld [vmem:[%s1299 + $0x80] sm:$0xff]
      %v5270 = vld [vmem:[%s1299 + $0x90] sm:$0xff]
      %v5271 = vld [vmem:[%s1299 + $0x98] sm:$0xff]
      %v5272 = vld [vmem:[%s1299 + $0xa8] sm:$0xff]
      %v5273 = vld [vmem:[%s1299 + $0xb0] sm:$0xff]
      %v5274 = vld [vmem:[%s1299 + $0xc0] sm:$0xff]
      %v5275 = vld [vmem:[%s1299 + $0xc8] sm:$0xff]
      %v5276 = vld [vmem:[%s1299 + $0xd8] sm:$0xff]
      %v5277 = vld [vmem:[%s1299 + $0xe0] sm:$0xff]
      %v5278 = vld [vmem:[%s1299 + $0xf0] sm:$0xff]
      %v5279 = vld [vmem:[%s1299 + $0xf8] sm:$0xff]
      %v5280 = vld [vmem:[%s1299 + $0x108] sm:$0xff]
      %v5281 = vld [vmem:[%s1299 + $0x110] sm:$0xff]
      %v5282 = vld [vmem:[%s1299 + $0x120] sm:$0xff]
      %v5283 = vld [vmem:[%s1299 + $0x128] sm:$0xff]
      %v5284 = vld [vmem:[%s1299 + $0x138] sm:$0xff]
      %v5285 = vld [vmem:[%s1299 + $0x140] sm:$0xff]
      %v5286 = vld [vmem:[%s1299 + $0x150] sm:$0xff]
      %v5287 = vld [vmem:[%s1299 + $0x158] sm:$0xff]
      %v5288 = vld [vmem:[%s1299 + $0x168] sm:$0xff]
      %v5289 = vld [vmem:[%s1299 + $0x170] sm:$0xff]
      %5322 = vrot.lane.b32.xlu0 %v5258, 64
      %v5323 = vpop.permute.xlu0 %5322
      %5324 = vrot.lane.b32.xlu0 %v5259, 64
      %v5325 = vpop.permute.xlu0 %5324
      %5326 = vrot.lane.b32.xlu0 %v5260, 64
      %v5327 = vpop.permute.xlu0 %5326
      %5328 = vrot.lane.b32.xlu0 %v5261, 64
      %v5329 = vpop.permute.xlu0 %5328
      %5330 = vrot.lane.b32.xlu0 %v5262, 64
      %v5331 = vpop.permute.xlu0 %5330
      %5332 = vrot.lane.b32.xlu0 %v5263, 64
      %v5333 = vpop.permute.xlu0 %5332
      %5334 = vrot.lane.b32.xlu0 %v5264, 64
      %v5335 = vpop.permute.xlu0 %5334
      %5336 = vrot.lane.b32.xlu0 %v5265, 64
      %v5337 = vpop.permute.xlu0 %5336
      %5338 = vrot.lane.b32.xlu0 %v5266, 64
      %v5339 = vpop.permute.xlu0 %5338
      %5340 = vrot.lane.b32.xlu0 %v5267, 64
      %v5341 = vpop.permute.xlu0 %5340
      %5342 = vrot.lane.b32.xlu0 %v5268, 64
      %v5343 = vpop.permute.xlu0 %5342
      %5344 = vrot.lane.b32.xlu0 %v5269, 64
      %v5345 = vpop.permute.xlu0 %5344
      %5346 = vrot.lane.b32.xlu0 %v5270, 64
      %v5347 = vpop.permute.xlu0 %5346
      %5348 = vrot.lane.b32.xlu0 %v5271, 64
      %v5349 = vpop.permute.xlu0 %5348
      %5350 = vrot.lane.b32.xlu0 %v5272, 64
      %v5351 = vpop.permute.xlu0 %5350
      %5352 = vrot.lane.b32.xlu0 %v5273, 64
      %v5353 = vpop.permute.xlu0 %5352
      %5354 = vrot.lane.b32.xlu0 %v5274, 64
      %v5355 = vpop.permute.xlu0 %5354
      %5356 = vrot.lane.b32.xlu0 %v5275, 64
      %v5357 = vpop.permute.xlu0 %5356
      %5358 = vrot.lane.b32.xlu0 %v5276, 64
      %v5359 = vpop.permute.xlu0 %5358
      %5360 = vrot.lane.b32.xlu0 %v5277, 64
      %v5361 = vpop.permute.xlu0 %5360
      %5362 = vrot.lane.b32.xlu0 %v5278, 64
      %v5363 = vpop.permute.xlu0 %5362
      %5364 = vrot.lane.b32.xlu0 %v5279, 64
      %v5365 = vpop.permute.xlu0 %5364
      %5366 = vrot.lane.b32.xlu0 %v5280, 64
      %v5367 = vpop.permute.xlu0 %5366
      %5368 = vrot.lane.b32.xlu0 %v5281, 64
      %v5369 = vpop.permute.xlu0 %5368
      %5370 = vrot.lane.b32.xlu0 %v5282, 64
      %v5371 = vpop.permute.xlu0 %5370
      %5372 = vrot.lane.b32.xlu0 %v5283, 64
      %v5373 = vpop.permute.xlu0 %5372
      %5374 = vrot.lane.b32.xlu0 %v5284, 64
      %v5375 = vpop.permute.xlu0 %5374
      %5376 = vrot.lane.b32.xlu0 %v5285, 64
      %v5377 = vpop.permute.xlu0 %5376
      %5378 = vrot.lane.b32.xlu0 %v5286, 64
      %v5379 = vpop.permute.xlu0 %5378
      %5380 = vrot.lane.b32.xlu0 %v5287, 64
      %v5381 = vpop.permute.xlu0 %5380
      %5382 = vrot.lane.b32.xlu0 %v5288, 64
      %v5383 = vpop.permute.xlu0 %5382
      %5384 = vrot.lane.b32.xlu0 %v5289, 64
      %v5385 = vpop.permute.xlu0 %5384
      %5418 = vst.msk [vmem:[#allocation3 + $0x8] sm:$0xff] %vm817, %v5323
      %5419 = vst.msk [vmem:[#allocation3 + $0x20] sm:$0xff] %vm817, %v5325
      %5420 = vst.msk [vmem:[#allocation3 + $0x38] sm:$0xff] %vm817, %v5327
      %5421 = vst.msk [vmem:[#allocation3 + $0x50] sm:$0xff] %vm817, %v5329
      %5422 = vst.msk [vmem:[#allocation3 + $0x68] sm:$0xff] %vm817, %v5331
      %5423 = vst.msk [vmem:[#allocation3 + $0x80] sm:$0xff] %vm817, %v5333
      %5424 = vst.msk [vmem:[#allocation3 + $0x98] sm:$0xff] %vm817, %v5335
      %5425 = vst.msk [vmem:[#allocation3 + $0xb0] sm:$0xff] %vm817, %v5337
      %5426 = vst.msk [vmem:[#allocation3 + $0xc8] sm:$0xff] %vm817, %v5339
      %5427 = vst.msk [vmem:[#allocation3 + $0xe0] sm:$0xff] %vm817, %v5341
      %5428 = vst.msk [vmem:[#allocation3 + $0xf8] sm:$0xff] %vm817, %v5343
      %5429 = vst.msk [vmem:[#allocation3 + $0x110] sm:$0xff] %vm817, %v5345
      %5430 = vst.msk [vmem:[#allocation3 + $0x128] sm:$0xff] %vm817, %v5347
      %5431 = vst.msk [vmem:[#allocation3 + $0x140] sm:$0xff] %vm817, %v5349
      %5432 = vst.msk [vmem:[#allocation3 + $0x158] sm:$0xff] %vm817, %v5351
      %5433 = vst.msk [vmem:[#allocation3 + $0x170] sm:$0xff] %vm817, %v5353
      %5434 = vst.msk [vmem:[#allocation3 + $0x188] sm:$0xff] %vm817, %v5355
      %5435 = vst.msk [vmem:[#allocation3 + $0x1a0] sm:$0xff] %vm817, %v5357
      %5436 = vst.msk [vmem:[#allocation3 + $0x1b8] sm:$0xff] %vm817, %v5359
      %5437 = vst.msk [vmem:[#allocation3 + $0x1d0] sm:$0xff] %vm817, %v5361
      %5438 = vst.msk [vmem:[#allocation3 + $0x1e8] sm:$0xff] %vm817, %v5363
      %5439 = vst.msk [vmem:[#allocation3 + $0x200] sm:$0xff] %vm817, %v5365
      %5440 = vst.msk [vmem:[#allocation3 + $0x218] sm:$0xff] %vm817, %v5367
      %5441 = vst.msk [vmem:[#allocation3 + $0x230] sm:$0xff] %vm817, %v5369
      %5442 = vst.msk [vmem:[#allocation3 + $0x248] sm:$0xff] %vm817, %v5371
      %5443 = vst.msk [vmem:[#allocation3 + $0x260] sm:$0xff] %vm817, %v5373
      %5444 = vst.msk [vmem:[#allocation3 + $0x278] sm:$0xff] %vm817, %v5375
      %5445 = vst.msk [vmem:[#allocation3 + $0x290] sm:$0xff] %vm817, %v5377
      %5446 = vst.msk [vmem:[#allocation3 + $0x2a8] sm:$0xff] %vm817, %v5379
      %5447 = vst.msk [vmem:[#allocation3 + $0x2c0] sm:$0xff] %vm817, %v5381
      %5448 = vst.msk [vmem:[#allocation3 + $0x2d8] sm:$0xff] %vm817, %v5383
      %5449 = vst.msk [vmem:[#allocation3 + $0x2f0] sm:$0xff] %vm817, %v5385
      %v5450 = vld [vmem:[%s1299 + $0x1] sm:$0xff]
      %v5451 = vld [vmem:[%s1299 + $0x9] sm:$0xff]
      %v5452 = vld [vmem:[%s1299 + $0x19] sm:$0xff]
      %v5453 = vld [vmem:[%s1299 + $0x21] sm:$0xff]
      %v5454 = vld [vmem:[%s1299 + $0x31] sm:$0xff]
      %v5455 = vld [vmem:[%s1299 + $0x39] sm:$0xff]
      %v5456 = vld [vmem:[%s1299 + $0x49] sm:$0xff]
      %v5457 = vld [vmem:[%s1299 + $0x51] sm:$0xff]
      %v5458 = vld [vmem:[%s1299 + $0x61] sm:$0xff]
      %v5459 = vld [vmem:[%s1299 + $0x69] sm:$0xff]
      %v5460 = vld [vmem:[%s1299 + $0x79] sm:$0xff]
      %v5461 = vld [vmem:[%s1299 + $0x81] sm:$0xff]
      %v5462 = vld [vmem:[%s1299 + $0x91] sm:$0xff]
      %v5463 = vld [vmem:[%s1299 + $0x99] sm:$0xff]
      %v5464 = vld [vmem:[%s1299 + $0xa9] sm:$0xff]
      %v5465 = vld [vmem:[%s1299 + $0xb1] sm:$0xff]
      %v5466 = vld [vmem:[%s1299 + $0xc1] sm:$0xff]
      %v5467 = vld [vmem:[%s1299 + $0xc9] sm:$0xff]
      %v5468 = vld [vmem:[%s1299 + $0xd9] sm:$0xff]
      %v5469 = vld [vmem:[%s1299 + $0xe1] sm:$0xff]
      %v5470 = vld [vmem:[%s1299 + $0xf1] sm:$0xff]
      %v5471 = vld [vmem:[%s1299 + $0xf9] sm:$0xff]
      %v5472 = vld [vmem:[%s1299 + $0x109] sm:$0xff]
      %v5473 = vld [vmem:[%s1299 + $0x111] sm:$0xff]
      %v5474 = vld [vmem:[%s1299 + $0x121] sm:$0xff]
      %v5475 = vld [vmem:[%s1299 + $0x129] sm:$0xff]
      %v5476 = vld [vmem:[%s1299 + $0x139] sm:$0xff]
      %v5477 = vld [vmem:[%s1299 + $0x141] sm:$0xff]
      %v5478 = vld [vmem:[%s1299 + $0x151] sm:$0xff]
      %v5479 = vld [vmem:[%s1299 + $0x159] sm:$0xff]
      %v5480 = vld [vmem:[%s1299 + $0x169] sm:$0xff]
      %v5481 = vld [vmem:[%s1299 + $0x171] sm:$0xff]
      %5514 = vrot.lane.b32.xlu0 %v5450, 96
      %v5515 = vpop.permute.xlu0 %5514
      %5516 = vrot.lane.b32.xlu0 %v5451, 96
      %v5517 = vpop.permute.xlu0 %5516
      %5518 = vrot.lane.b32.xlu0 %v5452, 96
      %v5519 = vpop.permute.xlu0 %5518
      %5520 = vrot.lane.b32.xlu0 %v5453, 96
      %v5521 = vpop.permute.xlu0 %5520
      %5522 = vrot.lane.b32.xlu0 %v5454, 96
      %v5523 = vpop.permute.xlu0 %5522
      %5524 = vrot.lane.b32.xlu0 %v5455, 96
      %v5525 = vpop.permute.xlu0 %5524
      %5526 = vrot.lane.b32.xlu0 %v5456, 96
      %v5527 = vpop.permute.xlu0 %5526
      %5528 = vrot.lane.b32.xlu0 %v5457, 96
      %v5529 = vpop.permute.xlu0 %5528
      %5530 = vrot.lane.b32.xlu0 %v5458, 96
      %v5531 = vpop.permute.xlu0 %5530
      %5532 = vrot.lane.b32.xlu0 %v5459, 96
      %v5533 = vpop.permute.xlu0 %5532
      %5534 = vrot.lane.b32.xlu0 %v5460, 96
      %v5535 = vpop.permute.xlu0 %5534
      %5536 = vrot.lane.b32.xlu0 %v5461, 96
      %v5537 = vpop.permute.xlu0 %5536
      %5538 = vrot.lane.b32.xlu0 %v5462, 96
      %v5539 = vpop.permute.xlu0 %5538
      %5540 = vrot.lane.b32.xlu0 %v5463, 96
      %v5541 = vpop.permute.xlu0 %5540
      %5542 = vrot.lane.b32.xlu0 %v5464, 96
      %v5543 = vpop.permute.xlu0 %5542
      %5544 = vrot.lane.b32.xlu0 %v5465, 96
      %v5545 = vpop.permute.xlu0 %5544
      %5546 = vrot.lane.b32.xlu0 %v5466, 96
      %v5547 = vpop.permute.xlu0 %5546
      %5548 = vrot.lane.b32.xlu0 %v5467, 96
      %v5549 = vpop.permute.xlu0 %5548
      %5550 = vrot.lane.b32.xlu0 %v5468, 96
      %v5551 = vpop.permute.xlu0 %5550
      %5552 = vrot.lane.b32.xlu0 %v5469, 96
      %v5553 = vpop.permute.xlu0 %5552
      %5554 = vrot.lane.b32.xlu0 %v5470, 96
      %v5555 = vpop.permute.xlu0 %5554
      %5556 = vrot.lane.b32.xlu0 %v5471, 96
      %v5557 = vpop.permute.xlu0 %5556
      %5558 = vrot.lane.b32.xlu0 %v5472, 96
      %v5559 = vpop.permute.xlu0 %5558
      %5560 = vrot.lane.b32.xlu0 %v5473, 96
      %v5561 = vpop.permute.xlu0 %5560
      %5562 = vrot.lane.b32.xlu0 %v5474, 96
      %v5563 = vpop.permute.xlu0 %5562
      %5564 = vrot.lane.b32.xlu0 %v5475, 96
      %v5565 = vpop.permute.xlu0 %5564
      %5566 = vrot.lane.b32.xlu0 %v5476, 96
      %v5567 = vpop.permute.xlu0 %5566
      %5568 = vrot.lane.b32.xlu0 %v5477, 96
      %v5569 = vpop.permute.xlu0 %5568
      %5570 = vrot.lane.b32.xlu0 %v5478, 96
      %v5571 = vpop.permute.xlu0 %5570
      %5572 = vrot.lane.b32.xlu0 %v5479, 96
      %v5573 = vpop.permute.xlu0 %5572
      %5574 = vrot.lane.b32.xlu0 %v5480, 96
      %v5575 = vpop.permute.xlu0 %5574
      %5576 = vrot.lane.b32.xlu0 %v5481, 96
      %v5577 = vpop.permute.xlu0 %5576
      %5610 = vst.msk [vmem:[#allocation3 + $0x8] sm:$0xff] %vm1010, %v5515
      %5611 = vst.msk [vmem:[#allocation3 + $0x20] sm:$0xff] %vm1010, %v5517
      %5612 = vst.msk [vmem:[#allocation3 + $0x38] sm:$0xff] %vm1010, %v5519
      %5613 = vst.msk [vmem:[#allocation3 + $0x50] sm:$0xff] %vm1010, %v5521
      %5614 = vst.msk [vmem:[#allocation3 + $0x68] sm:$0xff] %vm1010, %v5523
      %5615 = vst.msk [vmem:[#allocation3 + $0x80] sm:$0xff] %vm1010, %v5525
      %5616 = vst.msk [vmem:[#allocation3 + $0x98] sm:$0xff] %vm1010, %v5527
      %5617 = vst.msk [vmem:[#allocation3 + $0xb0] sm:$0xff] %vm1010, %v5529
      %5618 = vst.msk [vmem:[#allocation3 + $0xc8] sm:$0xff] %vm1010, %v5531
      %5619 = vst.msk [vmem:[#allocation3 + $0xe0] sm:$0xff] %vm1010, %v5533
      %5620 = vst.msk [vmem:[#allocation3 + $0xf8] sm:$0xff] %vm1010, %v5535
      %5621 = vst.msk [vmem:[#allocation3 + $0x110] sm:$0xff] %vm1010, %v5537
      %5622 = vst.msk [vmem:[#allocation3 + $0x128] sm:$0xff] %vm1010, %v5539
      %5623 = vst.msk [vmem:[#allocation3 + $0x140] sm:$0xff] %vm1010, %v5541
      %5624 = vst.msk [vmem:[#allocation3 + $0x158] sm:$0xff] %vm1010, %v5543
      %5625 = vst.msk [vmem:[#allocation3 + $0x170] sm:$0xff] %vm1010, %v5545
      %5626 = vst.msk [vmem:[#allocation3 + $0x188] sm:$0xff] %vm1010, %v5547
      %5627 = vst.msk [vmem:[#allocation3 + $0x1a0] sm:$0xff] %vm1010, %v5549
      %5628 = vst.msk [vmem:[#allocation3 + $0x1b8] sm:$0xff] %vm1010, %v5551
      %5629 = vst.msk [vmem:[#allocation3 + $0x1d0] sm:$0xff] %vm1010, %v5553
      %5630 = vst.msk [vmem:[#allocation3 + $0x1e8] sm:$0xff] %vm1010, %v5555
      %5631 = vst.msk [vmem:[#allocation3 + $0x200] sm:$0xff] %vm1010, %v5557
      %5632 = vst.msk [vmem:[#allocation3 + $0x218] sm:$0xff] %vm1010, %v5559
      %5633 = vst.msk [vmem:[#allocation3 + $0x230] sm:$0xff] %vm1010, %v5561
      %5634 = vst.msk [vmem:[#allocation3 + $0x248] sm:$0xff] %vm1010, %v5563
      %5635 = vst.msk [vmem:[#allocation3 + $0x260] sm:$0xff] %vm1010, %v5565
      %5636 = vst.msk [vmem:[#allocation3 + $0x278] sm:$0xff] %vm1010, %v5567
      %5637 = vst.msk [vmem:[#allocation3 + $0x290] sm:$0xff] %vm1010, %v5569
      %5638 = vst.msk [vmem:[#allocation3 + $0x2a8] sm:$0xff] %vm1010, %v5571
      %5639 = vst.msk [vmem:[#allocation3 + $0x2c0] sm:$0xff] %vm1010, %v5573
      %5640 = vst.msk [vmem:[#allocation3 + $0x2d8] sm:$0xff] %vm1010, %v5575
      %5641 = vst.msk [vmem:[#allocation3 + $0x2f0] sm:$0xff] %vm1010, %v5577
      %v5642 = vld [vmem:[%s1299 + $0x2] sm:$0xff]
      %v5643 = vld [vmem:[%s1299 + $0xa] sm:$0xff]
      %v5644 = vld [vmem:[%s1299 + $0x1a] sm:$0xff]
      %v5645 = vld [vmem:[%s1299 + $0x22] sm:$0xff]
      %v5646 = vld [vmem:[%s1299 + $0x32] sm:$0xff]
      %v5647 = vld [vmem:[%s1299 + $0x3a] sm:$0xff]
      %v5648 = vld [vmem:[%s1299 + $0x4a] sm:$0xff]
      %v5649 = vld [vmem:[%s1299 + $0x52] sm:$0xff]
      %v5650 = vld [vmem:[%s1299 + $0x62] sm:$0xff]
      %v5651 = vld [vmem:[%s1299 + $0x6a] sm:$0xff]
      %v5652 = vld [vmem:[%s1299 + $0x7a] sm:$0xff]
      %v5653 = vld [vmem:[%s1299 + $0x82] sm:$0xff]
      %v5654 = vld [vmem:[%s1299 + $0x92] sm:$0xff]
      %v5655 = vld [vmem:[%s1299 + $0x9a] sm:$0xff]
      %v5656 = vld [vmem:[%s1299 + $0xaa] sm:$0xff]
      %v5657 = vld [vmem:[%s1299 + $0xb2] sm:$0xff]
      %v5658 = vld [vmem:[%s1299 + $0xc2] sm:$0xff]
      %v5659 = vld [vmem:[%s1299 + $0xca] sm:$0xff]
      %v5660 = vld [vmem:[%s1299 + $0xda] sm:$0xff]
      %v5661 = vld [vmem:[%s1299 + $0xe2] sm:$0xff]
      %v5662 = vld [vmem:[%s1299 + $0xf2] sm:$0xff]
      %v5663 = vld [vmem:[%s1299 + $0xfa] sm:$0xff]
      %v5664 = vld [vmem:[%s1299 + $0x10a] sm:$0xff]
      %v5665 = vld [vmem:[%s1299 + $0x112] sm:$0xff]
      %v5666 = vld [vmem:[%s1299 + $0x122] sm:$0xff]
      %v5667 = vld [vmem:[%s1299 + $0x12a] sm:$0xff]
      %v5668 = vld [vmem:[%s1299 + $0x13a] sm:$0xff]
      %v5669 = vld [vmem:[%s1299 + $0x142] sm:$0xff]
      %v5670 = vld [vmem:[%s1299 + $0x152] sm:$0xff]
      %v5671 = vld [vmem:[%s1299 + $0x15a] sm:$0xff]
      %v5672 = vld [vmem:[%s1299 + $0x16a] sm:$0xff]
      %v5673 = vld [vmem:[%s1299 + $0x172] sm:$0xff]
      %5674 = vst.msk [vmem:[#allocation3 + $0x10] sm:$0xff] %vm279, %v5642
      %5675 = vst.msk [vmem:[#allocation3 + $0x28] sm:$0xff] %vm279, %v5643
      %5676 = vst.msk [vmem:[#allocation3 + $0x40] sm:$0xff] %vm279, %v5644
      %5677 = vst.msk [vmem:[#allocation3 + $0x58] sm:$0xff] %vm279, %v5645
      %5678 = vst.msk [vmem:[#allocation3 + $0x70] sm:$0xff] %vm279, %v5646
      %5679 = vst.msk [vmem:[#allocation3 + $0x88] sm:$0xff] %vm279, %v5647
      %5680 = vst.msk [vmem:[#allocation3 + $0xa0] sm:$0xff] %vm279, %v5648
      %5681 = vst.msk [vmem:[#allocation3 + $0xb8] sm:$0xff] %vm279, %v5649
      %5682 = vst.msk [vmem:[#allocation3 + $0xd0] sm:$0xff] %vm279, %v5650
      %5683 = vst.msk [vmem:[#allocation3 + $0xe8] sm:$0xff] %vm279, %v5651
      %5684 = vst.msk [vmem:[#allocation3 + $0x100] sm:$0xff] %vm279, %v5652
      %5685 = vst.msk [vmem:[#allocation3 + $0x118] sm:$0xff] %vm279, %v5653
      %5686 = vst.msk [vmem:[#allocation3 + $0x130] sm:$0xff] %vm279, %v5654
      %5687 = vst.msk [vmem:[#allocation3 + $0x148] sm:$0xff] %vm279, %v5655
      %5688 = vst.msk [vmem:[#allocation3 + $0x160] sm:$0xff] %vm279, %v5656
      %5689 = vst.msk [vmem:[#allocation3 + $0x178] sm:$0xff] %vm279, %v5657
      %5690 = vst.msk [vmem:[#allocation3 + $0x190] sm:$0xff] %vm279, %v5658
      %5691 = vst.msk [vmem:[#allocation3 + $0x1a8] sm:$0xff] %vm279, %v5659
      %5692 = vst.msk [vmem:[#allocation3 + $0x1c0] sm:$0xff] %vm279, %v5660
      %5693 = vst.msk [vmem:[#allocation3 + $0x1d8] sm:$0xff] %vm279, %v5661
      %5694 = vst.msk [vmem:[#allocation3 + $0x1f0] sm:$0xff] %vm279, %v5662
      %5695 = vst.msk [vmem:[#allocation3 + $0x208] sm:$0xff] %vm279, %v5663
      %5696 = vst.msk [vmem:[#allocation3 + $0x220] sm:$0xff] %vm279, %v5664
      %5697 = vst.msk [vmem:[#allocation3 + $0x238] sm:$0xff] %vm279, %v5665
      %5698 = vst.msk [vmem:[#allocation3 + $0x250] sm:$0xff] %vm279, %v5666
      %5699 = vst.msk [vmem:[#allocation3 + $0x268] sm:$0xff] %vm279, %v5667
      %5700 = vst.msk [vmem:[#allocation3 + $0x280] sm:$0xff] %vm279, %v5668
      %5701 = vst.msk [vmem:[#allocation3 + $0x298] sm:$0xff] %vm279, %v5669
      %5702 = vst.msk [vmem:[#allocation3 + $0x2b0] sm:$0xff] %vm279, %v5670
      %5703 = vst.msk [vmem:[#allocation3 + $0x2c8] sm:$0xff] %vm279, %v5671
      %5704 = vst.msk [vmem:[#allocation3 + $0x2e0] sm:$0xff] %vm279, %v5672
      %5705 = vst.msk [vmem:[#allocation3 + $0x2f8] sm:$0xff] %vm279, %v5673
      %v5706 = vld [vmem:[#allocation3] sm:$0xff]
      %v5707 = vld [vmem:[#allocation3 + $0x8] sm:$0xff]
      %v5708 = vld [vmem:[#allocation3 + $0x10] sm:$0xff]
      %v5709 = vld [vmem:[#allocation3 + $0x18] sm:$0xff]
      %v5710 = vld [vmem:[#allocation3 + $0x20] sm:$0xff]
      %v5711 = vld [vmem:[#allocation3 + $0x28] sm:$0xff]
      %v5712 = vld [vmem:[#allocation3 + $0x30] sm:$0xff]
      %v5713 = vld [vmem:[#allocation3 + $0x38] sm:$0xff]
      %v5714 = vld [vmem:[#allocation3 + $0x40] sm:$0xff]
      %v5715 = vld [vmem:[#allocation3 + $0x48] sm:$0xff]
      %v5716 = vld [vmem:[#allocation3 + $0x50] sm:$0xff]
      %v5717 = vld [vmem:[#allocation3 + $0x58] sm:$0xff]
      %v5718 = vld [vmem:[#allocation3 + $0x60] sm:$0xff]
      %v5719 = vld [vmem:[#allocation3 + $0x68] sm:$0xff]
      %v5720 = vld [vmem:[#allocation3 + $0x70] sm:$0xff]
      %v5721 = vld [vmem:[#allocation3 + $0x78] sm:$0xff]
      %v5722 = vld [vmem:[#allocation3 + $0x80] sm:$0xff]
      %v5723 = vld [vmem:[#allocation3 + $0x88] sm:$0xff]
      %v5724 = vld [vmem:[#allocation3 + $0x90] sm:$0xff]
      %v5725 = vld [vmem:[#allocation3 + $0x98] sm:$0xff]
      %v5726 = vld [vmem:[#allocation3 + $0xa0] sm:$0xff]
      %v5727 = vld [vmem:[#allocation3 + $0xa8] sm:$0xff]
      %v5728 = vld [vmem:[#allocation3 + $0xb0] sm:$0xff]
      %v5729 = vld [vmem:[#allocation3 + $0xb8] sm:$0xff]
      %v5730 = vld [vmem:[#allocation3 + $0xc0] sm:$0xff]
      %v5731 = vld [vmem:[#allocation3 + $0xc8] sm:$0xff]
      %v5732 = vld [vmem:[#allocation3 + $0xd0] sm:$0xff]
      %v5733 = vld [vmem:[#allocation3 + $0xd8] sm:$0xff]
      %v5734 = vld [vmem:[#allocation3 + $0xe0] sm:$0xff]
      %v5735 = vld [vmem:[#allocation3 + $0xe8] sm:$0xff]
      %v5736 = vld [vmem:[#allocation3 + $0xf0] sm:$0xff]
      %v5737 = vld [vmem:[#allocation3 + $0xf8] sm:$0xff]
      %v5738 = vld [vmem:[#allocation3 + $0x100] sm:$0xff]
      %v5739 = vld [vmem:[#allocation3 + $0x108] sm:$0xff]
      %v5740 = vld [vmem:[#allocation3 + $0x110] sm:$0xff]
      %v5741 = vld [vmem:[#allocation3 + $0x118] sm:$0xff]
      %v5742 = vld [vmem:[#allocation3 + $0x120] sm:$0xff]
      %v5743 = vld [vmem:[#allocation3 + $0x128] sm:$0xff]
      %v5744 = vld [vmem:[#allocation3 + $0x130] sm:$0xff]
      %v5745 = vld [vmem:[#allocation3 + $0x138] sm:$0xff]
      %v5746 = vld [vmem:[#allocation3 + $0x140] sm:$0xff]
      %v5747 = vld [vmem:[#allocation3 + $0x148] sm:$0xff]
      %v5748 = vld [vmem:[#allocation3 + $0x150] sm:$0xff]
      %v5749 = vld [vmem:[#allocation3 + $0x158] sm:$0xff]
      %v5750 = vld [vmem:[#allocation3 + $0x160] sm:$0xff]
      %v5751 = vld [vmem:[#allocation3 + $0x168] sm:$0xff]
      %v5752 = vld [vmem:[#allocation3 + $0x170] sm:$0xff]
      %v5753 = vld [vmem:[#allocation3 + $0x178] sm:$0xff]
      %v5754 = vld [vmem:[#allocation3 + $0x180] sm:$0xff]
      %v5755 = vld [vmem:[#allocation3 + $0x188] sm:$0xff]
      %v5756 = vld [vmem:[#allocation3 + $0x190] sm:$0xff]
      %v5757 = vld [vmem:[#allocation3 + $0x198] sm:$0xff]
      %v5758 = vld [vmem:[#allocation3 + $0x1a0] sm:$0xff]
      %v5759 = vld [vmem:[#allocation3 + $0x1a8] sm:$0xff]
      %v5760 = vld [vmem:[#allocation3 + $0x1b0] sm:$0xff]
      %v5761 = vld [vmem:[#allocation3 + $0x1b8] sm:$0xff]
      %v5762 = vld [vmem:[#allocation3 + $0x1c0] sm:$0xff]
      %v5763 = vld [vmem:[#allocation3 + $0x1c8] sm:$0xff]
      %v5764 = vld [vmem:[#allocation3 + $0x1d0] sm:$0xff]
      %v5765 = vld [vmem:[#allocation3 + $0x1d8] sm:$0xff]
      %v5766 = vld [vmem:[#allocation3 + $0x1e0] sm:$0xff]
      %v5767 = vld [vmem:[#allocation3 + $0x1e8] sm:$0xff]
      %v5768 = vld [vmem:[#allocation3 + $0x1f0] sm:$0xff]
      %v5769 = vld [vmem:[#allocation3 + $0x1f8] sm:$0xff]
      %v5770 = vld [vmem:[#allocation3 + $0x200] sm:$0xff]
      %v5771 = vld [vmem:[#allocation3 + $0x208] sm:$0xff]
      %v5772 = vld [vmem:[#allocation3 + $0x210] sm:$0xff]
      %v5773 = vld [vmem:[#allocation3 + $0x218] sm:$0xff]
      %v5774 = vld [vmem:[#allocation3 + $0x220] sm:$0xff]
      %v5775 = vld [vmem:[#allocation3 + $0x228] sm:$0xff]
      %v5776 = vld [vmem:[#allocation3 + $0x230] sm:$0xff]
      %v5777 = vld [vmem:[#allocation3 + $0x238] sm:$0xff]
      %v5778 = vld [vmem:[#allocation3 + $0x240] sm:$0xff]
      %v5779 = vld [vmem:[#allocation3 + $0x248] sm:$0xff]
      %v5780 = vld [vmem:[#allocation3 + $0x250] sm:$0xff]
      %v5781 = vld [vmem:[#allocation3 + $0x258] sm:$0xff]
      %v5782 = vld [vmem:[#allocation3 + $0x260] sm:$0xff]
      %v5783 = vld [vmem:[#allocation3 + $0x268] sm:$0xff]
      %v5784 = vld [vmem:[#allocation3 + $0x270] sm:$0xff]
      %v5785 = vld [vmem:[#allocation3 + $0x278] sm:$0xff]
      %v5786 = vld [vmem:[#allocation3 + $0x280] sm:$0xff]
      %v5787 = vld [vmem:[#allocation3 + $0x288] sm:$0xff]
      %v5788 = vld [vmem:[#allocation3 + $0x290] sm:$0xff]
      %v5789 = vld [vmem:[#allocation3 + $0x298] sm:$0xff]
      %v5790 = vld [vmem:[#allocation3 + $0x2a0] sm:$0xff]
      %v5791 = vld [vmem:[#allocation3 + $0x2a8] sm:$0xff]
      %v5792 = vld [vmem:[#allocation3 + $0x2b0] sm:$0xff]
      %v5793 = vld [vmem:[#allocation3 + $0x2b8] sm:$0xff]
      %v5794 = vld [vmem:[#allocation3 + $0x2c0] sm:$0xff]
      %v5795 = vld [vmem:[#allocation3 + $0x2c8] sm:$0xff]
      %v5796 = vld [vmem:[#allocation3 + $0x2d0] sm:$0xff]
      %v5797 = vld [vmem:[#allocation3 + $0x2d8] sm:$0xff]
      %v5798 = vld [vmem:[#allocation3 + $0x2e0] sm:$0xff]
      %v5799 = vld [vmem:[#allocation3 + $0x2e8] sm:$0xff]
      %v5800 = vld [vmem:[#allocation3 + $0x2f0] sm:$0xff]
      %v5801 = vld [vmem:[#allocation3 + $0x2f8] sm:$0xff]
      %v5802 = vld [vmem:[%s3] sm:$0xff]
      %v5803 = vld [vmem:[%s3 + $0x8] sm:$0xff]
      %v5804 = vld [vmem:[%s3 + $0x10] sm:$0xff]
      %v5805 = vld [vmem:[%s3 + $0x18] sm:$0xff]
      %v5806 = vld [vmem:[%s3 + $0x20] sm:$0xff]
      %v5807 = vld [vmem:[%s3 + $0x28] sm:$0xff]
      %v5808 = vld [vmem:[%s3 + $0x30] sm:$0xff]
      %v5809 = vld [vmem:[%s3 + $0x38] sm:$0xff]
      %v5810 = vld [vmem:[%s3 + $0x40] sm:$0xff]
      %v5811 = vld [vmem:[%s3 + $0x48] sm:$0xff]
      %v5812 = vld [vmem:[%s3 + $0x50] sm:$0xff]
      %v5813 = vld [vmem:[%s3 + $0x58] sm:$0xff]
      %v5814 = vld [vmem:[%s3 + $0x60] sm:$0xff]
      %v5815 = vld [vmem:[%s3 + $0x68] sm:$0xff]
      %v5816 = vld [vmem:[%s3 + $0x70] sm:$0xff]
      %v5817 = vld [vmem:[%s3 + $0x78] sm:$0xff]
      %v5818 = vld [vmem:[%s3 + $0x80] sm:$0xff]
      %v5819 = vld [vmem:[%s3 + $0x88] sm:$0xff]
      %v5820 = vld [vmem:[%s3 + $0x90] sm:$0xff]
      %v5821 = vld [vmem:[%s3 + $0x98] sm:$0xff]
      %v5822 = vld [vmem:[%s3 + $0xa0] sm:$0xff]
      %v5823 = vld [vmem:[%s3 + $0xa8] sm:$0xff]
      %v5824 = vld [vmem:[%s3 + $0xb0] sm:$0xff]
      %v5825 = vld [vmem:[%s3 + $0xb8] sm:$0xff]
      %v5826 = vld [vmem:[%s3 + $0xc0] sm:$0xff]
      %v5827 = vld [vmem:[%s3 + $0xc8] sm:$0xff]
      %v5828 = vld [vmem:[%s3 + $0xd0] sm:$0xff]
      %v5829 = vld [vmem:[%s3 + $0xd8] sm:$0xff]
      %v5830 = vld [vmem:[%s3 + $0xe0] sm:$0xff]
      %v5831 = vld [vmem:[%s3 + $0xe8] sm:$0xff]
      %v5832 = vld [vmem:[%s3 + $0xf0] sm:$0xff]
      %v5833 = vld [vmem:[%s3 + $0xf8] sm:$0xff]
      %v5834 = vld [vmem:[%s3 + $0x100] sm:$0xff]
      %v5835 = vld [vmem:[%s3 + $0x108] sm:$0xff]
      %v5836 = vld [vmem:[%s3 + $0x110] sm:$0xff]
      %v5837 = vld [vmem:[%s3 + $0x118] sm:$0xff]
      %v5838 = vld [vmem:[%s6] sm:$0x1]
      %v5840 = vperm.slane %v5838, 0
      %v5843 = vsel %vm279, %v5708, 0
      %v5846 = vsel %vm279, %v5711, 0
      %v5849 = vsel %vm279, %v5714, 0
      %v5852 = vsel %vm279, %v5717, 0
      %v5855 = vsel %vm279, %v5720, 0
      %v5858 = vsel %vm279, %v5723, 0
      %v5861 = vsel %vm279, %v5726, 0
      %v5864 = vsel %vm279, %v5729, 0
      %v5867 = vsel %vm279, %v5732, 0
      %v5870 = vsel %vm279, %v5735, 0
      %v5873 = vsel %vm279, %v5738, 0
      %v5876 = vsel %vm279, %v5741, 0
      %v5879 = vsel %vm279, %v5744, 0
      %v5882 = vsel %vm279, %v5747, 0
      %v5885 = vsel %vm279, %v5750, 0
      %v5888 = vsel %vm279, %v5753, 0
      %v5891 = vsel %vm279, %v5756, 0
      %v5894 = vsel %vm279, %v5759, 0
      %v5897 = vsel %vm279, %v5762, 0
      %v5900 = vsel %vm279, %v5765, 0
      %v5903 = vsel %vm279, %v5768, 0
      %v5906 = vsel %vm279, %v5771, 0
      %v5909 = vsel %vm279, %v5774, 0
      %v5912 = vsel %vm279, %v5777, 0
      %v5915 = vsel %vm279, %v5780, 0
      %v5918 = vsel %vm279, %v5783, 0
      %v5921 = vsel %vm279, %v5786, 0
      %v5924 = vsel %vm279, %v5789, 0
      %v5927 = vsel %vm279, %v5792, 0
      %v5930 = vsel %vm279, %v5795, 0
      %v5933 = vsel %vm279, %v5798, 0
      %v5936 = vsel %vm279, %v5801, 0
      %5938 = vmatpush.msra.mxu0 %v5817
      %5939 = vmatpush.msra.mxu0 %v5816
      %5940 = vmatpush.msra.mxu0 %v5815
      %5941 = vmatpush.msra.mxu0 %v5814
      %5942 = vmatpush.msra.mxu0 %v5813
      %5943 = vmatpush.msra.mxu0 %v5812
      %5944 = vmatpush.msra.mxu0 %v5811
      %5945 = vmatpush.msra.mxu0 %v5810
      %5946 = vmatpush.msra.mxu0 %v5809
      %5947 = vmatpush.msra.mxu0 %v5808
      %5948 = vmatpush.msra.mxu0 %v5807
      %5949 = vmatpush.msra.mxu0 %v5806
      %5950 = vmatpush.msra.mxu0 %v5805
      %5951 = vmatpush.msra.mxu0 %v5804
      %5952 = vmatpush.msra.mxu0 %v5803
      %5953 = vmatpush.msra.mxu0 %v5802
      %5954 = vmatmul.f32.gmra.mxu0 %v5706
      %v5955 = vpop.f32.mrf.mxu0
      %v5956 = vadd.f32 %v5840, %v5955
      %5957 = vmatmul.f32.gmra.mxu0 %v5709
      %v5958 = vpop.f32.mrf.mxu0
      %v5959 = vadd.f32 %v5840, %v5958
      %5960 = vmatmul.f32.gmra.mxu0 %v5712
      %v5961 = vpop.f32.mrf.mxu0
      %v5962 = vadd.f32 %v5840, %v5961
      %5963 = vmatmul.f32.gmra.mxu0 %v5715
      %v5964 = vpop.f32.mrf.mxu0
      %v5965 = vadd.f32 %v5840, %v5964
      %5966 = vmatmul.f32.gmra.mxu0 %v5718
      %v5967 = vpop.f32.mrf.mxu0
      %v5968 = vadd.f32 %v5840, %v5967
      %5969 = vmatmul.f32.gmra.mxu0 %v5721
      %v5970 = vpop.f32.mrf.mxu0
      %v5971 = vadd.f32 %v5840, %v5970
      %5972 = vmatmul.f32.gmra.mxu0 %v5724
      %v5973 = vpop.f32.mrf.mxu0
      %v5974 = vadd.f32 %v5840, %v5973
      %5975 = vmatmul.f32.gmra.mxu0 %v5727
      %v5976 = vpop.f32.mrf.mxu0
      %v5977 = vadd.f32 %v5840, %v5976
      %5978 = vmatmul.f32.gmra.mxu0 %v5730
      %v5979 = vpop.f32.mrf.mxu0
      %v5980 = vadd.f32 %v5840, %v5979
      %5981 = vmatmul.f32.gmra.mxu0 %v5733
      %v5982 = vpop.f32.mrf.mxu0
      %v5983 = vadd.f32 %v5840, %v5982
      %5984 = vmatmul.f32.gmra.mxu0 %v5736
      %v5985 = vpop.f32.mrf.mxu0
      %v5986 = vadd.f32 %v5840, %v5985
      %5987 = vmatmul.f32.gmra.mxu0 %v5739
      %v5988 = vpop.f32.mrf.mxu0
      %v5989 = vadd.f32 %v5840, %v5988
      %5990 = vmatmul.f32.gmra.mxu0 %v5742
      %v5991 = vpop.f32.mrf.mxu0
      %v5992 = vadd.f32 %v5840, %v5991
      %5993 = vmatmul.f32.gmra.mxu0 %v5745
      %v5994 = vpop.f32.mrf.mxu0
      %v5995 = vadd.f32 %v5840, %v5994
      %5996 = vmatmul.f32.gmra.mxu0 %v5748
      %v5997 = vpop.f32.mrf.mxu0
      %v5998 = vadd.f32 %v5840, %v5997
      %5999 = vmatmul.f32.gmra.mxu0 %v5751
      %v6000 = vpop.f32.mrf.mxu0
      %v6001 = vadd.f32 %v5840, %v6000
      %6002 = vmatmul.f32.gmra.mxu0 %v5754
      %v6003 = vpop.f32.mrf.mxu0
      %v6004 = vadd.f32 %v5840, %v6003
      %6005 = vmatmul.f32.gmra.mxu0 %v5757
      %v6006 = vpop.f32.mrf.mxu0
      %v6007 = vadd.f32 %v5840, %v6006
      %6008 = vmatmul.f32.gmra.mxu0 %v5760
      %v6009 = vpop.f32.mrf.mxu0
      %v6010 = vadd.f32 %v5840, %v6009
      %6011 = vmatmul.f32.gmra.mxu0 %v5763
      %v6012 = vpop.f32.mrf.mxu0
      %v6013 = vadd.f32 %v5840, %v6012
      %6014 = vmatmul.f32.gmra.mxu0 %v5766
      %v6015 = vpop.f32.mrf.mxu0
      %v6016 = vadd.f32 %v5840, %v6015
      %6017 = vmatmul.f32.gmra.mxu0 %v5769
      %v6018 = vpop.f32.mrf.mxu0
      %v6019 = vadd.f32 %v5840, %v6018
      %6020 = vmatmul.f32.gmra.mxu0 %v5772
      %v6021 = vpop.f32.mrf.mxu0
      %v6022 = vadd.f32 %v5840, %v6021
      %6023 = vmatmul.f32.gmra.mxu0 %v5775
      %v6024 = vpop.f32.mrf.mxu0
      %v6025 = vadd.f32 %v5840, %v6024
      %6026 = vmatmul.f32.gmra.mxu0 %v5778
      %v6027 = vpop.f32.mrf.mxu0
      %v6028 = vadd.f32 %v5840, %v6027
      %6029 = vmatmul.f32.gmra.mxu0 %v5781
      %v6030 = vpop.f32.mrf.mxu0
      %v6031 = vadd.f32 %v5840, %v6030
      %6032 = vmatmul.f32.gmra.mxu0 %v5784
      %v6033 = vpop.f32.mrf.mxu0
      %v6034 = vadd.f32 %v5840, %v6033
      %6035 = vmatmul.f32.gmra.mxu0 %v5787
      %v6036 = vpop.f32.mrf.mxu0
      %v6037 = vadd.f32 %v5840, %v6036
      %6038 = vmatmul.f32.gmra.mxu0 %v5790
      %v6039 = vpop.f32.mrf.mxu0
      %v6040 = vadd.f32 %v5840, %v6039
      %6041 = vmatmul.f32.gmra.mxu0 %v5793
      %v6042 = vpop.f32.mrf.mxu0
      %v6043 = vadd.f32 %v5840, %v6042
      %6044 = vmatmul.f32.gmra.mxu0 %v5796
      %v6045 = vpop.f32.mrf.mxu0
      %v6046 = vadd.f32 %v5840, %v6045
      %6047 = vmatmul.f32.gmra.mxu0 %v5799
      %v6048 = vpop.f32.mrf.mxu0
      %v6049 = vadd.f32 %v5840, %v6048
      %6050 = vdwg.mxu0
      %6051 = vmatpush.msra.mxu0 %v5833
      %6052 = vmatpush.msra.mxu0 %v5832
      %6053 = vmatpush.msra.mxu0 %v5831
      %6054 = vmatpush.msra.mxu0 %v5830
      %6055 = vmatpush.msra.mxu0 %v5829
      %6056 = vmatpush.msra.mxu0 %v5828
      %6057 = vmatpush.msra.mxu0 %v5827
      %6058 = vmatpush.msra.mxu0 %v5826
      %6059 = vmatpush.msra.mxu0 %v5825
      %6060 = vmatpush.msra.mxu0 %v5824
      %6061 = vmatpush.msra.mxu0 %v5823
      %6062 = vmatpush.msra.mxu0 %v5822
      %6063 = vmatpush.msra.mxu0 %v5821
      %6064 = vmatpush.msra.mxu0 %v5820
      %6065 = vmatpush.msra.mxu0 %v5819
      %6066 = vmatpush.msra.mxu0 %v5818
      %6067 = vmatmul.f32.gmra.mxu0 %v5707
      %v6068 = vpop.f32.mrf.mxu0
      %v6069 = vadd.f32 %v5956, %v6068
      %6070 = vmatmul.f32.gmra.mxu0 %v5710
      %v6071 = vpop.f32.mrf.mxu0
      %v6072 = vadd.f32 %v5959, %v6071
      %6073 = vmatmul.f32.gmra.mxu0 %v5713
      %v6074 = vpop.f32.mrf.mxu0
      %v6075 = vadd.f32 %v5962, %v6074
      %6076 = vmatmul.f32.gmra.mxu0 %v5716
      %v6077 = vpop.f32.mrf.mxu0
      %v6078 = vadd.f32 %v5965, %v6077
      %6079 = vmatmul.f32.gmra.mxu0 %v5719
      %v6080 = vpop.f32.mrf.mxu0
      %v6081 = vadd.f32 %v5968, %v6080
      %6082 = vmatmul.f32.gmra.mxu0 %v5722
      %v6083 = vpop.f32.mrf.mxu0
      %v6084 = vadd.f32 %v5971, %v6083
      %6085 = vmatmul.f32.gmra.mxu0 %v5725
      %v6086 = vpop.f32.mrf.mxu0
      %v6087 = vadd.f32 %v5974, %v6086
      %6088 = vmatmul.f32.gmra.mxu0 %v5728
      %v6089 = vpop.f32.mrf.mxu0
      %v6090 = vadd.f32 %v5977, %v6089
      %6091 = vmatmul.f32.gmra.mxu0 %v5731
      %v6092 = vpop.f32.mrf.mxu0
      %v6093 = vadd.f32 %v5980, %v6092
      %6094 = vmatmul.f32.gmra.mxu0 %v5734
      %v6095 = vpop.f32.mrf.mxu0
      %v6096 = vadd.f32 %v5983, %v6095
      %6097 = vmatmul.f32.gmra.mxu0 %v5737
      %v6098 = vpop.f32.mrf.mxu0
      %v6099 = vadd.f32 %v5986, %v6098
      %6100 = vmatmul.f32.gmra.mxu0 %v5740
      %v6101 = vpop.f32.mrf.mxu0
      %v6102 = vadd.f32 %v5989, %v6101
      %6103 = vmatmul.f32.gmra.mxu0 %v5743
      %v6104 = vpop.f32.mrf.mxu0
      %v6105 = vadd.f32 %v5992, %v6104
      %6106 = vmatmul.f32.gmra.mxu0 %v5746
      %v6107 = vpop.f32.mrf.mxu0
      %v6108 = vadd.f32 %v5995, %v6107
      %6109 = vmatmul.f32.gmra.mxu0 %v5749
      %v6110 = vpop.f32.mrf.mxu0
      %v6111 = vadd.f32 %v5998, %v6110
      %6112 = vmatmul.f32.gmra.mxu0 %v5752
      %v6113 = vpop.f32.mrf.mxu0
      %v6114 = vadd.f32 %v6001, %v6113
      %6115 = vmatmul.f32.gmra.mxu0 %v5755
      %v6116 = vpop.f32.mrf.mxu0
      %v6117 = vadd.f32 %v6004, %v6116
      %6118 = vmatmul.f32.gmra.mxu0 %v5758
      %v6119 = vpop.f32.mrf.mxu0
      %v6120 = vadd.f32 %v6007, %v6119
      %6121 = vmatmul.f32.gmra.mxu0 %v5761
      %v6122 = vpop.f32.mrf.mxu0
      %v6123 = vadd.f32 %v6010, %v6122
      %6124 = vmatmul.f32.gmra.mxu0 %v5764
      %v6125 = vpop.f32.mrf.mxu0
      %v6126 = vadd.f32 %v6013, %v6125
      %6127 = vmatmul.f32.gmra.mxu0 %v5767
      %v6128 = vpop.f32.mrf.mxu0
      %v6129 = vadd.f32 %v6016, %v6128
      %6130 = vmatmul.f32.gmra.mxu0 %v5770
      %v6131 = vpop.f32.mrf.mxu0
      %v6132 = vadd.f32 %v6019, %v6131
      %6133 = vmatmul.f32.gmra.mxu0 %v5773
      %v6134 = vpop.f32.mrf.mxu0
      %v6135 = vadd.f32 %v6022, %v6134
      %6136 = vmatmul.f32.gmra.mxu0 %v5776
      %v6137 = vpop.f32.mrf.mxu0
      %v6138 = vadd.f32 %v6025, %v6137
      %6139 = vmatmul.f32.gmra.mxu0 %v5779
      %v6140 = vpop.f32.mrf.mxu0
      %v6141 = vadd.f32 %v6028, %v6140
      %6142 = vmatmul.f32.gmra.mxu0 %v5782
      %v6143 = vpop.f32.mrf.mxu0
      %v6144 = vadd.f32 %v6031, %v6143
      %6145 = vmatmul.f32.gmra.mxu0 %v5785
      %v6146 = vpop.f32.mrf.mxu0
      %v6147 = vadd.f32 %v6034, %v6146
      %6148 = vmatmul.f32.gmra.mxu0 %v5788
      %v6149 = vpop.f32.mrf.mxu0
      %v6150 = vadd.f32 %v6037, %v6149
      %6151 = vmatmul.f32.gmra.mxu0 %v5791
      %v6152 = vpop.f32.mrf.mxu0
      %v6153 = vadd.f32 %v6040, %v6152
      %6154 = vmatmul.f32.gmra.mxu0 %v5794
      %v6155 = vpop.f32.mrf.mxu0
      %v6156 = vadd.f32 %v6043, %v6155
      %6157 = vmatmul.f32.gmra.mxu0 %v5797
      %v6158 = vpop.f32.mrf.mxu0
      %v6159 = vadd.f32 %v6046, %v6158
      %6160 = vmatmul.f32.gmra.mxu0 %v5800
      %v6161 = vpop.f32.mrf.mxu0
      %v6162 = vadd.f32 %v6049, %v6161
      %6163 = vdwg.mxu0
      %6164 = vmatpush.msra.mxu0 0.0
      %6165 = vmatpush.msra.mxu0 0.0
      %6166 = vmatpush.msra.mxu0 0.0
      %6167 = vmatpush.msra.mxu0 0.0
      %6168 = vmatpush.msra.mxu0 0.0
      %6169 = vmatpush.msra.mxu0 0.0
      %6170 = vmatpush.msra.mxu0 0.0
      %6171 = vmatpush.msra.mxu0 0.0
      %6172 = vmatpush.msra.mxu0 0.0
      %6173 = vmatpush.msra.mxu0 0.0
      %6174 = vmatpush.msra.mxu0 0.0
      %6175 = vmatpush.msra.mxu0 0.0
      %6176 = vmatpush.msra.mxu0 %v5837
      %6177 = vmatpush.msra.mxu0 %v5836
      %6178 = vmatpush.msra.mxu0 %v5835
      %6179 = vmatpush.msra.mxu0 %v5834
      %6180 = vmatmul.f32.gmra.mxu0 %v5843
      %v6181 = vpop.f32.mrf.mxu0
      %v6182 = vadd.f32 %v6069, %v6181
      %6183 = vmatmul.f32.gmra.mxu0 %v5846
      %v6184 = vpop.f32.mrf.mxu0
      %v6185 = vadd.f32 %v6072, %v6184
      %6186 = vmatmul.f32.gmra.mxu0 %v5849
      %v6187 = vpop.f32.mrf.mxu0
      %v6188 = vadd.f32 %v6075, %v6187
      %6189 = vmatmul.f32.gmra.mxu0 %v5852
      %v6190 = vpop.f32.mrf.mxu0
      %v6191 = vadd.f32 %v6078, %v6190
      %6192 = vmatmul.f32.gmra.mxu0 %v5855
      %v6193 = vpop.f32.mrf.mxu0
      %v6194 = vadd.f32 %v6081, %v6193
      %6195 = vmatmul.f32.gmra.mxu0 %v5858
      %v6196 = vpop.f32.mrf.mxu0
      %v6197 = vadd.f32 %v6084, %v6196
      %6198 = vmatmul.f32.gmra.mxu0 %v5861
      %v6199 = vpop.f32.mrf.mxu0
      %v6200 = vadd.f32 %v6087, %v6199
      %6201 = vmatmul.f32.gmra.mxu0 %v5864
      %v6202 = vpop.f32.mrf.mxu0
      %v6203 = vadd.f32 %v6090, %v6202
      %6204 = vmatmul.f32.gmra.mxu0 %v5867
      %v6205 = vpop.f32.mrf.mxu0
      %v6206 = vadd.f32 %v6093, %v6205
      %6207 = vmatmul.f32.gmra.mxu0 %v5870
      %v6208 = vpop.f32.mrf.mxu0
      %v6209 = vadd.f32 %v6096, %v6208
      %6210 = vmatmul.f32.gmra.mxu0 %v5873
      %v6211 = vpop.f32.mrf.mxu0
      %v6212 = vadd.f32 %v6099, %v6211
      %6213 = vmatmul.f32.gmra.mxu0 %v5876
      %v6214 = vpop.f32.mrf.mxu0
      %v6215 = vadd.f32 %v6102, %v6214
      %6216 = vmatmul.f32.gmra.mxu0 %v5879
      %v6217 = vpop.f32.mrf.mxu0
      %v6218 = vadd.f32 %v6105, %v6217
      %6219 = vmatmul.f32.gmra.mxu0 %v5882
      %v6220 = vpop.f32.mrf.mxu0
      %v6221 = vadd.f32 %v6108, %v6220
      %6222 = vmatmul.f32.gmra.mxu0 %v5885
      %v6223 = vpop.f32.mrf.mxu0
      %v6224 = vadd.f32 %v6111, %v6223
      %6225 = vmatmul.f32.gmra.mxu0 %v5888
      %v6226 = vpop.f32.mrf.mxu0
      %v6227 = vadd.f32 %v6114, %v6226
      %6228 = vmatmul.f32.gmra.mxu0 %v5891
      %v6229 = vpop.f32.mrf.mxu0
      %v6230 = vadd.f32 %v6117, %v6229
      %6231 = vmatmul.f32.gmra.mxu0 %v5894
      %v6232 = vpop.f32.mrf.mxu0
      %v6233 = vadd.f32 %v6120, %v6232
      %6234 = vmatmul.f32.gmra.mxu0 %v5897
      %v6235 = vpop.f32.mrf.mxu0
      %v6236 = vadd.f32 %v6123, %v6235
      %6237 = vmatmul.f32.gmra.mxu0 %v5900
      %v6238 = vpop.f32.mrf.mxu0
      %v6239 = vadd.f32 %v6126, %v6238
      %6240 = vmatmul.f32.gmra.mxu0 %v5903
      %v6241 = vpop.f32.mrf.mxu0
      %v6242 = vadd.f32 %v6129, %v6241
      %6243 = vmatmul.f32.gmra.mxu0 %v5906
      %v6244 = vpop.f32.mrf.mxu0
      %v6245 = vadd.f32 %v6132, %v6244
      %6246 = vmatmul.f32.gmra.mxu0 %v5909
      %v6247 = vpop.f32.mrf.mxu0
      %v6248 = vadd.f32 %v6135, %v6247
      %6249 = vmatmul.f32.gmra.mxu0 %v5912
      %v6250 = vpop.f32.mrf.mxu0
      %v6251 = vadd.f32 %v6138, %v6250
      %6252 = vmatmul.f32.gmra.mxu0 %v5915
      %v6253 = vpop.f32.mrf.mxu0
      %v6254 = vadd.f32 %v6141, %v6253
      %6255 = vmatmul.f32.gmra.mxu0 %v5918
      %v6256 = vpop.f32.mrf.mxu0
      %v6257 = vadd.f32 %v6144, %v6256
      %6258 = vmatmul.f32.gmra.mxu0 %v5921
      %v6259 = vpop.f32.mrf.mxu0
      %v6260 = vadd.f32 %v6147, %v6259
      %6261 = vmatmul.f32.gmra.mxu0 %v5924
      %v6262 = vpop.f32.mrf.mxu0
      %v6263 = vadd.f32 %v6150, %v6262
      %6264 = vmatmul.f32.gmra.mxu0 %v5927
      %v6265 = vpop.f32.mrf.mxu0
      %v6266 = vadd.f32 %v6153, %v6265
      %6267 = vmatmul.f32.gmra.mxu0 %v5930
      %v6268 = vpop.f32.mrf.mxu0
      %v6269 = vadd.f32 %v6156, %v6268
      %6270 = vmatmul.f32.gmra.mxu0 %v5933
      %v6271 = vpop.f32.mrf.mxu0
      %v6272 = vadd.f32 %v6159, %v6271
      %6273 = vmatmul.f32.gmra.mxu0 %v5936
      %v6274 = vpop.f32.mrf.mxu0
      %v6275 = vadd.f32 %v6162, %v6274
      %6276 = vdwg.mxu0
      %vm6277 = vcmask 64512
      %6278 = vst.msk [vmem:[%s278] sm:$0xff] %vm6277, %v6182
      %6279 = vst.msk [vmem:[%s278 + $0x8] sm:$0xff] %vm6277, %v6185
      %6280 = vst.msk [vmem:[%s278 + $0x10] sm:$0xff] %vm6277, %v6188
      %6281 = vst.msk [vmem:[%s278 + $0x18] sm:$0xff] %vm6277, %v6191
      %6282 = vst.msk [vmem:[%s278 + $0x20] sm:$0xff] %vm6277, %v6194
      %6283 = vst.msk [vmem:[%s278 + $0x28] sm:$0xff] %vm6277, %v6197
      %6284 = vst.msk [vmem:[%s278 + $0x30] sm:$0xff] %vm6277, %v6200
      %6285 = vst.msk [vmem:[%s278 + $0x38] sm:$0xff] %vm6277, %v6203
      %6286 = vst.msk [vmem:[%s278 + $0x40] sm:$0xff] %vm6277, %v6206
      %6287 = vst.msk [vmem:[%s278 + $0x48] sm:$0xff] %vm6277, %v6209
      %6288 = vst.msk [vmem:[%s278 + $0x50] sm:$0xff] %vm6277, %v6212
      %6289 = vst.msk [vmem:[%s278 + $0x58] sm:$0xff] %vm6277, %v6215
      %6290 = vst.msk [vmem:[%s278 + $0x60] sm:$0xff] %vm6277, %v6218
      %6291 = vst.msk [vmem:[%s278 + $0x68] sm:$0xff] %vm6277, %v6221
      %6292 = vst.msk [vmem:[%s278 + $0x70] sm:$0xff] %vm6277, %v6224
      %6293 = vst.msk [vmem:[%s278 + $0x78] sm:$0xff] %vm6277, %v6227
      %6294 = vst.msk [vmem:[%s278 + $0x80] sm:$0xff] %vm6277, %v6230
      %6295 = vst.msk [vmem:[%s278 + $0x88] sm:$0xff] %vm6277, %v6233
      %6296 = vst.msk [vmem:[%s278 + $0x90] sm:$0xff] %vm6277, %v6236
      %6297 = vst.msk [vmem:[%s278 + $0x98] sm:$0xff] %vm6277, %v6239
      %6298 = vst.msk [vmem:[%s278 + $0xa0] sm:$0xff] %vm6277, %v6242
      %6299 = vst.msk [vmem:[%s278 + $0xa8] sm:$0xff] %vm6277, %v6245
      %6300 = vst.msk [vmem:[%s278 + $0xb0] sm:$0xff] %vm6277, %v6248
      %6301 = vst.msk [vmem:[%s278 + $0xb8] sm:$0xff] %vm6277, %v6251
      %6302 = vst.msk [vmem:[%s278 + $0xc0] sm:$0xff] %vm6277, %v6254
      %6303 = vst.msk [vmem:[%s278 + $0xc8] sm:$0xff] %vm6277, %v6257
      %6304 = vst.msk [vmem:[%s278 + $0xd0] sm:$0xff] %vm6277, %v6260
      %6305 = vst.msk [vmem:[%s278 + $0xd8] sm:$0xff] %vm6277, %v6263
      %6306 = vst.msk [vmem:[%s278 + $0xe0] sm:$0xff] %vm6277, %v6266
      %6307 = vst.msk [vmem:[%s278 + $0xe8] sm:$0xff] %vm6277, %v6269
      %6308 = vst.msk [vmem:[%s278 + $0xf0] sm:$0xff] %vm6277, %v6272
      %6309 = vst.msk [vmem:[%s278 + $0xf8] sm:$0xff] %vm6277, %v6275
      %p6310 = scmp.lt.s32.totalorder %s18, 1
      %s6311 = scalar_select %p6310, %s18, 1
      %s6312 = smul.addr %s6311, 32
      %s6313 = smul.addr %s6312, 8
      %s6314 = scalar_lea.vmem %s7, %s6313
      // Predicated region
      $region49: #{_forward.1} parent=47 // pred_check
        %p6315 = pneg %p188
      $region50: #{_forward.1} parent=47 // pred_check_branch
        %6317 = sbr.rel (%p6315) target = $region52
      $region51: #{_forward.1} parent=47 // pred_region
        _
      $region52: #{_forward.1} parent=47 // pred_fallthru
        _
    $region48: #{_forward.1} parent=5 // pred_fallthru
      _
    %p6318 = scmp.le.s32.totalorder 2, %s13
    // Predicated region
    $region53: #{_forward.1} parent=5 // pred_check
      %p6319 = pneg %p6318
    $region54: #{_forward.1} parent=5 // pred_check_branch
      %6321 = sbr.rel (%p6319) target = $region56
    $region55: #{_forward.1} parent=5 // pred_region
      %s6322 = ssub.s32 %s13, 2
      // Predicated region
      $region57: #{_forward.1} parent=55 // pred_check
        %p6323 = pneg %p194
      $region58: #{_forward.1} parent=55 // pred_check_branch
        %6325 = sbr.rel (%p6323) target = $region60
      $region59: #{_forward.1} parent=55 // pred_region
        %p6326 = scmp.lt.s32.totalorder %s19, 1
        %s6327 = scalar_select %p6326, %s19, 1
        %s6328 = smul.addr %s6327, 32
        %s6329 = smul.addr %s6328, 8
        %s6330 = scalar_lea.vmem %s7, %s6329
      $region60: #{_forward.1} parent=55 // pred_fallthru
        _
    $region56: #{_forward.1} parent=5 // pred_fallthru
      _
  $region6: #{_forward.1} parent=0 // loop_footer
    %s17 = sadd.s32 1, %s13
  $region7: #{_forward.1} parent=0 // loop_footer_branch
    %12 = sbr.rel target = $region3
  $region8: #{_forward.1} parent=0 // loop_exit
    _

</llo_original>
